<compile_context>
chip_gen: v5e
topology: v5e:2x2
jax: 0.10.0
libtpu: 0.0.40
codegen_flags: <defaults>
</compile_context>

<pallas_src>
import math

import jax
import jax.numpy as jnp
from jax.experimental import pallas as pl
from jax.experimental.pallas import tpu as pltpu

LN_EPS = 1e-5       # nn.LayerNorm default
NORM_EPS = 1e-12    # avoids 0/0 in row L2 normalization


def _make_fused_kernel(num_layers, weight_p, inv_temp):
    """Builds the fully fused LLaVA_CLIP forward kernel (weight_p, 1/temp baked in)."""
    inv_sqrt2 = 1.0 / math.sqrt(2.0)
    wp = float(weight_p)
    it_ = float(inv_temp)

    def _layernorm(s, g, b):                       # fp32 stats
        mu = jnp.mean(s, axis=-1, keepdims=True)
        var = jnp.mean((s - mu) ** 2, axis=-1, keepdims=True)
        return (s - mu) * jax.lax.rsqrt(var + LN_EPS) * g + b

    def _row_l2n(x):                               # x * rsqrt(sum x^2) — EUP rsqrt
        return x * jax.lax.rsqrt(jnp.sum(x * x, axis=-1, keepdims=True) + NORM_EPS)

    def kernel(*refs):
        it = iter(refs)
        scal_ref = next(it)        # SMEM (2,): exp(logit_scale_CLIP), exp(logit_scale_LLaVA)
        labels_ref = next(it)      # (B, 1) int32
        emb_ref = next(it)         # (B, 768) f32
        img_ref = next(it)         # (B, 512) f32
        zwt_ref = next(it)         # (C, 512) f32   (zeroshot_weights.T, done in wrapper)
        mlp = [tuple(next(it) for _ in range(6)) for _ in range(num_layers)]
        pi = tuple(next(it) for _ in range(4))     # proj_img: w1, w2, gamma, beta
        pt = tuple(next(it) for _ in range(4))     # proj_txt: w1, w2, gamma, beta
        o_ref = next(it)                           # (B, 128) f32 packed output

        ls_clip = scal_ref[0]
        ls_llava = scal_ref[1]

        # ---- CLIP image features, L2 normalized (encoder output provided as input) ----
        img_n = _row_l2n(img_ref[...])             # (B, 512) fp32

        # ---- description_encoder: MLP of QuickGELU residual blocks ----
        x = emb_ref[...]                           # fp32
        for (w1, b1, w2, b2, g, bb) in mlp:
            e1 = jnp.dot(x.astype(jnp.bfloat16), w1[...],
                         preferred_element_type=jnp.float32) + b1[...]
            h = e1 * jax.nn.sigmoid(1.702 * e1)    # QuickGELU
            e2 = jnp.dot(h.astype(jnp.bfloat16), w2[...],
                         preferred_element_type=jnp.float32) + b2[...]
            x = _layernorm(e1 + e2, g[...], bb[...])
        desc_n = _row_l2n(x)                       # (B, 512) fp32

        # ---- Projection heads (bias-free linears, exact erf GELU, LayerNorm) ----
        def proj_head(inp, w1, w2, g, bb):
            e1 = jnp.dot(inp.astype(jnp.bfloat16), w1[...],
                         preferred_element_type=jnp.float32)
            h = 0.5 * e1 * (1.0 + jax.lax.erf(e1 * inv_sqrt2))         # exact GELU
            e2 = jnp.dot(h.astype(jnp.bfloat16), w2[...],
                         preferred_element_type=jnp.float32)
            return _layernorm(e1 + e2, g[...], bb[...])

        p_img = proj_head(img_n, *pi)                                   # (B, 512) fp32
        p_txt = proj_head(zwt_ref[...], *pt)                            # (C, 512) fp32

        # ---- fused similarity / loss / argmax / accuracy ----
        b = p_img.shape[0]
        stacked = jnp.concatenate([p_img, desc_n], axis=0)              # (2B, 512)
        sims = jax.lax.dot_general(stacked.astype(jnp.bfloat16),
                                   p_txt.astype(jnp.bfloat16),
                                   (((1,), (1,)), ((), ())),            # trans-B matmul
                                   preferred_element_type=jnp.float32)  # (2B, C)
        sim_clip = _row_l2n(sims[:b] * ls_clip)
        sim_bert = _row_l2n(sims[b:] * ls_llava)
        out_logits = _row_l2n(sim_clip * wp + sim_bert * (1.0 - wp))    # (B, C)

        c = out_logits.shape[1]
        col = jax.lax.broadcasted_iota(jnp.int32, (b, c), 1)
        labels = labels_ref[...]                                        # (B, 1) int32

        # LLaVA_CLIP_loss: mean_b [ logsumexp(logits_b / t) - logits[b, y_b] / t ]
        scaled = out_logits * it_
        mx = jnp.max(scaled, axis=-1, keepdims=True)
        lse = jnp.log(jnp.sum(jnp.exp(scaled - mx), axis=-1, keepdims=True)) + mx
        onehot = (col == labels).astype(jnp.float32)
        picked = jnp.sum(scaled * onehot, axis=-1, keepdims=True)
        loss = jnp.sum(lse - picked, axis=0, keepdims=True) * (1.0 / b)  # (1, 1)

        # torch.argmax(out_logits, dim=1).  The reference "acc" path is mathematically
        # identical (row-normalize cancels the positive logit scales), so reuse pred.
        mxl = jnp.max(out_logits, axis=-1, keepdims=True)
        cand = jnp.where(out_logits == mxl, col, c)
        pred = jnp.min(cand, axis=-1, keepdims=True)                     # (B, 1) int32
        acc = jnp.sum((pred == labels).astype(jnp.float32),
                      axis=0, keepdims=True)                             # (1, 1)

        # pack [pred | loss | acc] into one lane-dense (B, 128) slab -> one unmasked store
        lane = jax.lax.broadcasted_iota(jnp.int32, (b, 128), 1)
        slab = jnp.where(lane == 0, pred.astype(jnp.float32),
               jnp.where(lane == 1, loss,
               jnp.where(lane == 2, acc, 0.0)))
        o_ref[...] = slab

    return kernel


# ----------------------------------------------------------------------------
# Parameters (weight matrices bf16, biases / LayerNorm params fp32)
# ----------------------------------------------------------------------------
def init_params(key, hidden_dim=256, num_layers=2):
    ks = iter(jax.random.split(key, 64))

    def lin_w(din, dout):
        return (0.02 * jax.random.normal(next(ks), (din, dout), jnp.float32)
                ).astype(jnp.bfloat16)

    # description_encoder (MLP): block i does dims[i]->dims[i+1], then
    # dims[i+1]->dims[i+1], then LayerNorm(dims[i+1]) — matches the torch loop.
    dims = [768] + [hidden_dim] * (num_layers - 1) + [512]
    blocks = []
    for i in range(num_layers):
        din, dout = dims[i], dims[i + 1]
        blocks.append((lin_w(din, dout),
                       0.01 * jax.random.normal(next(ks), (dout,), jnp.float32),
                       lin_w(dout, dout),
                       0.01 * jax.random.normal(next(ks), (dout,), jnp.float32),
                       jnp.ones((dout,), jnp.float32),
                       jnp.zeros((dout,), jnp.float32)))

    def proj():  # Projection(d_in=512, d_out=512): bias-free linears + LayerNorm
        return dict(w1=lin_w(512, 512), w2=lin_w(512, 512),
                    g=jnp.ones((512,), jnp.float32),
                    b=jnp.zeros((512,), jnp.float32))

    return dict(mlp_blocks=blocks,
                proj_img=proj(),
                proj_txt=proj(),
                logit_scale_CLIP=jnp.float32(math.log(1.0 / 0.07)),
                logit_scale_LLaVA=jnp.float32(math.log(1.0 / 0.07)))


# ----------------------------------------------------------------------------
# Forward: one fused pallas_call
# ----------------------------------------------------------------------------
def llava_clip_forward(params, embeddings, img_features, zeroshot_weights,
                       weight_p, target_ind, temp):
    # TODO(synk): model_clip.encode_image (ViT-B/16) is not reimplemented; the
    # `img_features` input plays the role of its output.
    num_layers = len(params["mlp_blocks"])
    B = embeddings.shape[0]

    kernel = _make_fused_kernel(num_layers, float(weight_p), 1.0 / float(temp))

    scalars = jnp.stack([jnp.exp(params["logit_scale_CLIP"]),
                         jnp.exp(params["logit_scale_LLaVA"])]).astype(jnp.float32)
    labels = target_ind.astype(jnp.int32).reshape(B, 1)
    zw_t = zeroshot_weights.astype(jnp.float32).T        # (C, 512); tiny one-off transpose

    flat = [scalars, labels,
            embeddings.astype(jnp.float32),
            img_features.astype(jnp.float32),
            zw_t]
    for (w1, b1, w2, b2, g, bb) in params["mlp_blocks"]:
        flat += [w1, b1.reshape(1, -1), w2, b2.reshape(1, -1),
                 g.reshape(1, -1), bb.reshape(1, -1)]
    for p in (params["proj_img"], params["proj_txt"]):
        flat += [p["w1"], p["w2"], p["g"].reshape(1, -1), p["b"].reshape(1, -1)]

    in_specs = ([pl.BlockSpec(memory_space=pltpu.MemorySpace.SMEM)]
                + [pl.BlockSpec(memory_space=pltpu.MemorySpace.VMEM)] * (len(flat) - 1))

    slab = pl.pallas_call(
        kernel,
        out_shape=jax.ShapeDtypeStruct((B, 128), jnp.float32),
        in_specs=in_specs,
        out_specs=pl.BlockSpec(memory_space=pltpu.MemorySpace.VMEM),
    )(*flat)

    pred = slab[:, 0].astype(jnp.int32)   # torch.argmax(out_logits, dim=1)
    loss = slab[0, 1]
    acc = slab[0, 2].astype(jnp.int32)
    return loss, acc, pred


if __name__ == "__main__":
    key = jax.random.PRNGKey(0)
    k = jax.random.split(key, 8)

    B, C, HID = 8, 16, 256          # batch, #classes (zero-shot prompts), MLP hidden

    embeddings = jax.random.normal(k[0], (B, 768), jnp.float32)        # LLaVA/BERT desc emb
    img_features = jax.random.normal(k[1], (B, 512), jnp.float32)      # CLIP image features
    zeroshot_weights = jax.random.normal(k[2], (512, C), jnp.float32)  # (D, C), as in torch
    target_ind = jax.random.randint(k[3], (B,), 0, C, jnp.int32)

    params = init_params(k[4], hidden_dim=HID, num_layers=2)

    loss, acc, pred = llava_clip_forward(params, embeddings, img_features,
                                         zeroshot_weights, 0.5, target_ind, 0.07)
    jax.block_until_ready((loss, acc, pred))
    print("KERNEL_OK")
</pallas_src>

<mosaic_0001>
module attributes {stable_mosaic.version = 11 : i64} {
  func.func @kernel(%arg0: memref<2xf32, #tpu.memory_space<smem>>, %arg1: memref<8x1xi32, #tpu.memory_space<vmem>>, %arg2: memref<8x768xf32, #tpu.memory_space<vmem>>, %arg3: memref<8x512xf32, #tpu.memory_space<vmem>>, %arg4: memref<16x512xf32, #tpu.memory_space<vmem>>, %arg5: memref<768x256xbf16, #tpu.memory_space<vmem>>, %arg6: memref<1x256xf32, #tpu.memory_space<vmem>>, %arg7: memref<256x256xbf16, #tpu.memory_space<vmem>>, %arg8: memref<1x256xf32, #tpu.memory_space<vmem>>, %arg9: memref<1x256xf32, #tpu.memory_space<vmem>>, %arg10: memref<1x256xf32, #tpu.memory_space<vmem>>, %arg11: memref<256x512xbf16, #tpu.memory_space<vmem>>, %arg12: memref<1x512xf32, #tpu.memory_space<vmem>>, %arg13: memref<512x512xbf16, #tpu.memory_space<vmem>>, %arg14: memref<1x512xf32, #tpu.memory_space<vmem>>, %arg15: memref<1x512xf32, #tpu.memory_space<vmem>>, %arg16: memref<1x512xf32, #tpu.memory_space<vmem>>, %arg17: memref<512x512xbf16, #tpu.memory_space<vmem>>, %arg18: memref<512x512xbf16, #tpu.memory_space<vmem>>, %arg19: memref<1x512xf32, #tpu.memory_space<vmem>>, %arg20: memref<1x512xf32, #tpu.memory_space<vmem>>, %arg21: memref<512x512xbf16, #tpu.memory_space<vmem>>, %arg22: memref<512x512xbf16, #tpu.memory_space<vmem>>, %arg23: memref<1x512xf32, #tpu.memory_space<vmem>>, %arg24: memref<1x512xf32, #tpu.memory_space<vmem>>, %arg25: memref<8x128xf32, #tpu.memory_space<vmem>>) attributes {dimension_semantics = [], scalar_prefetch = 0 : i64, scratch_operands = 0 : i64, tpu.core_type = #tpu.core_type<tc>} {
    %c0 = arith.constant 0 : index
    %0 = memref.load %arg0[%c0] : memref<2xf32, #tpu.memory_space<smem>>
    %c1 = arith.constant 1 : index
    %1 = memref.load %arg0[%c1] : memref<2xf32, #tpu.memory_space<smem>>
    %c0_0 = arith.constant 0 : index
    %c0_1 = arith.constant 0 : index
    %2 = vector.load %arg3[%c0_0, %c0_1] : memref<8x512xf32, #tpu.memory_space<vmem>>, vector<8x512xf32>
    %3 = arith.mulf %2, %2 : vector<8x512xf32>
    %cst = arith.constant dense<0.000000e+00> : vector<8xf32>
    %4 = vector.multi_reduction <add>, %3, %cst [1] : vector<8x512xf32> to vector<8xf32>
    %5 = vector.shape_cast %4 : vector<8xf32> to vector<8x1xf32>
    %cst_2 = arith.constant 9.99999996E-13 : f32
    %6 = vector.broadcast %cst_2 : f32 to vector<8x1xf32>
    %7 = arith.addf %5, %6 : vector<8x1xf32>
    %8 = math.rsqrt %7 : vector<8x1xf32>
    %9 = vector.broadcast %8 : vector<8x1xf32> to vector<8x512xf32>
    %10 = arith.mulf %2, %9 : vector<8x512xf32>
    %c0_3 = arith.constant 0 : index
    %c0_4 = arith.constant 0 : index
    %11 = vector.load %arg2[%c0_3, %c0_4] : memref<8x768xf32, #tpu.memory_space<vmem>>, vector<8x768xf32>
    %12 = arith.truncf %11 : vector<8x768xf32> to vector<8x768xbf16>
    %c0_5 = arith.constant 0 : index
    %c0_6 = arith.constant 0 : index
    %13 = vector.load %arg5[%c0_5, %c0_6] : memref<768x256xbf16, #tpu.memory_space<vmem>>, vector<768x256xbf16>
    %cst_7 = arith.constant dense<0.000000e+00> : vector<8x256xf32>
    %14 = tpu.matmul %12, %13, %cst_7 {dimension_numbers = #tpu.dot_dimension_numbers<[1], [0], [0], [1], [0, 0, 1, 1], [], []>} : vector<8x768xbf16>, vector<768x256xbf16>, vector<8x256xf32> -> vector<8x256xf32>
    %c0_8 = arith.constant 0 : index
    %c0_9 = arith.constant 0 : index
    %15 = vector.load %arg6[%c0_8, %c0_9] : memref<1x256xf32, #tpu.memory_space<vmem>>, vector<1x256xf32>
    %16 = vector.broadcast %15 : vector<1x256xf32> to vector<8x256xf32>
    %17 = arith.addf %14, %16 : vector<8x256xf32>
    %cst_10 = arith.constant 1.702000e+00 : f32
    %18 = vector.broadcast %cst_10 : f32 to vector<8x256xf32>
    %19 = arith.mulf %18, %17 : vector<8x256xf32>
    %20 = arith.negf %19 : vector<8x256xf32>
    %21 = math.exp %20 : vector<8x256xf32>
    %cst_11 = arith.constant 1.000000e+00 : f32
    %22 = vector.broadcast %cst_11 : f32 to vector<8x256xf32>
    %23 = arith.addf %22, %21 : vector<8x256xf32>
    %24 = arith.divf %22, %23 : vector<8x256xf32>
    %25 = arith.mulf %17, %24 : vector<8x256xf32>
    %26 = arith.truncf %25 : vector<8x256xf32> to vector<8x256xbf16>
    %c0_12 = arith.constant 0 : index
    %c0_13 = arith.constant 0 : index
    %27 = vector.load %arg7[%c0_12, %c0_13] : memref<256x256xbf16, #tpu.memory_space<vmem>>, vector<256x256xbf16>
    %cst_14 = arith.constant dense<0.000000e+00> : vector<8x256xf32>
    %28 = tpu.matmul %26, %27, %cst_14 {dimension_numbers = #tpu.dot_dimension_numbers<[1], [0], [0], [1], [0, 0, 1, 1], [], []>} : vector<8x256xbf16>, vector<256x256xbf16>, vector<8x256xf32> -> vector<8x256xf32>
    %c0_15 = arith.constant 0 : index
    %c0_16 = arith.constant 0 : index
    %29 = vector.load %arg8[%c0_15, %c0_16] : memref<1x256xf32, #tpu.memory_space<vmem>>, vector<1x256xf32>
    %30 = vector.broadcast %29 : vector<1x256xf32> to vector<8x256xf32>
    %31 = arith.addf %28, %30 : vector<8x256xf32>
    %32 = arith.addf %17, %31 : vector<8x256xf32>
    %c0_17 = arith.constant 0 : index
    %c0_18 = arith.constant 0 : index
    %33 = vector.load %arg9[%c0_17, %c0_18] : memref<1x256xf32, #tpu.memory_space<vmem>>, vector<1x256xf32>
    %c0_19 = arith.constant 0 : index
    %c0_20 = arith.constant 0 : index
    %34 = vector.load %arg10[%c0_19, %c0_20] : memref<1x256xf32, #tpu.memory_space<vmem>>, vector<1x256xf32>
    %cst_21 = arith.constant dense<0.000000e+00> : vector<8xf32>
    %35 = vector.multi_reduction <add>, %32, %cst_21 [1] : vector<8x256xf32> to vector<8xf32>
    %36 = vector.shape_cast %35 : vector<8xf32> to vector<8x1xf32>
    %cst_22 = arith.constant 2.560000e+02 : f32
    %37 = vector.broadcast %cst_22 : f32 to vector<8x1xf32>
    %38 = arith.divf %36, %37 : vector<8x1xf32>
    %39 = vector.broadcast %38 : vector<8x1xf32> to vector<8x256xf32>
    %40 = arith.subf %32, %39 : vector<8x256xf32>
    %41 = arith.mulf %40, %40 : vector<8x256xf32>
    %cst_23 = arith.constant dense<0.000000e+00> : vector<8xf32>
    %42 = vector.multi_reduction <add>, %41, %cst_23 [1] : vector<8x256xf32> to vector<8xf32>
    %43 = vector.shape_cast %42 : vector<8xf32> to vector<8x1xf32>
    %cst_24 = arith.constant 2.560000e+02 : f32
    %44 = vector.broadcast %cst_24 : f32 to vector<8x1xf32>
    %45 = arith.divf %43, %44 : vector<8x1xf32>
    %46 = vector.broadcast %38 : vector<8x1xf32> to vector<8x256xf32>
    %47 = arith.subf %32, %46 : vector<8x256xf32>
    %cst_25 = arith.constant 9.99999974E-6 : f32
    %48 = vector.broadcast %cst_25 : f32 to vector<8x1xf32>
    %49 = arith.addf %45, %48 : vector<8x1xf32>
    %50 = math.rsqrt %49 : vector<8x1xf32>
    %51 = vector.broadcast %50 : vector<8x1xf32> to vector<8x256xf32>
    %52 = arith.mulf %47, %51 : vector<8x256xf32>
    %53 = vector.broadcast %33 : vector<1x256xf32> to vector<8x256xf32>
    %54 = arith.mulf %52, %53 : vector<8x256xf32>
    %55 = vector.broadcast %34 : vector<1x256xf32> to vector<8x256xf32>
    %56 = arith.addf %54, %55 : vector<8x256xf32>
    %57 = arith.truncf %56 : vector<8x256xf32> to vector<8x256xbf16>
    %c0_26 = arith.constant 0 : index
    %c0_27 = arith.constant 0 : index
    %58 = vector.load %arg11[%c0_26, %c0_27] : memref<256x512xbf16, #tpu.memory_space<vmem>>, vector<256x512xbf16>
    %cst_28 = arith.constant dense<0.000000e+00> : vector<8x512xf32>
    %59 = tpu.matmul %57, %58, %cst_28 {dimension_numbers = #tpu.dot_dimension_numbers<[1], [0], [0], [1], [0, 0, 1, 1], [], []>} : vector<8x256xbf16>, vector<256x512xbf16>, vector<8x512xf32> -> vector<8x512xf32>
    %c0_29 = arith.constant 0 : index
    %c0_30 = arith.constant 0 : index
    %60 = vector.load %arg12[%c0_29, %c0_30] : memref<1x512xf32, #tpu.memory_space<vmem>>, vector<1x512xf32>
    %61 = vector.broadcast %60 : vector<1x512xf32> to vector<8x512xf32>
    %62 = arith.addf %59, %61 : vector<8x512xf32>
    %cst_31 = arith.constant 1.702000e+00 : f32
    %63 = vector.broadcast %cst_31 : f32 to vector<8x512xf32>
    %64 = arith.mulf %63, %62 : vector<8x512xf32>
    %65 = arith.negf %64 : vector<8x512xf32>
    %66 = math.exp %65 : vector<8x512xf32>
    %cst_32 = arith.constant 1.000000e+00 : f32
    %67 = vector.broadcast %cst_32 : f32 to vector<8x512xf32>
    %68 = arith.addf %67, %66 : vector<8x512xf32>
    %69 = arith.divf %67, %68 : vector<8x512xf32>
    %70 = arith.mulf %62, %69 : vector<8x512xf32>
    %71 = arith.truncf %70 : vector<8x512xf32> to vector<8x512xbf16>
    %c0_33 = arith.constant 0 : index
    %c0_34 = arith.constant 0 : index
    %72 = vector.load %arg13[%c0_33, %c0_34] : memref<512x512xbf16, #tpu.memory_space<vmem>>, vector<512x512xbf16>
    %cst_35 = arith.constant dense<0.000000e+00> : vector<8x512xf32>
    %73 = tpu.matmul %71, %72, %cst_35 {dimension_numbers = #tpu.dot_dimension_numbers<[1], [0], [0], [1], [0, 0, 1, 1], [], []>} : vector<8x512xbf16>, vector<512x512xbf16>, vector<8x512xf32> -> vector<8x512xf32>
    %c0_36 = arith.constant 0 : index
    %c0_37 = arith.constant 0 : index
    %74 = vector.load %arg14[%c0_36, %c0_37] : memref<1x512xf32, #tpu.memory_space<vmem>>, vector<1x512xf32>
    %75 = vector.broadcast %74 : vector<1x512xf32> to vector<8x512xf32>
    %76 = arith.addf %73, %75 : vector<8x512xf32>
    %77 = arith.addf %62, %76 : vector<8x512xf32>
    %c0_38 = arith.constant 0 : index
    %c0_39 = arith.constant 0 : index
    %78 = vector.load %arg15[%c0_38, %c0_39] : memref<1x512xf32, #tpu.memory_space<vmem>>, vector<1x512xf32>
    %c0_40 = arith.constant 0 : index
    %c0_41 = arith.constant 0 : index
    %79 = vector.load %arg16[%c0_40, %c0_41] : memref<1x512xf32, #tpu.memory_space<vmem>>, vector<1x512xf32>
    %cst_42 = arith.constant dense<0.000000e+00> : vector<8xf32>
    %80 = vector.multi_reduction <add>, %77, %cst_42 [1] : vector<8x512xf32> to vector<8xf32>
    %81 = vector.shape_cast %80 : vector<8xf32> to vector<8x1xf32>
    %cst_43 = arith.constant 5.120000e+02 : f32
    %82 = vector.broadcast %cst_43 : f32 to vector<8x1xf32>
    %83 = arith.divf %81, %82 : vector<8x1xf32>
    %84 = vector.broadcast %83 : vector<8x1xf32> to vector<8x512xf32>
    %85 = arith.subf %77, %84 : vector<8x512xf32>
    %86 = arith.mulf %85, %85 : vector<8x512xf32>
    %cst_44 = arith.constant dense<0.000000e+00> : vector<8xf32>
    %87 = vector.multi_reduction <add>, %86, %cst_44 [1] : vector<8x512xf32> to vector<8xf32>
    %88 = vector.shape_cast %87 : vector<8xf32> to vector<8x1xf32>
    %cst_45 = arith.constant 5.120000e+02 : f32
    %89 = vector.broadcast %cst_45 : f32 to vector<8x1xf32>
    %90 = arith.divf %88, %89 : vector<8x1xf32>
    %91 = vector.broadcast %83 : vector<8x1xf32> to vector<8x512xf32>
    %92 = arith.subf %77, %91 : vector<8x512xf32>
    %cst_46 = arith.constant 9.99999974E-6 : f32
    %93 = vector.broadcast %cst_46 : f32 to vector<8x1xf32>
    %94 = arith.addf %90, %93 : vector<8x1xf32>
    %95 = math.rsqrt %94 : vector<8x1xf32>
    %96 = vector.broadcast %95 : vector<8x1xf32> to vector<8x512xf32>
    %97 = arith.mulf %92, %96 : vector<8x512xf32>
    %98 = vector.broadcast %78 : vector<1x512xf32> to vector<8x512xf32>
    %99 = arith.mulf %97, %98 : vector<8x512xf32>
    %100 = vector.broadcast %79 : vector<1x512xf32> to vector<8x512xf32>
    %101 = arith.addf %99, %100 : vector<8x512xf32>
    %102 = arith.mulf %101, %101 : vector<8x512xf32>
    %cst_47 = arith.constant dense<0.000000e+00> : vector<8xf32>
    %103 = vector.multi_reduction <add>, %102, %cst_47 [1] : vector<8x512xf32> to vector<8xf32>
    %104 = vector.shape_cast %103 : vector<8xf32> to vector<8x1xf32>
    %cst_48 = arith.constant 9.99999996E-13 : f32
    %105 = vector.broadcast %cst_48 : f32 to vector<8x1xf32>
    %106 = arith.addf %104, %105 : vector<8x1xf32>
    %107 = math.rsqrt %106 : vector<8x1xf32>
    %108 = vector.broadcast %107 : vector<8x1xf32> to vector<8x512xf32>
    %109 = arith.mulf %101, %108 : vector<8x512xf32>
    %110 = arith.truncf %10 : vector<8x512xf32> to vector<8x512xbf16>
    %c0_49 = arith.constant 0 : index
    %c0_50 = arith.constant 0 : index
    %111 = vector.load %arg17[%c0_49, %c0_50] : memref<512x512xbf16, #tpu.memory_space<vmem>>, vector<512x512xbf16>
    %cst_51 = arith.constant dense<0.000000e+00> : vector<8x512xf32>
    %112 = tpu.matmul %110, %111, %cst_51 {dimension_numbers = #tpu.dot_dimension_numbers<[1], [0], [0], [1], [0, 0, 1, 1], [], []>} : vector<8x512xbf16>, vector<512x512xbf16>, vector<8x512xf32> -> vector<8x512xf32>
    %cst_52 = arith.constant 5.000000e-01 : f32
    %113 = vector.broadcast %cst_52 : f32 to vector<8x512xf32>
    %114 = arith.mulf %113, %112 : vector<8x512xf32>
    %cst_53 = arith.constant 0.707106769 : f32
    %115 = vector.broadcast %cst_53 : f32 to vector<8x512xf32>
    %116 = arith.mulf %112, %115 : vector<8x512xf32>
    %117 = math.erf %116 : vector<8x512xf32>
    %cst_54 = arith.constant 1.000000e+00 : f32
    %118 = vector.broadcast %cst_54 : f32 to vector<8x512xf32>
    %119 = arith.addf %118, %117 : vector<8x512xf32>
    %120 = arith.mulf %114, %119 : vector<8x512xf32>
    %121 = arith.truncf %120 : vector<8x512xf32> to vector<8x512xbf16>
    %c0_55 = arith.constant 0 : index
    %c0_56 = arith.constant 0 : index
    %122 = vector.load %arg18[%c0_55, %c0_56] : memref<512x512xbf16, #tpu.memory_space<vmem>>, vector<512x512xbf16>
    %cst_57 = arith.constant dense<0.000000e+00> : vector<8x512xf32>
    %123 = tpu.matmul %121, %122, %cst_57 {dimension_numbers = #tpu.dot_dimension_numbers<[1], [0], [0], [1], [0, 0, 1, 1], [], []>} : vector<8x512xbf16>, vector<512x512xbf16>, vector<8x512xf32> -> vector<8x512xf32>
    %124 = arith.addf %112, %123 : vector<8x512xf32>
    %c0_58 = arith.constant 0 : index
    %c0_59 = arith.constant 0 : index
    %125 = vector.load %arg19[%c0_58, %c0_59] : memref<1x512xf32, #tpu.memory_space<vmem>>, vector<1x512xf32>
    %c0_60 = arith.constant 0 : index
    %c0_61 = arith.constant 0 : index
    %126 = vector.load %arg20[%c0_60, %c0_61] : memref<1x512xf32, #tpu.memory_space<vmem>>, vector<1x512xf32>
    %cst_62 = arith.constant dense<0.000000e+00> : vector<8xf32>
    %127 = vector.multi_reduction <add>, %124, %cst_62 [1] : vector<8x512xf32> to vector<8xf32>
    %128 = vector.shape_cast %127 : vector<8xf32> to vector<8x1xf32>
    %cst_63 = arith.constant 5.120000e+02 : f32
    %129 = vector.broadcast %cst_63 : f32 to vector<8x1xf32>
    %130 = arith.divf %128, %129 : vector<8x1xf32>
    %131 = vector.broadcast %130 : vector<8x1xf32> to vector<8x512xf32>
    %132 = arith.subf %124, %131 : vector<8x512xf32>
    %133 = arith.mulf %132, %132 : vector<8x512xf32>
    %cst_64 = arith.constant dense<0.000000e+00> : vector<8xf32>
    %134 = vector.multi_reduction <add>, %133, %cst_64 [1] : vector<8x512xf32> to vector<8xf32>
    %135 = vector.shape_cast %134 : vector<8xf32> to vector<8x1xf32>
    %cst_65 = arith.constant 5.120000e+02 : f32
    %136 = vector.broadcast %cst_65 : f32 to vector<8x1xf32>
    %137 = arith.divf %135, %136 : vector<8x1xf32>
    %138 = vector.broadcast %130 : vector<8x1xf32> to vector<8x512xf32>
    %139 = arith.subf %124, %138 : vector<8x512xf32>
    %cst_66 = arith.constant 9.99999974E-6 : f32
    %140 = vector.broadcast %cst_66 : f32 to vector<8x1xf32>
    %141 = arith.addf %137, %140 : vector<8x1xf32>
    %142 = math.rsqrt %141 : vector<8x1xf32>
    %143 = vector.broadcast %142 : vector<8x1xf32> to vector<8x512xf32>
    %144 = arith.mulf %139, %143 : vector<8x512xf32>
    %145 = vector.broadcast %125 : vector<1x512xf32> to vector<8x512xf32>
    %146 = arith.mulf %144, %145 : vector<8x512xf32>
    %147 = vector.broadcast %126 : vector<1x512xf32> to vector<8x512xf32>
    %148 = arith.addf %146, %147 : vector<8x512xf32>
    %c0_67 = arith.constant 0 : index
    %c0_68 = arith.constant 0 : index
    %149 = vector.load %arg4[%c0_67, %c0_68] : memref<16x512xf32, #tpu.memory_space<vmem>>, vector<16x512xf32>
    %150 = arith.truncf %149 : vector<16x512xf32> to vector<16x512xbf16>
    %c0_69 = arith.constant 0 : index
    %c0_70 = arith.constant 0 : index
    %151 = vector.load %arg21[%c0_69, %c0_70] : memref<512x512xbf16, #tpu.memory_space<vmem>>, vector<512x512xbf16>
    %cst_71 = arith.constant dense<0.000000e+00> : vector<16x512xf32>
    %152 = tpu.matmul %150, %151, %cst_71 {dimension_numbers = #tpu.dot_dimension_numbers<[1], [0], [0], [1], [0, 0, 1, 1], [], []>} : vector<16x512xbf16>, vector<512x512xbf16>, vector<16x512xf32> -> vector<16x512xf32>
    %cst_72 = arith.constant 5.000000e-01 : f32
    %153 = vector.broadcast %cst_72 : f32 to vector<16x512xf32>
    %154 = arith.mulf %153, %152 : vector<16x512xf32>
    %cst_73 = arith.constant 0.707106769 : f32
    %155 = vector.broadcast %cst_73 : f32 to vector<16x512xf32>
    %156 = arith.mulf %152, %155 : vector<16x512xf32>
    %157 = math.erf %156 : vector<16x512xf32>
    %cst_74 = arith.constant 1.000000e+00 : f32
    %158 = vector.broadcast %cst_74 : f32 to vector<16x512xf32>
    %159 = arith.addf %158, %157 : vector<16x512xf32>
    %160 = arith.mulf %154, %159 : vector<16x512xf32>
    %161 = arith.truncf %160 : vector<16x512xf32> to vector<16x512xbf16>
    %c0_75 = arith.constant 0 : index
    %c0_76 = arith.constant 0 : index
    %162 = vector.load %arg22[%c0_75, %c0_76] : memref<512x512xbf16, #tpu.memory_space<vmem>>, vector<512x512xbf16>
    %cst_77 = arith.constant dense<0.000000e+00> : vector<16x512xf32>
    %163 = tpu.matmul %161, %162, %cst_77 {dimension_numbers = #tpu.dot_dimension_numbers<[1], [0], [0], [1], [0, 0, 1, 1], [], []>} : vector<16x512xbf16>, vector<512x512xbf16>, vector<16x512xf32> -> vector<16x512xf32>
    %164 = arith.addf %152, %163 : vector<16x512xf32>
    %c0_78 = arith.constant 0 : index
    %c0_79 = arith.constant 0 : index
    %165 = vector.load %arg23[%c0_78, %c0_79] : memref<1x512xf32, #tpu.memory_space<vmem>>, vector<1x512xf32>
    %c0_80 = arith.constant 0 : index
    %c0_81 = arith.constant 0 : index
    %166 = vector.load %arg24[%c0_80, %c0_81] : memref<1x512xf32, #tpu.memory_space<vmem>>, vector<1x512xf32>
    %cst_82 = arith.constant dense<0.000000e+00> : vector<16xf32>
    %167 = vector.multi_reduction <add>, %164, %cst_82 [1] : vector<16x512xf32> to vector<16xf32>
    %168 = vector.shape_cast %167 : vector<16xf32> to vector<16x1xf32>
    %cst_83 = arith.constant 5.120000e+02 : f32
    %169 = vector.broadcast %cst_83 : f32 to vector<16x1xf32>
    %170 = arith.divf %168, %169 : vector<16x1xf32>
    %171 = vector.broadcast %170 : vector<16x1xf32> to vector<16x512xf32>
    %172 = arith.subf %164, %171 : vector<16x512xf32>
    %173 = arith.mulf %172, %172 : vector<16x512xf32>
    %cst_84 = arith.constant dense<0.000000e+00> : vector<16xf32>
    %174 = vector.multi_reduction <add>, %173, %cst_84 [1] : vector<16x512xf32> to vector<16xf32>
    %175 = vector.shape_cast %174 : vector<16xf32> to vector<16x1xf32>
    %cst_85 = arith.constant 5.120000e+02 : f32
    %176 = vector.broadcast %cst_85 : f32 to vector<16x1xf32>
    %177 = arith.divf %175, %176 : vector<16x1xf32>
    %178 = vector.broadcast %170 : vector<16x1xf32> to vector<16x512xf32>
    %179 = arith.subf %164, %178 : vector<16x512xf32>
    %cst_86 = arith.constant 9.99999974E-6 : f32
    %180 = vector.broadcast %cst_86 : f32 to vector<16x1xf32>
    %181 = arith.addf %177, %180 : vector<16x1xf32>
    %182 = math.rsqrt %181 : vector<16x1xf32>
    %183 = vector.broadcast %182 : vector<16x1xf32> to vector<16x512xf32>
    %184 = arith.mulf %179, %183 : vector<16x512xf32>
    %185 = vector.broadcast %165 : vector<1x512xf32> to vector<16x512xf32>
    %186 = arith.mulf %184, %185 : vector<16x512xf32>
    %187 = vector.broadcast %166 : vector<1x512xf32> to vector<16x512xf32>
    %188 = arith.addf %186, %187 : vector<16x512xf32>
    %189 = tpu.concatenate %148, %109 in 0 : vector<8x512xf32>, vector<8x512xf32> -> vector<16x512xf32>
    %190 = arith.truncf %189 : vector<16x512xf32> to vector<16x512xbf16>
    %191 = arith.truncf %188 : vector<16x512xf32> to vector<16x512xbf16>
    %cst_87 = arith.constant dense<0.000000e+00> : vector<16x16xf32>
    %192 = tpu.matmul %190, %191, %cst_87 {dimension_numbers = #tpu.dot_dimension_numbers<[1], [1], [0], [0], [0, 0, 1, 0], [], []>} : vector<16x512xbf16>, vector<16x512xbf16>, vector<16x16xf32> -> vector<16x16xf32>
    %193 = vector.extract_strided_slice %192 {offsets = [0, 0], sizes = [8, 16], strides = [1, 1]} : vector<16x16xf32> to vector<8x16xf32>
    %194 = vector.broadcast %0 : f32 to vector<8x16xf32>
    %195 = arith.mulf %193, %194 : vector<8x16xf32>
    %196 = arith.mulf %195, %195 : vector<8x16xf32>
    %cst_88 = arith.constant dense<0.000000e+00> : vector<8xf32>
    %197 = vector.multi_reduction <add>, %196, %cst_88 [1] : vector<8x16xf32> to vector<8xf32>
    %198 = vector.shape_cast %197 : vector<8xf32> to vector<8x1xf32>
    %cst_89 = arith.constant 9.99999996E-13 : f32
    %199 = vector.broadcast %cst_89 : f32 to vector<8x1xf32>
    %200 = arith.addf %198, %199 : vector<8x1xf32>
    %201 = math.rsqrt %200 : vector<8x1xf32>
    %202 = vector.broadcast %201 : vector<8x1xf32> to vector<8x16xf32>
    %203 = arith.mulf %195, %202 : vector<8x16xf32>
    %204 = vector.extract_strided_slice %192 {offsets = [8, 0], sizes = [8, 16], strides = [1, 1]} : vector<16x16xf32> to vector<8x16xf32>
    %205 = vector.broadcast %1 : f32 to vector<8x16xf32>
    %206 = arith.mulf %204, %205 : vector<8x16xf32>
    %207 = arith.mulf %206, %206 : vector<8x16xf32>
    %cst_90 = arith.constant dense<0.000000e+00> : vector<8xf32>
    %208 = vector.multi_reduction <add>, %207, %cst_90 [1] : vector<8x16xf32> to vector<8xf32>
    %209 = vector.shape_cast %208 : vector<8xf32> to vector<8x1xf32>
    %cst_91 = arith.constant 9.99999996E-13 : f32
    %210 = vector.broadcast %cst_91 : f32 to vector<8x1xf32>
    %211 = arith.addf %209, %210 : vector<8x1xf32>
    %212 = math.rsqrt %211 : vector<8x1xf32>
    %213 = vector.broadcast %212 : vector<8x1xf32> to vector<8x16xf32>
    %214 = arith.mulf %206, %213 : vector<8x16xf32>
    %cst_92 = arith.constant 5.000000e-01 : f32
    %215 = vector.broadcast %cst_92 : f32 to vector<8x16xf32>
    %216 = arith.mulf %203, %215 : vector<8x16xf32>
    %cst_93 = arith.constant 5.000000e-01 : f32
    %217 = vector.broadcast %cst_93 : f32 to vector<8x16xf32>
    %218 = arith.mulf %214, %217 : vector<8x16xf32>
    %219 = arith.addf %216, %218 : vector<8x16xf32>
    %220 = arith.mulf %219, %219 : vector<8x16xf32>
    %cst_94 = arith.constant dense<0.000000e+00> : vector<8xf32>
    %221 = vector.multi_reduction <add>, %220, %cst_94 [1] : vector<8x16xf32> to vector<8xf32>
    %222 = vector.shape_cast %221 : vector<8xf32> to vector<8x1xf32>
    %cst_95 = arith.constant 9.99999996E-13 : f32
    %223 = vector.broadcast %cst_95 : f32 to vector<8x1xf32>
    %224 = arith.addf %222, %223 : vector<8x1xf32>
    %225 = math.rsqrt %224 : vector<8x1xf32>
    %226 = vector.broadcast %225 : vector<8x1xf32> to vector<8x16xf32>
    %227 = arith.mulf %219, %226 : vector<8x16xf32>
    %228 = tpu.iota {dimensions = array<i32: 1>} : vector<8x16xi32>
    %c0_96 = arith.constant 0 : index
    %c0_97 = arith.constant 0 : index
    %229 = vector.load %arg1[%c0_96, %c0_97] : memref<8x1xi32, #tpu.memory_space<vmem>>, vector<8x1xi32>
    %cst_98 = arith.constant 14.2857141 : f32
    %230 = vector.broadcast %cst_98 : f32 to vector<8x16xf32>
    %231 = arith.mulf %227, %230 : vector<8x16xf32>
    %cst_99 = arith.constant dense<0xFF800000> : vector<8xf32>
    %232 = vector.multi_reduction <maximumf>, %231, %cst_99 [1] : vector<8x16xf32> to vector<8xf32>
    %233 = vector.shape_cast %232 : vector<8xf32> to vector<8x1xf32>
    %234 = vector.broadcast %233 : vector<8x1xf32> to vector<8x16xf32>
    %235 = arith.subf %231, %234 : vector<8x16xf32>
    %236 = math.exp %235 : vector<8x16xf32>
    %cst_100 = arith.constant dense<0.000000e+00> : vector<8xf32>
    %237 = vector.multi_reduction <add>, %236, %cst_100 [1] : vector<8x16xf32> to vector<8xf32>
    %238 = vector.shape_cast %237 : vector<8xf32> to vector<8x1xf32>
    %239 = math.log %238 : vector<8x1xf32>
    %240 = arith.addf %239, %233 : vector<8x1xf32>
    %241 = vector.broadcast %229 : vector<8x1xi32> to vector<8x16xi32>
    %242 = arith.cmpi eq, %228, %241 : vector<8x16xi32>
    %243 = arith.extui %242 : vector<8x16xi1> to vector<8x16xi32>
    %244 = arith.sitofp %243 : vector<8x16xi32> to vector<8x16xf32>
    %245 = arith.mulf %231, %244 : vector<8x16xf32>
    %cst_101 = arith.constant dense<0.000000e+00> : vector<8xf32>
    %246 = vector.multi_reduction <add>, %245, %cst_101 [1] : vector<8x16xf32> to vector<8xf32>
    %247 = vector.shape_cast %246 : vector<8xf32> to vector<8x1xf32>
    %248 = arith.subf %240, %247 : vector<8x1xf32>
    %cst_102 = arith.constant dense<0.000000e+00> : vector<1xf32>
    %249 = vector.multi_reduction <add>, %248, %cst_102 [0] : vector<8x1xf32> to vector<1xf32>
    %250 = vector.shape_cast %249 : vector<1xf32> to vector<1x1xf32>
    %cst_103 = arith.constant 1.250000e-01 : f32
    %251 = vector.broadcast %cst_103 : f32 to vector<1x1xf32>
    %252 = arith.mulf %250, %251 : vector<1x1xf32>
    %cst_104 = arith.constant dense<0xFF800000> : vector<8xf32>
    %253 = vector.multi_reduction <maximumf>, %227, %cst_104 [1] : vector<8x16xf32> to vector<8xf32>
    %254 = vector.shape_cast %253 : vector<8xf32> to vector<8x1xf32>
    %255 = vector.broadcast %254 : vector<8x1xf32> to vector<8x16xf32>
    %256 = arith.cmpf oeq, %227, %255 : vector<8x16xf32>
    %c16_i32 = arith.constant 16 : i32
    %257 = vector.broadcast %c16_i32 : i32 to vector<8x16xi32>
    %258 = arith.select %256, %228, %257 : vector<8x16xi1>, vector<8x16xi32>
    %cst_105 = arith.constant dense<2147483647> : vector<8xi32>
    %259 = vector.multi_reduction <minsi>, %258, %cst_105 [1] : vector<8x16xi32> to vector<8xi32>
    %260 = vector.shape_cast %259 : vector<8xi32> to vector<8x1xi32>
    %261 = arith.cmpi eq, %260, %229 : vector<8x1xi32>
    %262 = arith.extui %261 : vector<8x1xi1> to vector<8x1xi32>
    %263 = arith.sitofp %262 : vector<8x1xi32> to vector<8x1xf32>
    %cst_106 = arith.constant dense<0.000000e+00> : vector<1xf32>
    %264 = vector.multi_reduction <add>, %263, %cst_106 [0] : vector<8x1xf32> to vector<1xf32>
    %265 = vector.shape_cast %264 : vector<1xf32> to vector<1x1xf32>
    %266 = tpu.iota {dimensions = array<i32: 1>} : vector<8x128xi32>
    %c0_i32 = arith.constant 0 : i32
    %267 = vector.broadcast %c0_i32 : i32 to vector<8x128xi32>
    %268 = arith.cmpi eq, %266, %267 : vector<8x128xi32>
    %269 = arith.sitofp %260 : vector<8x1xi32> to vector<8x1xf32>
    %c1_i32 = arith.constant 1 : i32
    %270 = vector.broadcast %c1_i32 : i32 to vector<8x128xi32>
    %271 = arith.cmpi eq, %266, %270 : vector<8x128xi32>
    %c2_i32 = arith.constant 2 : i32
    %272 = vector.broadcast %c2_i32 : i32 to vector<8x128xi32>
    %273 = arith.cmpi eq, %266, %272 : vector<8x128xi32>
    %cst_107 = arith.constant 0.000000e+00 : f32
    %274 = vector.shape_cast %265 : vector<1x1xf32> to vector<1x1xf32>
    %275 = vector.broadcast %274 : vector<1x1xf32> to vector<8x128xf32>
    %276 = vector.broadcast %cst_107 : f32 to vector<8x128xf32>
    %277 = arith.select %273, %275, %276 : vector<8x128xi1>, vector<8x128xf32>
    %278 = vector.shape_cast %252 : vector<1x1xf32> to vector<1x1xf32>
    %279 = vector.broadcast %278 : vector<1x1xf32> to vector<8x128xf32>
    %280 = arith.select %271, %279, %277 : vector<8x128xi1>, vector<8x128xf32>
    %281 = vector.shape_cast %269 : vector<8x1xf32> to vector<8x1xf32>
    %282 = vector.broadcast %281 : vector<8x1xf32> to vector<8x128xf32>
    %283 = arith.select %268, %282, %280 : vector<8x128xi1>, vector<8x128xf32>
    %c0_108 = arith.constant 0 : index
    %c0_109 = arith.constant 0 : index
    %284 = vector.load %arg25[%c0_108, %c0_109] : memref<8x128xf32, #tpu.memory_space<vmem>>, vector<8x128xf32>
    tpu.vector_store %arg25[%c0_108, %c0_109], %283 {strides = array<i32>} : memref<8x128xf32, #tpu.memory_space<vmem>>, vector<8x128xf32>,
    return
  }
}

</mosaic_0001>

<llo_original>
// kernel: tpu_custom_call.1
$region0: #{tpu_custom_call.1}
  #allocation0 [shape = 'u32[]', space=smem, size = 0x4, offset = 0x4, fixed_abs, tag = 'smem constant byte address 0x4 - core index']
  #allocation1 [shape = 'u32[72,128]{1,0:T(1,128)}', space=vmem, size = 0x9000, scoped, tag = 'internal scratch']
  %s0 = inlined_call_operand.hbm [shape: f32[2], index: 0, kind: input, shape index: {}]
  %s1 = inlined_call_operand.vmem [shape: s32[8,1], index: 1, kind: input, shape index: {}]
  %s2 = inlined_call_operand.hbm [shape: f32[8,768], index: 2, kind: input, shape index: {}]
  %s3 = inlined_call_operand.hbm [shape: f32[8,512], index: 3, kind: input, shape index: {}]
  %s4 = inlined_call_operand.hbm [shape: f32[16,512], index: 4, kind: input, shape index: {}]
  %s5 = inlined_call_operand.hbm [shape: bf16[768,256], index: 5, kind: input, shape index: {}]
  %s6 = inlined_call_operand.hbm [shape: f32[1,256], index: 6, kind: input, shape index: {}]
  %s7 = inlined_call_operand.hbm [shape: bf16[256,256], index: 7, kind: input, shape index: {}]
  %s8 = inlined_call_operand.hbm [shape: f32[1,256], index: 8, kind: input, shape index: {}]
  %s9 = inlined_call_operand.hbm [shape: f32[1,256], index: 9, kind: input, shape index: {}]
  %s10 = inlined_call_operand.hbm [shape: f32[1,256], index: 10, kind: input, shape index: {}]
  %s11 = inlined_call_operand.hbm [shape: bf16[256,512], index: 11, kind: input, shape index: {}]
  %s12 = inlined_call_operand.vmem [shape: f32[1,512], index: 12, kind: input, shape index: {}]
  %s13 = inlined_call_operand.hbm [shape: bf16[512,512], index: 13, kind: input, shape index: {}]
  %s14 = inlined_call_operand.vmem [shape: f32[1,512], index: 14, kind: input, shape index: {}]
  %s15 = inlined_call_operand.vmem [shape: f32[1,512], index: 15, kind: input, shape index: {}]
  %s16 = inlined_call_operand.vmem [shape: f32[1,512], index: 16, kind: input, shape index: {}]
  %s17 = inlined_call_operand.hbm [shape: bf16[512,512], index: 17, kind: input, shape index: {}]
  %s18 = inlined_call_operand.hbm [shape: bf16[512,512], index: 18, kind: input, shape index: {}]
  %s19 = inlined_call_operand.vmem [shape: f32[1,512], index: 19, kind: input, shape index: {}]
  %s20 = inlined_call_operand.vmem [shape: f32[1,512], index: 20, kind: input, shape index: {}]
  %s21 = inlined_call_operand.hbm [shape: bf16[512,512], index: 21, kind: input, shape index: {}]
  %s22 = inlined_call_operand.hbm [shape: bf16[512,512], index: 22, kind: input, shape index: {}]
  %s23 = inlined_call_operand.vmem [shape: f32[1,512], index: 23, kind: input, shape index: {}]
  %s24 = inlined_call_operand.vmem [shape: f32[1,512], index: 24, kind: input, shape index: {}]
  %s25 = inlined_call_operand.hbm [shape: f32[8,128], index: 25, kind: output, shape index: {}]
  %s26 = sld [smem:[#allocation0]]
  $region174: #{tpu_custom_call.1} parent=0
    _
  %s28 = ssub.s32 1, %s26
  %s29 = scalar_select 0, %s28, %s26
  $region1: #{tpu_custom_call.1} parent=0
    #allocation2 [shape = 'u8[512]{0}', space=smem, size = 0x200, scoped, tag = 'input window, operand 0, single buffered']
    #allocation3 [shape = 's32[1]{0}', space=sflag, size = 0x4, scoped, tag = 'scoped memory for tpu_custom_call.1']
    #allocation4 [shape = 's32[1]{0}', space=sflag, size = 0x4, scoped, tag = 'scoped memory for tpu_custom_call.1']
    #allocation5 [shape = 's32[1]{0}', space=sflag, size = 0x4, scoped, tag = 'scoped memory for tpu_custom_call.1']
    #allocation6 [shape = 'u8[24576]{0}', space=vmem, size = 0x6000, scoped, tag = 'input window, operand 2, single buffered']
    #allocation7 [shape = 'u8[16384]{0}', space=vmem, size = 0x4000, scoped, tag = 'input window, operand 3, single buffered']
    #allocation8 [shape = 's32[1]{0}', space=sflag, size = 0x4, scoped, tag = 'scoped memory for tpu_custom_call.1']
    #allocation9 [shape = 'u8[32768]{0}', space=vmem, size = 0x8000, scoped, tag = 'input window, operand 4, single buffered']
    #allocation10 [shape = 'u8[393216]{0}', space=vmem, size = 0x60000, scoped, tag = 'input window, operand 5, single buffered']
    #allocation11 [shape = 's32[1]{0}', space=sflag, size = 0x4, scoped, tag = 'scoped memory for tpu_custom_call.1']
    #allocation12 [shape = 'u8[1024]{0}', space=vmem, size = 0x400, scoped, tag = 'input window, operand 6, single buffered']
    #allocation13 [shape = 'u8[131072]{0}', space=vmem, size = 0x20000, scoped, tag = 'input window, operand 7, single buffered']
    #allocation14 [shape = 's32[1]{0}', space=sflag, size = 0x4, scoped, tag = 'scoped memory for tpu_custom_call.1']
    #allocation15 [shape = 'u8[1024]{0}', space=vmem, size = 0x400, scoped, tag = 'input window, operand 8, single buffered']
    #allocation16 [shape = 'u8[1024]{0}', space=vmem, size = 0x400, scoped, tag = 'input window, operand 9, single buffered']
    #allocation17 [shape = 's32[1]{0}', space=sflag, size = 0x4, scoped, tag = 'scoped memory for tpu_custom_call.1']
    #allocation18 [shape = 'u8[1024]{0}', space=vmem, size = 0x400, scoped, tag = 'input window, operand 10, single buffered']
    #allocation19 [shape = 'u8[262144]{0}', space=vmem, size = 0x40000, scoped, tag = 'input window, operand 11, single buffered']
    #allocation20 [shape = 's32[1]{0}', space=sflag, size = 0x4, scoped, tag = 'scoped memory for tpu_custom_call.1']
    #allocation21 [shape = 'u8[524288]{0}', space=vmem, size = 0x80000, scoped, tag = 'input window, operand 13, single buffered']
    #allocation22 [shape = 'u8[524288]{0}', space=vmem, size = 0x80000, scoped, tag = 'input window, operand 17, single buffered']
    #allocation23 [shape = 's32[1]{0}', space=sflag, size = 0x4, scoped, tag = 'scoped memory for tpu_custom_call.1']
    #allocation24 [shape = 'u8[524288]{0}', space=vmem, size = 0x80000, scoped, tag = 'input window, operand 18, single buffered']
    #allocation25 [shape = 'u8[524288]{0}', space=vmem, size = 0x80000, scoped, tag = 'input window, operand 21, single buffered']
    #allocation26 [shape = 's32[1]{0}', space=sflag, size = 0x4, scoped, tag = 'scoped memory for tpu_custom_call.1']
    #allocation27 [shape = 'u8[524288]{0}', space=vmem, size = 0x80000, scoped, tag = 'input window, operand 22, single buffered']
    #allocation28 [shape = 'u8[4096]{0}', space=vmem, size = 0x1000, scoped, tag = 'output window, operand 0, single buffered']
    %30 = vsyncpa [#allocation5], 0
    %31 = vsyncpa [#allocation3], 0
    %32 = vsyncpa [#allocation8], 0
    %33 = vsyncpa [#allocation11], 0
    %34 = vsyncpa [#allocation14], 0
    %35 = vsyncpa [#allocation17], 0
    %36 = vsyncpa [#allocation20], 0
    %37 = vsyncpa [#allocation23], 0
    %38 = vsyncpa [#allocation26], 0
    %39 = vsyncpa [#allocation4], 0
    // Predicated region
    $region2: #{tpu_custom_call.1} parent=1 // pred_check
      _
    $region3: #{tpu_custom_call.1} parent=1 // pred_check_branch
      %41 = sbr.rel (0) target = $region5
    $region4: #{tpu_custom_call.1} parent=1 // pred_region
      %43 = vsyncadd [#allocation5], 0
      %s45 = sshll.u32 %s0, 4
      %s46 = int_to_ptr.hbm [resolvable:$true] %s45
      %48 = dma.hbm_to_smem %s46, 16, [#allocation2], [#allocation5]
    $region5: #{tpu_custom_call.1} parent=1 // pred_fallthru
      _
    // Predicated region
    $region6: #{tpu_custom_call.1} parent=1 // pred_check
      _
    $region7: #{tpu_custom_call.1} parent=1 // pred_check_branch
      %50 = sbr.rel (0) target = $region9
    $region8: #{tpu_custom_call.1} parent=1 // pred_region
      _
    $region9: #{tpu_custom_call.1} parent=1 // pred_fallthru
      _
    // Predicated region
    $region10: #{tpu_custom_call.1} parent=1 // pred_check
      _
    $region11: #{tpu_custom_call.1} parent=1 // pred_check_branch
      %52 = sbr.rel (0) target = $region13
    $region12: #{tpu_custom_call.1} parent=1 // pred_region
      %54 = vsyncadd [#allocation3], 0
      %s56 = sshll.u32 %s2, 4
      %s57 = int_to_ptr.hbm [resolvable:$true] %s56
      %s58 = sshll.u32 [#allocation6], 4
      %s59 = int_to_ptr.vmem [resolvable:$true] %s58
      %61 = dma.hbm_to_vmem [thread:$0]  %s57, 768, %s59, [#allocation3]
    $region13: #{tpu_custom_call.1} parent=1 // pred_fallthru
      _
    // Predicated region
    $region14: #{tpu_custom_call.1} parent=1 // pred_check
      _
    $region15: #{tpu_custom_call.1} parent=1 // pred_check_branch
      %63 = sbr.rel (0) target = $region17
    $region16: #{tpu_custom_call.1} parent=1 // pred_region
      %65 = vsyncadd [#allocation8], 0
      %s67 = sshll.u32 %s3, 4
      %s68 = int_to_ptr.hbm [resolvable:$true] %s67
      %s69 = sshll.u32 [#allocation7], 4
      %s70 = int_to_ptr.vmem [resolvable:$true] %s69
      %72 = dma.hbm_to_vmem [thread:$0]  %s68, 512, %s70, [#allocation8]
    $region17: #{tpu_custom_call.1} parent=1 // pred_fallthru
      _
    // Predicated region
    $region18: #{tpu_custom_call.1} parent=1 // pred_check
      _
    $region19: #{tpu_custom_call.1} parent=1 // pred_check_branch
      %74 = sbr.rel (0) target = $region21
    $region20: #{tpu_custom_call.1} parent=1 // pred_region
      %76 = vsyncadd [#allocation8], 0
      %s77 = sshll.u32 %s4, 4
      %s78 = int_to_ptr.hbm [resolvable:$true] %s77
      %s79 = sshll.u32 [#allocation9], 4
      %s80 = int_to_ptr.vmem [resolvable:$true] %s79
      %85 = dma.hbm_to_vmem [thread:$0]  %s78, 1024, %s80, [#allocation8], 512, 512, 32
    $region21: #{tpu_custom_call.1} parent=1 // pred_fallthru
      _
    // Predicated region
    $region22: #{tpu_custom_call.1} parent=1 // pred_check
      _
    $region23: #{tpu_custom_call.1} parent=1 // pred_check_branch
      %87 = sbr.rel (0) target = $region25
    $region24: #{tpu_custom_call.1} parent=1 // pred_region
      %89 = vsyncadd [#allocation11], 0
      %s90 = sshll.u32 %s5, 4
      %s91 = int_to_ptr.hbm [resolvable:$true] %s90
      %s92 = sshll.u32 [#allocation10], 4
      %s93 = int_to_ptr.vmem [resolvable:$true] %s92
      %98 = dma.hbm_to_vmem [thread:$0]  %s91, 12288, %s93, [#allocation11], 128, 128, 8
    $region25: #{tpu_custom_call.1} parent=1 // pred_fallthru
      _
    // Predicated region
    $region26: #{tpu_custom_call.1} parent=1 // pred_check
      _
    $region27: #{tpu_custom_call.1} parent=1 // pred_check_branch
      %100 = sbr.rel (0) target = $region29
    $region28: #{tpu_custom_call.1} parent=1 // pred_region
      %102 = vsyncadd [#allocation11], 0
      %s104 = sshll.u32 %s6, 4
      %s105 = int_to_ptr.hbm [resolvable:$true] %s104
      %s106 = sshll.u32 [#allocation12], 4
      %s107 = int_to_ptr.vmem [resolvable:$true] %s106
      %109 = dma.hbm_to_vmem [thread:$0]  %s105, 32, %s107, [#allocation11]
    $region29: #{tpu_custom_call.1} parent=1 // pred_fallthru
      _
    // Predicated region
    $region30: #{tpu_custom_call.1} parent=1 // pred_check
      _
    $region31: #{tpu_custom_call.1} parent=1 // pred_check_branch
      %111 = sbr.rel (0) target = $region33
    $region32: #{tpu_custom_call.1} parent=1 // pred_region
      %113 = vsyncadd [#allocation14], 0
      %s114 = sshll.u32 %s7, 4
      %s115 = int_to_ptr.hbm [resolvable:$true] %s114
      %s116 = sshll.u32 [#allocation13], 4
      %s117 = int_to_ptr.vmem [resolvable:$true] %s116
      %122 = dma.hbm_to_vmem [thread:$0]  %s115, 4096, %s117, [#allocation14], 128, 128, 8
    $region33: #{tpu_custom_call.1} parent=1 // pred_fallthru
      _
    // Predicated region
    $region34: #{tpu_custom_call.1} parent=1 // pred_check
      _
    $region35: #{tpu_custom_call.1} parent=1 // pred_check_branch
      %124 = sbr.rel (0) target = $region37
    $region36: #{tpu_custom_call.1} parent=1 // pred_region
      %126 = vsyncadd [#allocation14], 0
      %s128 = sshll.u32 %s8, 4
      %s129 = int_to_ptr.hbm [resolvable:$true] %s128
      %s130 = sshll.u32 [#allocation15], 4
      %s131 = int_to_ptr.vmem [resolvable:$true] %s130
      %133 = dma.hbm_to_vmem [thread:$0]  %s129, 32, %s131, [#allocation14]
    $region37: #{tpu_custom_call.1} parent=1 // pred_fallthru
      _
    // Predicated region
    $region38: #{tpu_custom_call.1} parent=1 // pred_check
      _
    $region39: #{tpu_custom_call.1} parent=1 // pred_check_branch
      %135 = sbr.rel (0) target = $region41
    $region40: #{tpu_custom_call.1} parent=1 // pred_region
      %137 = vsyncadd [#allocation17], 0
      %s139 = sshll.u32 %s9, 4
      %s140 = int_to_ptr.hbm [resolvable:$true] %s139
      %s141 = sshll.u32 [#allocation16], 4
      %s142 = int_to_ptr.vmem [resolvable:$true] %s141
      %144 = dma.hbm_to_vmem [thread:$0]  %s140, 32, %s142, [#allocation17]
    $region41: #{tpu_custom_call.1} parent=1 // pred_fallthru
      _
    // Predicated region
    $region42: #{tpu_custom_call.1} parent=1 // pred_check
      _
    $region43: #{tpu_custom_call.1} parent=1 // pred_check_branch
      %146 = sbr.rel (0) target = $region45
    $region44: #{tpu_custom_call.1} parent=1 // pred_region
      %148 = vsyncadd [#allocation17], 0
      %s150 = sshll.u32 %s10, 4
      %s151 = int_to_ptr.hbm [resolvable:$true] %s150
      %s152 = sshll.u32 [#allocation18], 4
      %s153 = int_to_ptr.vmem [resolvable:$true] %s152
      %155 = dma.hbm_to_vmem [thread:$0]  %s151, 32, %s153, [#allocation17]
    $region45: #{tpu_custom_call.1} parent=1 // pred_fallthru
      _
    // Predicated region
    $region46: #{tpu_custom_call.1} parent=1 // pred_check
      _
    $region47: #{tpu_custom_call.1} parent=1 // pred_check_branch
      %157 = sbr.rel (0) target = $region49
    $region48: #{tpu_custom_call.1} parent=1 // pred_region
      %159 = vsyncadd [#allocation20], 0
      %s160 = sshll.u32 %s11, 4
      %s161 = int_to_ptr.hbm [resolvable:$true] %s160
      %s162 = sshll.u32 [#allocation19], 4
      %s163 = int_to_ptr.vmem [resolvable:$true] %s162
      %168 = dma.hbm_to_vmem [thread:$0]  %s161, 8192, %s163, [#allocation20], 256, 256, 16
    $region49: #{tpu_custom_call.1} parent=1 // pred_fallthru
      _
    // Predicated region
    $region50: #{tpu_custom_call.1} parent=1 // pred_check
      _
    $region51: #{tpu_custom_call.1} parent=1 // pred_check_branch
      %170 = sbr.rel (0) target = $region53
    $region52: #{tpu_custom_call.1} parent=1 // pred_region
      _
    $region53: #{tpu_custom_call.1} parent=1 // pred_fallthru
      _
    // Predicated region
    $region54: #{tpu_custom_call.1} parent=1 // pred_check
      _
    $region55: #{tpu_custom_call.1} parent=1 // pred_check_branch
      %172 = sbr.rel (0) target = $region57
    $region56: #{tpu_custom_call.1} parent=1 // pred_region
      %174 = vsyncadd [#allocation20], 0
      %s175 = sshll.u32 %s13, 4
      %s176 = int_to_ptr.hbm [resolvable:$true] %s175
      %s177 = sshll.u32 [#allocation21], 4
      %s178 = int_to_ptr.vmem [resolvable:$true] %s177
      %183 = dma.hbm_to_vmem [thread:$0]  %s176, 16384, %s178, [#allocation20], 256, 256, 16
    $region57: #{tpu_custom_call.1} parent=1 // pred_fallthru
      _
    // Predicated region
    $region58: #{tpu_custom_call.1} parent=1 // pred_check
      _
    $region59: #{tpu_custom_call.1} parent=1 // pred_check_branch
      %185 = sbr.rel (0) target = $region61
    $region60: #{tpu_custom_call.1} parent=1 // pred_region
      _
    $region61: #{tpu_custom_call.1} parent=1 // pred_fallthru
      _
    // Predicated region
    $region62: #{tpu_custom_call.1} parent=1 // pred_check
      _
    $region63: #{tpu_custom_call.1} parent=1 // pred_check_branch
      %187 = sbr.rel (0) target = $region65
    $region64: #{tpu_custom_call.1} parent=1 // pred_region
      _
    $region65: #{tpu_custom_call.1} parent=1 // pred_fallthru
      _
    // Predicated region
    $region66: #{tpu_custom_call.1} parent=1 // pred_check
      _
    $region67: #{tpu_custom_call.1} parent=1 // pred_check_branch
      %189 = sbr.rel (0) target = $region69
    $region68: #{tpu_custom_call.1} parent=1 // pred_region
      _
    $region69: #{tpu_custom_call.1} parent=1 // pred_fallthru
      _
    // Predicated region
    $region70: #{tpu_custom_call.1} parent=1 // pred_check
      _
    $region71: #{tpu_custom_call.1} parent=1 // pred_check_branch
      %191 = sbr.rel (0) target = $region73
    $region72: #{tpu_custom_call.1} parent=1 // pred_region
      %193 = vsyncadd [#allocation23], 0
      %s194 = sshll.u32 %s17, 4
      %s195 = int_to_ptr.hbm [resolvable:$true] %s194
      %s196 = sshll.u32 [#allocation22], 4
      %s197 = int_to_ptr.vmem [resolvable:$true] %s196
      %202 = dma.hbm_to_vmem [thread:$0]  %s195, 16384, %s197, [#allocation23], 256, 256, 16
    $region73: #{tpu_custom_call.1} parent=1 // pred_fallthru
      _
    // Predicated region
    $region74: #{tpu_custom_call.1} parent=1 // pred_check
      _
    $region75: #{tpu_custom_call.1} parent=1 // pred_check_branch
      %204 = sbr.rel (0) target = $region77
    $region76: #{tpu_custom_call.1} parent=1 // pred_region
      %206 = vsyncadd [#allocation23], 0
      %s207 = sshll.u32 %s18, 4
      %s208 = int_to_ptr.hbm [resolvable:$true] %s207
      %s209 = sshll.u32 [#allocation24], 4
      %s210 = int_to_ptr.vmem [resolvable:$true] %s209
      %215 = dma.hbm_to_vmem [thread:$0]  %s208, 16384, %s210, [#allocation23], 256, 256, 16
    $region77: #{tpu_custom_call.1} parent=1 // pred_fallthru
      _
    // Predicated region
    $region78: #{tpu_custom_call.1} parent=1 // pred_check
      _
    $region79: #{tpu_custom_call.1} parent=1 // pred_check_branch
      %217 = sbr.rel (0) target = $region81
    $region80: #{tpu_custom_call.1} parent=1 // pred_region
      _
    $region81: #{tpu_custom_call.1} parent=1 // pred_fallthru
      _
    // Predicated region
    $region82: #{tpu_custom_call.1} parent=1 // pred_check
      _
    $region83: #{tpu_custom_call.1} parent=1 // pred_check_branch
      %219 = sbr.rel (0) target = $region85
    $region84: #{tpu_custom_call.1} parent=1 // pred_region
      _
    $region85: #{tpu_custom_call.1} parent=1 // pred_fallthru
      _
    // Predicated region
    $region86: #{tpu_custom_call.1} parent=1 // pred_check
      _
    $region87: #{tpu_custom_call.1} parent=1 // pred_check_branch
      %221 = sbr.rel (0) target = $region89
    $region88: #{tpu_custom_call.1} parent=1 // pred_region
      %223 = vsyncadd [#allocation26], 0
      %s224 = sshll.u32 %s21, 4
      %s225 = int_to_ptr.hbm [resolvable:$true] %s224
      %s226 = sshll.u32 [#allocation25], 4
      %s227 = int_to_ptr.vmem [resolvable:$true] %s226
      %232 = dma.hbm_to_vmem [thread:$0]  %s225, 16384, %s227, [#allocation26], 256, 256, 16
    $region89: #{tpu_custom_call.1} parent=1 // pred_fallthru
      _
    // Predicated region
    $region90: #{tpu_custom_call.1} parent=1 // pred_check
      _
    $region91: #{tpu_custom_call.1} parent=1 // pred_check_branch
      %234 = sbr.rel (0) target = $region93
    $region92: #{tpu_custom_call.1} parent=1 // pred_region
      %236 = vsyncadd [#allocation26], 0
      %s237 = sshll.u32 %s22, 4
      %s238 = int_to_ptr.hbm [resolvable:$true] %s237
      %s239 = sshll.u32 [#allocation27], 4
      %s240 = int_to_ptr.vmem [resolvable:$true] %s239
      %245 = dma.hbm_to_vmem [thread:$0]  %s238, 16384, %s240, [#allocation26], 256, 256, 16
    $region93: #{tpu_custom_call.1} parent=1 // pred_fallthru
      _
    // Predicated region
    $region94: #{tpu_custom_call.1} parent=1 // pred_check
      _
    $region95: #{tpu_custom_call.1} parent=1 // pred_check_branch
      %247 = sbr.rel (0) target = $region97
    $region96: #{tpu_custom_call.1} parent=1 // pred_region
      _
    $region97: #{tpu_custom_call.1} parent=1 // pred_fallthru
      _
    // Predicated region
    $region98: #{tpu_custom_call.1} parent=1 // pred_check
      _
    $region99: #{tpu_custom_call.1} parent=1 // pred_check_branch
      %249 = sbr.rel (0) target = $region101
    $region100: #{tpu_custom_call.1} parent=1 // pred_region
      _
    $region101: #{tpu_custom_call.1} parent=1 // pred_fallthru
      _
    // Predicated region
    $region102: #{tpu_custom_call.1} parent=1 // pred_check
      _
    $region103: #{tpu_custom_call.1} parent=1 // pred_check_branch
      %251 = sbr.rel (0) target = $region105
    $region104: #{tpu_custom_call.1} parent=1 // pred_region
      %253 = dma.done [#allocation5], 16
    $region105: #{tpu_custom_call.1} parent=1 // pred_fallthru
      _
    // Predicated region
    $region106: #{tpu_custom_call.1} parent=1 // pred_check
      _
    $region107: #{tpu_custom_call.1} parent=1 // pred_check_branch
      %255 = sbr.rel (0) target = $region109
    $region108: #{tpu_custom_call.1} parent=1 // pred_region
      %257 = dma.done [#allocation3], 768
    $region109: #{tpu_custom_call.1} parent=1 // pred_fallthru
      _
    // Predicated region
    $region110: #{tpu_custom_call.1} parent=1 // pred_check
      _
    $region111: #{tpu_custom_call.1} parent=1 // pred_check_branch
      %259 = sbr.rel (0) target = $region113
    $region112: #{tpu_custom_call.1} parent=1 // pred_region
      %261 = dma.done [#allocation8], 512
    $region113: #{tpu_custom_call.1} parent=1 // pred_fallthru
      _
    // Predicated region
    $region114: #{tpu_custom_call.1} parent=1 // pred_check
      _
    $region115: #{tpu_custom_call.1} parent=1 // pred_check_branch
      %263 = sbr.rel (0) target = $region117
    $region116: #{tpu_custom_call.1} parent=1 // pred_region
      %265 = dma.done [#allocation8], 1024
    $region117: #{tpu_custom_call.1} parent=1 // pred_fallthru
      _
    // Predicated region
    $region118: #{tpu_custom_call.1} parent=1 // pred_check
      _
    $region119: #{tpu_custom_call.1} parent=1 // pred_check_branch
      %267 = sbr.rel (0) target = $region121
    $region120: #{tpu_custom_call.1} parent=1 // pred_region
      %269 = dma.done [#allocation11], 12288
    $region121: #{tpu_custom_call.1} parent=1 // pred_fallthru
      _
    // Predicated region
    $region122: #{tpu_custom_call.1} parent=1 // pred_check
      _
    $region123: #{tpu_custom_call.1} parent=1 // pred_check_branch
      %271 = sbr.rel (0) target = $region125
    $region124: #{tpu_custom_call.1} parent=1 // pred_region
      %273 = dma.done [#allocation11], 32
    $region125: #{tpu_custom_call.1} parent=1 // pred_fallthru
      _
    // Predicated region
    $region126: #{tpu_custom_call.1} parent=1 // pred_check
      _
    $region127: #{tpu_custom_call.1} parent=1 // pred_check_branch
      %275 = sbr.rel (0) target = $region129
    $region128: #{tpu_custom_call.1} parent=1 // pred_region
      %277 = dma.done [#allocation14], 4096
    $region129: #{tpu_custom_call.1} parent=1 // pred_fallthru
      _
    // Predicated region
    $region130: #{tpu_custom_call.1} parent=1 // pred_check
      _
    $region131: #{tpu_custom_call.1} parent=1 // pred_check_branch
      %279 = sbr.rel (0) target = $region133
    $region132: #{tpu_custom_call.1} parent=1 // pred_region
      %281 = dma.done [#allocation14], 32
    $region133: #{tpu_custom_call.1} parent=1 // pred_fallthru
      _
    // Predicated region
    $region134: #{tpu_custom_call.1} parent=1 // pred_check
      _
    $region135: #{tpu_custom_call.1} parent=1 // pred_check_branch
      %283 = sbr.rel (0) target = $region137
    $region136: #{tpu_custom_call.1} parent=1 // pred_region
      %285 = dma.done [#allocation17], 32
    $region137: #{tpu_custom_call.1} parent=1 // pred_fallthru
      _
    // Predicated region
    $region138: #{tpu_custom_call.1} parent=1 // pred_check
      _
    $region139: #{tpu_custom_call.1} parent=1 // pred_check_branch
      %287 = sbr.rel (0) target = $region141
    $region140: #{tpu_custom_call.1} parent=1 // pred_region
      %289 = dma.done [#allocation17], 32
    $region141: #{tpu_custom_call.1} parent=1 // pred_fallthru
      _
    // Predicated region
    $region142: #{tpu_custom_call.1} parent=1 // pred_check
      _
    $region143: #{tpu_custom_call.1} parent=1 // pred_check_branch
      %291 = sbr.rel (0) target = $region145
    $region144: #{tpu_custom_call.1} parent=1 // pred_region
      %293 = dma.done [#allocation20], 8192
    $region145: #{tpu_custom_call.1} parent=1 // pred_fallthru
      _
    // Predicated region
    $region146: #{tpu_custom_call.1} parent=1 // pred_check
      _
    $region147: #{tpu_custom_call.1} parent=1 // pred_check_branch
      %295 = sbr.rel (0) target = $region149
    $region148: #{tpu_custom_call.1} parent=1 // pred_region
      %297 = dma.done [#allocation20], 16384
    $region149: #{tpu_custom_call.1} parent=1 // pred_fallthru
      _
    // Predicated region
    $region150: #{tpu_custom_call.1} parent=1 // pred_check
      _
    $region151: #{tpu_custom_call.1} parent=1 // pred_check_branch
      %299 = sbr.rel (0) target = $region153
    $region152: #{tpu_custom_call.1} parent=1 // pred_region
      %301 = dma.done [#allocation23], 16384
    $region153: #{tpu_custom_call.1} parent=1 // pred_fallthru
      _
    // Predicated region
    $region154: #{tpu_custom_call.1} parent=1 // pred_check
      _
    $region155: #{tpu_custom_call.1} parent=1 // pred_check_branch
      %303 = sbr.rel (0) target = $region157
    $region156: #{tpu_custom_call.1} parent=1 // pred_region
      %305 = dma.done [#allocation23], 16384
    $region157: #{tpu_custom_call.1} parent=1 // pred_fallthru
      _
    // Predicated region
    $region158: #{tpu_custom_call.1} parent=1 // pred_check
      _
    $region159: #{tpu_custom_call.1} parent=1 // pred_check_branch
      %307 = sbr.rel (0) target = $region161
    $region160: #{tpu_custom_call.1} parent=1 // pred_region
      %309 = dma.done [#allocation26], 16384
    $region161: #{tpu_custom_call.1} parent=1 // pred_fallthru
      _
    // Predicated region
    $region162: #{tpu_custom_call.1} parent=1 // pred_check
      _
    $region163: #{tpu_custom_call.1} parent=1 // pred_check_branch
      %311 = sbr.rel (0) target = $region165
    $region164: #{tpu_custom_call.1} parent=1 // pred_region
      %313 = dma.done [#allocation26], 16384
    $region165: #{tpu_custom_call.1} parent=1 // pred_fallthru
      _
    %314 = sfence
    %s316 = sld [smem:[#allocation2]]
    %s317 = sld [smem:[#allocation2 + $0x1]]
    %v318 = vld [vmem:[#allocation7] sm:$0xff]
    %v319 = vld [vmem:[#allocation7 + $0x8] sm:$0xff]
    %v320 = vld [vmem:[#allocation7 + $0x10] sm:$0xff]
    %v321 = vld [vmem:[#allocation7 + $0x18] sm:$0xff]
    %v322 = vmul.f32 %v318, %v318
    %v323 = vmul.f32 %v319, %v319
    %v324 = vmul.f32 %v320, %v320
    %v325 = vmul.f32 %v321, %v321
    %v326 = vadd.f32 %v322, %v323
    %v327 = vadd.f32 %v326, %v324
    %v328 = vadd.f32 %v327, %v325
    %329 = vadd.xlane.f32.xlu0 %v328
    %v330 = vpop.xlane.xlu0 %329
    %v331 = vadd.f32 %v330, 1e-12
    %v332 = vrsqrt.pop %v331
    %v333 = vmul.f32 %v332, %v331
    %v334 = vmul.f32 %v333, %v332
    %v335 = vmul.f32 0.5, %v334
    %v336 = vsub.f32 1.5, %v335
    %v337 = vmul.f32 %v332, %v336
    %vm338 = vweird.f32 %v331
    %vm339 = vweird.f32 %v332
    %vm340 = vmor %vm338, %vm339
    %v341 = vsel %vm340, %v332, %v337
    %v342 = vmul.f32 %v318, %v341
    %v343 = vmul.f32 %v319, %v341
    %v344 = vmul.f32 %v320, %v341
    %v345 = vmul.f32 %v321, %v341
    %v346 = vld [vmem:[#allocation6] sm:$0xff]
    %v347 = vld [vmem:[#allocation6 + $0x8] sm:$0xff]
    %v348 = vld [vmem:[#allocation6 + $0x10] sm:$0xff]
    %v349 = vld [vmem:[#allocation6 + $0x18] sm:$0xff]
    %v350 = vld [vmem:[#allocation6 + $0x20] sm:$0xff]
    %v351 = vld [vmem:[#allocation6 + $0x28] sm:$0xff]
    %v352 = vpack.c.bf16 %v346, %v346
    %v353 = vpack.c.bf16 %v347, %v347
    %v354 = vpack.c.bf16 %v348, %v348
    %v355 = vpack.c.bf16 %v349, %v349
    %v356 = vpack.c.bf16 %v350, %v350
    %v357 = vpack.c.bf16 %v351, %v351
    %v358 = vld [vmem:[#allocation10] sm:$0xff]
    %v359 = vld [vmem:[#allocation10 + $0x8] sm:$0xff]
    %v360 = vld [vmem:[#allocation10 + $0x10] sm:$0xff]
    %v361 = vld [vmem:[#allocation10 + $0x18] sm:$0xff]
    %v362 = vld [vmem:[#allocation10 + $0x20] sm:$0xff]
    %v363 = vld [vmem:[#allocation10 + $0x28] sm:$0xff]
    %v364 = vld [vmem:[#allocation10 + $0x30] sm:$0xff]
    %v365 = vld [vmem:[#allocation10 + $0x38] sm:$0xff]
    %v366 = vld [vmem:[#allocation10 + $0x40] sm:$0xff]
    %v367 = vld [vmem:[#allocation10 + $0x48] sm:$0xff]
    %v368 = vld [vmem:[#allocation10 + $0x50] sm:$0xff]
    %v369 = vld [vmem:[#allocation10 + $0x58] sm:$0xff]
    %v370 = vld [vmem:[#allocation10 + $0x60] sm:$0xff]
    %v371 = vld [vmem:[#allocation10 + $0x68] sm:$0xff]
    %v372 = vld [vmem:[#allocation10 + $0x70] sm:$0xff]
    %v373 = vld [vmem:[#allocation10 + $0x78] sm:$0xff]
    %v374 = vld [vmem:[#allocation10 + $0x80] sm:$0xff]
    %v375 = vld [vmem:[#allocation10 + $0x88] sm:$0xff]
    %v376 = vld [vmem:[#allocation10 + $0x90] sm:$0xff]
    %v377 = vld [vmem:[#allocation10 + $0x98] sm:$0xff]
    %v378 = vld [vmem:[#allocation10 + $0xa0] sm:$0xff]
    %v379 = vld [vmem:[#allocation10 + $0xa8] sm:$0xff]
    %v380 = vld [vmem:[#allocation10 + $0xb0] sm:$0xff]
    %v381 = vld [vmem:[#allocation10 + $0xb8] sm:$0xff]
    %v382 = vld [vmem:[#allocation10 + $0xc0] sm:$0xff]
    %v383 = vld [vmem:[#allocation10 + $0xc8] sm:$0xff]
    %v384 = vld [vmem:[#allocation10 + $0xd0] sm:$0xff]
    %v385 = vld [vmem:[#allocation10 + $0xd8] sm:$0xff]
    %v386 = vld [vmem:[#allocation10 + $0xe0] sm:$0xff]
    %v387 = vld [vmem:[#allocation10 + $0xe8] sm:$0xff]
    %v388 = vld [vmem:[#allocation10 + $0xf0] sm:$0xff]
    %v389 = vld [vmem:[#allocation10 + $0xf8] sm:$0xff]
    %v390 = vld [vmem:[#allocation10 + $0x100] sm:$0xff]
    %v391 = vld [vmem:[#allocation10 + $0x108] sm:$0xff]
    %v392 = vld [vmem:[#allocation10 + $0x110] sm:$0xff]
    %v393 = vld [vmem:[#allocation10 + $0x118] sm:$0xff]
    %v394 = vld [vmem:[#allocation10 + $0x120] sm:$0xff]
    %v395 = vld [vmem:[#allocation10 + $0x128] sm:$0xff]
    %v396 = vld [vmem:[#allocation10 + $0x130] sm:$0xff]
    %v397 = vld [vmem:[#allocation10 + $0x138] sm:$0xff]
    %v398 = vld [vmem:[#allocation10 + $0x140] sm:$0xff]
    %v399 = vld [vmem:[#allocation10 + $0x148] sm:$0xff]
    %v400 = vld [vmem:[#allocation10 + $0x150] sm:$0xff]
    %v401 = vld [vmem:[#allocation10 + $0x158] sm:$0xff]
    %v402 = vld [vmem:[#allocation10 + $0x160] sm:$0xff]
    %v403 = vld [vmem:[#allocation10 + $0x168] sm:$0xff]
    %v404 = vld [vmem:[#allocation10 + $0x170] sm:$0xff]
    %v405 = vld [vmem:[#allocation10 + $0x178] sm:$0xff]
    %v406 = vld [vmem:[#allocation10 + $0x180] sm:$0xff]
    %v407 = vld [vmem:[#allocation10 + $0x188] sm:$0xff]
    %v408 = vld [vmem:[#allocation10 + $0x190] sm:$0xff]
    %v409 = vld [vmem:[#allocation10 + $0x198] sm:$0xff]
    %v410 = vld [vmem:[#allocation10 + $0x1a0] sm:$0xff]
    %v411 = vld [vmem:[#allocation10 + $0x1a8] sm:$0xff]
    %v412 = vld [vmem:[#allocation10 + $0x1b0] sm:$0xff]
    %v413 = vld [vmem:[#allocation10 + $0x1b8] sm:$0xff]
    %v414 = vld [vmem:[#allocation10 + $0x1c0] sm:$0xff]
    %v415 = vld [vmem:[#allocation10 + $0x1c8] sm:$0xff]
    %v416 = vld [vmem:[#allocation10 + $0x1d0] sm:$0xff]
    %v417 = vld [vmem:[#allocation10 + $0x1d8] sm:$0xff]
    %v418 = vld [vmem:[#allocation10 + $0x1e0] sm:$0xff]
    %v419 = vld [vmem:[#allocation10 + $0x1e8] sm:$0xff]
    %v420 = vld [vmem:[#allocation10 + $0x1f0] sm:$0xff]
    %v421 = vld [vmem:[#allocation10 + $0x1f8] sm:$0xff]
    %v422 = vld [vmem:[#allocation10 + $0x200] sm:$0xff]
    %v423 = vld [vmem:[#allocation10 + $0x208] sm:$0xff]
    %v424 = vld [vmem:[#allocation10 + $0x210] sm:$0xff]
    %v425 = vld [vmem:[#allocation10 + $0x218] sm:$0xff]
    %v426 = vld [vmem:[#allocation10 + $0x220] sm:$0xff]
    %v427 = vld [vmem:[#allocation10 + $0x228] sm:$0xff]
    %v428 = vld [vmem:[#allocation10 + $0x230] sm:$0xff]
    %v429 = vld [vmem:[#allocation10 + $0x238] sm:$0xff]
    %v430 = vld [vmem:[#allocation10 + $0x240] sm:$0xff]
    %v431 = vld [vmem:[#allocation10 + $0x248] sm:$0xff]
    %v432 = vld [vmem:[#allocation10 + $0x250] sm:$0xff]
    %v433 = vld [vmem:[#allocation10 + $0x258] sm:$0xff]
    %v434 = vld [vmem:[#allocation10 + $0x260] sm:$0xff]
    %v435 = vld [vmem:[#allocation10 + $0x268] sm:$0xff]
    %v436 = vld [vmem:[#allocation10 + $0x270] sm:$0xff]
    %v437 = vld [vmem:[#allocation10 + $0x278] sm:$0xff]
    %v438 = vld [vmem:[#allocation10 + $0x280] sm:$0xff]
    %v439 = vld [vmem:[#allocation10 + $0x288] sm:$0xff]
    %v440 = vld [vmem:[#allocation10 + $0x290] sm:$0xff]
    %v441 = vld [vmem:[#allocation10 + $0x298] sm:$0xff]
    %v442 = vld [vmem:[#allocation10 + $0x2a0] sm:$0xff]
    %v443 = vld [vmem:[#allocation10 + $0x2a8] sm:$0xff]
    %v444 = vld [vmem:[#allocation10 + $0x2b0] sm:$0xff]
    %v445 = vld [vmem:[#allocation10 + $0x2b8] sm:$0xff]
    %v446 = vld [vmem:[#allocation10 + $0x2c0] sm:$0xff]
    %v447 = vld [vmem:[#allocation10 + $0x2c8] sm:$0xff]
    %v448 = vld [vmem:[#allocation10 + $0x2d0] sm:$0xff]
    %v449 = vld [vmem:[#allocation10 + $0x2d8] sm:$0xff]
    %v450 = vld [vmem:[#allocation10 + $0x2e0] sm:$0xff]
    %v451 = vld [vmem:[#allocation10 + $0x2e8] sm:$0xff]
    %v452 = vld [vmem:[#allocation10 + $0x2f0] sm:$0xff]
    %v453 = vld [vmem:[#allocation10 + $0x2f8] sm:$0xff]
    %v454 = vld [vmem:[#allocation12] sm:$0x3]
    %v456 = vperm.slane %v454, 0
    %v457 = vperm.slane %v454, 1
    %v556 = vunpack.c.l.b16 %v358
    %v557 = vunpack.c.h.b16 %v358
    %v558 = vunpack.c.l.b16 %v359
    %v559 = vunpack.c.h.b16 %v359
    %v560 = vunpack.c.l.b16 %v360
    %v561 = vunpack.c.h.b16 %v360
    %v562 = vunpack.c.l.b16 %v361
    %v563 = vunpack.c.h.b16 %v361
    %v564 = vunpack.c.l.b16 %v362
    %v565 = vunpack.c.h.b16 %v362
    %v566 = vunpack.c.l.b16 %v363
    %v567 = vunpack.c.h.b16 %v363
    %v568 = vunpack.c.l.b16 %v364
    %v569 = vunpack.c.h.b16 %v364
    %v570 = vunpack.c.l.b16 %v365
    %v571 = vunpack.c.h.b16 %v365
    %v572 = vunpack.c.l.b16 %v366
    %v573 = vunpack.c.h.b16 %v366
    %v574 = vunpack.c.l.b16 %v367
    %v575 = vunpack.c.h.b16 %v367
    %v576 = vunpack.c.l.b16 %v368
    %v577 = vunpack.c.h.b16 %v368
    %v578 = vunpack.c.l.b16 %v369
    %v579 = vunpack.c.h.b16 %v369
    %v580 = vunpack.c.l.b16 %v370
    %v581 = vunpack.c.h.b16 %v370
    %v582 = vunpack.c.l.b16 %v371
    %v583 = vunpack.c.h.b16 %v371
    %v584 = vunpack.c.l.b16 %v372
    %v585 = vunpack.c.h.b16 %v372
    %v586 = vunpack.c.l.b16 %v373
    %v587 = vunpack.c.h.b16 %v373
    %v588 = vunpack.c.l.b16 %v374
    %v589 = vunpack.c.h.b16 %v374
    %v590 = vunpack.c.l.b16 %v375
    %v591 = vunpack.c.h.b16 %v375
    %v592 = vunpack.c.l.b16 %v376
    %v593 = vunpack.c.h.b16 %v376
    %v594 = vunpack.c.l.b16 %v377
    %v595 = vunpack.c.h.b16 %v377
    %v596 = vunpack.c.l.b16 %v378
    %v597 = vunpack.c.h.b16 %v378
    %v598 = vunpack.c.l.b16 %v379
    %v599 = vunpack.c.h.b16 %v379
    %v600 = vunpack.c.l.b16 %v380
    %v601 = vunpack.c.h.b16 %v380
    %v602 = vunpack.c.l.b16 %v381
    %v603 = vunpack.c.h.b16 %v381
    %v604 = vunpack.c.l.b16 %v382
    %v605 = vunpack.c.h.b16 %v382
    %v606 = vunpack.c.l.b16 %v383
    %v607 = vunpack.c.h.b16 %v383
    %v608 = vunpack.c.l.b16 %v384
    %v609 = vunpack.c.h.b16 %v384
    %v610 = vunpack.c.l.b16 %v385
    %v611 = vunpack.c.h.b16 %v385
    %v612 = vunpack.c.l.b16 %v386
    %v613 = vunpack.c.h.b16 %v386
    %v614 = vunpack.c.l.b16 %v387
    %v615 = vunpack.c.h.b16 %v387
    %v616 = vunpack.c.l.b16 %v388
    %v617 = vunpack.c.h.b16 %v388
    %v618 = vunpack.c.l.b16 %v389
    %v619 = vunpack.c.h.b16 %v389
    %v620 = vunpack.c.l.b16 %v390
    %v621 = vunpack.c.h.b16 %v390
    %v622 = vunpack.c.l.b16 %v391
    %v623 = vunpack.c.h.b16 %v391
    %v624 = vunpack.c.l.b16 %v392
    %v625 = vunpack.c.h.b16 %v392
    %v626 = vunpack.c.l.b16 %v393
    %v627 = vunpack.c.h.b16 %v393
    %v628 = vunpack.c.l.b16 %v394
    %v629 = vunpack.c.h.b16 %v394
    %v630 = vunpack.c.l.b16 %v395
    %v631 = vunpack.c.h.b16 %v395
    %v632 = vunpack.c.l.b16 %v396
    %v633 = vunpack.c.h.b16 %v396
    %v634 = vunpack.c.l.b16 %v397
    %v635 = vunpack.c.h.b16 %v397
    %v636 = vunpack.c.l.b16 %v398
    %v637 = vunpack.c.h.b16 %v398
    %v638 = vunpack.c.l.b16 %v399
    %v639 = vunpack.c.h.b16 %v399
    %v640 = vunpack.c.l.b16 %v400
    %v641 = vunpack.c.h.b16 %v400
    %v642 = vunpack.c.l.b16 %v401
    %v643 = vunpack.c.h.b16 %v401
    %v644 = vunpack.c.l.b16 %v402
    %v645 = vunpack.c.h.b16 %v402
    %v646 = vunpack.c.l.b16 %v403
    %v647 = vunpack.c.h.b16 %v403
    %v648 = vunpack.c.l.b16 %v404
    %v649 = vunpack.c.h.b16 %v404
    %v650 = vunpack.c.l.b16 %v405
    %v651 = vunpack.c.h.b16 %v405
    %v652 = vunpack.c.l.b16 %v406
    %v653 = vunpack.c.h.b16 %v406
    %v654 = vunpack.c.l.b16 %v407
    %v655 = vunpack.c.h.b16 %v407
    %v656 = vunpack.c.l.b16 %v408
    %v657 = vunpack.c.h.b16 %v408
    %v658 = vunpack.c.l.b16 %v409
    %v659 = vunpack.c.h.b16 %v409
    %v660 = vunpack.c.l.b16 %v410
    %v661 = vunpack.c.h.b16 %v410
    %v662 = vunpack.c.l.b16 %v411
    %v663 = vunpack.c.h.b16 %v411
    %v664 = vunpack.c.l.b16 %v412
    %v665 = vunpack.c.h.b16 %v412
    %v666 = vunpack.c.l.b16 %v413
    %v667 = vunpack.c.h.b16 %v413
    %v668 = vunpack.c.l.b16 %v414
    %v669 = vunpack.c.h.b16 %v414
    %v670 = vunpack.c.l.b16 %v415
    %v671 = vunpack.c.h.b16 %v415
    %v672 = vunpack.c.l.b16 %v416
    %v673 = vunpack.c.h.b16 %v416
    %v674 = vunpack.c.l.b16 %v417
    %v675 = vunpack.c.h.b16 %v417
    %v676 = vunpack.c.l.b16 %v418
    %v677 = vunpack.c.h.b16 %v418
    %v678 = vunpack.c.l.b16 %v419
    %v679 = vunpack.c.h.b16 %v419
    %v680 = vunpack.c.l.b16 %v420
    %v681 = vunpack.c.h.b16 %v420
    %v682 = vunpack.c.l.b16 %v421
    %v683 = vunpack.c.h.b16 %v421
    %v684 = vunpack.c.l.b16 %v422
    %v685 = vunpack.c.h.b16 %v422
    %v686 = vunpack.c.l.b16 %v423
    %v687 = vunpack.c.h.b16 %v423
    %v688 = vunpack.c.l.b16 %v424
    %v689 = vunpack.c.h.b16 %v424
    %v690 = vunpack.c.l.b16 %v425
    %v691 = vunpack.c.h.b16 %v425
    %v692 = vunpack.c.l.b16 %v426
    %v693 = vunpack.c.h.b16 %v426
    %v694 = vunpack.c.l.b16 %v427
    %v695 = vunpack.c.h.b16 %v427
    %v696 = vunpack.c.l.b16 %v428
    %v697 = vunpack.c.h.b16 %v428
    %v698 = vunpack.c.l.b16 %v429
    %v699 = vunpack.c.h.b16 %v429
    %v700 = vunpack.c.l.b16 %v430
    %v701 = vunpack.c.h.b16 %v430
    %v702 = vunpack.c.l.b16 %v431
    %v703 = vunpack.c.h.b16 %v431
    %v704 = vunpack.c.l.b16 %v432
    %v705 = vunpack.c.h.b16 %v432
    %v706 = vunpack.c.l.b16 %v433
    %v707 = vunpack.c.h.b16 %v433
    %v708 = vunpack.c.l.b16 %v434
    %v709 = vunpack.c.h.b16 %v434
    %v710 = vunpack.c.l.b16 %v435
    %v711 = vunpack.c.h.b16 %v435
    %v712 = vunpack.c.l.b16 %v436
    %v713 = vunpack.c.h.b16 %v436
    %v714 = vunpack.c.l.b16 %v437
    %v715 = vunpack.c.h.b16 %v437
    %v716 = vunpack.c.l.b16 %v438
    %v717 = vunpack.c.h.b16 %v438
    %v718 = vunpack.c.l.b16 %v439
    %v719 = vunpack.c.h.b16 %v439
    %v720 = vunpack.c.l.b16 %v440
    %v721 = vunpack.c.h.b16 %v440
    %v722 = vunpack.c.l.b16 %v441
    %v723 = vunpack.c.h.b16 %v441
    %v724 = vunpack.c.l.b16 %v442
    %v725 = vunpack.c.h.b16 %v442
    %v726 = vunpack.c.l.b16 %v443
    %v727 = vunpack.c.h.b16 %v443
    %v728 = vunpack.c.l.b16 %v444
    %v729 = vunpack.c.h.b16 %v444
    %v730 = vunpack.c.l.b16 %v445
    %v731 = vunpack.c.h.b16 %v445
    %v732 = vunpack.c.l.b16 %v446
    %v733 = vunpack.c.h.b16 %v446
    %v734 = vunpack.c.l.b16 %v447
    %v735 = vunpack.c.h.b16 %v447
    %v736 = vunpack.c.l.b16 %v448
    %v737 = vunpack.c.h.b16 %v448
    %v738 = vunpack.c.l.b16 %v449
    %v739 = vunpack.c.h.b16 %v449
    %v740 = vunpack.c.l.b16 %v450
    %v741 = vunpack.c.h.b16 %v450
    %v742 = vunpack.c.l.b16 %v451
    %v743 = vunpack.c.h.b16 %v451
    %v744 = vunpack.c.l.b16 %v452
    %v745 = vunpack.c.h.b16 %v452
    %v746 = vunpack.c.l.b16 %v453
    %v747 = vunpack.c.h.b16 %v453
    %v748 = vpack.c.b16 %v558, %v556
    %v749 = vpack.c.b16 %v559, %v557
    %v750 = vpack.c.b16 %v562, %v560
    %v751 = vpack.c.b16 %v563, %v561
    %v752 = vpack.c.b16 %v566, %v564
    %v753 = vpack.c.b16 %v567, %v565
    %v754 = vpack.c.b16 %v570, %v568
    %v755 = vpack.c.b16 %v571, %v569
    %v756 = vpack.c.b16 %v574, %v572
    %v757 = vpack.c.b16 %v575, %v573
    %v758 = vpack.c.b16 %v578, %v576
    %v759 = vpack.c.b16 %v579, %v577
    %v760 = vpack.c.b16 %v582, %v580
    %v761 = vpack.c.b16 %v583, %v581
    %v762 = vpack.c.b16 %v586, %v584
    %v763 = vpack.c.b16 %v587, %v585
    %v764 = vpack.c.b16 %v590, %v588
    %v765 = vpack.c.b16 %v591, %v589
    %v766 = vpack.c.b16 %v594, %v592
    %v767 = vpack.c.b16 %v595, %v593
    %v768 = vpack.c.b16 %v598, %v596
    %v769 = vpack.c.b16 %v599, %v597
    %v770 = vpack.c.b16 %v602, %v600
    %v771 = vpack.c.b16 %v603, %v601
    %v772 = vpack.c.b16 %v606, %v604
    %v773 = vpack.c.b16 %v607, %v605
    %v774 = vpack.c.b16 %v610, %v608
    %v775 = vpack.c.b16 %v611, %v609
    %v776 = vpack.c.b16 %v614, %v612
    %v777 = vpack.c.b16 %v615, %v613
    %v778 = vpack.c.b16 %v618, %v616
    %v779 = vpack.c.b16 %v619, %v617
    %v780 = vpack.c.b16 %v622, %v620
    %v781 = vpack.c.b16 %v623, %v621
    %v782 = vpack.c.b16 %v626, %v624
    %v783 = vpack.c.b16 %v627, %v625
    %v784 = vpack.c.b16 %v630, %v628
    %v785 = vpack.c.b16 %v631, %v629
    %v786 = vpack.c.b16 %v634, %v632
    %v787 = vpack.c.b16 %v635, %v633
    %v788 = vpack.c.b16 %v638, %v636
    %v789 = vpack.c.b16 %v639, %v637
    %v790 = vpack.c.b16 %v642, %v640
    %v791 = vpack.c.b16 %v643, %v641
    %v792 = vpack.c.b16 %v646, %v644
    %v793 = vpack.c.b16 %v647, %v645
    %v794 = vpack.c.b16 %v650, %v648
    %v795 = vpack.c.b16 %v651, %v649
    %v796 = vpack.c.b16 %v654, %v652
    %v797 = vpack.c.b16 %v655, %v653
    %v798 = vpack.c.b16 %v658, %v656
    %v799 = vpack.c.b16 %v659, %v657
    %v800 = vpack.c.b16 %v662, %v660
    %v801 = vpack.c.b16 %v663, %v661
    %v802 = vpack.c.b16 %v666, %v664
    %v803 = vpack.c.b16 %v667, %v665
    %v804 = vpack.c.b16 %v670, %v668
    %v805 = vpack.c.b16 %v671, %v669
    %v806 = vpack.c.b16 %v674, %v672
    %v807 = vpack.c.b16 %v675, %v673
    %v808 = vpack.c.b16 %v678, %v676
    %v809 = vpack.c.b16 %v679, %v677
    %v810 = vpack.c.b16 %v682, %v680
    %v811 = vpack.c.b16 %v683, %v681
    %v812 = vpack.c.b16 %v686, %v684
    %v813 = vpack.c.b16 %v687, %v685
    %v814 = vpack.c.b16 %v690, %v688
    %v815 = vpack.c.b16 %v691, %v689
    %v816 = vpack.c.b16 %v694, %v692
    %v817 = vpack.c.b16 %v695, %v693
    %v818 = vpack.c.b16 %v698, %v696
    %v819 = vpack.c.b16 %v699, %v697
    %v820 = vpack.c.b16 %v702, %v700
    %v821 = vpack.c.b16 %v703, %v701
    %v822 = vpack.c.b16 %v706, %v704
    %v823 = vpack.c.b16 %v707, %v705
    %v824 = vpack.c.b16 %v710, %v708
    %v825 = vpack.c.b16 %v711, %v709
    %v826 = vpack.c.b16 %v714, %v712
    %v827 = vpack.c.b16 %v715, %v713
    %v828 = vpack.c.b16 %v718, %v716
    %v829 = vpack.c.b16 %v719, %v717
    %v830 = vpack.c.b16 %v722, %v720
    %v831 = vpack.c.b16 %v723, %v721
    %v832 = vpack.c.b16 %v726, %v724
    %v833 = vpack.c.b16 %v727, %v725
    %v834 = vpack.c.b16 %v730, %v728
    %v835 = vpack.c.b16 %v731, %v729
    %v836 = vpack.c.b16 %v734, %v732
    %v837 = vpack.c.b16 %v735, %v733
    %v838 = vpack.c.b16 %v738, %v736
    %v839 = vpack.c.b16 %v739, %v737
    %v840 = vpack.c.b16 %v742, %v740
    %v841 = vpack.c.b16 %v743, %v741
    %v842 = vpack.c.b16 %v746, %v744
    %v843 = vpack.c.b16 %v747, %v745
    %940 = vmatpush.bf16.msra.mxu0 %v762
    %941 = vmatpush.bf16.msra.mxu0 %v760
    %942 = vmatpush.bf16.msra.mxu0 %v758
    %943 = vmatpush.bf16.msra.mxu0 %v756
    %944 = vmatpush.bf16.msra.mxu0 %v754
    %945 = vmatpush.bf16.msra.mxu0 %v752
    %946 = vmatpush.bf16.msra.mxu0 %v750
    %947 = vmatpush.bf16.msra.mxu0 %v748
    %948 = vmatmul.bf16.gmra.mxu0 %v352
    %v949 = vpop.f32.mrf.mxu0
    %v950 = vadd.f32 %v456, %v949
    %v951 = vpop.f32.mrf.mxu0
    %952 = vdwg.mxu0
    %953 = vmatpush.bf16.msra.mxu0 %v778
    %954 = vmatpush.bf16.msra.mxu0 %v776
    %955 = vmatpush.bf16.msra.mxu0 %v774
    %956 = vmatpush.bf16.msra.mxu0 %v772
    %957 = vmatpush.bf16.msra.mxu0 %v770
    %958 = vmatpush.bf16.msra.mxu0 %v768
    %959 = vmatpush.bf16.msra.mxu0 %v766
    %960 = vmatpush.bf16.msra.mxu0 %v764
    %961 = vmatmul.bf16.gmra.mxu0 %v353
    %v962 = vpop.f32.mrf.mxu0
    %v963 = vadd.f32 %v950, %v962
    %v964 = vpop.f32.mrf.mxu0
    %965 = vdwg.mxu0
    %966 = vmatpush.bf16.msra.mxu0 %v794
    %967 = vmatpush.bf16.msra.mxu0 %v792
    %968 = vmatpush.bf16.msra.mxu0 %v790
    %969 = vmatpush.bf16.msra.mxu0 %v788
    %970 = vmatpush.bf16.msra.mxu0 %v786
    %971 = vmatpush.bf16.msra.mxu0 %v784
    %972 = vmatpush.bf16.msra.mxu0 %v782
    %973 = vmatpush.bf16.msra.mxu0 %v780
    %974 = vmatmul.bf16.gmra.mxu0 %v354
    %v975 = vpop.f32.mrf.mxu0
    %v976 = vadd.f32 %v963, %v975
    %v977 = vpop.f32.mrf.mxu0
    %978 = vdwg.mxu0
    %979 = vmatpush.bf16.msra.mxu0 %v810
    %980 = vmatpush.bf16.msra.mxu0 %v808
    %981 = vmatpush.bf16.msra.mxu0 %v806
    %982 = vmatpush.bf16.msra.mxu0 %v804
    %983 = vmatpush.bf16.msra.mxu0 %v802
    %984 = vmatpush.bf16.msra.mxu0 %v800
    %985 = vmatpush.bf16.msra.mxu0 %v798
    %986 = vmatpush.bf16.msra.mxu0 %v796
    %987 = vmatmul.bf16.gmra.mxu0 %v355
    %v988 = vpop.f32.mrf.mxu0
    %v989 = vadd.f32 %v976, %v988
    %v990 = vpop.f32.mrf.mxu0
    %991 = vdwg.mxu0
    %992 = vmatpush.bf16.msra.mxu0 %v826
    %993 = vmatpush.bf16.msra.mxu0 %v824
    %994 = vmatpush.bf16.msra.mxu0 %v822
    %995 = vmatpush.bf16.msra.mxu0 %v820
    %996 = vmatpush.bf16.msra.mxu0 %v818
    %997 = vmatpush.bf16.msra.mxu0 %v816
    %998 = vmatpush.bf16.msra.mxu0 %v814
    %999 = vmatpush.bf16.msra.mxu0 %v812
    %1000 = vmatmul.bf16.gmra.mxu0 %v356
    %v1001 = vpop.f32.mrf.mxu0
    %v1002 = vadd.f32 %v989, %v1001
    %v1003 = vpop.f32.mrf.mxu0
    %1004 = vdwg.mxu0
    %1005 = vmatpush.bf16.msra.mxu0 %v842
    %1006 = vmatpush.bf16.msra.mxu0 %v840
    %1007 = vmatpush.bf16.msra.mxu0 %v838
    %1008 = vmatpush.bf16.msra.mxu0 %v836
    %1009 = vmatpush.bf16.msra.mxu0 %v834
    %1010 = vmatpush.bf16.msra.mxu0 %v832
    %1011 = vmatpush.bf16.msra.mxu0 %v830
    %1012 = vmatpush.bf16.msra.mxu0 %v828
    %1013 = vmatmul.bf16.gmra.mxu0 %v357
    %v1014 = vpop.f32.mrf.mxu0
    %v1015 = vadd.f32 %v1002, %v1014
    %v1016 = vpop.f32.mrf.mxu0
    %1017 = vdwg.mxu0
    %1018 = vmatpush.bf16.msra.mxu0 %v763
    %1019 = vmatpush.bf16.msra.mxu0 %v761
    %1020 = vmatpush.bf16.msra.mxu0 %v759
    %1021 = vmatpush.bf16.msra.mxu0 %v757
    %1022 = vmatpush.bf16.msra.mxu0 %v755
    %1023 = vmatpush.bf16.msra.mxu0 %v753
    %1024 = vmatpush.bf16.msra.mxu0 %v751
    %1025 = vmatpush.bf16.msra.mxu0 %v749
    %1026 = vmatmul.bf16.gmra.mxu0 %v352
    %v1027 = vpop.f32.mrf.mxu0
    %v1028 = vadd.f32 %v457, %v1027
    %v1029 = vpop.f32.mrf.mxu0
    %1030 = vdwg.mxu0
    %1031 = vmatpush.bf16.msra.mxu0 %v779
    %1032 = vmatpush.bf16.msra.mxu0 %v777
    %1033 = vmatpush.bf16.msra.mxu0 %v775
    %1034 = vmatpush.bf16.msra.mxu0 %v773
    %1035 = vmatpush.bf16.msra.mxu0 %v771
    %1036 = vmatpush.bf16.msra.mxu0 %v769
    %1037 = vmatpush.bf16.msra.mxu0 %v767
    %1038 = vmatpush.bf16.msra.mxu0 %v765
    %1039 = vmatmul.bf16.gmra.mxu0 %v353
    %v1040 = vpop.f32.mrf.mxu0
    %v1041 = vadd.f32 %v1028, %v1040
    %v1042 = vpop.f32.mrf.mxu0
    %1043 = vdwg.mxu0
    %1044 = vmatpush.bf16.msra.mxu0 %v795
    %1045 = vmatpush.bf16.msra.mxu0 %v793
    %1046 = vmatpush.bf16.msra.mxu0 %v791
    %1047 = vmatpush.bf16.msra.mxu0 %v789
    %1048 = vmatpush.bf16.msra.mxu0 %v787
    %1049 = vmatpush.bf16.msra.mxu0 %v785
    %1050 = vmatpush.bf16.msra.mxu0 %v783
    %1051 = vmatpush.bf16.msra.mxu0 %v781
    %1052 = vmatmul.bf16.gmra.mxu0 %v354
    %v1053 = vpop.f32.mrf.mxu0
    %v1054 = vadd.f32 %v1041, %v1053
    %v1055 = vpop.f32.mrf.mxu0
    %1056 = vdwg.mxu0
    %1057 = vmatpush.bf16.msra.mxu0 %v811
    %1058 = vmatpush.bf16.msra.mxu0 %v809
    %1059 = vmatpush.bf16.msra.mxu0 %v807
    %1060 = vmatpush.bf16.msra.mxu0 %v805
    %1061 = vmatpush.bf16.msra.mxu0 %v803
    %1062 = vmatpush.bf16.msra.mxu0 %v801
    %1063 = vmatpush.bf16.msra.mxu0 %v799
    %1064 = vmatpush.bf16.msra.mxu0 %v797
    %1065 = vmatmul.bf16.gmra.mxu0 %v355
    %v1066 = vpop.f32.mrf.mxu0
    %v1067 = vadd.f32 %v1054, %v1066
    %v1068 = vpop.f32.mrf.mxu0
    %1069 = vdwg.mxu0
    %1070 = vmatpush.bf16.msra.mxu0 %v827
    %1071 = vmatpush.bf16.msra.mxu0 %v825
    %1072 = vmatpush.bf16.msra.mxu0 %v823
    %1073 = vmatpush.bf16.msra.mxu0 %v821
    %1074 = vmatpush.bf16.msra.mxu0 %v819
    %1075 = vmatpush.bf16.msra.mxu0 %v817
    %1076 = vmatpush.bf16.msra.mxu0 %v815
    %1077 = vmatpush.bf16.msra.mxu0 %v813
    %1078 = vmatmul.bf16.gmra.mxu0 %v356
    %v1079 = vpop.f32.mrf.mxu0
    %v1080 = vadd.f32 %v1067, %v1079
    %v1081 = vpop.f32.mrf.mxu0
    %1082 = vdwg.mxu0
    %1083 = vmatpush.bf16.msra.mxu0 %v843
    %1084 = vmatpush.bf16.msra.mxu0 %v841
    %1085 = vmatpush.bf16.msra.mxu0 %v839
    %1086 = vmatpush.bf16.msra.mxu0 %v837
    %1087 = vmatpush.bf16.msra.mxu0 %v835
    %1088 = vmatpush.bf16.msra.mxu0 %v833
    %1089 = vmatpush.bf16.msra.mxu0 %v831
    %1090 = vmatpush.bf16.msra.mxu0 %v829
    %1091 = vmatmul.bf16.gmra.mxu0 %v357
    %v1092 = vpop.f32.mrf.mxu0
    %v1093 = vadd.f32 %v1080, %v1092
    %v1094 = vpop.f32.mrf.mxu0
    %1095 = vdwg.mxu0
    %v1096 = vmul.f32 %v1015, 1.702
    %v1097 = vmul.f32 %v1093, 1.702
    %v1098 = vxor.u32 %v1096, 2147483648
    %v1099 = vxor.u32 %v1097, 2147483648
    %v1100 = vmul.f32 %v1098, 1.442695
    %v1101 = vpow.pop %v1100
    %v1102 = vmul.f32 %v1099, 1.442695
    %v1103 = vpow.pop %v1102
    %v1104 = vadd.f32 %v1101, 1.0
    %v1105 = vadd.f32 %v1103, 1.0
    %v1106 = vrcp.pop %v1104
    %v1107 = vmul.f32 %v1104, %v1106
    %v1108 = vsub.f32 1.0, %v1107
    %v1109 = vmul.f32 %v1106, %v1108
    %v1110 = vadd.f32 %v1106, %v1109
    %vm1111 = vweird.f32 %v1104
    %vm1112 = vweird.f32 %v1106
    %vm1113 = vmor %vm1111, %vm1112
    %v1114 = vsel %vm1113, %v1106, %v1110
    %v1115 = vand.u32 2147483647, %v1104
    %vm1116 = vcmp.eq.f32.partialorder %v1115, 8.507059e+37
    %v1117 = vand.u32 %v1104, 2147483648
    %v1118 = vor.u32 1.1754944e-38, %v1117
    %v1119 = vsel %vm1116, %v1118, %v1114
    %v1120 = vmul.f32 1.0, %v1119
    %v1121 = vrcp.pop %v1105
    %v1122 = vmul.f32 %v1105, %v1121
    %v1123 = vsub.f32 1.0, %v1122
    %v1124 = vmul.f32 %v1121, %v1123
    %v1125 = vadd.f32 %v1121, %v1124
    %vm1126 = vweird.f32 %v1105
    %vm1127 = vweird.f32 %v1121
    %vm1128 = vmor %vm1126, %vm1127
    %v1129 = vsel %vm1128, %v1121, %v1125
    %v1130 = vand.u32 2147483647, %v1105
    %vm1131 = vcmp.eq.f32.partialorder %v1130, 8.507059e+37
    %v1132 = vand.u32 %v1105, 2147483648
    %v1133 = vor.u32 1.1754944e-38, %v1132
    %v1134 = vsel %vm1131, %v1133, %v1129
    %v1135 = vmul.f32 1.0, %v1134
    %v1136 = vmul.f32 %v1015, %v1120
    %v1137 = vmul.f32 %v1093, %v1135
    %v1138 = vpack.c.bf16 %v1136, %v1136
    %v1139 = vpack.c.bf16 %v1137, %v1137
    %v1140 = vld [vmem:[#allocation13] sm:$0xff]
    %v1141 = vld [vmem:[#allocation13 + $0x8] sm:$0xff]
    %v1142 = vld [vmem:[#allocation13 + $0x10] sm:$0xff]
    %v1143 = vld [vmem:[#allocation13 + $0x18] sm:$0xff]
    %v1144 = vld [vmem:[#allocation13 + $0x20] sm:$0xff]
    %v1145 = vld [vmem:[#allocation13 + $0x28] sm:$0xff]
    %v1146 = vld [vmem:[#allocation13 + $0x30] sm:$0xff]
    %v1147 = vld [vmem:[#allocation13 + $0x38] sm:$0xff]
    %v1148 = vld [vmem:[#allocation13 + $0x40] sm:$0xff]
    %v1149 = vld [vmem:[#allocation13 + $0x48] sm:$0xff]
    %v1150 = vld [vmem:[#allocation13 + $0x50] sm:$0xff]
    %v1151 = vld [vmem:[#allocation13 + $0x58] sm:$0xff]
    %v1152 = vld [vmem:[#allocation13 + $0x60] sm:$0xff]
    %v1153 = vld [vmem:[#allocation13 + $0x68] sm:$0xff]
    %v1154 = vld [vmem:[#allocation13 + $0x70] sm:$0xff]
    %v1155 = vld [vmem:[#allocation13 + $0x78] sm:$0xff]
    %v1156 = vld [vmem:[#allocation13 + $0x80] sm:$0xff]
    %v1157 = vld [vmem:[#allocation13 + $0x88] sm:$0xff]
    %v1158 = vld [vmem:[#allocation13 + $0x90] sm:$0xff]
    %v1159 = vld [vmem:[#allocation13 + $0x98] sm:$0xff]
    %v1160 = vld [vmem:[#allocation13 + $0xa0] sm:$0xff]
    %v1161 = vld [vmem:[#allocation13 + $0xa8] sm:$0xff]
    %v1162 = vld [vmem:[#allocation13 + $0xb0] sm:$0xff]
    %v1163 = vld [vmem:[#allocation13 + $0xb8] sm:$0xff]
    %v1164 = vld [vmem:[#allocation13 + $0xc0] sm:$0xff]
    %v1165 = vld [vmem:[#allocation13 + $0xc8] sm:$0xff]
    %v1166 = vld [vmem:[#allocation13 + $0xd0] sm:$0xff]
    %v1167 = vld [vmem:[#allocation13 + $0xd8] sm:$0xff]
    %v1168 = vld [vmem:[#allocation13 + $0xe0] sm:$0xff]
    %v1169 = vld [vmem:[#allocation13 + $0xe8] sm:$0xff]
    %v1170 = vld [vmem:[#allocation13 + $0xf0] sm:$0xff]
    %v1171 = vld [vmem:[#allocation13 + $0xf8] sm:$0xff]
    %v1172 = vld [vmem:[#allocation15] sm:$0x3]
    %v1174 = vperm.slane %v1172, 0
    %v1175 = vperm.slane %v1172, 1
    %v1210 = vunpack.c.l.b16 %v1140
    %v1211 = vunpack.c.h.b16 %v1140
    %v1212 = vunpack.c.l.b16 %v1141
    %v1213 = vunpack.c.h.b16 %v1141
    %v1214 = vunpack.c.l.b16 %v1142
    %v1215 = vunpack.c.h.b16 %v1142
    %v1216 = vunpack.c.l.b16 %v1143
    %v1217 = vunpack.c.h.b16 %v1143
    %v1218 = vunpack.c.l.b16 %v1144
    %v1219 = vunpack.c.h.b16 %v1144
    %v1220 = vunpack.c.l.b16 %v1145
    %v1221 = vunpack.c.h.b16 %v1145
    %v1222 = vunpack.c.l.b16 %v1146
    %v1223 = vunpack.c.h.b16 %v1146
    %v1224 = vunpack.c.l.b16 %v1147
    %v1225 = vunpack.c.h.b16 %v1147
    %v1226 = vunpack.c.l.b16 %v1148
    %v1227 = vunpack.c.h.b16 %v1148
    %v1228 = vunpack.c.l.b16 %v1149
    %v1229 = vunpack.c.h.b16 %v1149
    %v1230 = vunpack.c.l.b16 %v1150
    %v1231 = vunpack.c.h.b16 %v1150
    %v1232 = vunpack.c.l.b16 %v1151
    %v1233 = vunpack.c.h.b16 %v1151
    %v1234 = vunpack.c.l.b16 %v1152
    %v1235 = vunpack.c.h.b16 %v1152
    %v1236 = vunpack.c.l.b16 %v1153
    %v1237 = vunpack.c.h.b16 %v1153
    %v1238 = vunpack.c.l.b16 %v1154
    %v1239 = vunpack.c.h.b16 %v1154
    %v1240 = vunpack.c.l.b16 %v1155
    %v1241 = vunpack.c.h.b16 %v1155
    %v1242 = vunpack.c.l.b16 %v1156
    %v1243 = vunpack.c.h.b16 %v1156
    %v1244 = vunpack.c.l.b16 %v1157
    %v1245 = vunpack.c.h.b16 %v1157
    %v1246 = vunpack.c.l.b16 %v1158
    %v1247 = vunpack.c.h.b16 %v1158
    %v1248 = vunpack.c.l.b16 %v1159
    %v1249 = vunpack.c.h.b16 %v1159
    %v1250 = vunpack.c.l.b16 %v1160
    %v1251 = vunpack.c.h.b16 %v1160
    %v1252 = vunpack.c.l.b16 %v1161
    %v1253 = vunpack.c.h.b16 %v1161
    %v1254 = vunpack.c.l.b16 %v1162
    %v1255 = vunpack.c.h.b16 %v1162
    %v1256 = vunpack.c.l.b16 %v1163
    %v1257 = vunpack.c.h.b16 %v1163
    %v1258 = vunpack.c.l.b16 %v1164
    %v1259 = vunpack.c.h.b16 %v1164
    %v1260 = vunpack.c.l.b16 %v1165
    %v1261 = vunpack.c.h.b16 %v1165
    %v1262 = vunpack.c.l.b16 %v1166
    %v1263 = vunpack.c.h.b16 %v1166
    %v1264 = vunpack.c.l.b16 %v1167
    %v1265 = vunpack.c.h.b16 %v1167
    %v1266 = vunpack.c.l.b16 %v1168
    %v1267 = vunpack.c.h.b16 %v1168
    %v1268 = vunpack.c.l.b16 %v1169
    %v1269 = vunpack.c.h.b16 %v1169
    %v1270 = vunpack.c.l.b16 %v1170
    %v1271 = vunpack.c.h.b16 %v1170
    %v1272 = vunpack.c.l.b16 %v1171
    %v1273 = vunpack.c.h.b16 %v1171
    %v1274 = vpack.c.b16 %v1212, %v1210
    %v1275 = vpack.c.b16 %v1213, %v1211
    %v1276 = vpack.c.b16 %v1216, %v1214
    %v1277 = vpack.c.b16 %v1217, %v1215
    %v1278 = vpack.c.b16 %v1220, %v1218
    %v1279 = vpack.c.b16 %v1221, %v1219
    %v1280 = vpack.c.b16 %v1224, %v1222
    %v1281 = vpack.c.b16 %v1225, %v1223
    %v1282 = vpack.c.b16 %v1228, %v1226
    %v1283 = vpack.c.b16 %v1229, %v1227
    %v1284 = vpack.c.b16 %v1232, %v1230
    %v1285 = vpack.c.b16 %v1233, %v1231
    %v1286 = vpack.c.b16 %v1236, %v1234
    %v1287 = vpack.c.b16 %v1237, %v1235
    %v1288 = vpack.c.b16 %v1240, %v1238
    %v1289 = vpack.c.b16 %v1241, %v1239
    %v1290 = vpack.c.b16 %v1244, %v1242
    %v1291 = vpack.c.b16 %v1245, %v1243
    %v1292 = vpack.c.b16 %v1248, %v1246
    %v1293 = vpack.c.b16 %v1249, %v1247
    %v1294 = vpack.c.b16 %v1252, %v1250
    %v1295 = vpack.c.b16 %v1253, %v1251
    %v1296 = vpack.c.b16 %v1256, %v1254
    %v1297 = vpack.c.b16 %v1257, %v1255
    %v1298 = vpack.c.b16 %v1260, %v1258
    %v1299 = vpack.c.b16 %v1261, %v1259
    %v1300 = vpack.c.b16 %v1264, %v1262
    %v1301 = vpack.c.b16 %v1265, %v1263
    %v1302 = vpack.c.b16 %v1268, %v1266
    %v1303 = vpack.c.b16 %v1269, %v1267
    %v1304 = vpack.c.b16 %v1272, %v1270
    %v1305 = vpack.c.b16 %v1273, %v1271
    %1338 = vmatpush.bf16.msra.mxu0 %v1288
    %1339 = vmatpush.bf16.msra.mxu0 %v1286
    %1340 = vmatpush.bf16.msra.mxu0 %v1284
    %1341 = vmatpush.bf16.msra.mxu0 %v1282
    %1342 = vmatpush.bf16.msra.mxu0 %v1280
    %1343 = vmatpush.bf16.msra.mxu0 %v1278
    %1344 = vmatpush.bf16.msra.mxu0 %v1276
    %1345 = vmatpush.bf16.msra.mxu0 %v1274
    %1346 = vmatmul.bf16.gmra.mxu0 %v1138
    %v1347 = vpop.f32.mrf.mxu0
    %v1348 = vadd.f32 %v1174, %v1347
    %v1349 = vpop.f32.mrf.mxu0
    %1350 = vdwg.mxu0
    %1351 = vmatpush.bf16.msra.mxu0 %v1304
    %1352 = vmatpush.bf16.msra.mxu0 %v1302
    %1353 = vmatpush.bf16.msra.mxu0 %v1300
    %1354 = vmatpush.bf16.msra.mxu0 %v1298
    %1355 = vmatpush.bf16.msra.mxu0 %v1296
    %1356 = vmatpush.bf16.msra.mxu0 %v1294
    %1357 = vmatpush.bf16.msra.mxu0 %v1292
    %1358 = vmatpush.bf16.msra.mxu0 %v1290
    %1359 = vmatmul.bf16.gmra.mxu0 %v1139
    %v1360 = vpop.f32.mrf.mxu0
    %v1361 = vadd.f32 %v1348, %v1360
    %v1362 = vpop.f32.mrf.mxu0
    %1363 = vdwg.mxu0
    %1364 = vmatpush.bf16.msra.mxu0 %v1289
    %1365 = vmatpush.bf16.msra.mxu0 %v1287
    %1366 = vmatpush.bf16.msra.mxu0 %v1285
    %1367 = vmatpush.bf16.msra.mxu0 %v1283
    %1368 = vmatpush.bf16.msra.mxu0 %v1281
    %1369 = vmatpush.bf16.msra.mxu0 %v1279
    %1370 = vmatpush.bf16.msra.mxu0 %v1277
    %1371 = vmatpush.bf16.msra.mxu0 %v1275
    %1372 = vmatmul.bf16.gmra.mxu0 %v1138
    %v1373 = vpop.f32.mrf.mxu0
    %v1374 = vadd.f32 %v1175, %v1373
    %v1375 = vpop.f32.mrf.mxu0
    %1376 = vdwg.mxu0
    %1377 = vmatpush.bf16.msra.mxu0 %v1305
    %1378 = vmatpush.bf16.msra.mxu0 %v1303
    %1379 = vmatpush.bf16.msra.mxu0 %v1301
    %1380 = vmatpush.bf16.msra.mxu0 %v1299
    %1381 = vmatpush.bf16.msra.mxu0 %v1297
    %1382 = vmatpush.bf16.msra.mxu0 %v1295
    %1383 = vmatpush.bf16.msra.mxu0 %v1293
    %1384 = vmatpush.bf16.msra.mxu0 %v1291
    %1385 = vmatmul.bf16.gmra.mxu0 %v1139
    %v1386 = vpop.f32.mrf.mxu0
    %v1387 = vadd.f32 %v1374, %v1386
    %v1388 = vpop.f32.mrf.mxu0
    %1389 = vdwg.mxu0
    %v1390 = vadd.f32 %v1015, %v1361
    %v1391 = vadd.f32 %v1093, %v1387
    %v1392 = vld [vmem:[#allocation16] sm:$0x3]
    %v1393 = vld [vmem:[#allocation18] sm:$0x3]
    %v1394 = vadd.f32 %v1390, %v1391
    %1395 = vadd.xlane.f32.xlu0 %v1394
    %v1396 = vpop.xlane.xlu0 %1395
    %v1397 = vrcp.pop 256.0
    %v1398 = vmul.f32 256.0, %v1397
    %v1399 = vsub.f32 1.0, %v1398
    %v1400 = vmul.f32 %v1397, %v1399
    %v1401 = vadd.f32 %v1397, %v1400
    %vm1402 = vweird.f32 %v1397
    %v1403 = vsel %vm1402, %v1397, %v1401
    %v1404 = vmul.f32 %v1396, %v1403
    %v1405 = vsub.f32 %v1390, %v1404
    %v1406 = vsub.f32 %v1391, %v1404
    %v1407 = vmul.f32 %v1405, %v1405
    %v1408 = vmul.f32 %v1406, %v1406
    %v1409 = vadd.f32 %v1407, %v1408
    %1410 = vadd.xlane.f32.xlu0 %v1409
    %v1411 = vpop.xlane.xlu0 %1410
    %v1412 = vmul.f32 %v1411, %v1403
    %v1413 = vadd.f32 %v1412, 1e-05
    %v1414 = vrsqrt.pop %v1413
    %v1415 = vmul.f32 %v1414, %v1413
    %v1416 = vmul.f32 %v1415, %v1414
    %v1417 = vmul.f32 0.5, %v1416
    %v1418 = vsub.f32 1.5, %v1417
    %v1419 = vmul.f32 %v1414, %v1418
    %vm1420 = vweird.f32 %v1413
    %vm1421 = vweird.f32 %v1414
    %vm1422 = vmor %vm1420, %vm1421
    %v1423 = vsel %vm1422, %v1414, %v1419
    %v1424 = vmul.f32 %v1405, %v1423
    %v1425 = vmul.f32 %v1406, %v1423
    %v1427 = vperm.slane %v1392, 0
    %v1428 = vperm.slane %v1392, 1
    %v1431 = vmul.f32 %v1424, %v1427
    %v1432 = vmul.f32 %v1425, %v1428
    %v1434 = vperm.slane %v1393, 0
    %v1435 = vperm.slane %v1393, 1
    %v1438 = vadd.f32 %v1431, %v1434
    %v1439 = vadd.f32 %v1432, %v1435
    %v1440 = vpack.c.bf16 %v1438, %v1438
    %v1441 = vpack.c.bf16 %v1439, %v1439
    %v1442 = vld [vmem:[#allocation19] sm:$0xff]
    %v1443 = vld [vmem:[#allocation19 + $0x8] sm:$0xff]
    %v1444 = vld [vmem:[#allocation19 + $0x10] sm:$0xff]
    %v1445 = vld [vmem:[#allocation19 + $0x18] sm:$0xff]
    %v1446 = vld [vmem:[#allocation19 + $0x20] sm:$0xff]
    %v1447 = vld [vmem:[#allocation19 + $0x28] sm:$0xff]
    %v1448 = vld [vmem:[#allocation19 + $0x30] sm:$0xff]
    %v1449 = vld [vmem:[#allocation19 + $0x38] sm:$0xff]
    %v1450 = vld [vmem:[#allocation19 + $0x40] sm:$0xff]
    %v1451 = vld [vmem:[#allocation19 + $0x48] sm:$0xff]
    %v1452 = vld [vmem:[#allocation19 + $0x50] sm:$0xff]
    %v1453 = vld [vmem:[#allocation19 + $0x58] sm:$0xff]
    %v1454 = vld [vmem:[#allocation19 + $0x60] sm:$0xff]
    %v1455 = vld [vmem:[#allocation19 + $0x68] sm:$0xff]
    %v1456 = vld [vmem:[#allocation19 + $0x70] sm:$0xff]
    %v1457 = vld [vmem:[#allocation19 + $0x78] sm:$0xff]
    %v1458 = vld [vmem:[#allocation19 + $0x80] sm:$0xff]
    %v1459 = vld [vmem:[#allocation19 + $0x88] sm:$0xff]
    %v1460 = vld [vmem:[#allocation19 + $0x90] sm:$0xff]
    %v1461 = vld [vmem:[#allocation19 + $0x98] sm:$0xff]
    %v1462 = vld [vmem:[#allocation19 + $0xa0] sm:$0xff]
    %v1463 = vld [vmem:[#allocation19 + $0xa8] sm:$0xff]
    %v1464 = vld [vmem:[#allocation19 + $0xb0] sm:$0xff]
    %v1465 = vld [vmem:[#allocation19 + $0xb8] sm:$0xff]
    %v1466 = vld [vmem:[#allocation19 + $0xc0] sm:$0xff]
    %v1467 = vld [vmem:[#allocation19 + $0xc8] sm:$0xff]
    %v1468 = vld [vmem:[#allocation19 + $0xd0] sm:$0xff]
    %v1469 = vld [vmem:[#allocation19 + $0xd8] sm:$0xff]
    %v1470 = vld [vmem:[#allocation19 + $0xe0] sm:$0xff]
    %v1471 = vld [vmem:[#allocation19 + $0xe8] sm:$0xff]
    %v1472 = vld [vmem:[#allocation19 + $0xf0] sm:$0xff]
    %v1473 = vld [vmem:[#allocation19 + $0xf8] sm:$0xff]
    %v1474 = vld [vmem:[#allocation19 + $0x100] sm:$0xff]
    %v1475 = vld [vmem:[#allocation19 + $0x108] sm:$0xff]
    %v1476 = vld [vmem:[#allocation19 + $0x110] sm:$0xff]
    %v1477 = vld [vmem:[#allocation19 + $0x118] sm:$0xff]
    %v1478 = vld [vmem:[#allocation19 + $0x120] sm:$0xff]
    %v1479 = vld [vmem:[#allocation19 + $0x128] sm:$0xff]
    %v1480 = vld [vmem:[#allocation19 + $0x130] sm:$0xff]
    %v1481 = vld [vmem:[#allocation19 + $0x138] sm:$0xff]
    %v1482 = vld [vmem:[#allocation19 + $0x140] sm:$0xff]
    %v1483 = vld [vmem:[#allocation19 + $0x148] sm:$0xff]
    %v1484 = vld [vmem:[#allocation19 + $0x150] sm:$0xff]
    %v1485 = vld [vmem:[#allocation19 + $0x158] sm:$0xff]
    %v1486 = vld [vmem:[#allocation19 + $0x160] sm:$0xff]
    %v1487 = vld [vmem:[#allocation19 + $0x168] sm:$0xff]
    %v1488 = vld [vmem:[#allocation19 + $0x170] sm:$0xff]
    %v1489 = vld [vmem:[#allocation19 + $0x178] sm:$0xff]
    %v1490 = vld [vmem:[#allocation19 + $0x180] sm:$0xff]
    %v1491 = vld [vmem:[#allocation19 + $0x188] sm:$0xff]
    %v1492 = vld [vmem:[#allocation19 + $0x190] sm:$0xff]
    %v1493 = vld [vmem:[#allocation19 + $0x198] sm:$0xff]
    %v1494 = vld [vmem:[#allocation19 + $0x1a0] sm:$0xff]
    %v1495 = vld [vmem:[#allocation19 + $0x1a8] sm:$0xff]
    %v1496 = vld [vmem:[#allocation19 + $0x1b0] sm:$0xff]
    %v1497 = vld [vmem:[#allocation19 + $0x1b8] sm:$0xff]
    %v1498 = vld [vmem:[#allocation19 + $0x1c0] sm:$0xff]
    %v1499 = vld [vmem:[#allocation19 + $0x1c8] sm:$0xff]
    %v1500 = vld [vmem:[#allocation19 + $0x1d0] sm:$0xff]
    %v1501 = vld [vmem:[#allocation19 + $0x1d8] sm:$0xff]
    %v1502 = vld [vmem:[#allocation19 + $0x1e0] sm:$0xff]
    %v1503 = vld [vmem:[#allocation19 + $0x1e8] sm:$0xff]
    %v1504 = vld [vmem:[#allocation19 + $0x1f0] sm:$0xff]
    %v1505 = vld [vmem:[#allocation19 + $0x1f8] sm:$0xff]
    %v1506 = vld [vmem:[%s12] sm:$0xf]
    %v1508 = vperm.slane %v1506, 0
    %v1509 = vperm.slane %v1506, 1
    %v1510 = vperm.slane %v1506, 2
    %v1511 = vperm.slane %v1506, 3
    %v1580 = vunpack.c.l.b16 %v1442
    %v1581 = vunpack.c.h.b16 %v1442
    %v1582 = vunpack.c.l.b16 %v1443
    %v1583 = vunpack.c.h.b16 %v1443
    %v1584 = vunpack.c.l.b16 %v1444
    %v1585 = vunpack.c.h.b16 %v1444
    %v1586 = vunpack.c.l.b16 %v1445
    %v1587 = vunpack.c.h.b16 %v1445
    %v1588 = vunpack.c.l.b16 %v1446
    %v1589 = vunpack.c.h.b16 %v1446
    %v1590 = vunpack.c.l.b16 %v1447
    %v1591 = vunpack.c.h.b16 %v1447
    %v1592 = vunpack.c.l.b16 %v1448
    %v1593 = vunpack.c.h.b16 %v1448
    %v1594 = vunpack.c.l.b16 %v1449
    %v1595 = vunpack.c.h.b16 %v1449
    %v1596 = vunpack.c.l.b16 %v1450
    %v1597 = vunpack.c.h.b16 %v1450
    %v1598 = vunpack.c.l.b16 %v1451
    %v1599 = vunpack.c.h.b16 %v1451
    %v1600 = vunpack.c.l.b16 %v1452
    %v1601 = vunpack.c.h.b16 %v1452
    %v1602 = vunpack.c.l.b16 %v1453
    %v1603 = vunpack.c.h.b16 %v1453
    %v1604 = vunpack.c.l.b16 %v1454
    %v1605 = vunpack.c.h.b16 %v1454
    %v1606 = vunpack.c.l.b16 %v1455
    %v1607 = vunpack.c.h.b16 %v1455
    %v1608 = vunpack.c.l.b16 %v1456
    %v1609 = vunpack.c.h.b16 %v1456
    %v1610 = vunpack.c.l.b16 %v1457
    %v1611 = vunpack.c.h.b16 %v1457
    %v1612 = vunpack.c.l.b16 %v1458
    %v1613 = vunpack.c.h.b16 %v1458
    %v1614 = vunpack.c.l.b16 %v1459
    %v1615 = vunpack.c.h.b16 %v1459
    %v1616 = vunpack.c.l.b16 %v1460
    %v1617 = vunpack.c.h.b16 %v1460
    %v1618 = vunpack.c.l.b16 %v1461
    %v1619 = vunpack.c.h.b16 %v1461
    %v1620 = vunpack.c.l.b16 %v1462
    %v1621 = vunpack.c.h.b16 %v1462
    %v1622 = vunpack.c.l.b16 %v1463
    %v1623 = vunpack.c.h.b16 %v1463
    %v1624 = vunpack.c.l.b16 %v1464
    %v1625 = vunpack.c.h.b16 %v1464
    %v1626 = vunpack.c.l.b16 %v1465
    %v1627 = vunpack.c.h.b16 %v1465
    %v1628 = vunpack.c.l.b16 %v1466
    %v1629 = vunpack.c.h.b16 %v1466
    %v1630 = vunpack.c.l.b16 %v1467
    %v1631 = vunpack.c.h.b16 %v1467
    %v1632 = vunpack.c.l.b16 %v1468
    %v1633 = vunpack.c.h.b16 %v1468
    %v1634 = vunpack.c.l.b16 %v1469
    %v1635 = vunpack.c.h.b16 %v1469
    %v1636 = vunpack.c.l.b16 %v1470
    %v1637 = vunpack.c.h.b16 %v1470
    %v1638 = vunpack.c.l.b16 %v1471
    %v1639 = vunpack.c.h.b16 %v1471
    %v1640 = vunpack.c.l.b16 %v1472
    %v1641 = vunpack.c.h.b16 %v1472
    %v1642 = vunpack.c.l.b16 %v1473
    %v1643 = vunpack.c.h.b16 %v1473
    %v1644 = vunpack.c.l.b16 %v1474
    %v1645 = vunpack.c.h.b16 %v1474
    %v1646 = vunpack.c.l.b16 %v1475
    %v1647 = vunpack.c.h.b16 %v1475
    %v1648 = vunpack.c.l.b16 %v1476
    %v1649 = vunpack.c.h.b16 %v1476
    %v1650 = vunpack.c.l.b16 %v1477
    %v1651 = vunpack.c.h.b16 %v1477
    %v1652 = vunpack.c.l.b16 %v1478
    %v1653 = vunpack.c.h.b16 %v1478
    %v1654 = vunpack.c.l.b16 %v1479
    %v1655 = vunpack.c.h.b16 %v1479
    %v1656 = vunpack.c.l.b16 %v1480
    %v1657 = vunpack.c.h.b16 %v1480
    %v1658 = vunpack.c.l.b16 %v1481
    %v1659 = vunpack.c.h.b16 %v1481
    %v1660 = vunpack.c.l.b16 %v1482
    %v1661 = vunpack.c.h.b16 %v1482
    %v1662 = vunpack.c.l.b16 %v1483
    %v1663 = vunpack.c.h.b16 %v1483
    %v1664 = vunpack.c.l.b16 %v1484
    %v1665 = vunpack.c.h.b16 %v1484
    %v1666 = vunpack.c.l.b16 %v1485
    %v1667 = vunpack.c.h.b16 %v1485
    %v1668 = vunpack.c.l.b16 %v1486
    %v1669 = vunpack.c.h.b16 %v1486
    %v1670 = vunpack.c.l.b16 %v1487
    %v1671 = vunpack.c.h.b16 %v1487
    %v1672 = vunpack.c.l.b16 %v1488
    %v1673 = vunpack.c.h.b16 %v1488
    %v1674 = vunpack.c.l.b16 %v1489
    %v1675 = vunpack.c.h.b16 %v1489
    %v1676 = vunpack.c.l.b16 %v1490
    %v1677 = vunpack.c.h.b16 %v1490
    %v1678 = vunpack.c.l.b16 %v1491
    %v1679 = vunpack.c.h.b16 %v1491
    %v1680 = vunpack.c.l.b16 %v1492
    %v1681 = vunpack.c.h.b16 %v1492
    %v1682 = vunpack.c.l.b16 %v1493
    %v1683 = vunpack.c.h.b16 %v1493
    %v1684 = vunpack.c.l.b16 %v1494
    %v1685 = vunpack.c.h.b16 %v1494
    %v1686 = vunpack.c.l.b16 %v1495
    %v1687 = vunpack.c.h.b16 %v1495
    %v1688 = vunpack.c.l.b16 %v1496
    %v1689 = vunpack.c.h.b16 %v1496
    %v1690 = vunpack.c.l.b16 %v1497
    %v1691 = vunpack.c.h.b16 %v1497
    %v1692 = vunpack.c.l.b16 %v1498
    %v1693 = vunpack.c.h.b16 %v1498
    %v1694 = vunpack.c.l.b16 %v1499
    %v1695 = vunpack.c.h.b16 %v1499
    %v1696 = vunpack.c.l.b16 %v1500
    %v1697 = vunpack.c.h.b16 %v1500
    %v1698 = vunpack.c.l.b16 %v1501
    %v1699 = vunpack.c.h.b16 %v1501
    %v1700 = vunpack.c.l.b16 %v1502
    %v1701 = vunpack.c.h.b16 %v1502
    %v1702 = vunpack.c.l.b16 %v1503
    %v1703 = vunpack.c.h.b16 %v1503
    %v1704 = vunpack.c.l.b16 %v1504
    %v1705 = vunpack.c.h.b16 %v1504
    %v1706 = vunpack.c.l.b16 %v1505
    %v1707 = vunpack.c.h.b16 %v1505
    %v1708 = vpack.c.b16 %v1584, %v1580
    %v1709 = vpack.c.b16 %v1585, %v1581
    %v1710 = vpack.c.b16 %v1586, %v1582
    %v1711 = vpack.c.b16 %v1587, %v1583
    %v1712 = vpack.c.b16 %v1592, %v1588
    %v1713 = vpack.c.b16 %v1593, %v1589
    %v1714 = vpack.c.b16 %v1594, %v1590
    %v1715 = vpack.c.b16 %v1595, %v1591
    %v1716 = vpack.c.b16 %v1600, %v1596
    %v1717 = vpack.c.b16 %v1601, %v1597
    %v1718 = vpack.c.b16 %v1602, %v1598
    %v1719 = vpack.c.b16 %v1603, %v1599
    %v1720 = vpack.c.b16 %v1608, %v1604
    %v1721 = vpack.c.b16 %v1609, %v1605
    %v1722 = vpack.c.b16 %v1610, %v1606
    %v1723 = vpack.c.b16 %v1611, %v1607
    %v1724 = vpack.c.b16 %v1616, %v1612
    %v1725 = vpack.c.b16 %v1617, %v1613
    %v1726 = vpack.c.b16 %v1618, %v1614
    %v1727 = vpack.c.b16 %v1619, %v1615
    %v1728 = vpack.c.b16 %v1624, %v1620
    %v1729 = vpack.c.b16 %v1625, %v1621
    %v1730 = vpack.c.b16 %v1626, %v1622
    %v1731 = vpack.c.b16 %v1627, %v1623
    %v1732 = vpack.c.b16 %v1632, %v1628
    %v1733 = vpack.c.b16 %v1633, %v1629
    %v1734 = vpack.c.b16 %v1634, %v1630
    %v1735 = vpack.c.b16 %v1635, %v1631
    %v1736 = vpack.c.b16 %v1640, %v1636
    %v1737 = vpack.c.b16 %v1641, %v1637
    %v1738 = vpack.c.b16 %v1642, %v1638
    %v1739 = vpack.c.b16 %v1643, %v1639
    %v1740 = vpack.c.b16 %v1648, %v1644
    %v1741 = vpack.c.b16 %v1649, %v1645
    %v1742 = vpack.c.b16 %v1650, %v1646
    %v1743 = vpack.c.b16 %v1651, %v1647
    %v1744 = vpack.c.b16 %v1656, %v1652
    %v1745 = vpack.c.b16 %v1657, %v1653
    %v1746 = vpack.c.b16 %v1658, %v1654
    %v1747 = vpack.c.b16 %v1659, %v1655
    %v1748 = vpack.c.b16 %v1664, %v1660
    %v1749 = vpack.c.b16 %v1665, %v1661
    %v1750 = vpack.c.b16 %v1666, %v1662
    %v1751 = vpack.c.b16 %v1667, %v1663
    %v1752 = vpack.c.b16 %v1672, %v1668
    %v1753 = vpack.c.b16 %v1673, %v1669
    %v1754 = vpack.c.b16 %v1674, %v1670
    %v1755 = vpack.c.b16 %v1675, %v1671
    %v1756 = vpack.c.b16 %v1680, %v1676
    %v1757 = vpack.c.b16 %v1681, %v1677
    %v1758 = vpack.c.b16 %v1682, %v1678
    %v1759 = vpack.c.b16 %v1683, %v1679
    %v1760 = vpack.c.b16 %v1688, %v1684
    %v1761 = vpack.c.b16 %v1689, %v1685
    %v1762 = vpack.c.b16 %v1690, %v1686
    %v1763 = vpack.c.b16 %v1691, %v1687
    %v1764 = vpack.c.b16 %v1696, %v1692
    %v1765 = vpack.c.b16 %v1697, %v1693
    %v1766 = vpack.c.b16 %v1698, %v1694
    %v1767 = vpack.c.b16 %v1699, %v1695
    %v1768 = vpack.c.b16 %v1704, %v1700
    %v1769 = vpack.c.b16 %v1705, %v1701
    %v1770 = vpack.c.b16 %v1706, %v1702
    %v1771 = vpack.c.b16 %v1707, %v1703
    %1836 = vmatpush.bf16.msra.mxu0 %v1736
    %1837 = vmatpush.bf16.msra.mxu0 %v1732
    %1838 = vmatpush.bf16.msra.mxu0 %v1728
    %1839 = vmatpush.bf16.msra.mxu0 %v1724
    %1840 = vmatpush.bf16.msra.mxu0 %v1720
    %1841 = vmatpush.bf16.msra.mxu0 %v1716
    %1842 = vmatpush.bf16.msra.mxu0 %v1712
    %1843 = vmatpush.bf16.msra.mxu0 %v1708
    %1844 = vmatmul.bf16.gmra.mxu0 %v1440
    %v1845 = vpop.f32.mrf.mxu0
    %v1846 = vadd.f32 %v1508, %v1845
    %v1847 = vpop.f32.mrf.mxu0
    %1848 = vdwg.mxu0
    %1849 = vmatpush.bf16.msra.mxu0 %v1768
    %1850 = vmatpush.bf16.msra.mxu0 %v1764
    %1851 = vmatpush.bf16.msra.mxu0 %v1760
    %1852 = vmatpush.bf16.msra.mxu0 %v1756
    %1853 = vmatpush.bf16.msra.mxu0 %v1752
    %1854 = vmatpush.bf16.msra.mxu0 %v1748
    %1855 = vmatpush.bf16.msra.mxu0 %v1744
    %1856 = vmatpush.bf16.msra.mxu0 %v1740
    %1857 = vmatmul.bf16.gmra.mxu0 %v1441
    %v1858 = vpop.f32.mrf.mxu0
    %v1859 = vadd.f32 %v1846, %v1858
    %v1860 = vpop.f32.mrf.mxu0
    %1861 = vdwg.mxu0
    %1862 = vmatpush.bf16.msra.mxu0 %v1737
    %1863 = vmatpush.bf16.msra.mxu0 %v1733
    %1864 = vmatpush.bf16.msra.mxu0 %v1729
    %1865 = vmatpush.bf16.msra.mxu0 %v1725
    %1866 = vmatpush.bf16.msra.mxu0 %v1721
    %1867 = vmatpush.bf16.msra.mxu0 %v1717
    %1868 = vmatpush.bf16.msra.mxu0 %v1713
    %1869 = vmatpush.bf16.msra.mxu0 %v1709
    %1870 = vmatmul.bf16.gmra.mxu0 %v1440
    %v1871 = vpop.f32.mrf.mxu0
    %v1872 = vadd.f32 %v1509, %v1871
    %v1873 = vpop.f32.mrf.mxu0
    %1874 = vdwg.mxu0
    %1875 = vmatpush.bf16.msra.mxu0 %v1769
    %1876 = vmatpush.bf16.msra.mxu0 %v1765
    %1877 = vmatpush.bf16.msra.mxu0 %v1761
    %1878 = vmatpush.bf16.msra.mxu0 %v1757
    %1879 = vmatpush.bf16.msra.mxu0 %v1753
    %1880 = vmatpush.bf16.msra.mxu0 %v1749
    %1881 = vmatpush.bf16.msra.mxu0 %v1745
    %1882 = vmatpush.bf16.msra.mxu0 %v1741
    %1883 = vmatmul.bf16.gmra.mxu0 %v1441
    %v1884 = vpop.f32.mrf.mxu0
    %v1885 = vadd.f32 %v1872, %v1884
    %v1886 = vpop.f32.mrf.mxu0
    %1887 = vdwg.mxu0
    %1888 = vmatpush.bf16.msra.mxu0 %v1738
    %1889 = vmatpush.bf16.msra.mxu0 %v1734
    %1890 = vmatpush.bf16.msra.mxu0 %v1730
    %1891 = vmatpush.bf16.msra.mxu0 %v1726
    %1892 = vmatpush.bf16.msra.mxu0 %v1722
    %1893 = vmatpush.bf16.msra.mxu0 %v1718
    %1894 = vmatpush.bf16.msra.mxu0 %v1714
    %1895 = vmatpush.bf16.msra.mxu0 %v1710
    %1896 = vmatmul.bf16.gmra.mxu0 %v1440
    %v1897 = vpop.f32.mrf.mxu0
    %v1898 = vadd.f32 %v1510, %v1897
    %v1899 = vpop.f32.mrf.mxu0
    %1900 = vdwg.mxu0
    %1901 = vmatpush.bf16.msra.mxu0 %v1770
    %1902 = vmatpush.bf16.msra.mxu0 %v1766
    %1903 = vmatpush.bf16.msra.mxu0 %v1762
    %1904 = vmatpush.bf16.msra.mxu0 %v1758
    %1905 = vmatpush.bf16.msra.mxu0 %v1754
    %1906 = vmatpush.bf16.msra.mxu0 %v1750
    %1907 = vmatpush.bf16.msra.mxu0 %v1746
    %1908 = vmatpush.bf16.msra.mxu0 %v1742
    %1909 = vmatmul.bf16.gmra.mxu0 %v1441
    %v1910 = vpop.f32.mrf.mxu0
    %v1911 = vadd.f32 %v1898, %v1910
    %v1912 = vpop.f32.mrf.mxu0
    %1913 = vdwg.mxu0
    %1914 = vmatpush.bf16.msra.mxu0 %v1739
    %1915 = vmatpush.bf16.msra.mxu0 %v1735
    %1916 = vmatpush.bf16.msra.mxu0 %v1731
    %1917 = vmatpush.bf16.msra.mxu0 %v1727
    %1918 = vmatpush.bf16.msra.mxu0 %v1723
    %1919 = vmatpush.bf16.msra.mxu0 %v1719
    %1920 = vmatpush.bf16.msra.mxu0 %v1715
    %1921 = vmatpush.bf16.msra.mxu0 %v1711
    %1922 = vmatmul.bf16.gmra.mxu0 %v1440
    %v1923 = vpop.f32.mrf.mxu0
    %v1924 = vadd.f32 %v1511, %v1923
    %v1925 = vpop.f32.mrf.mxu0
    %1926 = vdwg.mxu0
    %1927 = vmatpush.bf16.msra.mxu0 %v1771
    %1928 = vmatpush.bf16.msra.mxu0 %v1767
    %1929 = vmatpush.bf16.msra.mxu0 %v1763
    %1930 = vmatpush.bf16.msra.mxu0 %v1759
    %1931 = vmatpush.bf16.msra.mxu0 %v1755
    %1932 = vmatpush.bf16.msra.mxu0 %v1751
    %1933 = vmatpush.bf16.msra.mxu0 %v1747
    %1934 = vmatpush.bf16.msra.mxu0 %v1743
    %1935 = vmatmul.bf16.gmra.mxu0 %v1441
    %v1936 = vpop.f32.mrf.mxu0
    %v1937 = vadd.f32 %v1924, %v1936
    %v1938 = vpop.f32.mrf.mxu0
    %1939 = vdwg.mxu0
    %v1940 = vmul.f32 %v1859, 1.702
    %v1941 = vmul.f32 %v1885, 1.702
    %v1942 = vmul.f32 %v1911, 1.702
    %v1943 = vmul.f32 %v1937, 1.702
    %v1944 = vxor.u32 %v1940, 2147483648
    %v1945 = vxor.u32 %v1941, 2147483648
    %v1946 = vxor.u32 %v1942, 2147483648
    %v1947 = vxor.u32 %v1943, 2147483648
    %v1948 = vmul.f32 %v1944, 1.442695
    %v1949 = vpow.pop %v1948
    %v1950 = vmul.f32 %v1945, 1.442695
    %v1951 = vpow.pop %v1950
    %v1952 = vmul.f32 %v1946, 1.442695
    %v1953 = vpow.pop %v1952
    %v1954 = vmul.f32 %v1947, 1.442695
    %v1955 = vpow.pop %v1954
    %v1956 = vadd.f32 %v1949, 1.0
    %v1957 = vadd.f32 %v1951, 1.0
    %v1958 = vadd.f32 %v1953, 1.0
    %v1959 = vadd.f32 %v1955, 1.0
    %v1960 = vrcp.pop %v1956
    %v1961 = vmul.f32 %v1956, %v1960
    %v1962 = vsub.f32 1.0, %v1961
    %v1963 = vmul.f32 %v1960, %v1962
    %v1964 = vadd.f32 %v1960, %v1963
    %vm1965 = vweird.f32 %v1956
    %vm1966 = vweird.f32 %v1960
    %vm1967 = vmor %vm1965, %vm1966
    %v1968 = vsel %vm1967, %v1960, %v1964
    %v1969 = vand.u32 2147483647, %v1956
    %vm1970 = vcmp.eq.f32.partialorder %v1969, 8.507059e+37
    %v1971 = vand.u32 %v1956, 2147483648
    %v1972 = vor.u32 1.1754944e-38, %v1971
    %v1973 = vsel %vm1970, %v1972, %v1968
    %v1974 = vmul.f32 1.0, %v1973
    %v1975 = vrcp.pop %v1957
    %v1976 = vmul.f32 %v1957, %v1975
    %v1977 = vsub.f32 1.0, %v1976
    %v1978 = vmul.f32 %v1975, %v1977
    %v1979 = vadd.f32 %v1975, %v1978
    %vm1980 = vweird.f32 %v1957
    %vm1981 = vweird.f32 %v1975
    %vm1982 = vmor %vm1980, %vm1981
    %v1983 = vsel %vm1982, %v1975, %v1979
    %v1984 = vand.u32 2147483647, %v1957
    %vm1985 = vcmp.eq.f32.partialorder %v1984, 8.507059e+37
    %v1986 = vand.u32 %v1957, 2147483648
    %v1987 = vor.u32 1.1754944e-38, %v1986
    %v1988 = vsel %vm1985, %v1987, %v1983
    %v1989 = vmul.f32 1.0, %v1988
    %v1990 = vrcp.pop %v1958
    %v1991 = vmul.f32 %v1958, %v1990
    %v1992 = vsub.f32 1.0, %v1991
    %v1993 = vmul.f32 %v1990, %v1992
    %v1994 = vadd.f32 %v1990, %v1993
    %vm1995 = vweird.f32 %v1958
    %vm1996 = vweird.f32 %v1990
    %vm1997 = vmor %vm1995, %vm1996
    %v1998 = vsel %vm1997, %v1990, %v1994
    %v1999 = vand.u32 2147483647, %v1958
    %vm2000 = vcmp.eq.f32.partialorder %v1999, 8.507059e+37
    %v2001 = vand.u32 %v1958, 2147483648
    %v2002 = vor.u32 1.1754944e-38, %v2001
    %v2003 = vsel %vm2000, %v2002, %v1998
    %v2004 = vmul.f32 1.0, %v2003
    %v2005 = vrcp.pop %v1959
    %v2006 = vmul.f32 %v1959, %v2005
    %v2007 = vsub.f32 1.0, %v2006
    %v2008 = vmul.f32 %v2005, %v2007
    %v2009 = vadd.f32 %v2005, %v2008
    %vm2010 = vweird.f32 %v1959
    %vm2011 = vweird.f32 %v2005
    %vm2012 = vmor %vm2010, %vm2011
    %v2013 = vsel %vm2012, %v2005, %v2009
    %v2014 = vand.u32 2147483647, %v1959
    %vm2015 = vcmp.eq.f32.partialorder %v2014, 8.507059e+37
    %v2016 = vand.u32 %v1959, 2147483648
    %v2017 = vor.u32 1.1754944e-38, %v2016
    %v2018 = vsel %vm2015, %v2017, %v2013
    %v2019 = vmul.f32 1.0, %v2018
    %v2020 = vmul.f32 %v1859, %v1974
    %v2021 = vmul.f32 %v1885, %v1989
    %v2022 = vmul.f32 %v1911, %v2004
    %v2023 = vmul.f32 %v1937, %v2019
    %v2024 = vpack.c.bf16 %v2020, %v2020
    %v2025 = vpack.c.bf16 %v2021, %v2021
    %v2026 = vpack.c.bf16 %v2022, %v2022
    %v2027 = vpack.c.bf16 %v2023, %v2023
    %v2028 = vld [vmem:[#allocation21] sm:$0xff]
    %v2029 = vld [vmem:[#allocation21 + $0x8] sm:$0xff]
    %v2030 = vld [vmem:[#allocation21 + $0x10] sm:$0xff]
    %v2031 = vld [vmem:[#allocation21 + $0x18] sm:$0xff]
    %v2032 = vld [vmem:[#allocation21 + $0x20] sm:$0xff]
    %v2033 = vld [vmem:[#allocation21 + $0x28] sm:$0xff]
    %v2034 = vld [vmem:[#allocation21 + $0x30] sm:$0xff]
    %v2035 = vld [vmem:[#allocation21 + $0x38] sm:$0xff]
    %v2036 = vld [vmem:[#allocation21 + $0x40] sm:$0xff]
    %v2037 = vld [vmem:[#allocation21 + $0x48] sm:$0xff]
    %v2038 = vld [vmem:[#allocation21 + $0x50] sm:$0xff]
    %v2039 = vld [vmem:[#allocation21 + $0x58] sm:$0xff]
    %v2040 = vld [vmem:[#allocation21 + $0x60] sm:$0xff]
    %v2041 = vld [vmem:[#allocation21 + $0x68] sm:$0xff]
    %v2042 = vld [vmem:[#allocation21 + $0x70] sm:$0xff]
    %v2043 = vld [vmem:[#allocation21 + $0x78] sm:$0xff]
    %v2044 = vld [vmem:[#allocation21 + $0x80] sm:$0xff]
    %v2045 = vld [vmem:[#allocation21 + $0x88] sm:$0xff]
    %v2046 = vld [vmem:[#allocation21 + $0x90] sm:$0xff]
    %v2047 = vld [vmem:[#allocation21 + $0x98] sm:$0xff]
    %v2048 = vld [vmem:[#allocation21 + $0xa0] sm:$0xff]
    %v2049 = vld [vmem:[#allocation21 + $0xa8] sm:$0xff]
    %v2050 = vld [vmem:[#allocation21 + $0xb0] sm:$0xff]
    %v2051 = vld [vmem:[#allocation21 + $0xb8] sm:$0xff]
    %v2052 = vld [vmem:[#allocation21 + $0xc0] sm:$0xff]
    %v2053 = vld [vmem:[#allocation21 + $0xc8] sm:$0xff]
    %v2054 = vld [vmem:[#allocation21 + $0xd0] sm:$0xff]
    %v2055 = vld [vmem:[#allocation21 + $0xd8] sm:$0xff]
    %v2056 = vld [vmem:[#allocation21 + $0xe0] sm:$0xff]
    %v2057 = vld [vmem:[#allocation21 + $0xe8] sm:$0xff]
    %v2058 = vld [vmem:[#allocation21 + $0xf0] sm:$0xff]
    %v2059 = vld [vmem:[#allocation21 + $0xf8] sm:$0xff]
    %v2060 = vld [vmem:[#allocation21 + $0x100] sm:$0xff]
    %v2061 = vld [vmem:[#allocation21 + $0x108] sm:$0xff]
    %v2062 = vld [vmem:[#allocation21 + $0x110] sm:$0xff]
    %v2063 = vld [vmem:[#allocation21 + $0x118] sm:$0xff]
    %v2064 = vld [vmem:[#allocation21 + $0x120] sm:$0xff]
    %v2065 = vld [vmem:[#allocation21 + $0x128] sm:$0xff]
    %v2066 = vld [vmem:[#allocation21 + $0x130] sm:$0xff]
    %v2067 = vld [vmem:[#allocation21 + $0x138] sm:$0xff]
    %v2068 = vld [vmem:[#allocation21 + $0x140] sm:$0xff]
    %v2069 = vld [vmem:[#allocation21 + $0x148] sm:$0xff]
    %v2070 = vld [vmem:[#allocation21 + $0x150] sm:$0xff]
    %v2071 = vld [vmem:[#allocation21 + $0x158] sm:$0xff]
    %v2072 = vld [vmem:[#allocation21 + $0x160] sm:$0xff]
    %v2073 = vld [vmem:[#allocation21 + $0x168] sm:$0xff]
    %v2074 = vld [vmem:[#allocation21 + $0x170] sm:$0xff]
    %v2075 = vld [vmem:[#allocation21 + $0x178] sm:$0xff]
    %v2076 = vld [vmem:[#allocation21 + $0x180] sm:$0xff]
    %v2077 = vld [vmem:[#allocation21 + $0x188] sm:$0xff]
    %v2078 = vld [vmem:[#allocation21 + $0x190] sm:$0xff]
    %v2079 = vld [vmem:[#allocation21 + $0x198] sm:$0xff]
    %v2080 = vld [vmem:[#allocation21 + $0x1a0] sm:$0xff]
    %v2081 = vld [vmem:[#allocation21 + $0x1a8] sm:$0xff]
    %v2082 = vld [vmem:[#allocation21 + $0x1b0] sm:$0xff]
    %v2083 = vld [vmem:[#allocation21 + $0x1b8] sm:$0xff]
    %v2084 = vld [vmem:[#allocation21 + $0x1c0] sm:$0xff]
    %v2085 = vld [vmem:[#allocation21 + $0x1c8] sm:$0xff]
    %v2086 = vld [vmem:[#allocation21 + $0x1d0] sm:$0xff]
    %v2087 = vld [vmem:[#allocation21 + $0x1d8] sm:$0xff]
    %v2088 = vld [vmem:[#allocation21 + $0x1e0] sm:$0xff]
    %v2089 = vld [vmem:[#allocation21 + $0x1e8] sm:$0xff]
    %v2090 = vld [vmem:[#allocation21 + $0x1f0] sm:$0xff]
    %v2091 = vld [vmem:[#allocation21 + $0x1f8] sm:$0xff]
    %v2092 = vld [vmem:[#allocation21 + $0x200] sm:$0xff]
    %v2093 = vld [vmem:[#allocation21 + $0x208] sm:$0xff]
    %v2094 = vld [vmem:[#allocation21 + $0x210] sm:$0xff]
    %v2095 = vld [vmem:[#allocation21 + $0x218] sm:$0xff]
    %v2096 = vld [vmem:[#allocation21 + $0x220] sm:$0xff]
    %v2097 = vld [vmem:[#allocation21 + $0x228] sm:$0xff]
    %v2098 = vld [vmem:[#allocation21 + $0x230] sm:$0xff]
    %v2099 = vld [vmem:[#allocation21 + $0x238] sm:$0xff]
    %v2100 = vld [vmem:[#allocation21 + $0x240] sm:$0xff]
    %v2101 = vld [vmem:[#allocation21 + $0x248] sm:$0xff]
    %v2102 = vld [vmem:[#allocation21 + $0x250] sm:$0xff]
    %v2103 = vld [vmem:[#allocation21 + $0x258] sm:$0xff]
    %v2104 = vld [vmem:[#allocation21 + $0x260] sm:$0xff]
    %v2105 = vld [vmem:[#allocation21 + $0x268] sm:$0xff]
    %v2106 = vld [vmem:[#allocation21 + $0x270] sm:$0xff]
    %v2107 = vld [vmem:[#allocation21 + $0x278] sm:$0xff]
    %v2108 = vld [vmem:[#allocation21 + $0x280] sm:$0xff]
    %v2109 = vld [vmem:[#allocation21 + $0x288] sm:$0xff]
    %v2110 = vld [vmem:[#allocation21 + $0x290] sm:$0xff]
    %v2111 = vld [vmem:[#allocation21 + $0x298] sm:$0xff]
    %v2112 = vld [vmem:[#allocation21 + $0x2a0] sm:$0xff]
    %v2113 = vld [vmem:[#allocation21 + $0x2a8] sm:$0xff]
    %v2114 = vld [vmem:[#allocation21 + $0x2b0] sm:$0xff]
    %v2115 = vld [vmem:[#allocation21 + $0x2b8] sm:$0xff]
    %v2116 = vld [vmem:[#allocation21 + $0x2c0] sm:$0xff]
    %v2117 = vld [vmem:[#allocation21 + $0x2c8] sm:$0xff]
    %v2118 = vld [vmem:[#allocation21 + $0x2d0] sm:$0xff]
    %v2119 = vld [vmem:[#allocation21 + $0x2d8] sm:$0xff]
    %v2120 = vld [vmem:[#allocation21 + $0x2e0] sm:$0xff]
    %v2121 = vld [vmem:[#allocation21 + $0x2e8] sm:$0xff]
    %v2122 = vld [vmem:[#allocation21 + $0x2f0] sm:$0xff]
    %v2123 = vld [vmem:[#allocation21 + $0x2f8] sm:$0xff]
    %v2124 = vld [vmem:[#allocation21 + $0x300] sm:$0xff]
    %v2125 = vld [vmem:[#allocation21 + $0x308] sm:$0xff]
    %v2126 = vld [vmem:[#allocation21 + $0x310] sm:$0xff]
    %v2127 = vld [vmem:[#allocation21 + $0x318] sm:$0xff]
    %v2128 = vld [vmem:[#allocation21 + $0x320] sm:$0xff]
    %v2129 = vld [vmem:[#allocation21 + $0x328] sm:$0xff]
    %v2130 = vld [vmem:[#allocation21 + $0x330] sm:$0xff]
    %v2131 = vld [vmem:[#allocation21 + $0x338] sm:$0xff]
    %v2132 = vld [vmem:[#allocation21 + $0x340] sm:$0xff]
    %v2133 = vld [vmem:[#allocation21 + $0x348] sm:$0xff]
    %v2134 = vld [vmem:[#allocation21 + $0x350] sm:$0xff]
    %v2135 = vld [vmem:[#allocation21 + $0x358] sm:$0xff]
    %v2136 = vld [vmem:[#allocation21 + $0x360] sm:$0xff]
    %v2137 = vld [vmem:[#allocation21 + $0x368] sm:$0xff]
    %v2138 = vld [vmem:[#allocation21 + $0x370] sm:$0xff]
    %v2139 = vld [vmem:[#allocation21 + $0x378] sm:$0xff]
    %v2140 = vld [vmem:[#allocation21 + $0x380] sm:$0xff]
    %v2141 = vld [vmem:[#allocation21 + $0x388] sm:$0xff]
    %v2142 = vld [vmem:[#allocation21 + $0x390] sm:$0xff]
    %v2143 = vld [vmem:[#allocation21 + $0x398] sm:$0xff]
    %v2144 = vld [vmem:[#allocation21 + $0x3a0] sm:$0xff]
    %v2145 = vld [vmem:[#allocation21 + $0x3a8] sm:$0xff]
    %v2146 = vld [vmem:[#allocation21 + $0x3b0] sm:$0xff]
    %v2147 = vld [vmem:[#allocation21 + $0x3b8] sm:$0xff]
    %v2148 = vld [vmem:[#allocation21 + $0x3c0] sm:$0xff]
    %v2149 = vld [vmem:[#allocation21 + $0x3c8] sm:$0xff]
    %v2150 = vld [vmem:[#allocation21 + $0x3d0] sm:$0xff]
    %v2151 = vld [vmem:[#allocation21 + $0x3d8] sm:$0xff]
    %v2152 = vld [vmem:[#allocation21 + $0x3e0] sm:$0xff]
    %v2153 = vld [vmem:[#allocation21 + $0x3e8] sm:$0xff]
    %v2154 = vld [vmem:[#allocation21 + $0x3f0] sm:$0xff]
    %v2155 = vld [vmem:[#allocation21 + $0x3f8] sm:$0xff]
    %v2156 = vld [vmem:[%s14] sm:$0xf]
    %v2158 = vperm.slane %v2156, 0
    %v2159 = vperm.slane %v2156, 1
    %v2160 = vperm.slane %v2156, 2
    %v2161 = vperm.slane %v2156, 3
    %v2294 = vunpack.c.l.b16 %v2028
    %v2295 = vunpack.c.h.b16 %v2028
    %v2296 = vunpack.c.l.b16 %v2029
    %v2297 = vunpack.c.h.b16 %v2029
    %v2298 = vunpack.c.l.b16 %v2030
    %v2299 = vunpack.c.h.b16 %v2030
    %v2300 = vunpack.c.l.b16 %v2031
    %v2301 = vunpack.c.h.b16 %v2031
    %v2302 = vunpack.c.l.b16 %v2032
    %v2303 = vunpack.c.h.b16 %v2032
    %v2304 = vunpack.c.l.b16 %v2033
    %v2305 = vunpack.c.h.b16 %v2033
    %v2306 = vunpack.c.l.b16 %v2034
    %v2307 = vunpack.c.h.b16 %v2034
    %v2308 = vunpack.c.l.b16 %v2035
    %v2309 = vunpack.c.h.b16 %v2035
    %v2310 = vunpack.c.l.b16 %v2036
    %v2311 = vunpack.c.h.b16 %v2036
    %v2312 = vunpack.c.l.b16 %v2037
    %v2313 = vunpack.c.h.b16 %v2037
    %v2314 = vunpack.c.l.b16 %v2038
    %v2315 = vunpack.c.h.b16 %v2038
    %v2316 = vunpack.c.l.b16 %v2039
    %v2317 = vunpack.c.h.b16 %v2039
    %v2318 = vunpack.c.l.b16 %v2040
    %v2319 = vunpack.c.h.b16 %v2040
    %v2320 = vunpack.c.l.b16 %v2041
    %v2321 = vunpack.c.h.b16 %v2041
    %v2322 = vunpack.c.l.b16 %v2042
    %v2323 = vunpack.c.h.b16 %v2042
    %v2324 = vunpack.c.l.b16 %v2043
    %v2325 = vunpack.c.h.b16 %v2043
    %v2326 = vunpack.c.l.b16 %v2044
    %v2327 = vunpack.c.h.b16 %v2044
    %v2328 = vunpack.c.l.b16 %v2045
    %v2329 = vunpack.c.h.b16 %v2045
    %v2330 = vunpack.c.l.b16 %v2046
    %v2331 = vunpack.c.h.b16 %v2046
    %v2332 = vunpack.c.l.b16 %v2047
    %v2333 = vunpack.c.h.b16 %v2047
    %v2334 = vunpack.c.l.b16 %v2048
    %v2335 = vunpack.c.h.b16 %v2048
    %v2336 = vunpack.c.l.b16 %v2049
    %v2337 = vunpack.c.h.b16 %v2049
    %v2338 = vunpack.c.l.b16 %v2050
    %v2339 = vunpack.c.h.b16 %v2050
    %v2340 = vunpack.c.l.b16 %v2051
    %v2341 = vunpack.c.h.b16 %v2051
    %v2342 = vunpack.c.l.b16 %v2052
    %v2343 = vunpack.c.h.b16 %v2052
    %v2344 = vunpack.c.l.b16 %v2053
    %v2345 = vunpack.c.h.b16 %v2053
    %v2346 = vunpack.c.l.b16 %v2054
    %v2347 = vunpack.c.h.b16 %v2054
    %v2348 = vunpack.c.l.b16 %v2055
    %v2349 = vunpack.c.h.b16 %v2055
    %v2350 = vunpack.c.l.b16 %v2056
    %v2351 = vunpack.c.h.b16 %v2056
    %v2352 = vunpack.c.l.b16 %v2057
    %v2353 = vunpack.c.h.b16 %v2057
    %v2354 = vunpack.c.l.b16 %v2058
    %v2355 = vunpack.c.h.b16 %v2058
    %v2356 = vunpack.c.l.b16 %v2059
    %v2357 = vunpack.c.h.b16 %v2059
    %v2358 = vunpack.c.l.b16 %v2060
    %v2359 = vunpack.c.h.b16 %v2060
    %v2360 = vunpack.c.l.b16 %v2061
    %v2361 = vunpack.c.h.b16 %v2061
    %v2362 = vunpack.c.l.b16 %v2062
    %v2363 = vunpack.c.h.b16 %v2062
    %v2364 = vunpack.c.l.b16 %v2063
    %v2365 = vunpack.c.h.b16 %v2063
    %v2366 = vunpack.c.l.b16 %v2064
    %v2367 = vunpack.c.h.b16 %v2064
    %v2368 = vunpack.c.l.b16 %v2065
    %v2369 = vunpack.c.h.b16 %v2065
    %v2370 = vunpack.c.l.b16 %v2066
    %v2371 = vunpack.c.h.b16 %v2066
    %v2372 = vunpack.c.l.b16 %v2067
    %v2373 = vunpack.c.h.b16 %v2067
    %v2374 = vunpack.c.l.b16 %v2068
    %v2375 = vunpack.c.h.b16 %v2068
    %v2376 = vunpack.c.l.b16 %v2069
    %v2377 = vunpack.c.h.b16 %v2069
    %v2378 = vunpack.c.l.b16 %v2070
    %v2379 = vunpack.c.h.b16 %v2070
    %v2380 = vunpack.c.l.b16 %v2071
    %v2381 = vunpack.c.h.b16 %v2071
    %v2382 = vunpack.c.l.b16 %v2072
    %v2383 = vunpack.c.h.b16 %v2072
    %v2384 = vunpack.c.l.b16 %v2073
    %v2385 = vunpack.c.h.b16 %v2073
    %v2386 = vunpack.c.l.b16 %v2074
    %v2387 = vunpack.c.h.b16 %v2074
    %v2388 = vunpack.c.l.b16 %v2075
    %v2389 = vunpack.c.h.b16 %v2075
    %v2390 = vunpack.c.l.b16 %v2076
    %v2391 = vunpack.c.h.b16 %v2076
    %v2392 = vunpack.c.l.b16 %v2077
    %v2393 = vunpack.c.h.b16 %v2077
    %v2394 = vunpack.c.l.b16 %v2078
    %v2395 = vunpack.c.h.b16 %v2078
    %v2396 = vunpack.c.l.b16 %v2079
    %v2397 = vunpack.c.h.b16 %v2079
    %v2398 = vunpack.c.l.b16 %v2080
    %v2399 = vunpack.c.h.b16 %v2080
    %v2400 = vunpack.c.l.b16 %v2081
    %v2401 = vunpack.c.h.b16 %v2081
    %v2402 = vunpack.c.l.b16 %v2082
    %v2403 = vunpack.c.h.b16 %v2082
    %v2404 = vunpack.c.l.b16 %v2083
    %v2405 = vunpack.c.h.b16 %v2083
    %v2406 = vunpack.c.l.b16 %v2084
    %v2407 = vunpack.c.h.b16 %v2084
    %v2408 = vunpack.c.l.b16 %v2085
    %v2409 = vunpack.c.h.b16 %v2085
    %v2410 = vunpack.c.l.b16 %v2086
    %v2411 = vunpack.c.h.b16 %v2086
    %v2412 = vunpack.c.l.b16 %v2087
    %v2413 = vunpack.c.h.b16 %v2087
    %v2414 = vunpack.c.l.b16 %v2088
    %v2415 = vunpack.c.h.b16 %v2088
    %v2416 = vunpack.c.l.b16 %v2089
    %v2417 = vunpack.c.h.b16 %v2089
    %v2418 = vunpack.c.l.b16 %v2090
    %v2419 = vunpack.c.h.b16 %v2090
    %v2420 = vunpack.c.l.b16 %v2091
    %v2421 = vunpack.c.h.b16 %v2091
    %v2422 = vunpack.c.l.b16 %v2092
    %v2423 = vunpack.c.h.b16 %v2092
    %v2424 = vunpack.c.l.b16 %v2093
    %v2425 = vunpack.c.h.b16 %v2093
    %v2426 = vunpack.c.l.b16 %v2094
    %v2427 = vunpack.c.h.b16 %v2094
    %v2428 = vunpack.c.l.b16 %v2095
    %v2429 = vunpack.c.h.b16 %v2095
    %v2430 = vunpack.c.l.b16 %v2096
    %v2431 = vunpack.c.h.b16 %v2096
    %v2432 = vunpack.c.l.b16 %v2097
    %v2433 = vunpack.c.h.b16 %v2097
    %v2434 = vunpack.c.l.b16 %v2098
    %v2435 = vunpack.c.h.b16 %v2098
    %v2436 = vunpack.c.l.b16 %v2099
    %v2437 = vunpack.c.h.b16 %v2099
    %v2438 = vunpack.c.l.b16 %v2100
    %v2439 = vunpack.c.h.b16 %v2100
    %v2440 = vunpack.c.l.b16 %v2101
    %v2441 = vunpack.c.h.b16 %v2101
    %v2442 = vunpack.c.l.b16 %v2102
    %v2443 = vunpack.c.h.b16 %v2102
    %v2444 = vunpack.c.l.b16 %v2103
    %v2445 = vunpack.c.h.b16 %v2103
    %v2446 = vunpack.c.l.b16 %v2104
    %v2447 = vunpack.c.h.b16 %v2104
    %v2448 = vunpack.c.l.b16 %v2105
    %v2449 = vunpack.c.h.b16 %v2105
    %v2450 = vunpack.c.l.b16 %v2106
    %v2451 = vunpack.c.h.b16 %v2106
    %v2452 = vunpack.c.l.b16 %v2107
    %v2453 = vunpack.c.h.b16 %v2107
    %v2454 = vunpack.c.l.b16 %v2108
    %v2455 = vunpack.c.h.b16 %v2108
    %v2456 = vunpack.c.l.b16 %v2109
    %v2457 = vunpack.c.h.b16 %v2109
    %v2458 = vunpack.c.l.b16 %v2110
    %v2459 = vunpack.c.h.b16 %v2110
    %v2460 = vunpack.c.l.b16 %v2111
    %v2461 = vunpack.c.h.b16 %v2111
    %v2462 = vunpack.c.l.b16 %v2112
    %v2463 = vunpack.c.h.b16 %v2112
    %v2464 = vunpack.c.l.b16 %v2113
    %v2465 = vunpack.c.h.b16 %v2113
    %v2466 = vunpack.c.l.b16 %v2114
    %v2467 = vunpack.c.h.b16 %v2114
    %v2468 = vunpack.c.l.b16 %v2115
    %v2469 = vunpack.c.h.b16 %v2115
    %v2470 = vunpack.c.l.b16 %v2116
    %v2471 = vunpack.c.h.b16 %v2116
    %v2472 = vunpack.c.l.b16 %v2117
    %v2473 = vunpack.c.h.b16 %v2117
    %v2474 = vunpack.c.l.b16 %v2118
    %v2475 = vunpack.c.h.b16 %v2118
    %v2476 = vunpack.c.l.b16 %v2119
    %v2477 = vunpack.c.h.b16 %v2119
    %v2478 = vunpack.c.l.b16 %v2120
    %v2479 = vunpack.c.h.b16 %v2120
    %v2480 = vunpack.c.l.b16 %v2121
    %v2481 = vunpack.c.h.b16 %v2121
    %v2482 = vunpack.c.l.b16 %v2122
    %v2483 = vunpack.c.h.b16 %v2122
    %v2484 = vunpack.c.l.b16 %v2123
    %v2485 = vunpack.c.h.b16 %v2123
    %v2486 = vunpack.c.l.b16 %v2124
    %v2487 = vunpack.c.h.b16 %v2124
    %v2488 = vunpack.c.l.b16 %v2125
    %v2489 = vunpack.c.h.b16 %v2125
    %v2490 = vunpack.c.l.b16 %v2126
    %v2491 = vunpack.c.h.b16 %v2126
    %v2492 = vunpack.c.l.b16 %v2127
    %v2493 = vunpack.c.h.b16 %v2127
    %v2494 = vunpack.c.l.b16 %v2128
    %v2495 = vunpack.c.h.b16 %v2128
    %v2496 = vunpack.c.l.b16 %v2129
    %v2497 = vunpack.c.h.b16 %v2129
    %v2498 = vunpack.c.l.b16 %v2130
    %v2499 = vunpack.c.h.b16 %v2130
    %v2500 = vunpack.c.l.b16 %v2131
    %v2501 = vunpack.c.h.b16 %v2131
    %v2502 = vunpack.c.l.b16 %v2132
    %v2503 = vunpack.c.h.b16 %v2132
    %v2504 = vunpack.c.l.b16 %v2133
    %v2505 = vunpack.c.h.b16 %v2133
    %v2506 = vunpack.c.l.b16 %v2134
    %v2507 = vunpack.c.h.b16 %v2134
    %v2508 = vunpack.c.l.b16 %v2135
    %v2509 = vunpack.c.h.b16 %v2135
    %v2510 = vunpack.c.l.b16 %v2136
    %v2511 = vunpack.c.h.b16 %v2136
    %v2512 = vunpack.c.l.b16 %v2137
    %v2513 = vunpack.c.h.b16 %v2137
    %v2514 = vunpack.c.l.b16 %v2138
    %v2515 = vunpack.c.h.b16 %v2138
    %v2516 = vunpack.c.l.b16 %v2139
    %v2517 = vunpack.c.h.b16 %v2139
    %v2518 = vunpack.c.l.b16 %v2140
    %v2519 = vunpack.c.h.b16 %v2140
    %v2520 = vunpack.c.l.b16 %v2141
    %v2521 = vunpack.c.h.b16 %v2141
    %v2522 = vunpack.c.l.b16 %v2142
    %v2523 = vunpack.c.h.b16 %v2142
    %v2524 = vunpack.c.l.b16 %v2143
    %v2525 = vunpack.c.h.b16 %v2143
    %v2526 = vunpack.c.l.b16 %v2144
    %v2527 = vunpack.c.h.b16 %v2144
    %v2528 = vunpack.c.l.b16 %v2145
    %v2529 = vunpack.c.h.b16 %v2145
    %v2530 = vunpack.c.l.b16 %v2146
    %v2531 = vunpack.c.h.b16 %v2146
    %v2532 = vunpack.c.l.b16 %v2147
    %v2533 = vunpack.c.h.b16 %v2147
    %v2534 = vunpack.c.l.b16 %v2148
    %v2535 = vunpack.c.h.b16 %v2148
    %v2536 = vunpack.c.l.b16 %v2149
    %v2537 = vunpack.c.h.b16 %v2149
    %v2538 = vunpack.c.l.b16 %v2150
    %v2539 = vunpack.c.h.b16 %v2150
    %v2540 = vunpack.c.l.b16 %v2151
    %v2541 = vunpack.c.h.b16 %v2151
    %v2542 = vunpack.c.l.b16 %v2152
    %v2543 = vunpack.c.h.b16 %v2152
    %v2544 = vunpack.c.l.b16 %v2153
    %v2545 = vunpack.c.h.b16 %v2153
    %v2546 = vunpack.c.l.b16 %v2154
    %v2547 = vunpack.c.h.b16 %v2154
    %v2548 = vunpack.c.l.b16 %v2155
    %v2549 = vunpack.c.h.b16 %v2155
    %v2550 = vpack.c.b16 %v2298, %v2294
    %v2551 = vpack.c.b16 %v2299, %v2295
    %v2552 = vpack.c.b16 %v2300, %v2296
    %v2553 = vpack.c.b16 %v2301, %v2297
    %v2554 = vpack.c.b16 %v2306, %v2302
    %v2555 = vpack.c.b16 %v2307, %v2303
    %v2556 = vpack.c.b16 %v2308, %v2304
    %v2557 = vpack.c.b16 %v2309, %v2305
    %v2558 = vpack.c.b16 %v2314, %v2310
    %v2559 = vpack.c.b16 %v2315, %v2311
    %v2560 = vpack.c.b16 %v2316, %v2312
    %v2561 = vpack.c.b16 %v2317, %v2313
    %v2562 = vpack.c.b16 %v2322, %v2318
    %v2563 = vpack.c.b16 %v2323, %v2319
    %v2564 = vpack.c.b16 %v2324, %v2320
    %v2565 = vpack.c.b16 %v2325, %v2321
    %v2566 = vpack.c.b16 %v2330, %v2326
    %v2567 = vpack.c.b16 %v2331, %v2327
    %v2568 = vpack.c.b16 %v2332, %v2328
    %v2569 = vpack.c.b16 %v2333, %v2329
    %v2570 = vpack.c.b16 %v2338, %v2334
    %v2571 = vpack.c.b16 %v2339, %v2335
    %v2572 = vpack.c.b16 %v2340, %v2336
    %v2573 = vpack.c.b16 %v2341, %v2337
    %v2574 = vpack.c.b16 %v2346, %v2342
    %v2575 = vpack.c.b16 %v2347, %v2343
    %v2576 = vpack.c.b16 %v2348, %v2344
    %v2577 = vpack.c.b16 %v2349, %v2345
    %v2578 = vpack.c.b16 %v2354, %v2350
    %v2579 = vpack.c.b16 %v2355, %v2351
    %v2580 = vpack.c.b16 %v2356, %v2352
    %v2581 = vpack.c.b16 %v2357, %v2353
    %v2582 = vpack.c.b16 %v2362, %v2358
    %v2583 = vpack.c.b16 %v2363, %v2359
    %v2584 = vpack.c.b16 %v2364, %v2360
    %v2585 = vpack.c.b16 %v2365, %v2361
    %v2586 = vpack.c.b16 %v2370, %v2366
    %v2587 = vpack.c.b16 %v2371, %v2367
    %v2588 = vpack.c.b16 %v2372, %v2368
    %v2589 = vpack.c.b16 %v2373, %v2369
    %v2590 = vpack.c.b16 %v2378, %v2374
    %v2591 = vpack.c.b16 %v2379, %v2375
    %v2592 = vpack.c.b16 %v2380, %v2376
    %v2593 = vpack.c.b16 %v2381, %v2377
    %v2594 = vpack.c.b16 %v2386, %v2382
    %v2595 = vpack.c.b16 %v2387, %v2383
    %v2596 = vpack.c.b16 %v2388, %v2384
    %v2597 = vpack.c.b16 %v2389, %v2385
    %v2598 = vpack.c.b16 %v2394, %v2390
    %v2599 = vpack.c.b16 %v2395, %v2391
    %v2600 = vpack.c.b16 %v2396, %v2392
    %v2601 = vpack.c.b16 %v2397, %v2393
    %v2602 = vpack.c.b16 %v2402, %v2398
    %v2603 = vpack.c.b16 %v2403, %v2399
    %v2604 = vpack.c.b16 %v2404, %v2400
    %v2605 = vpack.c.b16 %v2405, %v2401
    %v2606 = vpack.c.b16 %v2410, %v2406
    %v2607 = vpack.c.b16 %v2411, %v2407
    %v2608 = vpack.c.b16 %v2412, %v2408
    %v2609 = vpack.c.b16 %v2413, %v2409
    %v2610 = vpack.c.b16 %v2418, %v2414
    %v2611 = vpack.c.b16 %v2419, %v2415
    %v2612 = vpack.c.b16 %v2420, %v2416
    %v2613 = vpack.c.b16 %v2421, %v2417
    %v2614 = vpack.c.b16 %v2426, %v2422
    %v2615 = vpack.c.b16 %v2427, %v2423
    %v2616 = vpack.c.b16 %v2428, %v2424
    %v2617 = vpack.c.b16 %v2429, %v2425
    %v2618 = vpack.c.b16 %v2434, %v2430
    %v2619 = vpack.c.b16 %v2435, %v2431
    %v2620 = vpack.c.b16 %v2436, %v2432
    %v2621 = vpack.c.b16 %v2437, %v2433
    %v2622 = vpack.c.b16 %v2442, %v2438
    %v2623 = vpack.c.b16 %v2443, %v2439
    %v2624 = vpack.c.b16 %v2444, %v2440
    %v2625 = vpack.c.b16 %v2445, %v2441
    %v2626 = vpack.c.b16 %v2450, %v2446
    %v2627 = vpack.c.b16 %v2451, %v2447
    %v2628 = vpack.c.b16 %v2452, %v2448
    %v2629 = vpack.c.b16 %v2453, %v2449
    %v2630 = vpack.c.b16 %v2458, %v2454
    %v2631 = vpack.c.b16 %v2459, %v2455
    %v2632 = vpack.c.b16 %v2460, %v2456
    %v2633 = vpack.c.b16 %v2461, %v2457
    %v2634 = vpack.c.b16 %v2466, %v2462
    %v2635 = vpack.c.b16 %v2467, %v2463
    %v2636 = vpack.c.b16 %v2468, %v2464
    %v2637 = vpack.c.b16 %v2469, %v2465
    %v2638 = vpack.c.b16 %v2474, %v2470
    %v2639 = vpack.c.b16 %v2475, %v2471
    %v2640 = vpack.c.b16 %v2476, %v2472
    %v2641 = vpack.c.b16 %v2477, %v2473
    %v2642 = vpack.c.b16 %v2482, %v2478
    %v2643 = vpack.c.b16 %v2483, %v2479
    %v2644 = vpack.c.b16 %v2484, %v2480
    %v2645 = vpack.c.b16 %v2485, %v2481
    %v2646 = vpack.c.b16 %v2490, %v2486
    %v2647 = vpack.c.b16 %v2491, %v2487
    %v2648 = vpack.c.b16 %v2492, %v2488
    %v2649 = vpack.c.b16 %v2493, %v2489
    %v2650 = vpack.c.b16 %v2498, %v2494
    %v2651 = vpack.c.b16 %v2499, %v2495
    %v2652 = vpack.c.b16 %v2500, %v2496
    %v2653 = vpack.c.b16 %v2501, %v2497
    %v2654 = vpack.c.b16 %v2506, %v2502
    %v2655 = vpack.c.b16 %v2507, %v2503
    %v2656 = vpack.c.b16 %v2508, %v2504
    %v2657 = vpack.c.b16 %v2509, %v2505
    %v2658 = vpack.c.b16 %v2514, %v2510
    %v2659 = vpack.c.b16 %v2515, %v2511
    %v2660 = vpack.c.b16 %v2516, %v2512
    %v2661 = vpack.c.b16 %v2517, %v2513
    %v2662 = vpack.c.b16 %v2522, %v2518
    %v2663 = vpack.c.b16 %v2523, %v2519
    %v2664 = vpack.c.b16 %v2524, %v2520
    %v2665 = vpack.c.b16 %v2525, %v2521
    %v2666 = vpack.c.b16 %v2530, %v2526
    %v2667 = vpack.c.b16 %v2531, %v2527
    %v2668 = vpack.c.b16 %v2532, %v2528
    %v2669 = vpack.c.b16 %v2533, %v2529
    %v2670 = vpack.c.b16 %v2538, %v2534
    %v2671 = vpack.c.b16 %v2539, %v2535
    %v2672 = vpack.c.b16 %v2540, %v2536
    %v2673 = vpack.c.b16 %v2541, %v2537
    %v2674 = vpack.c.b16 %v2546, %v2542
    %v2675 = vpack.c.b16 %v2547, %v2543
    %v2676 = vpack.c.b16 %v2548, %v2544
    %v2677 = vpack.c.b16 %v2549, %v2545
    %2806 = vmatpush.bf16.msra.mxu0 %v2578
    %2807 = vmatpush.bf16.msra.mxu0 %v2574
    %2808 = vmatpush.bf16.msra.mxu0 %v2570
    %2809 = vmatpush.bf16.msra.mxu0 %v2566
    %2810 = vmatpush.bf16.msra.mxu0 %v2562
    %2811 = vmatpush.bf16.msra.mxu0 %v2558
    %2812 = vmatpush.bf16.msra.mxu0 %v2554
    %2813 = vmatpush.bf16.msra.mxu0 %v2550
    %2814 = vmatmul.bf16.gmra.mxu0 %v2024
    %v2815 = vpop.f32.mrf.mxu0
    %v2816 = vadd.f32 %v2158, %v2815
    %v2817 = vpop.f32.mrf.mxu0
    %2818 = vdwg.mxu0
    %2819 = vmatpush.bf16.msra.mxu0 %v2610
    %2820 = vmatpush.bf16.msra.mxu0 %v2606
    %2821 = vmatpush.bf16.msra.mxu0 %v2602
    %2822 = vmatpush.bf16.msra.mxu0 %v2598
    %2823 = vmatpush.bf16.msra.mxu0 %v2594
    %2824 = vmatpush.bf16.msra.mxu0 %v2590
    %2825 = vmatpush.bf16.msra.mxu0 %v2586
    %2826 = vmatpush.bf16.msra.mxu0 %v2582
    %2827 = vmatmul.bf16.gmra.mxu0 %v2025
    %v2828 = vpop.f32.mrf.mxu0
    %v2829 = vadd.f32 %v2816, %v2828
    %v2830 = vpop.f32.mrf.mxu0
    %2831 = vdwg.mxu0
    %2832 = vmatpush.bf16.msra.mxu0 %v2642
    %2833 = vmatpush.bf16.msra.mxu0 %v2638
    %2834 = vmatpush.bf16.msra.mxu0 %v2634
    %2835 = vmatpush.bf16.msra.mxu0 %v2630
    %2836 = vmatpush.bf16.msra.mxu0 %v2626
    %2837 = vmatpush.bf16.msra.mxu0 %v2622
    %2838 = vmatpush.bf16.msra.mxu0 %v2618
    %2839 = vmatpush.bf16.msra.mxu0 %v2614
    %2840 = vmatmul.bf16.gmra.mxu0 %v2026
    %v2841 = vpop.f32.mrf.mxu0
    %v2842 = vadd.f32 %v2829, %v2841
    %v2843 = vpop.f32.mrf.mxu0
    %2844 = vdwg.mxu0
    %2845 = vmatpush.bf16.msra.mxu0 %v2674
    %2846 = vmatpush.bf16.msra.mxu0 %v2670
    %2847 = vmatpush.bf16.msra.mxu0 %v2666
    %2848 = vmatpush.bf16.msra.mxu0 %v2662
    %2849 = vmatpush.bf16.msra.mxu0 %v2658
    %2850 = vmatpush.bf16.msra.mxu0 %v2654
    %2851 = vmatpush.bf16.msra.mxu0 %v2650
    %2852 = vmatpush.bf16.msra.mxu0 %v2646
    %2853 = vmatmul.bf16.gmra.mxu0 %v2027
    %v2854 = vpop.f32.mrf.mxu0
    %v2855 = vadd.f32 %v2842, %v2854
    %v2856 = vpop.f32.mrf.mxu0
    %2857 = vdwg.mxu0
    %2858 = vmatpush.bf16.msra.mxu0 %v2579
    %2859 = vmatpush.bf16.msra.mxu0 %v2575
    %2860 = vmatpush.bf16.msra.mxu0 %v2571
    %2861 = vmatpush.bf16.msra.mxu0 %v2567
    %2862 = vmatpush.bf16.msra.mxu0 %v2563
    %2863 = vmatpush.bf16.msra.mxu0 %v2559
    %2864 = vmatpush.bf16.msra.mxu0 %v2555
    %2865 = vmatpush.bf16.msra.mxu0 %v2551
    %2866 = vmatmul.bf16.gmra.mxu0 %v2024
    %v2867 = vpop.f32.mrf.mxu0
    %v2868 = vadd.f32 %v2159, %v2867
    %v2869 = vpop.f32.mrf.mxu0
    %2870 = vdwg.mxu0
    %2871 = vmatpush.bf16.msra.mxu0 %v2611
    %2872 = vmatpush.bf16.msra.mxu0 %v2607
    %2873 = vmatpush.bf16.msra.mxu0 %v2603
    %2874 = vmatpush.bf16.msra.mxu0 %v2599
    %2875 = vmatpush.bf16.msra.mxu0 %v2595
    %2876 = vmatpush.bf16.msra.mxu0 %v2591
    %2877 = vmatpush.bf16.msra.mxu0 %v2587
    %2878 = vmatpush.bf16.msra.mxu0 %v2583
    %2879 = vmatmul.bf16.gmra.mxu0 %v2025
    %v2880 = vpop.f32.mrf.mxu0
    %v2881 = vadd.f32 %v2868, %v2880
    %v2882 = vpop.f32.mrf.mxu0
    %2883 = vdwg.mxu0
    %2884 = vmatpush.bf16.msra.mxu0 %v2643
    %2885 = vmatpush.bf16.msra.mxu0 %v2639
    %2886 = vmatpush.bf16.msra.mxu0 %v2635
    %2887 = vmatpush.bf16.msra.mxu0 %v2631
    %2888 = vmatpush.bf16.msra.mxu0 %v2627
    %2889 = vmatpush.bf16.msra.mxu0 %v2623
    %2890 = vmatpush.bf16.msra.mxu0 %v2619
    %2891 = vmatpush.bf16.msra.mxu0 %v2615
    %2892 = vmatmul.bf16.gmra.mxu0 %v2026
    %v2893 = vpop.f32.mrf.mxu0
    %v2894 = vadd.f32 %v2881, %v2893
    %v2895 = vpop.f32.mrf.mxu0
    %2896 = vdwg.mxu0
    %2897 = vmatpush.bf16.msra.mxu0 %v2675
    %2898 = vmatpush.bf16.msra.mxu0 %v2671
    %2899 = vmatpush.bf16.msra.mxu0 %v2667
    %2900 = vmatpush.bf16.msra.mxu0 %v2663
    %2901 = vmatpush.bf16.msra.mxu0 %v2659
    %2902 = vmatpush.bf16.msra.mxu0 %v2655
    %2903 = vmatpush.bf16.msra.mxu0 %v2651
    %2904 = vmatpush.bf16.msra.mxu0 %v2647
    %2905 = vmatmul.bf16.gmra.mxu0 %v2027
    %v2906 = vpop.f32.mrf.mxu0
    %v2907 = vadd.f32 %v2894, %v2906
    %v2908 = vpop.f32.mrf.mxu0
    %2909 = vdwg.mxu0
    %2910 = vmatpush.bf16.msra.mxu0 %v2580
    %2911 = vmatpush.bf16.msra.mxu0 %v2576
    %2912 = vmatpush.bf16.msra.mxu0 %v2572
    %2913 = vmatpush.bf16.msra.mxu0 %v2568
    %2914 = vmatpush.bf16.msra.mxu0 %v2564
    %2915 = vmatpush.bf16.msra.mxu0 %v2560
    %2916 = vmatpush.bf16.msra.mxu0 %v2556
    %2917 = vmatpush.bf16.msra.mxu0 %v2552
    %2918 = vmatmul.bf16.gmra.mxu0 %v2024
    %v2919 = vpop.f32.mrf.mxu0
    %v2920 = vadd.f32 %v2160, %v2919
    %v2921 = vpop.f32.mrf.mxu0
    %2922 = vdwg.mxu0
    %2923 = vmatpush.bf16.msra.mxu0 %v2612
    %2924 = vmatpush.bf16.msra.mxu0 %v2608
    %2925 = vmatpush.bf16.msra.mxu0 %v2604
    %2926 = vmatpush.bf16.msra.mxu0 %v2600
    %2927 = vmatpush.bf16.msra.mxu0 %v2596
    %2928 = vmatpush.bf16.msra.mxu0 %v2592
    %2929 = vmatpush.bf16.msra.mxu0 %v2588
    %2930 = vmatpush.bf16.msra.mxu0 %v2584
    %2931 = vmatmul.bf16.gmra.mxu0 %v2025
    %v2932 = vpop.f32.mrf.mxu0
    %v2933 = vadd.f32 %v2920, %v2932
    %v2934 = vpop.f32.mrf.mxu0
    %2935 = vdwg.mxu0
    %2936 = vmatpush.bf16.msra.mxu0 %v2644
    %2937 = vmatpush.bf16.msra.mxu0 %v2640
    %2938 = vmatpush.bf16.msra.mxu0 %v2636
    %2939 = vmatpush.bf16.msra.mxu0 %v2632
    %2940 = vmatpush.bf16.msra.mxu0 %v2628
    %2941 = vmatpush.bf16.msra.mxu0 %v2624
    %2942 = vmatpush.bf16.msra.mxu0 %v2620
    %2943 = vmatpush.bf16.msra.mxu0 %v2616
    %2944 = vmatmul.bf16.gmra.mxu0 %v2026
    %v2945 = vpop.f32.mrf.mxu0
    %v2946 = vadd.f32 %v2933, %v2945
    %v2947 = vpop.f32.mrf.mxu0
    %2948 = vdwg.mxu0
    %2949 = vmatpush.bf16.msra.mxu0 %v2676
    %2950 = vmatpush.bf16.msra.mxu0 %v2672
    %2951 = vmatpush.bf16.msra.mxu0 %v2668
    %2952 = vmatpush.bf16.msra.mxu0 %v2664
    %2953 = vmatpush.bf16.msra.mxu0 %v2660
    %2954 = vmatpush.bf16.msra.mxu0 %v2656
    %2955 = vmatpush.bf16.msra.mxu0 %v2652
    %2956 = vmatpush.bf16.msra.mxu0 %v2648
    %2957 = vmatmul.bf16.gmra.mxu0 %v2027
    %v2958 = vpop.f32.mrf.mxu0
    %v2959 = vadd.f32 %v2946, %v2958
    %v2960 = vpop.f32.mrf.mxu0
    %2961 = vdwg.mxu0
    %2962 = vmatpush.bf16.msra.mxu0 %v2581
    %2963 = vmatpush.bf16.msra.mxu0 %v2577
    %2964 = vmatpush.bf16.msra.mxu0 %v2573
    %2965 = vmatpush.bf16.msra.mxu0 %v2569
    %2966 = vmatpush.bf16.msra.mxu0 %v2565
    %2967 = vmatpush.bf16.msra.mxu0 %v2561
    %2968 = vmatpush.bf16.msra.mxu0 %v2557
    %2969 = vmatpush.bf16.msra.mxu0 %v2553
    %2970 = vmatmul.bf16.gmra.mxu0 %v2024
    %v2971 = vpop.f32.mrf.mxu0
    %v2972 = vadd.f32 %v2161, %v2971
    %v2973 = vpop.f32.mrf.mxu0
    %2974 = vdwg.mxu0
    %2975 = vmatpush.bf16.msra.mxu0 %v2613
    %2976 = vmatpush.bf16.msra.mxu0 %v2609
    %2977 = vmatpush.bf16.msra.mxu0 %v2605
    %2978 = vmatpush.bf16.msra.mxu0 %v2601
    %2979 = vmatpush.bf16.msra.mxu0 %v2597
    %2980 = vmatpush.bf16.msra.mxu0 %v2593
    %2981 = vmatpush.bf16.msra.mxu0 %v2589
    %2982 = vmatpush.bf16.msra.mxu0 %v2585
    %2983 = vmatmul.bf16.gmra.mxu0 %v2025
    %v2984 = vpop.f32.mrf.mxu0
    %v2985 = vadd.f32 %v2972, %v2984
    %v2986 = vpop.f32.mrf.mxu0
    %2987 = vdwg.mxu0
    %2988 = vmatpush.bf16.msra.mxu0 %v2645
    %2989 = vmatpush.bf16.msra.mxu0 %v2641
    %2990 = vmatpush.bf16.msra.mxu0 %v2637
    %2991 = vmatpush.bf16.msra.mxu0 %v2633
    %2992 = vmatpush.bf16.msra.mxu0 %v2629
    %2993 = vmatpush.bf16.msra.mxu0 %v2625
    %2994 = vmatpush.bf16.msra.mxu0 %v2621
    %2995 = vmatpush.bf16.msra.mxu0 %v2617
    %2996 = vmatmul.bf16.gmra.mxu0 %v2026
    %v2997 = vpop.f32.mrf.mxu0
    %v2998 = vadd.f32 %v2985, %v2997
    %v2999 = vpop.f32.mrf.mxu0
    %3000 = vdwg.mxu0
    %3001 = vmatpush.bf16.msra.mxu0 %v2677
    %3002 = vmatpush.bf16.msra.mxu0 %v2673
    %3003 = vmatpush.bf16.msra.mxu0 %v2669
    %3004 = vmatpush.bf16.msra.mxu0 %v2665
    %3005 = vmatpush.bf16.msra.mxu0 %v2661
    %3006 = vmatpush.bf16.msra.mxu0 %v2657
    %3007 = vmatpush.bf16.msra.mxu0 %v2653
    %3008 = vmatpush.bf16.msra.mxu0 %v2649
    %3009 = vmatmul.bf16.gmra.mxu0 %v2027
    %v3010 = vpop.f32.mrf.mxu0
    %v3011 = vadd.f32 %v2998, %v3010
    %v3012 = vpop.f32.mrf.mxu0
    %3013 = vdwg.mxu0
    %v3014 = vadd.f32 %v1859, %v2855
    %v3015 = vadd.f32 %v1885, %v2907
    %v3016 = vadd.f32 %v1911, %v2959
    %v3017 = vadd.f32 %v1937, %v3011
    %v3018 = vld [vmem:[%s15] sm:$0xf]
    %v3019 = vld [vmem:[%s16] sm:$0xf]
    %v3020 = vadd.f32 %v3014, %v3015
    %v3021 = vadd.f32 %v3020, %v3016
    %v3022 = vadd.f32 %v3021, %v3017
    %3023 = vadd.xlane.f32.xlu0 %v3022
    %v3024 = vpop.xlane.xlu0 %3023
    %v3025 = vrcp.pop 512.0
    %v3026 = vmul.f32 512.0, %v3025
    %v3027 = vsub.f32 1.0, %v3026
    %v3028 = vmul.f32 %v3025, %v3027
    %v3029 = vadd.f32 %v3025, %v3028
    %vm3030 = vweird.f32 %v3025
    %v3031 = vsel %vm3030, %v3025, %v3029
    %v3032 = vmul.f32 %v3024, %v3031
    %v3033 = vsub.f32 %v3014, %v3032
    %v3034 = vsub.f32 %v3015, %v3032
    %v3035 = vsub.f32 %v3016, %v3032
    %v3036 = vsub.f32 %v3017, %v3032
    %v3037 = vmul.f32 %v3033, %v3033
    %v3038 = vmul.f32 %v3034, %v3034
    %v3039 = vmul.f32 %v3035, %v3035
    %v3040 = vmul.f32 %v3036, %v3036
    %v3041 = vadd.f32 %v3037, %v3038
    %v3042 = vadd.f32 %v3041, %v3039
    %v3043 = vadd.f32 %v3042, %v3040
    %3044 = vadd.xlane.f32.xlu0 %v3043
    %v3045 = vpop.xlane.xlu0 %3044
    %v3046 = vmul.f32 %v3045, %v3031
    %v3047 = vadd.f32 %v3046, 1e-05
    %v3048 = vrsqrt.pop %v3047
    %v3049 = vmul.f32 %v3048, %v3047
    %v3050 = vmul.f32 %v3049, %v3048
    %v3051 = vmul.f32 0.5, %v3050
    %v3052 = vsub.f32 1.5, %v3051
    %v3053 = vmul.f32 %v3048, %v3052
    %vm3054 = vweird.f32 %v3047
    %vm3055 = vweird.f32 %v3048
    %vm3056 = vmor %vm3054, %vm3055
    %v3057 = vsel %vm3056, %v3048, %v3053
    %v3058 = vmul.f32 %v3033, %v3057
    %v3059 = vmul.f32 %v3034, %v3057
    %v3060 = vmul.f32 %v3035, %v3057
    %v3061 = vmul.f32 %v3036, %v3057
    %v3063 = vperm.slane %v3018, 0
    %v3064 = vperm.slane %v3018, 1
    %v3065 = vperm.slane %v3018, 2
    %v3066 = vperm.slane %v3018, 3
    %v3071 = vmul.f32 %v3058, %v3063
    %v3072 = vmul.f32 %v3059, %v3064
    %v3073 = vmul.f32 %v3060, %v3065
    %v3074 = vmul.f32 %v3061, %v3066
    %v3076 = vperm.slane %v3019, 0
    %v3077 = vperm.slane %v3019, 1
    %v3078 = vperm.slane %v3019, 2
    %v3079 = vperm.slane %v3019, 3
    %v3084 = vadd.f32 %v3071, %v3076
    %v3085 = vadd.f32 %v3072, %v3077
    %v3086 = vadd.f32 %v3073, %v3078
    %v3087 = vadd.f32 %v3074, %v3079
    %v3088 = vmul.f32 %v3084, %v3084
    %v3089 = vmul.f32 %v3085, %v3085
    %v3090 = vmul.f32 %v3086, %v3086
    %v3091 = vmul.f32 %v3087, %v3087
    %v3092 = vadd.f32 %v3088, %v3089
    %v3093 = vadd.f32 %v3092, %v3090
    %v3094 = vadd.f32 %v3093, %v3091
    %3095 = vadd.xlane.f32.xlu0 %v3094
    %v3096 = vpop.xlane.xlu0 %3095
    %v3097 = vadd.f32 %v3096, 1e-12
    %v3098 = vrsqrt.pop %v3097
    %v3099 = vmul.f32 %v3098, %v3097
    %v3100 = vmul.f32 %v3099, %v3098
    %v3101 = vmul.f32 0.5, %v3100
    %v3102 = vsub.f32 1.5, %v3101
    %v3103 = vmul.f32 %v3098, %v3102
    %vm3104 = vweird.f32 %v3097
    %vm3105 = vweird.f32 %v3098
    %vm3106 = vmor %vm3104, %vm3105
    %v3107 = vsel %vm3106, %v3098, %v3103
    %v3108 = vmul.f32 %v3084, %v3107
    %v3109 = vmul.f32 %v3085, %v3107
    %v3110 = vmul.f32 %v3086, %v3107
    %v3111 = vmul.f32 %v3087, %v3107
    %v3112 = vpack.c.bf16 %v342, %v342
    %v3113 = vpack.c.bf16 %v343, %v343
    %v3114 = vpack.c.bf16 %v344, %v344
    %v3115 = vpack.c.bf16 %v345, %v345
    %v3116 = vld [vmem:[#allocation22] sm:$0xff]
    %v3117 = vld [vmem:[#allocation22 + $0x8] sm:$0xff]
    %v3118 = vld [vmem:[#allocation22 + $0x10] sm:$0xff]
    %v3119 = vld [vmem:[#allocation22 + $0x18] sm:$0xff]
    %v3120 = vld [vmem:[#allocation22 + $0x20] sm:$0xff]
    %v3121 = vld [vmem:[#allocation22 + $0x28] sm:$0xff]
    %v3122 = vld [vmem:[#allocation22 + $0x30] sm:$0xff]
    %v3123 = vld [vmem:[#allocation22 + $0x38] sm:$0xff]
    %v3124 = vld [vmem:[#allocation22 + $0x40] sm:$0xff]
    %v3125 = vld [vmem:[#allocation22 + $0x48] sm:$0xff]
    %v3126 = vld [vmem:[#allocation22 + $0x50] sm:$0xff]
    %v3127 = vld [vmem:[#allocation22 + $0x58] sm:$0xff]
    %v3128 = vld [vmem:[#allocation22 + $0x60] sm:$0xff]
    %v3129 = vld [vmem:[#allocation22 + $0x68] sm:$0xff]
    %v3130 = vld [vmem:[#allocation22 + $0x70] sm:$0xff]
    %v3131 = vld [vmem:[#allocation22 + $0x78] sm:$0xff]
    %v3132 = vld [vmem:[#allocation22 + $0x80] sm:$0xff]
    %v3133 = vld [vmem:[#allocation22 + $0x88] sm:$0xff]
    %v3134 = vld [vmem:[#allocation22 + $0x90] sm:$0xff]
    %v3135 = vld [vmem:[#allocation22 + $0x98] sm:$0xff]
    %v3136 = vld [vmem:[#allocation22 + $0xa0] sm:$0xff]
    %v3137 = vld [vmem:[#allocation22 + $0xa8] sm:$0xff]
    %v3138 = vld [vmem:[#allocation22 + $0xb0] sm:$0xff]
    %v3139 = vld [vmem:[#allocation22 + $0xb8] sm:$0xff]
    %v3140 = vld [vmem:[#allocation22 + $0xc0] sm:$0xff]
    %v3141 = vld [vmem:[#allocation22 + $0xc8] sm:$0xff]
    %v3142 = vld [vmem:[#allocation22 + $0xd0] sm:$0xff]
    %v3143 = vld [vmem:[#allocation22 + $0xd8] sm:$0xff]
    %v3144 = vld [vmem:[#allocation22 + $0xe0] sm:$0xff]
    %v3145 = vld [vmem:[#allocation22 + $0xe8] sm:$0xff]
    %v3146 = vld [vmem:[#allocation22 + $0xf0] sm:$0xff]
    %v3147 = vld [vmem:[#allocation22 + $0xf8] sm:$0xff]
    %v3148 = vld [vmem:[#allocation22 + $0x100] sm:$0xff]
    %v3149 = vld [vmem:[#allocation22 + $0x108] sm:$0xff]
    %v3150 = vld [vmem:[#allocation22 + $0x110] sm:$0xff]
    %v3151 = vld [vmem:[#allocation22 + $0x118] sm:$0xff]
    %v3152 = vld [vmem:[#allocation22 + $0x120] sm:$0xff]
    %v3153 = vld [vmem:[#allocation22 + $0x128] sm:$0xff]
    %v3154 = vld [vmem:[#allocation22 + $0x130] sm:$0xff]
    %v3155 = vld [vmem:[#allocation22 + $0x138] sm:$0xff]
    %v3156 = vld [vmem:[#allocation22 + $0x140] sm:$0xff]
    %v3157 = vld [vmem:[#allocation22 + $0x148] sm:$0xff]
    %v3158 = vld [vmem:[#allocation22 + $0x150] sm:$0xff]
    %v3159 = vld [vmem:[#allocation22 + $0x158] sm:$0xff]
    %v3160 = vld [vmem:[#allocation22 + $0x160] sm:$0xff]
    %v3161 = vld [vmem:[#allocation22 + $0x168] sm:$0xff]
    %v3162 = vld [vmem:[#allocation22 + $0x170] sm:$0xff]
    %v3163 = vld [vmem:[#allocation22 + $0x178] sm:$0xff]
    %v3164 = vld [vmem:[#allocation22 + $0x180] sm:$0xff]
    %v3165 = vld [vmem:[#allocation22 + $0x188] sm:$0xff]
    %v3166 = vld [vmem:[#allocation22 + $0x190] sm:$0xff]
    %v3167 = vld [vmem:[#allocation22 + $0x198] sm:$0xff]
    %v3168 = vld [vmem:[#allocation22 + $0x1a0] sm:$0xff]
    %v3169 = vld [vmem:[#allocation22 + $0x1a8] sm:$0xff]
    %v3170 = vld [vmem:[#allocation22 + $0x1b0] sm:$0xff]
    %v3171 = vld [vmem:[#allocation22 + $0x1b8] sm:$0xff]
    %v3172 = vld [vmem:[#allocation22 + $0x1c0] sm:$0xff]
    %v3173 = vld [vmem:[#allocation22 + $0x1c8] sm:$0xff]
    %v3174 = vld [vmem:[#allocation22 + $0x1d0] sm:$0xff]
    %v3175 = vld [vmem:[#allocation22 + $0x1d8] sm:$0xff]
    %v3176 = vld [vmem:[#allocation22 + $0x1e0] sm:$0xff]
    %v3177 = vld [vmem:[#allocation22 + $0x1e8] sm:$0xff]
    %v3178 = vld [vmem:[#allocation22 + $0x1f0] sm:$0xff]
    %v3179 = vld [vmem:[#allocation22 + $0x1f8] sm:$0xff]
    %v3180 = vld [vmem:[#allocation22 + $0x200] sm:$0xff]
    %v3181 = vld [vmem:[#allocation22 + $0x208] sm:$0xff]
    %v3182 = vld [vmem:[#allocation22 + $0x210] sm:$0xff]
    %v3183 = vld [vmem:[#allocation22 + $0x218] sm:$0xff]
    %v3184 = vld [vmem:[#allocation22 + $0x220] sm:$0xff]
    %v3185 = vld [vmem:[#allocation22 + $0x228] sm:$0xff]
    %v3186 = vld [vmem:[#allocation22 + $0x230] sm:$0xff]
    %v3187 = vld [vmem:[#allocation22 + $0x238] sm:$0xff]
    %v3188 = vld [vmem:[#allocation22 + $0x240] sm:$0xff]
    %v3189 = vld [vmem:[#allocation22 + $0x248] sm:$0xff]
    %v3190 = vld [vmem:[#allocation22 + $0x250] sm:$0xff]
    %v3191 = vld [vmem:[#allocation22 + $0x258] sm:$0xff]
    %v3192 = vld [vmem:[#allocation22 + $0x260] sm:$0xff]
    %v3193 = vld [vmem:[#allocation22 + $0x268] sm:$0xff]
    %v3194 = vld [vmem:[#allocation22 + $0x270] sm:$0xff]
    %v3195 = vld [vmem:[#allocation22 + $0x278] sm:$0xff]
    %v3196 = vld [vmem:[#allocation22 + $0x280] sm:$0xff]
    %v3197 = vld [vmem:[#allocation22 + $0x288] sm:$0xff]
    %v3198 = vld [vmem:[#allocation22 + $0x290] sm:$0xff]
    %v3199 = vld [vmem:[#allocation22 + $0x298] sm:$0xff]
    %v3200 = vld [vmem:[#allocation22 + $0x2a0] sm:$0xff]
    %v3201 = vld [vmem:[#allocation22 + $0x2a8] sm:$0xff]
    %v3202 = vld [vmem:[#allocation22 + $0x2b0] sm:$0xff]
    %v3203 = vld [vmem:[#allocation22 + $0x2b8] sm:$0xff]
    %v3204 = vld [vmem:[#allocation22 + $0x2c0] sm:$0xff]
    %v3205 = vld [vmem:[#allocation22 + $0x2c8] sm:$0xff]
    %v3206 = vld [vmem:[#allocation22 + $0x2d0] sm:$0xff]
    %v3207 = vld [vmem:[#allocation22 + $0x2d8] sm:$0xff]
    %v3208 = vld [vmem:[#allocation22 + $0x2e0] sm:$0xff]
    %v3209 = vld [vmem:[#allocation22 + $0x2e8] sm:$0xff]
    %v3210 = vld [vmem:[#allocation22 + $0x2f0] sm:$0xff]
    %v3211 = vld [vmem:[#allocation22 + $0x2f8] sm:$0xff]
    %v3212 = vld [vmem:[#allocation22 + $0x300] sm:$0xff]
    %v3213 = vld [vmem:[#allocation22 + $0x308] sm:$0xff]
    %v3214 = vld [vmem:[#allocation22 + $0x310] sm:$0xff]
    %v3215 = vld [vmem:[#allocation22 + $0x318] sm:$0xff]
    %v3216 = vld [vmem:[#allocation22 + $0x320] sm:$0xff]
    %v3217 = vld [vmem:[#allocation22 + $0x328] sm:$0xff]
    %v3218 = vld [vmem:[#allocation22 + $0x330] sm:$0xff]
    %v3219 = vld [vmem:[#allocation22 + $0x338] sm:$0xff]
    %v3220 = vld [vmem:[#allocation22 + $0x340] sm:$0xff]
    %v3221 = vld [vmem:[#allocation22 + $0x348] sm:$0xff]
    %v3222 = vld [vmem:[#allocation22 + $0x350] sm:$0xff]
    %v3223 = vld [vmem:[#allocation22 + $0x358] sm:$0xff]
    %v3224 = vld [vmem:[#allocation22 + $0x360] sm:$0xff]
    %v3225 = vld [vmem:[#allocation22 + $0x368] sm:$0xff]
    %v3226 = vld [vmem:[#allocation22 + $0x370] sm:$0xff]
    %v3227 = vld [vmem:[#allocation22 + $0x378] sm:$0xff]
    %v3228 = vld [vmem:[#allocation22 + $0x380] sm:$0xff]
    %v3229 = vld [vmem:[#allocation22 + $0x388] sm:$0xff]
    %v3230 = vld [vmem:[#allocation22 + $0x390] sm:$0xff]
    %v3231 = vld [vmem:[#allocation22 + $0x398] sm:$0xff]
    %v3232 = vld [vmem:[#allocation22 + $0x3a0] sm:$0xff]
    %v3233 = vld [vmem:[#allocation22 + $0x3a8] sm:$0xff]
    %v3234 = vld [vmem:[#allocation22 + $0x3b0] sm:$0xff]
    %v3235 = vld [vmem:[#allocation22 + $0x3b8] sm:$0xff]
    %v3236 = vld [vmem:[#allocation22 + $0x3c0] sm:$0xff]
    %v3237 = vld [vmem:[#allocation22 + $0x3c8] sm:$0xff]
    %v3238 = vld [vmem:[#allocation22 + $0x3d0] sm:$0xff]
    %v3239 = vld [vmem:[#allocation22 + $0x3d8] sm:$0xff]
    %v3240 = vld [vmem:[#allocation22 + $0x3e0] sm:$0xff]
    %v3241 = vld [vmem:[#allocation22 + $0x3e8] sm:$0xff]
    %v3242 = vld [vmem:[#allocation22 + $0x3f0] sm:$0xff]
    %v3243 = vld [vmem:[#allocation22 + $0x3f8] sm:$0xff]
    %v3372 = vunpack.c.l.b16 %v3116
    %v3373 = vunpack.c.h.b16 %v3116
    %v3374 = vunpack.c.l.b16 %v3117
    %v3375 = vunpack.c.h.b16 %v3117
    %v3376 = vunpack.c.l.b16 %v3118
    %v3377 = vunpack.c.h.b16 %v3118
    %v3378 = vunpack.c.l.b16 %v3119
    %v3379 = vunpack.c.h.b16 %v3119
    %v3380 = vunpack.c.l.b16 %v3120
    %v3381 = vunpack.c.h.b16 %v3120
    %v3382 = vunpack.c.l.b16 %v3121
    %v3383 = vunpack.c.h.b16 %v3121
    %v3384 = vunpack.c.l.b16 %v3122
    %v3385 = vunpack.c.h.b16 %v3122
    %v3386 = vunpack.c.l.b16 %v3123
    %v3387 = vunpack.c.h.b16 %v3123
    %v3388 = vunpack.c.l.b16 %v3124
    %v3389 = vunpack.c.h.b16 %v3124
    %v3390 = vunpack.c.l.b16 %v3125
    %v3391 = vunpack.c.h.b16 %v3125
    %v3392 = vunpack.c.l.b16 %v3126
    %v3393 = vunpack.c.h.b16 %v3126
    %v3394 = vunpack.c.l.b16 %v3127
    %v3395 = vunpack.c.h.b16 %v3127
    %v3396 = vunpack.c.l.b16 %v3128
    %v3397 = vunpack.c.h.b16 %v3128
    %v3398 = vunpack.c.l.b16 %v3129
    %v3399 = vunpack.c.h.b16 %v3129
    %v3400 = vunpack.c.l.b16 %v3130
    %v3401 = vunpack.c.h.b16 %v3130
    %v3402 = vunpack.c.l.b16 %v3131
    %v3403 = vunpack.c.h.b16 %v3131
    %v3404 = vunpack.c.l.b16 %v3132
    %v3405 = vunpack.c.h.b16 %v3132
    %v3406 = vunpack.c.l.b16 %v3133
    %v3407 = vunpack.c.h.b16 %v3133
    %v3408 = vunpack.c.l.b16 %v3134
    %v3409 = vunpack.c.h.b16 %v3134
    %v3410 = vunpack.c.l.b16 %v3135
    %v3411 = vunpack.c.h.b16 %v3135
    %v3412 = vunpack.c.l.b16 %v3136
    %v3413 = vunpack.c.h.b16 %v3136
    %v3414 = vunpack.c.l.b16 %v3137
    %v3415 = vunpack.c.h.b16 %v3137
    %v3416 = vunpack.c.l.b16 %v3138
    %v3417 = vunpack.c.h.b16 %v3138
    %v3418 = vunpack.c.l.b16 %v3139
    %v3419 = vunpack.c.h.b16 %v3139
    %v3420 = vunpack.c.l.b16 %v3140
    %v3421 = vunpack.c.h.b16 %v3140
    %v3422 = vunpack.c.l.b16 %v3141
    %v3423 = vunpack.c.h.b16 %v3141
    %v3424 = vunpack.c.l.b16 %v3142
    %v3425 = vunpack.c.h.b16 %v3142
    %v3426 = vunpack.c.l.b16 %v3143
    %v3427 = vunpack.c.h.b16 %v3143
    %v3428 = vunpack.c.l.b16 %v3144
    %v3429 = vunpack.c.h.b16 %v3144
    %v3430 = vunpack.c.l.b16 %v3145
    %v3431 = vunpack.c.h.b16 %v3145
    %v3432 = vunpack.c.l.b16 %v3146
    %v3433 = vunpack.c.h.b16 %v3146
    %v3434 = vunpack.c.l.b16 %v3147
    %v3435 = vunpack.c.h.b16 %v3147
    %v3436 = vunpack.c.l.b16 %v3148
    %v3437 = vunpack.c.h.b16 %v3148
    %v3438 = vunpack.c.l.b16 %v3149
    %v3439 = vunpack.c.h.b16 %v3149
    %v3440 = vunpack.c.l.b16 %v3150
    %v3441 = vunpack.c.h.b16 %v3150
    %v3442 = vunpack.c.l.b16 %v3151
    %v3443 = vunpack.c.h.b16 %v3151
    %v3444 = vunpack.c.l.b16 %v3152
    %v3445 = vunpack.c.h.b16 %v3152
    %v3446 = vunpack.c.l.b16 %v3153
    %v3447 = vunpack.c.h.b16 %v3153
    %v3448 = vunpack.c.l.b16 %v3154
    %v3449 = vunpack.c.h.b16 %v3154
    %v3450 = vunpack.c.l.b16 %v3155
    %v3451 = vunpack.c.h.b16 %v3155
    %v3452 = vunpack.c.l.b16 %v3156
    %v3453 = vunpack.c.h.b16 %v3156
    %v3454 = vunpack.c.l.b16 %v3157
    %v3455 = vunpack.c.h.b16 %v3157
    %v3456 = vunpack.c.l.b16 %v3158
    %v3457 = vunpack.c.h.b16 %v3158
    %v3458 = vunpack.c.l.b16 %v3159
    %v3459 = vunpack.c.h.b16 %v3159
    %v3460 = vunpack.c.l.b16 %v3160
    %v3461 = vunpack.c.h.b16 %v3160
    %v3462 = vunpack.c.l.b16 %v3161
    %v3463 = vunpack.c.h.b16 %v3161
    %v3464 = vunpack.c.l.b16 %v3162
    %v3465 = vunpack.c.h.b16 %v3162
    %v3466 = vunpack.c.l.b16 %v3163
    %v3467 = vunpack.c.h.b16 %v3163
    %v3468 = vunpack.c.l.b16 %v3164
    %v3469 = vunpack.c.h.b16 %v3164
    %v3470 = vunpack.c.l.b16 %v3165
    %v3471 = vunpack.c.h.b16 %v3165
    %v3472 = vunpack.c.l.b16 %v3166
    %v3473 = vunpack.c.h.b16 %v3166
    %v3474 = vunpack.c.l.b16 %v3167
    %v3475 = vunpack.c.h.b16 %v3167
    %v3476 = vunpack.c.l.b16 %v3168
    %v3477 = vunpack.c.h.b16 %v3168
    %v3478 = vunpack.c.l.b16 %v3169
    %v3479 = vunpack.c.h.b16 %v3169
    %v3480 = vunpack.c.l.b16 %v3170
    %v3481 = vunpack.c.h.b16 %v3170
    %v3482 = vunpack.c.l.b16 %v3171
    %v3483 = vunpack.c.h.b16 %v3171
    %v3484 = vunpack.c.l.b16 %v3172
    %v3485 = vunpack.c.h.b16 %v3172
    %v3486 = vunpack.c.l.b16 %v3173
    %v3487 = vunpack.c.h.b16 %v3173
    %v3488 = vunpack.c.l.b16 %v3174
    %v3489 = vunpack.c.h.b16 %v3174
    %v3490 = vunpack.c.l.b16 %v3175
    %v3491 = vunpack.c.h.b16 %v3175
    %v3492 = vunpack.c.l.b16 %v3176
    %v3493 = vunpack.c.h.b16 %v3176
    %v3494 = vunpack.c.l.b16 %v3177
    %v3495 = vunpack.c.h.b16 %v3177
    %v3496 = vunpack.c.l.b16 %v3178
    %v3497 = vunpack.c.h.b16 %v3178
    %v3498 = vunpack.c.l.b16 %v3179
    %v3499 = vunpack.c.h.b16 %v3179
    %v3500 = vunpack.c.l.b16 %v3180
    %v3501 = vunpack.c.h.b16 %v3180
    %v3502 = vunpack.c.l.b16 %v3181
    %v3503 = vunpack.c.h.b16 %v3181
    %v3504 = vunpack.c.l.b16 %v3182
    %v3505 = vunpack.c.h.b16 %v3182
    %v3506 = vunpack.c.l.b16 %v3183
    %v3507 = vunpack.c.h.b16 %v3183
    %v3508 = vunpack.c.l.b16 %v3184
    %v3509 = vunpack.c.h.b16 %v3184
    %v3510 = vunpack.c.l.b16 %v3185
    %v3511 = vunpack.c.h.b16 %v3185
    %v3512 = vunpack.c.l.b16 %v3186
    %v3513 = vunpack.c.h.b16 %v3186
    %v3514 = vunpack.c.l.b16 %v3187
    %v3515 = vunpack.c.h.b16 %v3187
    %v3516 = vunpack.c.l.b16 %v3188
    %v3517 = vunpack.c.h.b16 %v3188
    %v3518 = vunpack.c.l.b16 %v3189
    %v3519 = vunpack.c.h.b16 %v3189
    %v3520 = vunpack.c.l.b16 %v3190
    %v3521 = vunpack.c.h.b16 %v3190
    %v3522 = vunpack.c.l.b16 %v3191
    %v3523 = vunpack.c.h.b16 %v3191
    %v3524 = vunpack.c.l.b16 %v3192
    %v3525 = vunpack.c.h.b16 %v3192
    %v3526 = vunpack.c.l.b16 %v3193
    %v3527 = vunpack.c.h.b16 %v3193
    %v3528 = vunpack.c.l.b16 %v3194
    %v3529 = vunpack.c.h.b16 %v3194
    %v3530 = vunpack.c.l.b16 %v3195
    %v3531 = vunpack.c.h.b16 %v3195
    %v3532 = vunpack.c.l.b16 %v3196
    %v3533 = vunpack.c.h.b16 %v3196
    %v3534 = vunpack.c.l.b16 %v3197
    %v3535 = vunpack.c.h.b16 %v3197
    %v3536 = vunpack.c.l.b16 %v3198
    %v3537 = vunpack.c.h.b16 %v3198
    %v3538 = vunpack.c.l.b16 %v3199
    %v3539 = vunpack.c.h.b16 %v3199
    %v3540 = vunpack.c.l.b16 %v3200
    %v3541 = vunpack.c.h.b16 %v3200
    %v3542 = vunpack.c.l.b16 %v3201
    %v3543 = vunpack.c.h.b16 %v3201
    %v3544 = vunpack.c.l.b16 %v3202
    %v3545 = vunpack.c.h.b16 %v3202
    %v3546 = vunpack.c.l.b16 %v3203
    %v3547 = vunpack.c.h.b16 %v3203
    %v3548 = vunpack.c.l.b16 %v3204
    %v3549 = vunpack.c.h.b16 %v3204
    %v3550 = vunpack.c.l.b16 %v3205
    %v3551 = vunpack.c.h.b16 %v3205
    %v3552 = vunpack.c.l.b16 %v3206
    %v3553 = vunpack.c.h.b16 %v3206
    %v3554 = vunpack.c.l.b16 %v3207
    %v3555 = vunpack.c.h.b16 %v3207
    %v3556 = vunpack.c.l.b16 %v3208
    %v3557 = vunpack.c.h.b16 %v3208
    %v3558 = vunpack.c.l.b16 %v3209
    %v3559 = vunpack.c.h.b16 %v3209
    %v3560 = vunpack.c.l.b16 %v3210
    %v3561 = vunpack.c.h.b16 %v3210
    %v3562 = vunpack.c.l.b16 %v3211
    %v3563 = vunpack.c.h.b16 %v3211
    %v3564 = vunpack.c.l.b16 %v3212
    %v3565 = vunpack.c.h.b16 %v3212
    %v3566 = vunpack.c.l.b16 %v3213
    %v3567 = vunpack.c.h.b16 %v3213
    %v3568 = vunpack.c.l.b16 %v3214
    %v3569 = vunpack.c.h.b16 %v3214
    %v3570 = vunpack.c.l.b16 %v3215
    %v3571 = vunpack.c.h.b16 %v3215
    %v3572 = vunpack.c.l.b16 %v3216
    %v3573 = vunpack.c.h.b16 %v3216
    %v3574 = vunpack.c.l.b16 %v3217
    %v3575 = vunpack.c.h.b16 %v3217
    %v3576 = vunpack.c.l.b16 %v3218
    %v3577 = vunpack.c.h.b16 %v3218
    %v3578 = vunpack.c.l.b16 %v3219
    %v3579 = vunpack.c.h.b16 %v3219
    %v3580 = vunpack.c.l.b16 %v3220
    %v3581 = vunpack.c.h.b16 %v3220
    %v3582 = vunpack.c.l.b16 %v3221
    %v3583 = vunpack.c.h.b16 %v3221
    %v3584 = vunpack.c.l.b16 %v3222
    %v3585 = vunpack.c.h.b16 %v3222
    %v3586 = vunpack.c.l.b16 %v3223
    %v3587 = vunpack.c.h.b16 %v3223
    %v3588 = vunpack.c.l.b16 %v3224
    %v3589 = vunpack.c.h.b16 %v3224
    %v3590 = vunpack.c.l.b16 %v3225
    %v3591 = vunpack.c.h.b16 %v3225
    %v3592 = vunpack.c.l.b16 %v3226
    %v3593 = vunpack.c.h.b16 %v3226
    %v3594 = vunpack.c.l.b16 %v3227
    %v3595 = vunpack.c.h.b16 %v3227
    %v3596 = vunpack.c.l.b16 %v3228
    %v3597 = vunpack.c.h.b16 %v3228
    %v3598 = vunpack.c.l.b16 %v3229
    %v3599 = vunpack.c.h.b16 %v3229
    %v3600 = vunpack.c.l.b16 %v3230
    %v3601 = vunpack.c.h.b16 %v3230
    %v3602 = vunpack.c.l.b16 %v3231
    %v3603 = vunpack.c.h.b16 %v3231
    %v3604 = vunpack.c.l.b16 %v3232
    %v3605 = vunpack.c.h.b16 %v3232
    %v3606 = vunpack.c.l.b16 %v3233
    %v3607 = vunpack.c.h.b16 %v3233
    %v3608 = vunpack.c.l.b16 %v3234
    %v3609 = vunpack.c.h.b16 %v3234
    %v3610 = vunpack.c.l.b16 %v3235
    %v3611 = vunpack.c.h.b16 %v3235
    %v3612 = vunpack.c.l.b16 %v3236
    %v3613 = vunpack.c.h.b16 %v3236
    %v3614 = vunpack.c.l.b16 %v3237
    %v3615 = vunpack.c.h.b16 %v3237
    %v3616 = vunpack.c.l.b16 %v3238
    %v3617 = vunpack.c.h.b16 %v3238
    %v3618 = vunpack.c.l.b16 %v3239
    %v3619 = vunpack.c.h.b16 %v3239
    %v3620 = vunpack.c.l.b16 %v3240
    %v3621 = vunpack.c.h.b16 %v3240
    %v3622 = vunpack.c.l.b16 %v3241
    %v3623 = vunpack.c.h.b16 %v3241
    %v3624 = vunpack.c.l.b16 %v3242
    %v3625 = vunpack.c.h.b16 %v3242
    %v3626 = vunpack.c.l.b16 %v3243
    %v3627 = vunpack.c.h.b16 %v3243
    %v3628 = vpack.c.b16 %v3376, %v3372
    %v3629 = vpack.c.b16 %v3377, %v3373
    %v3630 = vpack.c.b16 %v3378, %v3374
    %v3631 = vpack.c.b16 %v3379, %v3375
    %v3632 = vpack.c.b16 %v3384, %v3380
    %v3633 = vpack.c.b16 %v3385, %v3381
    %v3634 = vpack.c.b16 %v3386, %v3382
    %v3635 = vpack.c.b16 %v3387, %v3383
    %v3636 = vpack.c.b16 %v3392, %v3388
    %v3637 = vpack.c.b16 %v3393, %v3389
    %v3638 = vpack.c.b16 %v3394, %v3390
    %v3639 = vpack.c.b16 %v3395, %v3391
    %v3640 = vpack.c.b16 %v3400, %v3396
    %v3641 = vpack.c.b16 %v3401, %v3397
    %v3642 = vpack.c.b16 %v3402, %v3398
    %v3643 = vpack.c.b16 %v3403, %v3399
    %v3644 = vpack.c.b16 %v3408, %v3404
    %v3645 = vpack.c.b16 %v3409, %v3405
    %v3646 = vpack.c.b16 %v3410, %v3406
    %v3647 = vpack.c.b16 %v3411, %v3407
    %v3648 = vpack.c.b16 %v3416, %v3412
    %v3649 = vpack.c.b16 %v3417, %v3413
    %v3650 = vpack.c.b16 %v3418, %v3414
    %v3651 = vpack.c.b16 %v3419, %v3415
    %v3652 = vpack.c.b16 %v3424, %v3420
    %v3653 = vpack.c.b16 %v3425, %v3421
    %v3654 = vpack.c.b16 %v3426, %v3422
    %v3655 = vpack.c.b16 %v3427, %v3423
    %v3656 = vpack.c.b16 %v3432, %v3428
    %v3657 = vpack.c.b16 %v3433, %v3429
    %v3658 = vpack.c.b16 %v3434, %v3430
    %v3659 = vpack.c.b16 %v3435, %v3431
    %v3660 = vpack.c.b16 %v3440, %v3436
    %v3661 = vpack.c.b16 %v3441, %v3437
    %v3662 = vpack.c.b16 %v3442, %v3438
    %v3663 = vpack.c.b16 %v3443, %v3439
    %v3664 = vpack.c.b16 %v3448, %v3444
    %v3665 = vpack.c.b16 %v3449, %v3445
    %v3666 = vpack.c.b16 %v3450, %v3446
    %v3667 = vpack.c.b16 %v3451, %v3447
    %v3668 = vpack.c.b16 %v3456, %v3452
    %v3669 = vpack.c.b16 %v3457, %v3453
    %v3670 = vpack.c.b16 %v3458, %v3454
    %v3671 = vpack.c.b16 %v3459, %v3455
    %v3672 = vpack.c.b16 %v3464, %v3460
    %v3673 = vpack.c.b16 %v3465, %v3461
    %v3674 = vpack.c.b16 %v3466, %v3462
    %v3675 = vpack.c.b16 %v3467, %v3463
    %v3676 = vpack.c.b16 %v3472, %v3468
    %v3677 = vpack.c.b16 %v3473, %v3469
    %v3678 = vpack.c.b16 %v3474, %v3470
    %v3679 = vpack.c.b16 %v3475, %v3471
    %v3680 = vpack.c.b16 %v3480, %v3476
    %v3681 = vpack.c.b16 %v3481, %v3477
    %v3682 = vpack.c.b16 %v3482, %v3478
    %v3683 = vpack.c.b16 %v3483, %v3479
    %v3684 = vpack.c.b16 %v3488, %v3484
    %v3685 = vpack.c.b16 %v3489, %v3485
    %v3686 = vpack.c.b16 %v3490, %v3486
    %v3687 = vpack.c.b16 %v3491, %v3487
    %v3688 = vpack.c.b16 %v3496, %v3492
    %v3689 = vpack.c.b16 %v3497, %v3493
    %v3690 = vpack.c.b16 %v3498, %v3494
    %v3691 = vpack.c.b16 %v3499, %v3495
    %v3692 = vpack.c.b16 %v3504, %v3500
    %v3693 = vpack.c.b16 %v3505, %v3501
    %v3694 = vpack.c.b16 %v3506, %v3502
    %v3695 = vpack.c.b16 %v3507, %v3503
    %v3696 = vpack.c.b16 %v3512, %v3508
    %v3697 = vpack.c.b16 %v3513, %v3509
    %v3698 = vpack.c.b16 %v3514, %v3510
    %v3699 = vpack.c.b16 %v3515, %v3511
    %v3700 = vpack.c.b16 %v3520, %v3516
    %v3701 = vpack.c.b16 %v3521, %v3517
    %v3702 = vpack.c.b16 %v3522, %v3518
    %v3703 = vpack.c.b16 %v3523, %v3519
    %v3704 = vpack.c.b16 %v3528, %v3524
    %v3705 = vpack.c.b16 %v3529, %v3525
    %v3706 = vpack.c.b16 %v3530, %v3526
    %v3707 = vpack.c.b16 %v3531, %v3527
    %v3708 = vpack.c.b16 %v3536, %v3532
    %v3709 = vpack.c.b16 %v3537, %v3533
    %v3710 = vpack.c.b16 %v3538, %v3534
    %v3711 = vpack.c.b16 %v3539, %v3535
    %v3712 = vpack.c.b16 %v3544, %v3540
    %v3713 = vpack.c.b16 %v3545, %v3541
    %v3714 = vpack.c.b16 %v3546, %v3542
    %v3715 = vpack.c.b16 %v3547, %v3543
    %v3716 = vpack.c.b16 %v3552, %v3548
    %v3717 = vpack.c.b16 %v3553, %v3549
    %v3718 = vpack.c.b16 %v3554, %v3550
    %v3719 = vpack.c.b16 %v3555, %v3551
    %v3720 = vpack.c.b16 %v3560, %v3556
    %v3721 = vpack.c.b16 %v3561, %v3557
    %v3722 = vpack.c.b16 %v3562, %v3558
    %v3723 = vpack.c.b16 %v3563, %v3559
    %v3724 = vpack.c.b16 %v3568, %v3564
    %v3725 = vpack.c.b16 %v3569, %v3565
    %v3726 = vpack.c.b16 %v3570, %v3566
    %v3727 = vpack.c.b16 %v3571, %v3567
    %v3728 = vpack.c.b16 %v3576, %v3572
    %v3729 = vpack.c.b16 %v3577, %v3573
    %v3730 = vpack.c.b16 %v3578, %v3574
    %v3731 = vpack.c.b16 %v3579, %v3575
    %v3732 = vpack.c.b16 %v3584, %v3580
    %v3733 = vpack.c.b16 %v3585, %v3581
    %v3734 = vpack.c.b16 %v3586, %v3582
    %v3735 = vpack.c.b16 %v3587, %v3583
    %v3736 = vpack.c.b16 %v3592, %v3588
    %v3737 = vpack.c.b16 %v3593, %v3589
    %v3738 = vpack.c.b16 %v3594, %v3590
    %v3739 = vpack.c.b16 %v3595, %v3591
    %v3740 = vpack.c.b16 %v3600, %v3596
    %v3741 = vpack.c.b16 %v3601, %v3597
    %v3742 = vpack.c.b16 %v3602, %v3598
    %v3743 = vpack.c.b16 %v3603, %v3599
    %v3744 = vpack.c.b16 %v3608, %v3604
    %v3745 = vpack.c.b16 %v3609, %v3605
    %v3746 = vpack.c.b16 %v3610, %v3606
    %v3747 = vpack.c.b16 %v3611, %v3607
    %v3748 = vpack.c.b16 %v3616, %v3612
    %v3749 = vpack.c.b16 %v3617, %v3613
    %v3750 = vpack.c.b16 %v3618, %v3614
    %v3751 = vpack.c.b16 %v3619, %v3615
    %v3752 = vpack.c.b16 %v3624, %v3620
    %v3753 = vpack.c.b16 %v3625, %v3621
    %v3754 = vpack.c.b16 %v3626, %v3622
    %v3755 = vpack.c.b16 %v3627, %v3623
    %3884 = vmatpush.bf16.msra.mxu0 %v3656
    %3885 = vmatpush.bf16.msra.mxu0 %v3652
    %3886 = vmatpush.bf16.msra.mxu0 %v3648
    %3887 = vmatpush.bf16.msra.mxu0 %v3644
    %3888 = vmatpush.bf16.msra.mxu0 %v3640
    %3889 = vmatpush.bf16.msra.mxu0 %v3636
    %3890 = vmatpush.bf16.msra.mxu0 %v3632
    %3891 = vmatpush.bf16.msra.mxu0 %v3628
    %3892 = vmatmul.bf16.gmra.mxu0 %v3112
    %v3893 = vpop.f32.mrf.mxu0
    %v3894 = vadd.f32 0.0, %v3893
    %v3895 = vpop.f32.mrf.mxu0
    %3896 = vdwg.mxu0
    %3897 = vmatpush.bf16.msra.mxu0 %v3688
    %3898 = vmatpush.bf16.msra.mxu0 %v3684
    %3899 = vmatpush.bf16.msra.mxu0 %v3680
    %3900 = vmatpush.bf16.msra.mxu0 %v3676
    %3901 = vmatpush.bf16.msra.mxu0 %v3672
    %3902 = vmatpush.bf16.msra.mxu0 %v3668
    %3903 = vmatpush.bf16.msra.mxu0 %v3664
    %3904 = vmatpush.bf16.msra.mxu0 %v3660
    %3905 = vmatmul.bf16.gmra.mxu0 %v3113
    %v3906 = vpop.f32.mrf.mxu0
    %v3907 = vadd.f32 %v3894, %v3906
    %v3908 = vpop.f32.mrf.mxu0
    %3909 = vdwg.mxu0
    %3910 = vmatpush.bf16.msra.mxu0 %v3720
    %3911 = vmatpush.bf16.msra.mxu0 %v3716
    %3912 = vmatpush.bf16.msra.mxu0 %v3712
    %3913 = vmatpush.bf16.msra.mxu0 %v3708
    %3914 = vmatpush.bf16.msra.mxu0 %v3704
    %3915 = vmatpush.bf16.msra.mxu0 %v3700
    %3916 = vmatpush.bf16.msra.mxu0 %v3696
    %3917 = vmatpush.bf16.msra.mxu0 %v3692
    %3918 = vmatmul.bf16.gmra.mxu0 %v3114
    %v3919 = vpop.f32.mrf.mxu0
    %v3920 = vadd.f32 %v3907, %v3919
    %v3921 = vpop.f32.mrf.mxu0
    %3922 = vdwg.mxu0
    %3923 = vmatpush.bf16.msra.mxu0 %v3752
    %3924 = vmatpush.bf16.msra.mxu0 %v3748
    %3925 = vmatpush.bf16.msra.mxu0 %v3744
    %3926 = vmatpush.bf16.msra.mxu0 %v3740
    %3927 = vmatpush.bf16.msra.mxu0 %v3736
    %3928 = vmatpush.bf16.msra.mxu0 %v3732
    %3929 = vmatpush.bf16.msra.mxu0 %v3728
    %3930 = vmatpush.bf16.msra.mxu0 %v3724
    %3931 = vmatmul.bf16.gmra.mxu0 %v3115
    %v3932 = vpop.f32.mrf.mxu0
    %v3933 = vadd.f32 %v3920, %v3932
    %v3934 = vpop.f32.mrf.mxu0
    %3935 = vdwg.mxu0
    %3936 = vmatpush.bf16.msra.mxu0 %v3657
    %3937 = vmatpush.bf16.msra.mxu0 %v3653
    %3938 = vmatpush.bf16.msra.mxu0 %v3649
    %3939 = vmatpush.bf16.msra.mxu0 %v3645
    %3940 = vmatpush.bf16.msra.mxu0 %v3641
    %3941 = vmatpush.bf16.msra.mxu0 %v3637
    %3942 = vmatpush.bf16.msra.mxu0 %v3633
    %3943 = vmatpush.bf16.msra.mxu0 %v3629
    %3944 = vmatmul.bf16.gmra.mxu0 %v3112
    %v3945 = vpop.f32.mrf.mxu0
    %v3946 = vadd.f32 0.0, %v3945
    %v3947 = vpop.f32.mrf.mxu0
    %3948 = vdwg.mxu0
    %3949 = vmatpush.bf16.msra.mxu0 %v3689
    %3950 = vmatpush.bf16.msra.mxu0 %v3685
    %3951 = vmatpush.bf16.msra.mxu0 %v3681
    %3952 = vmatpush.bf16.msra.mxu0 %v3677
    %3953 = vmatpush.bf16.msra.mxu0 %v3673
    %3954 = vmatpush.bf16.msra.mxu0 %v3669
    %3955 = vmatpush.bf16.msra.mxu0 %v3665
    %3956 = vmatpush.bf16.msra.mxu0 %v3661
    %3957 = vmatmul.bf16.gmra.mxu0 %v3113
    %v3958 = vpop.f32.mrf.mxu0
    %v3959 = vadd.f32 %v3946, %v3958
    %v3960 = vpop.f32.mrf.mxu0
    %3961 = vdwg.mxu0
    %3962 = vmatpush.bf16.msra.mxu0 %v3721
    %3963 = vmatpush.bf16.msra.mxu0 %v3717
    %3964 = vmatpush.bf16.msra.mxu0 %v3713
    %3965 = vmatpush.bf16.msra.mxu0 %v3709
    %3966 = vmatpush.bf16.msra.mxu0 %v3705
    %3967 = vmatpush.bf16.msra.mxu0 %v3701
    %3968 = vmatpush.bf16.msra.mxu0 %v3697
    %3969 = vmatpush.bf16.msra.mxu0 %v3693
    %3970 = vmatmul.bf16.gmra.mxu0 %v3114
    %v3971 = vpop.f32.mrf.mxu0
    %v3972 = vadd.f32 %v3959, %v3971
    %v3973 = vpop.f32.mrf.mxu0
    %3974 = vdwg.mxu0
    %3975 = vmatpush.bf16.msra.mxu0 %v3753
    %3976 = vmatpush.bf16.msra.mxu0 %v3749
    %3977 = vmatpush.bf16.msra.mxu0 %v3745
    %3978 = vmatpush.bf16.msra.mxu0 %v3741
    %3979 = vmatpush.bf16.msra.mxu0 %v3737
    %3980 = vmatpush.bf16.msra.mxu0 %v3733
    %3981 = vmatpush.bf16.msra.mxu0 %v3729
    %3982 = vmatpush.bf16.msra.mxu0 %v3725
    %3983 = vmatmul.bf16.gmra.mxu0 %v3115
    %v3984 = vpop.f32.mrf.mxu0
    %v3985 = vadd.f32 %v3972, %v3984
    %v3986 = vpop.f32.mrf.mxu0
    %3987 = vdwg.mxu0
    %3988 = vmatpush.bf16.msra.mxu0 %v3658
    %3989 = vmatpush.bf16.msra.mxu0 %v3654
    %3990 = vmatpush.bf16.msra.mxu0 %v3650
    %3991 = vmatpush.bf16.msra.mxu0 %v3646
    %3992 = vmatpush.bf16.msra.mxu0 %v3642
    %3993 = vmatpush.bf16.msra.mxu0 %v3638
    %3994 = vmatpush.bf16.msra.mxu0 %v3634
    %3995 = vmatpush.bf16.msra.mxu0 %v3630
    %3996 = vmatmul.bf16.gmra.mxu0 %v3112
    %v3997 = vpop.f32.mrf.mxu0
    %v3998 = vadd.f32 0.0, %v3997
    %v3999 = vpop.f32.mrf.mxu0
    %4000 = vdwg.mxu0
    %4001 = vmatpush.bf16.msra.mxu0 %v3690
    %4002 = vmatpush.bf16.msra.mxu0 %v3686
    %4003 = vmatpush.bf16.msra.mxu0 %v3682
    %4004 = vmatpush.bf16.msra.mxu0 %v3678
    %4005 = vmatpush.bf16.msra.mxu0 %v3674
    %4006 = vmatpush.bf16.msra.mxu0 %v3670
    %4007 = vmatpush.bf16.msra.mxu0 %v3666
    %4008 = vmatpush.bf16.msra.mxu0 %v3662
    %4009 = vmatmul.bf16.gmra.mxu0 %v3113
    %v4010 = vpop.f32.mrf.mxu0
    %v4011 = vadd.f32 %v3998, %v4010
    %v4012 = vpop.f32.mrf.mxu0
    %4013 = vdwg.mxu0
    %4014 = vmatpush.bf16.msra.mxu0 %v3722
    %4015 = vmatpush.bf16.msra.mxu0 %v3718
    %4016 = vmatpush.bf16.msra.mxu0 %v3714
    %4017 = vmatpush.bf16.msra.mxu0 %v3710
    %4018 = vmatpush.bf16.msra.mxu0 %v3706
    %4019 = vmatpush.bf16.msra.mxu0 %v3702
    %4020 = vmatpush.bf16.msra.mxu0 %v3698
    %4021 = vmatpush.bf16.msra.mxu0 %v3694
    %4022 = vmatmul.bf16.gmra.mxu0 %v3114
    %v4023 = vpop.f32.mrf.mxu0
    %v4024 = vadd.f32 %v4011, %v4023
    %v4025 = vpop.f32.mrf.mxu0
    %4026 = vdwg.mxu0
    %4027 = vmatpush.bf16.msra.mxu0 %v3754
    %4028 = vmatpush.bf16.msra.mxu0 %v3750
    %4029 = vmatpush.bf16.msra.mxu0 %v3746
    %4030 = vmatpush.bf16.msra.mxu0 %v3742
    %4031 = vmatpush.bf16.msra.mxu0 %v3738
    %4032 = vmatpush.bf16.msra.mxu0 %v3734
    %4033 = vmatpush.bf16.msra.mxu0 %v3730
    %4034 = vmatpush.bf16.msra.mxu0 %v3726
    %4035 = vmatmul.bf16.gmra.mxu0 %v3115
    %v4036 = vpop.f32.mrf.mxu0
    %v4037 = vadd.f32 %v4024, %v4036
    %v4038 = vpop.f32.mrf.mxu0
    %4039 = vdwg.mxu0
    %4040 = vmatpush.bf16.msra.mxu0 %v3659
    %4041 = vmatpush.bf16.msra.mxu0 %v3655
    %4042 = vmatpush.bf16.msra.mxu0 %v3651
    %4043 = vmatpush.bf16.msra.mxu0 %v3647
    %4044 = vmatpush.bf16.msra.mxu0 %v3643
    %4045 = vmatpush.bf16.msra.mxu0 %v3639
    %4046 = vmatpush.bf16.msra.mxu0 %v3635
    %4047 = vmatpush.bf16.msra.mxu0 %v3631
    %4048 = vmatmul.bf16.gmra.mxu0 %v3112
    %v4049 = vpop.f32.mrf.mxu0
    %v4050 = vadd.f32 0.0, %v4049
    %v4051 = vpop.f32.mrf.mxu0
    %4052 = vdwg.mxu0
    %4053 = vmatpush.bf16.msra.mxu0 %v3691
    %4054 = vmatpush.bf16.msra.mxu0 %v3687
    %4055 = vmatpush.bf16.msra.mxu0 %v3683
    %4056 = vmatpush.bf16.msra.mxu0 %v3679
    %4057 = vmatpush.bf16.msra.mxu0 %v3675
    %4058 = vmatpush.bf16.msra.mxu0 %v3671
    %4059 = vmatpush.bf16.msra.mxu0 %v3667
    %4060 = vmatpush.bf16.msra.mxu0 %v3663
    %4061 = vmatmul.bf16.gmra.mxu0 %v3113
    %v4062 = vpop.f32.mrf.mxu0
    %v4063 = vadd.f32 %v4050, %v4062
    %v4064 = vpop.f32.mrf.mxu0
    %4065 = vdwg.mxu0
    %4066 = vmatpush.bf16.msra.mxu0 %v3723
    %4067 = vmatpush.bf16.msra.mxu0 %v3719
    %4068 = vmatpush.bf16.msra.mxu0 %v3715
    %4069 = vmatpush.bf16.msra.mxu0 %v3711
    %4070 = vmatpush.bf16.msra.mxu0 %v3707
    %4071 = vmatpush.bf16.msra.mxu0 %v3703
    %4072 = vmatpush.bf16.msra.mxu0 %v3699
    %4073 = vmatpush.bf16.msra.mxu0 %v3695
    %4074 = vmatmul.bf16.gmra.mxu0 %v3114
    %v4075 = vpop.f32.mrf.mxu0
    %v4076 = vadd.f32 %v4063, %v4075
    %v4077 = vpop.f32.mrf.mxu0
    %4078 = vdwg.mxu0
    %4079 = vmatpush.bf16.msra.mxu0 %v3755
    %4080 = vmatpush.bf16.msra.mxu0 %v3751
    %4081 = vmatpush.bf16.msra.mxu0 %v3747
    %4082 = vmatpush.bf16.msra.mxu0 %v3743
    %4083 = vmatpush.bf16.msra.mxu0 %v3739
    %4084 = vmatpush.bf16.msra.mxu0 %v3735
    %4085 = vmatpush.bf16.msra.mxu0 %v3731
    %4086 = vmatpush.bf16.msra.mxu0 %v3727
    %4087 = vmatmul.bf16.gmra.mxu0 %v3115
    %v4088 = vpop.f32.mrf.mxu0
    %v4089 = vadd.f32 %v4076, %v4088
    %v4090 = vpop.f32.mrf.mxu0
    %4091 = vdwg.mxu0
    %v4092 = vmul.f32 %v3933, 0.5
    %v4093 = vmul.f32 %v3985, 0.5
    %v4094 = vmul.f32 %v4037, 0.5
    %v4095 = vmul.f32 %v4089, 0.5
    %v4096 = vmul.f32 %v3933, 0.70710677
    %v4097 = vmul.f32 %v3985, 0.70710677
    %v4098 = vmul.f32 %v4037, 0.70710677
    %v4099 = vmul.f32 %v4089, 0.70710677
    %v4100 = vmul.f32 %v4096, %v4096
    %v4101 = vmin.f32 16.0, %v4100
    %v4102 = vmul.f32 %v4101, 2.1237322e-06
    %v4103 = vadd.f32 %v4102, 0.00028619796
    %v4104 = vmul.f32 %v4101, %v4103
    %v4105 = vadd.f32 %v4104, 0.0036580483
    %v4106 = vmul.f32 %v4101, %v4105
    %v4107 = vadd.f32 %v4106, 0.05243302
    %v4108 = vmul.f32 %v4101, %v4107
    %v4109 = vadd.f32 %v4108, 0.18741608
    %v4110 = vmul.f32 %v4101, %v4109
    %v4111 = vadd.f32 %v4110, 1.1283791
    %v4112 = vmul.f32 %v4096, %v4111
    %v4113 = vmul.f32 %v4101, 3.8918573e-05
    %v4114 = vadd.f32 %v4113, 0.001143296
    %v4115 = vmul.f32 %v4101, %v4114
    %v4116 = vadd.f32 %v4115, 0.014752088
    %v4117 = vmul.f32 %v4101, %v4116
    %v4118 = vadd.f32 %v4117, 0.112945676
    %v4119 = vmul.f32 %v4101, %v4118
    %v4120 = vadd.f32 %v4119, 0.4994258
    %v4121 = vmul.f32 %v4101, %v4120
    %v4122 = vadd.f32 %v4121, 1.0
    %v4123 = vrcp.pop %v4122
    %v4124 = vmul.f32 %v4122, %v4123
    %v4125 = vsub.f32 1.0, %v4124
    %v4126 = vmul.f32 %v4123, %v4125
    %v4127 = vadd.f32 %v4123, %v4126
    %vm4128 = vweird.f32 %v4122
    %vm4129 = vweird.f32 %v4123
    %vm4130 = vmor %vm4128, %vm4129
    %v4131 = vsel %vm4130, %v4123, %v4127
    %v4132 = vand.u32 2147483647, %v4122
    %vm4133 = vcmp.eq.f32.partialorder %v4132, 8.507059e+37
    %v4134 = vand.u32 %v4122, 2147483648
    %v4135 = vor.u32 1.1754944e-38, %v4134
    %v4136 = vsel %vm4133, %v4135, %v4131
    %v4137 = vmul.f32 %v4112, %v4136
    %v4138 = vmin.f32 %v4137, 1.0
    %v4139 = vmax.f32 %v4138, -1.0
    %v4140 = vmul.f32 %v4097, %v4097
    %v4141 = vmin.f32 16.0, %v4140
    %v4142 = vmul.f32 %v4141, 2.1237322e-06
    %v4143 = vadd.f32 %v4142, 0.00028619796
    %v4144 = vmul.f32 %v4141, %v4143
    %v4145 = vadd.f32 %v4144, 0.0036580483
    %v4146 = vmul.f32 %v4141, %v4145
    %v4147 = vadd.f32 %v4146, 0.05243302
    %v4148 = vmul.f32 %v4141, %v4147
    %v4149 = vadd.f32 %v4148, 0.18741608
    %v4150 = vmul.f32 %v4141, %v4149
    %v4151 = vadd.f32 %v4150, 1.1283791
    %v4152 = vmul.f32 %v4097, %v4151
    %v4153 = vmul.f32 %v4141, 3.8918573e-05
    %v4154 = vadd.f32 %v4153, 0.001143296
    %v4155 = vmul.f32 %v4141, %v4154
    %v4156 = vadd.f32 %v4155, 0.014752088
    %v4157 = vmul.f32 %v4141, %v4156
    %v4158 = vadd.f32 %v4157, 0.112945676
    %v4159 = vmul.f32 %v4141, %v4158
    %v4160 = vadd.f32 %v4159, 0.4994258
    %v4161 = vmul.f32 %v4141, %v4160
    %v4162 = vadd.f32 %v4161, 1.0
    %v4163 = vrcp.pop %v4162
    %v4164 = vmul.f32 %v4162, %v4163
    %v4165 = vsub.f32 1.0, %v4164
    %v4166 = vmul.f32 %v4163, %v4165
    %v4167 = vadd.f32 %v4163, %v4166
    %vm4168 = vweird.f32 %v4162
    %vm4169 = vweird.f32 %v4163
    %vm4170 = vmor %vm4168, %vm4169
    %v4171 = vsel %vm4170, %v4163, %v4167
    %v4172 = vand.u32 2147483647, %v4162
    %vm4173 = vcmp.eq.f32.partialorder %v4172, 8.507059e+37
    %v4174 = vand.u32 %v4162, 2147483648
    %v4175 = vor.u32 1.1754944e-38, %v4174
    %v4176 = vsel %vm4173, %v4175, %v4171
    %v4177 = vmul.f32 %v4152, %v4176
    %v4178 = vmin.f32 %v4177, 1.0
    %v4179 = vmax.f32 %v4178, -1.0
    %v4180 = vmul.f32 %v4098, %v4098
    %v4181 = vmin.f32 16.0, %v4180
    %v4182 = vmul.f32 %v4181, 2.1237322e-06
    %v4183 = vadd.f32 %v4182, 0.00028619796
    %v4184 = vmul.f32 %v4181, %v4183
    %v4185 = vadd.f32 %v4184, 0.0036580483
    %v4186 = vmul.f32 %v4181, %v4185
    %v4187 = vadd.f32 %v4186, 0.05243302
    %v4188 = vmul.f32 %v4181, %v4187
    %v4189 = vadd.f32 %v4188, 0.18741608
    %v4190 = vmul.f32 %v4181, %v4189
    %v4191 = vadd.f32 %v4190, 1.1283791
    %v4192 = vmul.f32 %v4098, %v4191
    %v4193 = vmul.f32 %v4181, 3.8918573e-05
    %v4194 = vadd.f32 %v4193, 0.001143296
    %v4195 = vmul.f32 %v4181, %v4194
    %v4196 = vadd.f32 %v4195, 0.014752088
    %v4197 = vmul.f32 %v4181, %v4196
    %v4198 = vadd.f32 %v4197, 0.112945676
    %v4199 = vmul.f32 %v4181, %v4198
    %v4200 = vadd.f32 %v4199, 0.4994258
    %v4201 = vmul.f32 %v4181, %v4200
    %v4202 = vadd.f32 %v4201, 1.0
    %v4203 = vrcp.pop %v4202
    %v4204 = vmul.f32 %v4202, %v4203
    %v4205 = vsub.f32 1.0, %v4204
    %v4206 = vmul.f32 %v4203, %v4205
    %v4207 = vadd.f32 %v4203, %v4206
    %vm4208 = vweird.f32 %v4202
    %vm4209 = vweird.f32 %v4203
    %vm4210 = vmor %vm4208, %vm4209
    %v4211 = vsel %vm4210, %v4203, %v4207
    %v4212 = vand.u32 2147483647, %v4202
    %vm4213 = vcmp.eq.f32.partialorder %v4212, 8.507059e+37
    %v4214 = vand.u32 %v4202, 2147483648
    %v4215 = vor.u32 1.1754944e-38, %v4214
    %v4216 = vsel %vm4213, %v4215, %v4211
    %v4217 = vmul.f32 %v4192, %v4216
    %v4218 = vmin.f32 %v4217, 1.0
    %v4219 = vmax.f32 %v4218, -1.0
    %v4220 = vmul.f32 %v4099, %v4099
    %v4221 = vmin.f32 16.0, %v4220
    %v4222 = vmul.f32 %v4221, 2.1237322e-06
    %v4223 = vadd.f32 %v4222, 0.00028619796
    %v4224 = vmul.f32 %v4221, %v4223
    %v4225 = vadd.f32 %v4224, 0.0036580483
    %v4226 = vmul.f32 %v4221, %v4225
    %v4227 = vadd.f32 %v4226, 0.05243302
    %v4228 = vmul.f32 %v4221, %v4227
    %v4229 = vadd.f32 %v4228, 0.18741608
    %v4230 = vmul.f32 %v4221, %v4229
    %v4231 = vadd.f32 %v4230, 1.1283791
    %v4232 = vmul.f32 %v4099, %v4231
    %v4233 = vmul.f32 %v4221, 3.8918573e-05
    %v4234 = vadd.f32 %v4233, 0.001143296
    %v4235 = vmul.f32 %v4221, %v4234
    %v4236 = vadd.f32 %v4235, 0.014752088
    %v4237 = vmul.f32 %v4221, %v4236
    %v4238 = vadd.f32 %v4237, 0.112945676
    %v4239 = vmul.f32 %v4221, %v4238
    %v4240 = vadd.f32 %v4239, 0.4994258
    %v4241 = vmul.f32 %v4221, %v4240
    %v4242 = vadd.f32 %v4241, 1.0
    %v4243 = vrcp.pop %v4242
    %v4244 = vmul.f32 %v4242, %v4243
    %v4245 = vsub.f32 1.0, %v4244
    %v4246 = vmul.f32 %v4243, %v4245
    %v4247 = vadd.f32 %v4243, %v4246
    %vm4248 = vweird.f32 %v4242
    %vm4249 = vweird.f32 %v4243
    %vm4250 = vmor %vm4248, %vm4249
    %v4251 = vsel %vm4250, %v4243, %v4247
    %v4252 = vand.u32 2147483647, %v4242
    %vm4253 = vcmp.eq.f32.partialorder %v4252, 8.507059e+37
    %v4254 = vand.u32 %v4242, 2147483648
    %v4255 = vor.u32 1.1754944e-38, %v4254
    %v4256 = vsel %vm4253, %v4255, %v4251
    %v4257 = vmul.f32 %v4232, %v4256
    %v4258 = vmin.f32 %v4257, 1.0
    %v4259 = vmax.f32 %v4258, -1.0
    %v4260 = vadd.f32 %v4139, 1.0
    %v4261 = vadd.f32 %v4179, 1.0
    %v4262 = vadd.f32 %v4219, 1.0
    %v4263 = vadd.f32 %v4259, 1.0
    %v4264 = vmul.f32 %v4092, %v4260
    %v4265 = vmul.f32 %v4093, %v4261
    %v4266 = vmul.f32 %v4094, %v4262
    %v4267 = vmul.f32 %v4095, %v4263
    %v4268 = vpack.c.bf16 %v4264, %v4264
    %v4269 = vpack.c.bf16 %v4265, %v4265
    %v4270 = vpack.c.bf16 %v4266, %v4266
    %v4271 = vpack.c.bf16 %v4267, %v4267
    %v4272 = vld [vmem:[#allocation24] sm:$0xff]
    %v4273 = vld [vmem:[#allocation24 + $0x8] sm:$0xff]
    %v4274 = vld [vmem:[#allocation24 + $0x10] sm:$0xff]
    %v4275 = vld [vmem:[#allocation24 + $0x18] sm:$0xff]
    %v4276 = vld [vmem:[#allocation24 + $0x20] sm:$0xff]
    %v4277 = vld [vmem:[#allocation24 + $0x28] sm:$0xff]
    %v4278 = vld [vmem:[#allocation24 + $0x30] sm:$0xff]
    %v4279 = vld [vmem:[#allocation24 + $0x38] sm:$0xff]
    %v4280 = vld [vmem:[#allocation24 + $0x40] sm:$0xff]
    %v4281 = vld [vmem:[#allocation24 + $0x48] sm:$0xff]
    %v4282 = vld [vmem:[#allocation24 + $0x50] sm:$0xff]
    %v4283 = vld [vmem:[#allocation24 + $0x58] sm:$0xff]
    %v4284 = vld [vmem:[#allocation24 + $0x60] sm:$0xff]
    %v4285 = vld [vmem:[#allocation24 + $0x68] sm:$0xff]
    %v4286 = vld [vmem:[#allocation24 + $0x70] sm:$0xff]
    %v4287 = vld [vmem:[#allocation24 + $0x78] sm:$0xff]
    %v4288 = vld [vmem:[#allocation24 + $0x80] sm:$0xff]
    %v4289 = vld [vmem:[#allocation24 + $0x88] sm:$0xff]
    %v4290 = vld [vmem:[#allocation24 + $0x90] sm:$0xff]
    %v4291 = vld [vmem:[#allocation24 + $0x98] sm:$0xff]
    %v4292 = vld [vmem:[#allocation24 + $0xa0] sm:$0xff]
    %v4293 = vld [vmem:[#allocation24 + $0xa8] sm:$0xff]
    %v4294 = vld [vmem:[#allocation24 + $0xb0] sm:$0xff]
    %v4295 = vld [vmem:[#allocation24 + $0xb8] sm:$0xff]
    %v4296 = vld [vmem:[#allocation24 + $0xc0] sm:$0xff]
    %v4297 = vld [vmem:[#allocation24 + $0xc8] sm:$0xff]
    %v4298 = vld [vmem:[#allocation24 + $0xd0] sm:$0xff]
    %v4299 = vld [vmem:[#allocation24 + $0xd8] sm:$0xff]
    %v4300 = vld [vmem:[#allocation24 + $0xe0] sm:$0xff]
    %v4301 = vld [vmem:[#allocation24 + $0xe8] sm:$0xff]
    %v4302 = vld [vmem:[#allocation24 + $0xf0] sm:$0xff]
    %v4303 = vld [vmem:[#allocation24 + $0xf8] sm:$0xff]
    %v4304 = vld [vmem:[#allocation24 + $0x100] sm:$0xff]
    %v4305 = vld [vmem:[#allocation24 + $0x108] sm:$0xff]
    %v4306 = vld [vmem:[#allocation24 + $0x110] sm:$0xff]
    %v4307 = vld [vmem:[#allocation24 + $0x118] sm:$0xff]
    %v4308 = vld [vmem:[#allocation24 + $0x120] sm:$0xff]
    %v4309 = vld [vmem:[#allocation24 + $0x128] sm:$0xff]
    %v4310 = vld [vmem:[#allocation24 + $0x130] sm:$0xff]
    %v4311 = vld [vmem:[#allocation24 + $0x138] sm:$0xff]
    %v4312 = vld [vmem:[#allocation24 + $0x140] sm:$0xff]
    %v4313 = vld [vmem:[#allocation24 + $0x148] sm:$0xff]
    %v4314 = vld [vmem:[#allocation24 + $0x150] sm:$0xff]
    %v4315 = vld [vmem:[#allocation24 + $0x158] sm:$0xff]
    %v4316 = vld [vmem:[#allocation24 + $0x160] sm:$0xff]
    %v4317 = vld [vmem:[#allocation24 + $0x168] sm:$0xff]
    %v4318 = vld [vmem:[#allocation24 + $0x170] sm:$0xff]
    %v4319 = vld [vmem:[#allocation24 + $0x178] sm:$0xff]
    %v4320 = vld [vmem:[#allocation24 + $0x180] sm:$0xff]
    %v4321 = vld [vmem:[#allocation24 + $0x188] sm:$0xff]
    %v4322 = vld [vmem:[#allocation24 + $0x190] sm:$0xff]
    %v4323 = vld [vmem:[#allocation24 + $0x198] sm:$0xff]
    %v4324 = vld [vmem:[#allocation24 + $0x1a0] sm:$0xff]
    %v4325 = vld [vmem:[#allocation24 + $0x1a8] sm:$0xff]
    %v4326 = vld [vmem:[#allocation24 + $0x1b0] sm:$0xff]
    %v4327 = vld [vmem:[#allocation24 + $0x1b8] sm:$0xff]
    %v4328 = vld [vmem:[#allocation24 + $0x1c0] sm:$0xff]
    %v4329 = vld [vmem:[#allocation24 + $0x1c8] sm:$0xff]
    %v4330 = vld [vmem:[#allocation24 + $0x1d0] sm:$0xff]
    %v4331 = vld [vmem:[#allocation24 + $0x1d8] sm:$0xff]
    %v4332 = vld [vmem:[#allocation24 + $0x1e0] sm:$0xff]
    %v4333 = vld [vmem:[#allocation24 + $0x1e8] sm:$0xff]
    %v4334 = vld [vmem:[#allocation24 + $0x1f0] sm:$0xff]
    %v4335 = vld [vmem:[#allocation24 + $0x1f8] sm:$0xff]
    %v4336 = vld [vmem:[#allocation24 + $0x200] sm:$0xff]
    %v4337 = vld [vmem:[#allocation24 + $0x208] sm:$0xff]
    %v4338 = vld [vmem:[#allocation24 + $0x210] sm:$0xff]
    %v4339 = vld [vmem:[#allocation24 + $0x218] sm:$0xff]
    %v4340 = vld [vmem:[#allocation24 + $0x220] sm:$0xff]
    %v4341 = vld [vmem:[#allocation24 + $0x228] sm:$0xff]
    %v4342 = vld [vmem:[#allocation24 + $0x230] sm:$0xff]
    %v4343 = vld [vmem:[#allocation24 + $0x238] sm:$0xff]
    %v4344 = vld [vmem:[#allocation24 + $0x240] sm:$0xff]
    %v4345 = vld [vmem:[#allocation24 + $0x248] sm:$0xff]
    %v4346 = vld [vmem:[#allocation24 + $0x250] sm:$0xff]
    %v4347 = vld [vmem:[#allocation24 + $0x258] sm:$0xff]
    %v4348 = vld [vmem:[#allocation24 + $0x260] sm:$0xff]
    %v4349 = vld [vmem:[#allocation24 + $0x268] sm:$0xff]
    %v4350 = vld [vmem:[#allocation24 + $0x270] sm:$0xff]
    %v4351 = vld [vmem:[#allocation24 + $0x278] sm:$0xff]
    %v4352 = vld [vmem:[#allocation24 + $0x280] sm:$0xff]
    %v4353 = vld [vmem:[#allocation24 + $0x288] sm:$0xff]
    %v4354 = vld [vmem:[#allocation24 + $0x290] sm:$0xff]
    %v4355 = vld [vmem:[#allocation24 + $0x298] sm:$0xff]
    %v4356 = vld [vmem:[#allocation24 + $0x2a0] sm:$0xff]
    %v4357 = vld [vmem:[#allocation24 + $0x2a8] sm:$0xff]
    %v4358 = vld [vmem:[#allocation24 + $0x2b0] sm:$0xff]
    %v4359 = vld [vmem:[#allocation24 + $0x2b8] sm:$0xff]
    %v4360 = vld [vmem:[#allocation24 + $0x2c0] sm:$0xff]
    %v4361 = vld [vmem:[#allocation24 + $0x2c8] sm:$0xff]
    %v4362 = vld [vmem:[#allocation24 + $0x2d0] sm:$0xff]
    %v4363 = vld [vmem:[#allocation24 + $0x2d8] sm:$0xff]
    %v4364 = vld [vmem:[#allocation24 + $0x2e0] sm:$0xff]
    %v4365 = vld [vmem:[#allocation24 + $0x2e8] sm:$0xff]
    %v4366 = vld [vmem:[#allocation24 + $0x2f0] sm:$0xff]
    %v4367 = vld [vmem:[#allocation24 + $0x2f8] sm:$0xff]
    %v4368 = vld [vmem:[#allocation24 + $0x300] sm:$0xff]
    %v4369 = vld [vmem:[#allocation24 + $0x308] sm:$0xff]
    %v4370 = vld [vmem:[#allocation24 + $0x310] sm:$0xff]
    %v4371 = vld [vmem:[#allocation24 + $0x318] sm:$0xff]
    %v4372 = vld [vmem:[#allocation24 + $0x320] sm:$0xff]
    %v4373 = vld [vmem:[#allocation24 + $0x328] sm:$0xff]
    %v4374 = vld [vmem:[#allocation24 + $0x330] sm:$0xff]
    %v4375 = vld [vmem:[#allocation24 + $0x338] sm:$0xff]
    %v4376 = vld [vmem:[#allocation24 + $0x340] sm:$0xff]
    %v4377 = vld [vmem:[#allocation24 + $0x348] sm:$0xff]
    %v4378 = vld [vmem:[#allocation24 + $0x350] sm:$0xff]
    %v4379 = vld [vmem:[#allocation24 + $0x358] sm:$0xff]
    %v4380 = vld [vmem:[#allocation24 + $0x360] sm:$0xff]
    %v4381 = vld [vmem:[#allocation24 + $0x368] sm:$0xff]
    %v4382 = vld [vmem:[#allocation24 + $0x370] sm:$0xff]
    %v4383 = vld [vmem:[#allocation24 + $0x378] sm:$0xff]
    %v4384 = vld [vmem:[#allocation24 + $0x380] sm:$0xff]
    %v4385 = vld [vmem:[#allocation24 + $0x388] sm:$0xff]
    %v4386 = vld [vmem:[#allocation24 + $0x390] sm:$0xff]
    %v4387 = vld [vmem:[#allocation24 + $0x398] sm:$0xff]
    %v4388 = vld [vmem:[#allocation24 + $0x3a0] sm:$0xff]
    %v4389 = vld [vmem:[#allocation24 + $0x3a8] sm:$0xff]
    %v4390 = vld [vmem:[#allocation24 + $0x3b0] sm:$0xff]
    %v4391 = vld [vmem:[#allocation24 + $0x3b8] sm:$0xff]
    %v4392 = vld [vmem:[#allocation24 + $0x3c0] sm:$0xff]
    %v4393 = vld [vmem:[#allocation24 + $0x3c8] sm:$0xff]
    %v4394 = vld [vmem:[#allocation24 + $0x3d0] sm:$0xff]
    %v4395 = vld [vmem:[#allocation24 + $0x3d8] sm:$0xff]
    %v4396 = vld [vmem:[#allocation24 + $0x3e0] sm:$0xff]
    %v4397 = vld [vmem:[#allocation24 + $0x3e8] sm:$0xff]
    %v4398 = vld [vmem:[#allocation24 + $0x3f0] sm:$0xff]
    %v4399 = vld [vmem:[#allocation24 + $0x3f8] sm:$0xff]
    %v4528 = vunpack.c.l.b16 %v4272
    %v4529 = vunpack.c.h.b16 %v4272
    %v4530 = vunpack.c.l.b16 %v4273
    %v4531 = vunpack.c.h.b16 %v4273
    %v4532 = vunpack.c.l.b16 %v4274
    %v4533 = vunpack.c.h.b16 %v4274
    %v4534 = vunpack.c.l.b16 %v4275
    %v4535 = vunpack.c.h.b16 %v4275
    %v4536 = vunpack.c.l.b16 %v4276
    %v4537 = vunpack.c.h.b16 %v4276
    %v4538 = vunpack.c.l.b16 %v4277
    %v4539 = vunpack.c.h.b16 %v4277
    %v4540 = vunpack.c.l.b16 %v4278
    %v4541 = vunpack.c.h.b16 %v4278
    %v4542 = vunpack.c.l.b16 %v4279
    %v4543 = vunpack.c.h.b16 %v4279
    %v4544 = vunpack.c.l.b16 %v4280
    %v4545 = vunpack.c.h.b16 %v4280
    %v4546 = vunpack.c.l.b16 %v4281
    %v4547 = vunpack.c.h.b16 %v4281
    %v4548 = vunpack.c.l.b16 %v4282
    %v4549 = vunpack.c.h.b16 %v4282
    %v4550 = vunpack.c.l.b16 %v4283
    %v4551 = vunpack.c.h.b16 %v4283
    %v4552 = vunpack.c.l.b16 %v4284
    %v4553 = vunpack.c.h.b16 %v4284
    %v4554 = vunpack.c.l.b16 %v4285
    %v4555 = vunpack.c.h.b16 %v4285
    %v4556 = vunpack.c.l.b16 %v4286
    %v4557 = vunpack.c.h.b16 %v4286
    %v4558 = vunpack.c.l.b16 %v4287
    %v4559 = vunpack.c.h.b16 %v4287
    %v4560 = vunpack.c.l.b16 %v4288
    %v4561 = vunpack.c.h.b16 %v4288
    %v4562 = vunpack.c.l.b16 %v4289
    %v4563 = vunpack.c.h.b16 %v4289
    %v4564 = vunpack.c.l.b16 %v4290
    %v4565 = vunpack.c.h.b16 %v4290
    %v4566 = vunpack.c.l.b16 %v4291
    %v4567 = vunpack.c.h.b16 %v4291
    %v4568 = vunpack.c.l.b16 %v4292
    %v4569 = vunpack.c.h.b16 %v4292
    %v4570 = vunpack.c.l.b16 %v4293
    %v4571 = vunpack.c.h.b16 %v4293
    %v4572 = vunpack.c.l.b16 %v4294
    %v4573 = vunpack.c.h.b16 %v4294
    %v4574 = vunpack.c.l.b16 %v4295
    %v4575 = vunpack.c.h.b16 %v4295
    %v4576 = vunpack.c.l.b16 %v4296
    %v4577 = vunpack.c.h.b16 %v4296
    %v4578 = vunpack.c.l.b16 %v4297
    %v4579 = vunpack.c.h.b16 %v4297
    %v4580 = vunpack.c.l.b16 %v4298
    %v4581 = vunpack.c.h.b16 %v4298
    %v4582 = vunpack.c.l.b16 %v4299
    %v4583 = vunpack.c.h.b16 %v4299
    %v4584 = vunpack.c.l.b16 %v4300
    %v4585 = vunpack.c.h.b16 %v4300
    %v4586 = vunpack.c.l.b16 %v4301
    %v4587 = vunpack.c.h.b16 %v4301
    %v4588 = vunpack.c.l.b16 %v4302
    %v4589 = vunpack.c.h.b16 %v4302
    %v4590 = vunpack.c.l.b16 %v4303
    %v4591 = vunpack.c.h.b16 %v4303
    %v4592 = vunpack.c.l.b16 %v4304
    %v4593 = vunpack.c.h.b16 %v4304
    %v4594 = vunpack.c.l.b16 %v4305
    %v4595 = vunpack.c.h.b16 %v4305
    %v4596 = vunpack.c.l.b16 %v4306
    %v4597 = vunpack.c.h.b16 %v4306
    %v4598 = vunpack.c.l.b16 %v4307
    %v4599 = vunpack.c.h.b16 %v4307
    %v4600 = vunpack.c.l.b16 %v4308
    %v4601 = vunpack.c.h.b16 %v4308
    %v4602 = vunpack.c.l.b16 %v4309
    %v4603 = vunpack.c.h.b16 %v4309
    %v4604 = vunpack.c.l.b16 %v4310
    %v4605 = vunpack.c.h.b16 %v4310
    %v4606 = vunpack.c.l.b16 %v4311
    %v4607 = vunpack.c.h.b16 %v4311
    %v4608 = vunpack.c.l.b16 %v4312
    %v4609 = vunpack.c.h.b16 %v4312
    %v4610 = vunpack.c.l.b16 %v4313
    %v4611 = vunpack.c.h.b16 %v4313
    %v4612 = vunpack.c.l.b16 %v4314
    %v4613 = vunpack.c.h.b16 %v4314
    %v4614 = vunpack.c.l.b16 %v4315
    %v4615 = vunpack.c.h.b16 %v4315
    %v4616 = vunpack.c.l.b16 %v4316
    %v4617 = vunpack.c.h.b16 %v4316
    %v4618 = vunpack.c.l.b16 %v4317
    %v4619 = vunpack.c.h.b16 %v4317
    %v4620 = vunpack.c.l.b16 %v4318
    %v4621 = vunpack.c.h.b16 %v4318
    %v4622 = vunpack.c.l.b16 %v4319
    %v4623 = vunpack.c.h.b16 %v4319
    %v4624 = vunpack.c.l.b16 %v4320
    %v4625 = vunpack.c.h.b16 %v4320
    %v4626 = vunpack.c.l.b16 %v4321
    %v4627 = vunpack.c.h.b16 %v4321
    %v4628 = vunpack.c.l.b16 %v4322
    %v4629 = vunpack.c.h.b16 %v4322
    %v4630 = vunpack.c.l.b16 %v4323
    %v4631 = vunpack.c.h.b16 %v4323
    %v4632 = vunpack.c.l.b16 %v4324
    %v4633 = vunpack.c.h.b16 %v4324
    %v4634 = vunpack.c.l.b16 %v4325
    %v4635 = vunpack.c.h.b16 %v4325
    %v4636 = vunpack.c.l.b16 %v4326
    %v4637 = vunpack.c.h.b16 %v4326
    %v4638 = vunpack.c.l.b16 %v4327
    %v4639 = vunpack.c.h.b16 %v4327
    %v4640 = vunpack.c.l.b16 %v4328
    %v4641 = vunpack.c.h.b16 %v4328
    %v4642 = vunpack.c.l.b16 %v4329
    %v4643 = vunpack.c.h.b16 %v4329
    %v4644 = vunpack.c.l.b16 %v4330
    %v4645 = vunpack.c.h.b16 %v4330
    %v4646 = vunpack.c.l.b16 %v4331
    %v4647 = vunpack.c.h.b16 %v4331
    %v4648 = vunpack.c.l.b16 %v4332
    %v4649 = vunpack.c.h.b16 %v4332
    %v4650 = vunpack.c.l.b16 %v4333
    %v4651 = vunpack.c.h.b16 %v4333
    %v4652 = vunpack.c.l.b16 %v4334
    %v4653 = vunpack.c.h.b16 %v4334
    %v4654 = vunpack.c.l.b16 %v4335
    %v4655 = vunpack.c.h.b16 %v4335
    %v4656 = vunpack.c.l.b16 %v4336
    %v4657 = vunpack.c.h.b16 %v4336
    %v4658 = vunpack.c.l.b16 %v4337
    %v4659 = vunpack.c.h.b16 %v4337
    %v4660 = vunpack.c.l.b16 %v4338
    %v4661 = vunpack.c.h.b16 %v4338
    %v4662 = vunpack.c.l.b16 %v4339
    %v4663 = vunpack.c.h.b16 %v4339
    %v4664 = vunpack.c.l.b16 %v4340
    %v4665 = vunpack.c.h.b16 %v4340
    %v4666 = vunpack.c.l.b16 %v4341
    %v4667 = vunpack.c.h.b16 %v4341
    %v4668 = vunpack.c.l.b16 %v4342
    %v4669 = vunpack.c.h.b16 %v4342
    %v4670 = vunpack.c.l.b16 %v4343
    %v4671 = vunpack.c.h.b16 %v4343
    %v4672 = vunpack.c.l.b16 %v4344
    %v4673 = vunpack.c.h.b16 %v4344
    %v4674 = vunpack.c.l.b16 %v4345
    %v4675 = vunpack.c.h.b16 %v4345
    %v4676 = vunpack.c.l.b16 %v4346
    %v4677 = vunpack.c.h.b16 %v4346
    %v4678 = vunpack.c.l.b16 %v4347
    %v4679 = vunpack.c.h.b16 %v4347
    %v4680 = vunpack.c.l.b16 %v4348
    %v4681 = vunpack.c.h.b16 %v4348
    %v4682 = vunpack.c.l.b16 %v4349
    %v4683 = vunpack.c.h.b16 %v4349
    %v4684 = vunpack.c.l.b16 %v4350
    %v4685 = vunpack.c.h.b16 %v4350
    %v4686 = vunpack.c.l.b16 %v4351
    %v4687 = vunpack.c.h.b16 %v4351
    %v4688 = vunpack.c.l.b16 %v4352
    %v4689 = vunpack.c.h.b16 %v4352
    %v4690 = vunpack.c.l.b16 %v4353
    %v4691 = vunpack.c.h.b16 %v4353
    %v4692 = vunpack.c.l.b16 %v4354
    %v4693 = vunpack.c.h.b16 %v4354
    %v4694 = vunpack.c.l.b16 %v4355
    %v4695 = vunpack.c.h.b16 %v4355
    %v4696 = vunpack.c.l.b16 %v4356
    %v4697 = vunpack.c.h.b16 %v4356
    %v4698 = vunpack.c.l.b16 %v4357
    %v4699 = vunpack.c.h.b16 %v4357
    %v4700 = vunpack.c.l.b16 %v4358
    %v4701 = vunpack.c.h.b16 %v4358
    %v4702 = vunpack.c.l.b16 %v4359
    %v4703 = vunpack.c.h.b16 %v4359
    %v4704 = vunpack.c.l.b16 %v4360
    %v4705 = vunpack.c.h.b16 %v4360
    %v4706 = vunpack.c.l.b16 %v4361
    %v4707 = vunpack.c.h.b16 %v4361
    %v4708 = vunpack.c.l.b16 %v4362
    %v4709 = vunpack.c.h.b16 %v4362
    %v4710 = vunpack.c.l.b16 %v4363
    %v4711 = vunpack.c.h.b16 %v4363
    %v4712 = vunpack.c.l.b16 %v4364
    %v4713 = vunpack.c.h.b16 %v4364
    %v4714 = vunpack.c.l.b16 %v4365
    %v4715 = vunpack.c.h.b16 %v4365
    %v4716 = vunpack.c.l.b16 %v4366
    %v4717 = vunpack.c.h.b16 %v4366
    %v4718 = vunpack.c.l.b16 %v4367
    %v4719 = vunpack.c.h.b16 %v4367
    %v4720 = vunpack.c.l.b16 %v4368
    %v4721 = vunpack.c.h.b16 %v4368
    %v4722 = vunpack.c.l.b16 %v4369
    %v4723 = vunpack.c.h.b16 %v4369
    %v4724 = vunpack.c.l.b16 %v4370
    %v4725 = vunpack.c.h.b16 %v4370
    %v4726 = vunpack.c.l.b16 %v4371
    %v4727 = vunpack.c.h.b16 %v4371
    %v4728 = vunpack.c.l.b16 %v4372
    %v4729 = vunpack.c.h.b16 %v4372
    %v4730 = vunpack.c.l.b16 %v4373
    %v4731 = vunpack.c.h.b16 %v4373
    %v4732 = vunpack.c.l.b16 %v4374
    %v4733 = vunpack.c.h.b16 %v4374
    %v4734 = vunpack.c.l.b16 %v4375
    %v4735 = vunpack.c.h.b16 %v4375
    %v4736 = vunpack.c.l.b16 %v4376
    %v4737 = vunpack.c.h.b16 %v4376
    %v4738 = vunpack.c.l.b16 %v4377
    %v4739 = vunpack.c.h.b16 %v4377
    %v4740 = vunpack.c.l.b16 %v4378
    %v4741 = vunpack.c.h.b16 %v4378
    %v4742 = vunpack.c.l.b16 %v4379
    %v4743 = vunpack.c.h.b16 %v4379
    %v4744 = vunpack.c.l.b16 %v4380
    %v4745 = vunpack.c.h.b16 %v4380
    %v4746 = vunpack.c.l.b16 %v4381
    %v4747 = vunpack.c.h.b16 %v4381
    %v4748 = vunpack.c.l.b16 %v4382
    %v4749 = vunpack.c.h.b16 %v4382
    %v4750 = vunpack.c.l.b16 %v4383
    %v4751 = vunpack.c.h.b16 %v4383
    %v4752 = vunpack.c.l.b16 %v4384
    %v4753 = vunpack.c.h.b16 %v4384
    %v4754 = vunpack.c.l.b16 %v4385
    %v4755 = vunpack.c.h.b16 %v4385
    %v4756 = vunpack.c.l.b16 %v4386
    %v4757 = vunpack.c.h.b16 %v4386
    %v4758 = vunpack.c.l.b16 %v4387
    %v4759 = vunpack.c.h.b16 %v4387
    %v4760 = vunpack.c.l.b16 %v4388
    %v4761 = vunpack.c.h.b16 %v4388
    %v4762 = vunpack.c.l.b16 %v4389
    %v4763 = vunpack.c.h.b16 %v4389
    %v4764 = vunpack.c.l.b16 %v4390
    %v4765 = vunpack.c.h.b16 %v4390
    %v4766 = vunpack.c.l.b16 %v4391
    %v4767 = vunpack.c.h.b16 %v4391
    %v4768 = vunpack.c.l.b16 %v4392
    %v4769 = vunpack.c.h.b16 %v4392
    %v4770 = vunpack.c.l.b16 %v4393
    %v4771 = vunpack.c.h.b16 %v4393
    %v4772 = vunpack.c.l.b16 %v4394
    %v4773 = vunpack.c.h.b16 %v4394
    %v4774 = vunpack.c.l.b16 %v4395
    %v4775 = vunpack.c.h.b16 %v4395
    %v4776 = vunpack.c.l.b16 %v4396
    %v4777 = vunpack.c.h.b16 %v4396
    %v4778 = vunpack.c.l.b16 %v4397
    %v4779 = vunpack.c.h.b16 %v4397
    %v4780 = vunpack.c.l.b16 %v4398
    %v4781 = vunpack.c.h.b16 %v4398
    %v4782 = vunpack.c.l.b16 %v4399
    %v4783 = vunpack.c.h.b16 %v4399
    %v4784 = vpack.c.b16 %v4532, %v4528
    %v4785 = vpack.c.b16 %v4533, %v4529
    %v4786 = vpack.c.b16 %v4534, %v4530
    %v4787 = vpack.c.b16 %v4535, %v4531
    %v4788 = vpack.c.b16 %v4540, %v4536
    %v4789 = vpack.c.b16 %v4541, %v4537
    %v4790 = vpack.c.b16 %v4542, %v4538
    %v4791 = vpack.c.b16 %v4543, %v4539
    %v4792 = vpack.c.b16 %v4548, %v4544
    %v4793 = vpack.c.b16 %v4549, %v4545
    %v4794 = vpack.c.b16 %v4550, %v4546
    %v4795 = vpack.c.b16 %v4551, %v4547
    %v4796 = vpack.c.b16 %v4556, %v4552
    %v4797 = vpack.c.b16 %v4557, %v4553
    %v4798 = vpack.c.b16 %v4558, %v4554
    %v4799 = vpack.c.b16 %v4559, %v4555
    %v4800 = vpack.c.b16 %v4564, %v4560
    %v4801 = vpack.c.b16 %v4565, %v4561
    %v4802 = vpack.c.b16 %v4566, %v4562
    %v4803 = vpack.c.b16 %v4567, %v4563
    %v4804 = vpack.c.b16 %v4572, %v4568
    %v4805 = vpack.c.b16 %v4573, %v4569
    %v4806 = vpack.c.b16 %v4574, %v4570
    %v4807 = vpack.c.b16 %v4575, %v4571
    %v4808 = vpack.c.b16 %v4580, %v4576
    %v4809 = vpack.c.b16 %v4581, %v4577
    %v4810 = vpack.c.b16 %v4582, %v4578
    %v4811 = vpack.c.b16 %v4583, %v4579
    %v4812 = vpack.c.b16 %v4588, %v4584
    %v4813 = vpack.c.b16 %v4589, %v4585
    %v4814 = vpack.c.b16 %v4590, %v4586
    %v4815 = vpack.c.b16 %v4591, %v4587
    %v4816 = vpack.c.b16 %v4596, %v4592
    %v4817 = vpack.c.b16 %v4597, %v4593
    %v4818 = vpack.c.b16 %v4598, %v4594
    %v4819 = vpack.c.b16 %v4599, %v4595
    %v4820 = vpack.c.b16 %v4604, %v4600
    %v4821 = vpack.c.b16 %v4605, %v4601
    %v4822 = vpack.c.b16 %v4606, %v4602
    %v4823 = vpack.c.b16 %v4607, %v4603
    %v4824 = vpack.c.b16 %v4612, %v4608
    %v4825 = vpack.c.b16 %v4613, %v4609
    %v4826 = vpack.c.b16 %v4614, %v4610
    %v4827 = vpack.c.b16 %v4615, %v4611
    %v4828 = vpack.c.b16 %v4620, %v4616
    %v4829 = vpack.c.b16 %v4621, %v4617
    %v4830 = vpack.c.b16 %v4622, %v4618
    %v4831 = vpack.c.b16 %v4623, %v4619
    %v4832 = vpack.c.b16 %v4628, %v4624
    %v4833 = vpack.c.b16 %v4629, %v4625
    %v4834 = vpack.c.b16 %v4630, %v4626
    %v4835 = vpack.c.b16 %v4631, %v4627
    %v4836 = vpack.c.b16 %v4636, %v4632
    %v4837 = vpack.c.b16 %v4637, %v4633
    %v4838 = vpack.c.b16 %v4638, %v4634
    %v4839 = vpack.c.b16 %v4639, %v4635
    %v4840 = vpack.c.b16 %v4644, %v4640
    %v4841 = vpack.c.b16 %v4645, %v4641
    %v4842 = vpack.c.b16 %v4646, %v4642
    %v4843 = vpack.c.b16 %v4647, %v4643
    %v4844 = vpack.c.b16 %v4652, %v4648
    %v4845 = vpack.c.b16 %v4653, %v4649
    %v4846 = vpack.c.b16 %v4654, %v4650
    %v4847 = vpack.c.b16 %v4655, %v4651
    %v4848 = vpack.c.b16 %v4660, %v4656
    %v4849 = vpack.c.b16 %v4661, %v4657
    %v4850 = vpack.c.b16 %v4662, %v4658
    %v4851 = vpack.c.b16 %v4663, %v4659
    %v4852 = vpack.c.b16 %v4668, %v4664
    %v4853 = vpack.c.b16 %v4669, %v4665
    %v4854 = vpack.c.b16 %v4670, %v4666
    %v4855 = vpack.c.b16 %v4671, %v4667
    %v4856 = vpack.c.b16 %v4676, %v4672
    %v4857 = vpack.c.b16 %v4677, %v4673
    %v4858 = vpack.c.b16 %v4678, %v4674
    %v4859 = vpack.c.b16 %v4679, %v4675
    %v4860 = vpack.c.b16 %v4684, %v4680
    %v4861 = vpack.c.b16 %v4685, %v4681
    %v4862 = vpack.c.b16 %v4686, %v4682
    %v4863 = vpack.c.b16 %v4687, %v4683
    %v4864 = vpack.c.b16 %v4692, %v4688
    %v4865 = vpack.c.b16 %v4693, %v4689
    %v4866 = vpack.c.b16 %v4694, %v4690
    %v4867 = vpack.c.b16 %v4695, %v4691
    %v4868 = vpack.c.b16 %v4700, %v4696
    %v4869 = vpack.c.b16 %v4701, %v4697
    %v4870 = vpack.c.b16 %v4702, %v4698
    %v4871 = vpack.c.b16 %v4703, %v4699
    %v4872 = vpack.c.b16 %v4708, %v4704
    %v4873 = vpack.c.b16 %v4709, %v4705
    %v4874 = vpack.c.b16 %v4710, %v4706
    %v4875 = vpack.c.b16 %v4711, %v4707
    %v4876 = vpack.c.b16 %v4716, %v4712
    %v4877 = vpack.c.b16 %v4717, %v4713
    %v4878 = vpack.c.b16 %v4718, %v4714
    %v4879 = vpack.c.b16 %v4719, %v4715
    %v4880 = vpack.c.b16 %v4724, %v4720
    %v4881 = vpack.c.b16 %v4725, %v4721
    %v4882 = vpack.c.b16 %v4726, %v4722
    %v4883 = vpack.c.b16 %v4727, %v4723
    %v4884 = vpack.c.b16 %v4732, %v4728
    %v4885 = vpack.c.b16 %v4733, %v4729
    %v4886 = vpack.c.b16 %v4734, %v4730
    %v4887 = vpack.c.b16 %v4735, %v4731
    %v4888 = vpack.c.b16 %v4740, %v4736
    %v4889 = vpack.c.b16 %v4741, %v4737
    %v4890 = vpack.c.b16 %v4742, %v4738
    %v4891 = vpack.c.b16 %v4743, %v4739
    %v4892 = vpack.c.b16 %v4748, %v4744
    %v4893 = vpack.c.b16 %v4749, %v4745
    %v4894 = vpack.c.b16 %v4750, %v4746
    %v4895 = vpack.c.b16 %v4751, %v4747
    %v4896 = vpack.c.b16 %v4756, %v4752
    %v4897 = vpack.c.b16 %v4757, %v4753
    %v4898 = vpack.c.b16 %v4758, %v4754
    %v4899 = vpack.c.b16 %v4759, %v4755
    %v4900 = vpack.c.b16 %v4764, %v4760
    %v4901 = vpack.c.b16 %v4765, %v4761
    %v4902 = vpack.c.b16 %v4766, %v4762
    %v4903 = vpack.c.b16 %v4767, %v4763
    %v4904 = vpack.c.b16 %v4772, %v4768
    %v4905 = vpack.c.b16 %v4773, %v4769
    %v4906 = vpack.c.b16 %v4774, %v4770
    %v4907 = vpack.c.b16 %v4775, %v4771
    %v4908 = vpack.c.b16 %v4780, %v4776
    %v4909 = vpack.c.b16 %v4781, %v4777
    %v4910 = vpack.c.b16 %v4782, %v4778
    %v4911 = vpack.c.b16 %v4783, %v4779
    %5040 = vmatpush.bf16.msra.mxu0 %v4812
    %5041 = vmatpush.bf16.msra.mxu0 %v4808
    %5042 = vmatpush.bf16.msra.mxu0 %v4804
    %5043 = vmatpush.bf16.msra.mxu0 %v4800
    %5044 = vmatpush.bf16.msra.mxu0 %v4796
    %5045 = vmatpush.bf16.msra.mxu0 %v4792
    %5046 = vmatpush.bf16.msra.mxu0 %v4788
    %5047 = vmatpush.bf16.msra.mxu0 %v4784
    %5048 = vmatmul.bf16.gmra.mxu0 %v4268
    %v5049 = vpop.f32.mrf.mxu0
    %v5050 = vadd.f32 0.0, %v5049
    %v5051 = vpop.f32.mrf.mxu0
    %5052 = vdwg.mxu0
    %5053 = vmatpush.bf16.msra.mxu0 %v4844
    %5054 = vmatpush.bf16.msra.mxu0 %v4840
    %5055 = vmatpush.bf16.msra.mxu0 %v4836
    %5056 = vmatpush.bf16.msra.mxu0 %v4832
    %5057 = vmatpush.bf16.msra.mxu0 %v4828
    %5058 = vmatpush.bf16.msra.mxu0 %v4824
    %5059 = vmatpush.bf16.msra.mxu0 %v4820
    %5060 = vmatpush.bf16.msra.mxu0 %v4816
    %5061 = vmatmul.bf16.gmra.mxu0 %v4269
    %v5062 = vpop.f32.mrf.mxu0
    %v5063 = vadd.f32 %v5050, %v5062
    %v5064 = vpop.f32.mrf.mxu0
    %5065 = vdwg.mxu0
    %5066 = vmatpush.bf16.msra.mxu0 %v4876
    %5067 = vmatpush.bf16.msra.mxu0 %v4872
    %5068 = vmatpush.bf16.msra.mxu0 %v4868
    %5069 = vmatpush.bf16.msra.mxu0 %v4864
    %5070 = vmatpush.bf16.msra.mxu0 %v4860
    %5071 = vmatpush.bf16.msra.mxu0 %v4856
    %5072 = vmatpush.bf16.msra.mxu0 %v4852
    %5073 = vmatpush.bf16.msra.mxu0 %v4848
    %5074 = vmatmul.bf16.gmra.mxu0 %v4270
    %v5075 = vpop.f32.mrf.mxu0
    %v5076 = vadd.f32 %v5063, %v5075
    %v5077 = vpop.f32.mrf.mxu0
    %5078 = vdwg.mxu0
    %5079 = vmatpush.bf16.msra.mxu0 %v4908
    %5080 = vmatpush.bf16.msra.mxu0 %v4904
    %5081 = vmatpush.bf16.msra.mxu0 %v4900
    %5082 = vmatpush.bf16.msra.mxu0 %v4896
    %5083 = vmatpush.bf16.msra.mxu0 %v4892
    %5084 = vmatpush.bf16.msra.mxu0 %v4888
    %5085 = vmatpush.bf16.msra.mxu0 %v4884
    %5086 = vmatpush.bf16.msra.mxu0 %v4880
    %5087 = vmatmul.bf16.gmra.mxu0 %v4271
    %v5088 = vpop.f32.mrf.mxu0
    %v5089 = vadd.f32 %v5076, %v5088
    %v5090 = vpop.f32.mrf.mxu0
    %5091 = vdwg.mxu0
    %5092 = vmatpush.bf16.msra.mxu0 %v4813
    %5093 = vmatpush.bf16.msra.mxu0 %v4809
    %5094 = vmatpush.bf16.msra.mxu0 %v4805
    %5095 = vmatpush.bf16.msra.mxu0 %v4801
    %5096 = vmatpush.bf16.msra.mxu0 %v4797
    %5097 = vmatpush.bf16.msra.mxu0 %v4793
    %5098 = vmatpush.bf16.msra.mxu0 %v4789
    %5099 = vmatpush.bf16.msra.mxu0 %v4785
    %5100 = vmatmul.bf16.gmra.mxu0 %v4268
    %v5101 = vpop.f32.mrf.mxu0
    %v5102 = vadd.f32 0.0, %v5101
    %v5103 = vpop.f32.mrf.mxu0
    %5104 = vdwg.mxu0
    %5105 = vmatpush.bf16.msra.mxu0 %v4845
    %5106 = vmatpush.bf16.msra.mxu0 %v4841
    %5107 = vmatpush.bf16.msra.mxu0 %v4837
    %5108 = vmatpush.bf16.msra.mxu0 %v4833
    %5109 = vmatpush.bf16.msra.mxu0 %v4829
    %5110 = vmatpush.bf16.msra.mxu0 %v4825
    %5111 = vmatpush.bf16.msra.mxu0 %v4821
    %5112 = vmatpush.bf16.msra.mxu0 %v4817
    %5113 = vmatmul.bf16.gmra.mxu0 %v4269
    %v5114 = vpop.f32.mrf.mxu0
    %v5115 = vadd.f32 %v5102, %v5114
    %v5116 = vpop.f32.mrf.mxu0
    %5117 = vdwg.mxu0
    %5118 = vmatpush.bf16.msra.mxu0 %v4877
    %5119 = vmatpush.bf16.msra.mxu0 %v4873
    %5120 = vmatpush.bf16.msra.mxu0 %v4869
    %5121 = vmatpush.bf16.msra.mxu0 %v4865
    %5122 = vmatpush.bf16.msra.mxu0 %v4861
    %5123 = vmatpush.bf16.msra.mxu0 %v4857
    %5124 = vmatpush.bf16.msra.mxu0 %v4853
    %5125 = vmatpush.bf16.msra.mxu0 %v4849
    %5126 = vmatmul.bf16.gmra.mxu0 %v4270
    %v5127 = vpop.f32.mrf.mxu0
    %v5128 = vadd.f32 %v5115, %v5127
    %v5129 = vpop.f32.mrf.mxu0
    %5130 = vdwg.mxu0
    %5131 = vmatpush.bf16.msra.mxu0 %v4909
    %5132 = vmatpush.bf16.msra.mxu0 %v4905
    %5133 = vmatpush.bf16.msra.mxu0 %v4901
    %5134 = vmatpush.bf16.msra.mxu0 %v4897
    %5135 = vmatpush.bf16.msra.mxu0 %v4893
    %5136 = vmatpush.bf16.msra.mxu0 %v4889
    %5137 = vmatpush.bf16.msra.mxu0 %v4885
    %5138 = vmatpush.bf16.msra.mxu0 %v4881
    %5139 = vmatmul.bf16.gmra.mxu0 %v4271
    %v5140 = vpop.f32.mrf.mxu0
    %v5141 = vadd.f32 %v5128, %v5140
    %v5142 = vpop.f32.mrf.mxu0
    %5143 = vdwg.mxu0
    %5144 = vmatpush.bf16.msra.mxu0 %v4814
    %5145 = vmatpush.bf16.msra.mxu0 %v4810
    %5146 = vmatpush.bf16.msra.mxu0 %v4806
    %5147 = vmatpush.bf16.msra.mxu0 %v4802
    %5148 = vmatpush.bf16.msra.mxu0 %v4798
    %5149 = vmatpush.bf16.msra.mxu0 %v4794
    %5150 = vmatpush.bf16.msra.mxu0 %v4790
    %5151 = vmatpush.bf16.msra.mxu0 %v4786
    %5152 = vmatmul.bf16.gmra.mxu0 %v4268
    %v5153 = vpop.f32.mrf.mxu0
    %v5154 = vadd.f32 0.0, %v5153
    %v5155 = vpop.f32.mrf.mxu0
    %5156 = vdwg.mxu0
    %5157 = vmatpush.bf16.msra.mxu0 %v4846
    %5158 = vmatpush.bf16.msra.mxu0 %v4842
    %5159 = vmatpush.bf16.msra.mxu0 %v4838
    %5160 = vmatpush.bf16.msra.mxu0 %v4834
    %5161 = vmatpush.bf16.msra.mxu0 %v4830
    %5162 = vmatpush.bf16.msra.mxu0 %v4826
    %5163 = vmatpush.bf16.msra.mxu0 %v4822
    %5164 = vmatpush.bf16.msra.mxu0 %v4818
    %5165 = vmatmul.bf16.gmra.mxu0 %v4269
    %v5166 = vpop.f32.mrf.mxu0
    %v5167 = vadd.f32 %v5154, %v5166
    %v5168 = vpop.f32.mrf.mxu0
    %5169 = vdwg.mxu0
    %5170 = vmatpush.bf16.msra.mxu0 %v4878
    %5171 = vmatpush.bf16.msra.mxu0 %v4874
    %5172 = vmatpush.bf16.msra.mxu0 %v4870
    %5173 = vmatpush.bf16.msra.mxu0 %v4866
    %5174 = vmatpush.bf16.msra.mxu0 %v4862
    %5175 = vmatpush.bf16.msra.mxu0 %v4858
    %5176 = vmatpush.bf16.msra.mxu0 %v4854
    %5177 = vmatpush.bf16.msra.mxu0 %v4850
    %5178 = vmatmul.bf16.gmra.mxu0 %v4270
    %v5179 = vpop.f32.mrf.mxu0
    %v5180 = vadd.f32 %v5167, %v5179
    %v5181 = vpop.f32.mrf.mxu0
    %5182 = vdwg.mxu0
    %5183 = vmatpush.bf16.msra.mxu0 %v4910
    %5184 = vmatpush.bf16.msra.mxu0 %v4906
    %5185 = vmatpush.bf16.msra.mxu0 %v4902
    %5186 = vmatpush.bf16.msra.mxu0 %v4898
    %5187 = vmatpush.bf16.msra.mxu0 %v4894
    %5188 = vmatpush.bf16.msra.mxu0 %v4890
    %5189 = vmatpush.bf16.msra.mxu0 %v4886
    %5190 = vmatpush.bf16.msra.mxu0 %v4882
    %5191 = vmatmul.bf16.gmra.mxu0 %v4271
    %v5192 = vpop.f32.mrf.mxu0
    %v5193 = vadd.f32 %v5180, %v5192
    %v5194 = vpop.f32.mrf.mxu0
    %5195 = vdwg.mxu0
    %5196 = vmatpush.bf16.msra.mxu0 %v4815
    %5197 = vmatpush.bf16.msra.mxu0 %v4811
    %5198 = vmatpush.bf16.msra.mxu0 %v4807
    %5199 = vmatpush.bf16.msra.mxu0 %v4803
    %5200 = vmatpush.bf16.msra.mxu0 %v4799
    %5201 = vmatpush.bf16.msra.mxu0 %v4795
    %5202 = vmatpush.bf16.msra.mxu0 %v4791
    %5203 = vmatpush.bf16.msra.mxu0 %v4787
    %5204 = vmatmul.bf16.gmra.mxu0 %v4268
    %v5205 = vpop.f32.mrf.mxu0
    %v5206 = vadd.f32 0.0, %v5205
    %v5207 = vpop.f32.mrf.mxu0
    %5208 = vdwg.mxu0
    %5209 = vmatpush.bf16.msra.mxu0 %v4847
    %5210 = vmatpush.bf16.msra.mxu0 %v4843
    %5211 = vmatpush.bf16.msra.mxu0 %v4839
    %5212 = vmatpush.bf16.msra.mxu0 %v4835
    %5213 = vmatpush.bf16.msra.mxu0 %v4831
    %5214 = vmatpush.bf16.msra.mxu0 %v4827
    %5215 = vmatpush.bf16.msra.mxu0 %v4823
    %5216 = vmatpush.bf16.msra.mxu0 %v4819
    %5217 = vmatmul.bf16.gmra.mxu0 %v4269
    %v5218 = vpop.f32.mrf.mxu0
    %v5219 = vadd.f32 %v5206, %v5218
    %v5220 = vpop.f32.mrf.mxu0
    %5221 = vdwg.mxu0
    %5222 = vmatpush.bf16.msra.mxu0 %v4879
    %5223 = vmatpush.bf16.msra.mxu0 %v4875
    %5224 = vmatpush.bf16.msra.mxu0 %v4871
    %5225 = vmatpush.bf16.msra.mxu0 %v4867
    %5226 = vmatpush.bf16.msra.mxu0 %v4863
    %5227 = vmatpush.bf16.msra.mxu0 %v4859
    %5228 = vmatpush.bf16.msra.mxu0 %v4855
    %5229 = vmatpush.bf16.msra.mxu0 %v4851
    %5230 = vmatmul.bf16.gmra.mxu0 %v4270
    %v5231 = vpop.f32.mrf.mxu0
    %v5232 = vadd.f32 %v5219, %v5231
    %v5233 = vpop.f32.mrf.mxu0
    %5234 = vdwg.mxu0
    %5235 = vmatpush.bf16.msra.mxu0 %v4911
    %5236 = vmatpush.bf16.msra.mxu0 %v4907
    %5237 = vmatpush.bf16.msra.mxu0 %v4903
    %5238 = vmatpush.bf16.msra.mxu0 %v4899
    %5239 = vmatpush.bf16.msra.mxu0 %v4895
    %5240 = vmatpush.bf16.msra.mxu0 %v4891
    %5241 = vmatpush.bf16.msra.mxu0 %v4887
    %5242 = vmatpush.bf16.msra.mxu0 %v4883
    %5243 = vmatmul.bf16.gmra.mxu0 %v4271
    %v5244 = vpop.f32.mrf.mxu0
    %v5245 = vadd.f32 %v5232, %v5244
    %v5246 = vpop.f32.mrf.mxu0
    %5247 = vdwg.mxu0
    %v5248 = vadd.f32 %v3933, %v5089
    %v5249 = vadd.f32 %v3985, %v5141
    %v5250 = vadd.f32 %v4037, %v5193
    %v5251 = vadd.f32 %v4089, %v5245
    %v5252 = vld [vmem:[%s19] sm:$0xf]
    %v5253 = vld [vmem:[%s20] sm:$0xf]
    %v5254 = vadd.f32 %v5248, %v5249
    %v5255 = vadd.f32 %v5254, %v5250
    %v5256 = vadd.f32 %v5255, %v5251
    %5257 = vadd.xlane.f32.xlu0 %v5256
    %v5258 = vpop.xlane.xlu0 %5257
    %v5259 = vmul.f32 %v5258, %v3031
    %v5260 = vsub.f32 %v5248, %v5259
    %v5261 = vsub.f32 %v5249, %v5259
    %v5262 = vsub.f32 %v5250, %v5259
    %v5263 = vsub.f32 %v5251, %v5259
    %v5264 = vmul.f32 %v5260, %v5260
    %v5265 = vmul.f32 %v5261, %v5261
    %v5266 = vmul.f32 %v5262, %v5262
    %v5267 = vmul.f32 %v5263, %v5263
    %v5268 = vadd.f32 %v5264, %v5265
    %v5269 = vadd.f32 %v5268, %v5266
    %v5270 = vadd.f32 %v5269, %v5267
    %5271 = vadd.xlane.f32.xlu0 %v5270
    %v5272 = vpop.xlane.xlu0 %5271
    %v5273 = vmul.f32 %v5272, %v3031
    %v5274 = vadd.f32 %v5273, 1e-05
    %v5275 = vrsqrt.pop %v5274
    %v5276 = vmul.f32 %v5275, %v5274
    %v5277 = vmul.f32 %v5276, %v5275
    %v5278 = vmul.f32 0.5, %v5277
    %v5279 = vsub.f32 1.5, %v5278
    %v5280 = vmul.f32 %v5275, %v5279
    %vm5281 = vweird.f32 %v5274
    %vm5282 = vweird.f32 %v5275
    %vm5283 = vmor %vm5281, %vm5282
    %v5284 = vsel %vm5283, %v5275, %v5280
    %v5285 = vmul.f32 %v5260, %v5284
    %v5286 = vmul.f32 %v5261, %v5284
    %v5287 = vmul.f32 %v5262, %v5284
    %v5288 = vmul.f32 %v5263, %v5284
    %v5290 = vperm.slane %v5252, 0
    %v5291 = vperm.slane %v5252, 1
    %v5292 = vperm.slane %v5252, 2
    %v5293 = vperm.slane %v5252, 3
    %v5298 = vmul.f32 %v5285, %v5290
    %v5299 = vmul.f32 %v5286, %v5291
    %v5300 = vmul.f32 %v5287, %v5292
    %v5301 = vmul.f32 %v5288, %v5293
    %v5303 = vperm.slane %v5253, 0
    %v5304 = vperm.slane %v5253, 1
    %v5305 = vperm.slane %v5253, 2
    %v5306 = vperm.slane %v5253, 3
    %v5311 = vadd.f32 %v5298, %v5303
    %v5312 = vadd.f32 %v5299, %v5304
    %v5313 = vadd.f32 %v5300, %v5305
    %v5314 = vadd.f32 %v5301, %v5306
    %v5315 = vld [vmem:[#allocation9] sm:$0xff]
    %v5316 = vld [vmem:[#allocation9 + $0x8] sm:$0xff]
    %v5317 = vld [vmem:[#allocation9 + $0x10] sm:$0xff]
    %v5318 = vld [vmem:[#allocation9 + $0x18] sm:$0xff]
    %v5319 = vld [vmem:[#allocation9 + $0x20] sm:$0xff]
    %v5320 = vld [vmem:[#allocation9 + $0x28] sm:$0xff]
    %v5321 = vld [vmem:[#allocation9 + $0x30] sm:$0xff]
    %v5322 = vld [vmem:[#allocation9 + $0x38] sm:$0xff]
    %v5323 = vpack.c.bf16 %v5319, %v5315
    %v5324 = vpack.c.bf16 %v5320, %v5316
    %v5325 = vpack.c.bf16 %v5321, %v5317
    %v5326 = vpack.c.bf16 %v5322, %v5318
    %v5327 = vld [vmem:[#allocation25] sm:$0xff]
    %v5328 = vld [vmem:[#allocation25 + $0x8] sm:$0xff]
    %v5329 = vld [vmem:[#allocation25 + $0x10] sm:$0xff]
    %v5330 = vld [vmem:[#allocation25 + $0x18] sm:$0xff]
    %v5331 = vld [vmem:[#allocation25 + $0x20] sm:$0xff]
    %v5332 = vld [vmem:[#allocation25 + $0x28] sm:$0xff]
    %v5333 = vld [vmem:[#allocation25 + $0x30] sm:$0xff]
    %v5334 = vld [vmem:[#allocation25 + $0x38] sm:$0xff]
    %v5335 = vld [vmem:[#allocation25 + $0x40] sm:$0xff]
    %v5336 = vld [vmem:[#allocation25 + $0x48] sm:$0xff]
    %v5337 = vld [vmem:[#allocation25 + $0x50] sm:$0xff]
    %v5338 = vld [vmem:[#allocation25 + $0x58] sm:$0xff]
    %v5339 = vld [vmem:[#allocation25 + $0x60] sm:$0xff]
    %v5340 = vld [vmem:[#allocation25 + $0x68] sm:$0xff]
    %v5341 = vld [vmem:[#allocation25 + $0x70] sm:$0xff]
    %v5342 = vld [vmem:[#allocation25 + $0x78] sm:$0xff]
    %v5343 = vld [vmem:[#allocation25 + $0x80] sm:$0xff]
    %v5344 = vld [vmem:[#allocation25 + $0x88] sm:$0xff]
    %v5345 = vld [vmem:[#allocation25 + $0x90] sm:$0xff]
    %v5346 = vld [vmem:[#allocation25 + $0x98] sm:$0xff]
    %v5347 = vld [vmem:[#allocation25 + $0xa0] sm:$0xff]
    %v5348 = vld [vmem:[#allocation25 + $0xa8] sm:$0xff]
    %v5349 = vld [vmem:[#allocation25 + $0xb0] sm:$0xff]
    %v5350 = vld [vmem:[#allocation25 + $0xb8] sm:$0xff]
    %v5351 = vld [vmem:[#allocation25 + $0xc0] sm:$0xff]
    %v5352 = vld [vmem:[#allocation25 + $0xc8] sm:$0xff]
    %v5353 = vld [vmem:[#allocation25 + $0xd0] sm:$0xff]
    %v5354 = vld [vmem:[#allocation25 + $0xd8] sm:$0xff]
    %v5355 = vld [vmem:[#allocation25 + $0xe0] sm:$0xff]
    %v5356 = vld [vmem:[#allocation25 + $0xe8] sm:$0xff]
    %v5357 = vld [vmem:[#allocation25 + $0xf0] sm:$0xff]
    %v5358 = vld [vmem:[#allocation25 + $0xf8] sm:$0xff]
    %v5359 = vld [vmem:[#allocation25 + $0x100] sm:$0xff]
    %v5360 = vld [vmem:[#allocation25 + $0x108] sm:$0xff]
    %v5361 = vld [vmem:[#allocation25 + $0x110] sm:$0xff]
    %v5362 = vld [vmem:[#allocation25 + $0x118] sm:$0xff]
    %v5363 = vld [vmem:[#allocation25 + $0x120] sm:$0xff]
    %v5364 = vld [vmem:[#allocation25 + $0x128] sm:$0xff]
    %v5365 = vld [vmem:[#allocation25 + $0x130] sm:$0xff]
    %v5366 = vld [vmem:[#allocation25 + $0x138] sm:$0xff]
    %v5367 = vld [vmem:[#allocation25 + $0x140] sm:$0xff]
    %v5368 = vld [vmem:[#allocation25 + $0x148] sm:$0xff]
    %v5369 = vld [vmem:[#allocation25 + $0x150] sm:$0xff]
    %v5370 = vld [vmem:[#allocation25 + $0x158] sm:$0xff]
    %v5371 = vld [vmem:[#allocation25 + $0x160] sm:$0xff]
    %v5372 = vld [vmem:[#allocation25 + $0x168] sm:$0xff]
    %v5373 = vld [vmem:[#allocation25 + $0x170] sm:$0xff]
    %v5374 = vld [vmem:[#allocation25 + $0x178] sm:$0xff]
    %v5375 = vld [vmem:[#allocation25 + $0x180] sm:$0xff]
    %v5376 = vld [vmem:[#allocation25 + $0x188] sm:$0xff]
    %v5377 = vld [vmem:[#allocation25 + $0x190] sm:$0xff]
    %v5378 = vld [vmem:[#allocation25 + $0x198] sm:$0xff]
    %v5379 = vld [vmem:[#allocation25 + $0x1a0] sm:$0xff]
    %v5380 = vld [vmem:[#allocation25 + $0x1a8] sm:$0xff]
    %v5381 = vld [vmem:[#allocation25 + $0x1b0] sm:$0xff]
    %v5382 = vld [vmem:[#allocation25 + $0x1b8] sm:$0xff]
    %v5383 = vld [vmem:[#allocation25 + $0x1c0] sm:$0xff]
    %v5384 = vld [vmem:[#allocation25 + $0x1c8] sm:$0xff]
    %v5385 = vld [vmem:[#allocation25 + $0x1d0] sm:$0xff]
    %v5386 = vld [vmem:[#allocation25 + $0x1d8] sm:$0xff]
    %v5387 = vld [vmem:[#allocation25 + $0x1e0] sm:$0xff]
    %v5388 = vld [vmem:[#allocation25 + $0x1e8] sm:$0xff]
    %v5389 = vld [vmem:[#allocation25 + $0x1f0] sm:$0xff]
    %v5390 = vld [vmem:[#allocation25 + $0x1f8] sm:$0xff]
    %v5391 = vld [vmem:[#allocation25 + $0x200] sm:$0xff]
    %v5392 = vld [vmem:[#allocation25 + $0x208] sm:$0xff]
    %v5393 = vld [vmem:[#allocation25 + $0x210] sm:$0xff]
    %v5394 = vld [vmem:[#allocation25 + $0x218] sm:$0xff]
    %v5395 = vld [vmem:[#allocation25 + $0x220] sm:$0xff]
    %v5396 = vld [vmem:[#allocation25 + $0x228] sm:$0xff]
    %v5397 = vld [vmem:[#allocation25 + $0x230] sm:$0xff]
    %v5398 = vld [vmem:[#allocation25 + $0x238] sm:$0xff]
    %v5399 = vld [vmem:[#allocation25 + $0x240] sm:$0xff]
    %v5400 = vld [vmem:[#allocation25 + $0x248] sm:$0xff]
    %v5401 = vld [vmem:[#allocation25 + $0x250] sm:$0xff]
    %v5402 = vld [vmem:[#allocation25 + $0x258] sm:$0xff]
    %v5403 = vld [vmem:[#allocation25 + $0x260] sm:$0xff]
    %v5404 = vld [vmem:[#allocation25 + $0x268] sm:$0xff]
    %v5405 = vld [vmem:[#allocation25 + $0x270] sm:$0xff]
    %v5406 = vld [vmem:[#allocation25 + $0x278] sm:$0xff]
    %v5407 = vld [vmem:[#allocation25 + $0x280] sm:$0xff]
    %v5408 = vld [vmem:[#allocation25 + $0x288] sm:$0xff]
    %v5409 = vld [vmem:[#allocation25 + $0x290] sm:$0xff]
    %v5410 = vld [vmem:[#allocation25 + $0x298] sm:$0xff]
    %v5411 = vld [vmem:[#allocation25 + $0x2a0] sm:$0xff]
    %v5412 = vld [vmem:[#allocation25 + $0x2a8] sm:$0xff]
    %v5413 = vld [vmem:[#allocation25 + $0x2b0] sm:$0xff]
    %v5414 = vld [vmem:[#allocation25 + $0x2b8] sm:$0xff]
    %v5415 = vld [vmem:[#allocation25 + $0x2c0] sm:$0xff]
    %v5416 = vld [vmem:[#allocation25 + $0x2c8] sm:$0xff]
    %v5417 = vld [vmem:[#allocation25 + $0x2d0] sm:$0xff]
    %v5418 = vld [vmem:[#allocation25 + $0x2d8] sm:$0xff]
    %v5419 = vld [vmem:[#allocation25 + $0x2e0] sm:$0xff]
    %v5420 = vld [vmem:[#allocation25 + $0x2e8] sm:$0xff]
    %v5421 = vld [vmem:[#allocation25 + $0x2f0] sm:$0xff]
    %v5422 = vld [vmem:[#allocation25 + $0x2f8] sm:$0xff]
    %v5423 = vld [vmem:[#allocation25 + $0x300] sm:$0xff]
    %v5424 = vld [vmem:[#allocation25 + $0x308] sm:$0xff]
    %v5425 = vld [vmem:[#allocation25 + $0x310] sm:$0xff]
    %v5426 = vld [vmem:[#allocation25 + $0x318] sm:$0xff]
    %v5427 = vld [vmem:[#allocation25 + $0x320] sm:$0xff]
    %v5428 = vld [vmem:[#allocation25 + $0x328] sm:$0xff]
    %v5429 = vld [vmem:[#allocation25 + $0x330] sm:$0xff]
    %v5430 = vld [vmem:[#allocation25 + $0x338] sm:$0xff]
    %v5431 = vld [vmem:[#allocation25 + $0x340] sm:$0xff]
    %v5432 = vld [vmem:[#allocation25 + $0x348] sm:$0xff]
    %v5433 = vld [vmem:[#allocation25 + $0x350] sm:$0xff]
    %v5434 = vld [vmem:[#allocation25 + $0x358] sm:$0xff]
    %v5435 = vld [vmem:[#allocation25 + $0x360] sm:$0xff]
    %v5436 = vld [vmem:[#allocation25 + $0x368] sm:$0xff]
    %v5437 = vld [vmem:[#allocation25 + $0x370] sm:$0xff]
    %v5438 = vld [vmem:[#allocation25 + $0x378] sm:$0xff]
    %v5439 = vld [vmem:[#allocation25 + $0x380] sm:$0xff]
    %v5440 = vld [vmem:[#allocation25 + $0x388] sm:$0xff]
    %v5441 = vld [vmem:[#allocation25 + $0x390] sm:$0xff]
    %v5442 = vld [vmem:[#allocation25 + $0x398] sm:$0xff]
    %v5443 = vld [vmem:[#allocation25 + $0x3a0] sm:$0xff]
    %v5444 = vld [vmem:[#allocation25 + $0x3a8] sm:$0xff]
    %v5445 = vld [vmem:[#allocation25 + $0x3b0] sm:$0xff]
    %v5446 = vld [vmem:[#allocation25 + $0x3b8] sm:$0xff]
    %v5447 = vld [vmem:[#allocation25 + $0x3c0] sm:$0xff]
    %v5448 = vld [vmem:[#allocation25 + $0x3c8] sm:$0xff]
    %v5449 = vld [vmem:[#allocation25 + $0x3d0] sm:$0xff]
    %v5450 = vld [vmem:[#allocation25 + $0x3d8] sm:$0xff]
    %v5451 = vld [vmem:[#allocation25 + $0x3e0] sm:$0xff]
    %v5452 = vld [vmem:[#allocation25 + $0x3e8] sm:$0xff]
    %v5453 = vld [vmem:[#allocation25 + $0x3f0] sm:$0xff]
    %v5454 = vld [vmem:[#allocation25 + $0x3f8] sm:$0xff]
    %v5583 = vunpack.c.l.b16 %v5327
    %v5584 = vunpack.c.h.b16 %v5327
    %v5585 = vunpack.c.l.b16 %v5328
    %v5586 = vunpack.c.h.b16 %v5328
    %v5587 = vunpack.c.l.b16 %v5329
    %v5588 = vunpack.c.h.b16 %v5329
    %v5589 = vunpack.c.l.b16 %v5330
    %v5590 = vunpack.c.h.b16 %v5330
    %v5591 = vunpack.c.l.b16 %v5331
    %v5592 = vunpack.c.h.b16 %v5331
    %v5593 = vunpack.c.l.b16 %v5332
    %v5594 = vunpack.c.h.b16 %v5332
    %v5595 = vunpack.c.l.b16 %v5333
    %v5596 = vunpack.c.h.b16 %v5333
    %v5597 = vunpack.c.l.b16 %v5334
    %v5598 = vunpack.c.h.b16 %v5334
    %v5599 = vunpack.c.l.b16 %v5335
    %v5600 = vunpack.c.h.b16 %v5335
    %v5601 = vunpack.c.l.b16 %v5336
    %v5602 = vunpack.c.h.b16 %v5336
    %v5603 = vunpack.c.l.b16 %v5337
    %v5604 = vunpack.c.h.b16 %v5337
    %v5605 = vunpack.c.l.b16 %v5338
    %v5606 = vunpack.c.h.b16 %v5338
    %v5607 = vunpack.c.l.b16 %v5339
    %v5608 = vunpack.c.h.b16 %v5339
    %v5609 = vunpack.c.l.b16 %v5340
    %v5610 = vunpack.c.h.b16 %v5340
    %v5611 = vunpack.c.l.b16 %v5341
    %v5612 = vunpack.c.h.b16 %v5341
    %v5613 = vunpack.c.l.b16 %v5342
    %v5614 = vunpack.c.h.b16 %v5342
    %v5615 = vunpack.c.l.b16 %v5343
    %v5616 = vunpack.c.h.b16 %v5343
    %v5617 = vunpack.c.l.b16 %v5344
    %v5618 = vunpack.c.h.b16 %v5344
    %v5619 = vunpack.c.l.b16 %v5345
    %v5620 = vunpack.c.h.b16 %v5345
    %v5621 = vunpack.c.l.b16 %v5346
    %v5622 = vunpack.c.h.b16 %v5346
    %v5623 = vunpack.c.l.b16 %v5347
    %v5624 = vunpack.c.h.b16 %v5347
    %v5625 = vunpack.c.l.b16 %v5348
    %v5626 = vunpack.c.h.b16 %v5348
    %v5627 = vunpack.c.l.b16 %v5349
    %v5628 = vunpack.c.h.b16 %v5349
    %v5629 = vunpack.c.l.b16 %v5350
    %v5630 = vunpack.c.h.b16 %v5350
    %v5631 = vunpack.c.l.b16 %v5351
    %v5632 = vunpack.c.h.b16 %v5351
    %v5633 = vunpack.c.l.b16 %v5352
    %v5634 = vunpack.c.h.b16 %v5352
    %v5635 = vunpack.c.l.b16 %v5353
    %v5636 = vunpack.c.h.b16 %v5353
    %v5637 = vunpack.c.l.b16 %v5354
    %v5638 = vunpack.c.h.b16 %v5354
    %v5639 = vunpack.c.l.b16 %v5355
    %v5640 = vunpack.c.h.b16 %v5355
    %v5641 = vunpack.c.l.b16 %v5356
    %v5642 = vunpack.c.h.b16 %v5356
    %v5643 = vunpack.c.l.b16 %v5357
    %v5644 = vunpack.c.h.b16 %v5357
    %v5645 = vunpack.c.l.b16 %v5358
    %v5646 = vunpack.c.h.b16 %v5358
    %v5647 = vunpack.c.l.b16 %v5359
    %v5648 = vunpack.c.h.b16 %v5359
    %v5649 = vunpack.c.l.b16 %v5360
    %v5650 = vunpack.c.h.b16 %v5360
    %v5651 = vunpack.c.l.b16 %v5361
    %v5652 = vunpack.c.h.b16 %v5361
    %v5653 = vunpack.c.l.b16 %v5362
    %v5654 = vunpack.c.h.b16 %v5362
    %v5655 = vunpack.c.l.b16 %v5363
    %v5656 = vunpack.c.h.b16 %v5363
    %v5657 = vunpack.c.l.b16 %v5364
    %v5658 = vunpack.c.h.b16 %v5364
    %v5659 = vunpack.c.l.b16 %v5365
    %v5660 = vunpack.c.h.b16 %v5365
    %v5661 = vunpack.c.l.b16 %v5366
    %v5662 = vunpack.c.h.b16 %v5366
    %v5663 = vunpack.c.l.b16 %v5367
    %v5664 = vunpack.c.h.b16 %v5367
    %v5665 = vunpack.c.l.b16 %v5368
    %v5666 = vunpack.c.h.b16 %v5368
    %v5667 = vunpack.c.l.b16 %v5369
    %v5668 = vunpack.c.h.b16 %v5369
    %v5669 = vunpack.c.l.b16 %v5370
    %v5670 = vunpack.c.h.b16 %v5370
    %v5671 = vunpack.c.l.b16 %v5371
    %v5672 = vunpack.c.h.b16 %v5371
    %v5673 = vunpack.c.l.b16 %v5372
    %v5674 = vunpack.c.h.b16 %v5372
    %v5675 = vunpack.c.l.b16 %v5373
    %v5676 = vunpack.c.h.b16 %v5373
    %v5677 = vunpack.c.l.b16 %v5374
    %v5678 = vunpack.c.h.b16 %v5374
    %v5679 = vunpack.c.l.b16 %v5375
    %v5680 = vunpack.c.h.b16 %v5375
    %v5681 = vunpack.c.l.b16 %v5376
    %v5682 = vunpack.c.h.b16 %v5376
    %v5683 = vunpack.c.l.b16 %v5377
    %v5684 = vunpack.c.h.b16 %v5377
    %v5685 = vunpack.c.l.b16 %v5378
    %v5686 = vunpack.c.h.b16 %v5378
    %v5687 = vunpack.c.l.b16 %v5379
    %v5688 = vunpack.c.h.b16 %v5379
    %v5689 = vunpack.c.l.b16 %v5380
    %v5690 = vunpack.c.h.b16 %v5380
    %v5691 = vunpack.c.l.b16 %v5381
    %v5692 = vunpack.c.h.b16 %v5381
    %v5693 = vunpack.c.l.b16 %v5382
    %v5694 = vunpack.c.h.b16 %v5382
    %v5695 = vunpack.c.l.b16 %v5383
    %v5696 = vunpack.c.h.b16 %v5383
    %v5697 = vunpack.c.l.b16 %v5384
    %v5698 = vunpack.c.h.b16 %v5384
    %v5699 = vunpack.c.l.b16 %v5385
    %v5700 = vunpack.c.h.b16 %v5385
    %v5701 = vunpack.c.l.b16 %v5386
    %v5702 = vunpack.c.h.b16 %v5386
    %v5703 = vunpack.c.l.b16 %v5387
    %v5704 = vunpack.c.h.b16 %v5387
    %v5705 = vunpack.c.l.b16 %v5388
    %v5706 = vunpack.c.h.b16 %v5388
    %v5707 = vunpack.c.l.b16 %v5389
    %v5708 = vunpack.c.h.b16 %v5389
    %v5709 = vunpack.c.l.b16 %v5390
    %v5710 = vunpack.c.h.b16 %v5390
    %v5711 = vunpack.c.l.b16 %v5391
    %v5712 = vunpack.c.h.b16 %v5391
    %v5713 = vunpack.c.l.b16 %v5392
    %v5714 = vunpack.c.h.b16 %v5392
    %v5715 = vunpack.c.l.b16 %v5393
    %v5716 = vunpack.c.h.b16 %v5393
    %v5717 = vunpack.c.l.b16 %v5394
    %v5718 = vunpack.c.h.b16 %v5394
    %v5719 = vunpack.c.l.b16 %v5395
    %v5720 = vunpack.c.h.b16 %v5395
    %v5721 = vunpack.c.l.b16 %v5396
    %v5722 = vunpack.c.h.b16 %v5396
    %v5723 = vunpack.c.l.b16 %v5397
    %v5724 = vunpack.c.h.b16 %v5397
    %v5725 = vunpack.c.l.b16 %v5398
    %v5726 = vunpack.c.h.b16 %v5398
    %v5727 = vunpack.c.l.b16 %v5399
    %v5728 = vunpack.c.h.b16 %v5399
    %v5729 = vunpack.c.l.b16 %v5400
    %v5730 = vunpack.c.h.b16 %v5400
    %v5731 = vunpack.c.l.b16 %v5401
    %v5732 = vunpack.c.h.b16 %v5401
    %v5733 = vunpack.c.l.b16 %v5402
    %v5734 = vunpack.c.h.b16 %v5402
    %v5735 = vunpack.c.l.b16 %v5403
    %v5736 = vunpack.c.h.b16 %v5403
    %v5737 = vunpack.c.l.b16 %v5404
    %v5738 = vunpack.c.h.b16 %v5404
    %v5739 = vunpack.c.l.b16 %v5405
    %v5740 = vunpack.c.h.b16 %v5405
    %v5741 = vunpack.c.l.b16 %v5406
    %v5742 = vunpack.c.h.b16 %v5406
    %v5743 = vunpack.c.l.b16 %v5407
    %v5744 = vunpack.c.h.b16 %v5407
    %v5745 = vunpack.c.l.b16 %v5408
    %v5746 = vunpack.c.h.b16 %v5408
    %v5747 = vunpack.c.l.b16 %v5409
    %v5748 = vunpack.c.h.b16 %v5409
    %v5749 = vunpack.c.l.b16 %v5410
    %v5750 = vunpack.c.h.b16 %v5410
    %v5751 = vunpack.c.l.b16 %v5411
    %v5752 = vunpack.c.h.b16 %v5411
    %v5753 = vunpack.c.l.b16 %v5412
    %v5754 = vunpack.c.h.b16 %v5412
    %v5755 = vunpack.c.l.b16 %v5413
    %v5756 = vunpack.c.h.b16 %v5413
    %v5757 = vunpack.c.l.b16 %v5414
    %v5758 = vunpack.c.h.b16 %v5414
    %v5759 = vunpack.c.l.b16 %v5415
    %v5760 = vunpack.c.h.b16 %v5415
    %v5761 = vunpack.c.l.b16 %v5416
    %v5762 = vunpack.c.h.b16 %v5416
    %v5763 = vunpack.c.l.b16 %v5417
    %v5764 = vunpack.c.h.b16 %v5417
    %v5765 = vunpack.c.l.b16 %v5418
    %v5766 = vunpack.c.h.b16 %v5418
    %v5767 = vunpack.c.l.b16 %v5419
    %v5768 = vunpack.c.h.b16 %v5419
    %v5769 = vunpack.c.l.b16 %v5420
    %v5770 = vunpack.c.h.b16 %v5420
    %v5771 = vunpack.c.l.b16 %v5421
    %v5772 = vunpack.c.h.b16 %v5421
    %v5773 = vunpack.c.l.b16 %v5422
    %v5774 = vunpack.c.h.b16 %v5422
    %v5775 = vunpack.c.l.b16 %v5423
    %v5776 = vunpack.c.h.b16 %v5423
    %v5777 = vunpack.c.l.b16 %v5424
    %v5778 = vunpack.c.h.b16 %v5424
    %v5779 = vunpack.c.l.b16 %v5425
    %v5780 = vunpack.c.h.b16 %v5425
    %v5781 = vunpack.c.l.b16 %v5426
    %v5782 = vunpack.c.h.b16 %v5426
    %v5783 = vunpack.c.l.b16 %v5427
    %v5784 = vunpack.c.h.b16 %v5427
    %v5785 = vunpack.c.l.b16 %v5428
    %v5786 = vunpack.c.h.b16 %v5428
    %v5787 = vunpack.c.l.b16 %v5429
    %v5788 = vunpack.c.h.b16 %v5429
    %v5789 = vunpack.c.l.b16 %v5430
    %v5790 = vunpack.c.h.b16 %v5430
    %v5791 = vunpack.c.l.b16 %v5431
    %v5792 = vunpack.c.h.b16 %v5431
    %v5793 = vunpack.c.l.b16 %v5432
    %v5794 = vunpack.c.h.b16 %v5432
    %v5795 = vunpack.c.l.b16 %v5433
    %v5796 = vunpack.c.h.b16 %v5433
    %v5797 = vunpack.c.l.b16 %v5434
    %v5798 = vunpack.c.h.b16 %v5434
    %v5799 = vunpack.c.l.b16 %v5435
    %v5800 = vunpack.c.h.b16 %v5435
    %v5801 = vunpack.c.l.b16 %v5436
    %v5802 = vunpack.c.h.b16 %v5436
    %v5803 = vunpack.c.l.b16 %v5437
    %v5804 = vunpack.c.h.b16 %v5437
    %v5805 = vunpack.c.l.b16 %v5438
    %v5806 = vunpack.c.h.b16 %v5438
    %v5807 = vunpack.c.l.b16 %v5439
    %v5808 = vunpack.c.h.b16 %v5439
    %v5809 = vunpack.c.l.b16 %v5440
    %v5810 = vunpack.c.h.b16 %v5440
    %v5811 = vunpack.c.l.b16 %v5441
    %v5812 = vunpack.c.h.b16 %v5441
    %v5813 = vunpack.c.l.b16 %v5442
    %v5814 = vunpack.c.h.b16 %v5442
    %v5815 = vunpack.c.l.b16 %v5443
    %v5816 = vunpack.c.h.b16 %v5443
    %v5817 = vunpack.c.l.b16 %v5444
    %v5818 = vunpack.c.h.b16 %v5444
    %v5819 = vunpack.c.l.b16 %v5445
    %v5820 = vunpack.c.h.b16 %v5445
    %v5821 = vunpack.c.l.b16 %v5446
    %v5822 = vunpack.c.h.b16 %v5446
    %v5823 = vunpack.c.l.b16 %v5447
    %v5824 = vunpack.c.h.b16 %v5447
    %v5825 = vunpack.c.l.b16 %v5448
    %v5826 = vunpack.c.h.b16 %v5448
    %v5827 = vunpack.c.l.b16 %v5449
    %v5828 = vunpack.c.h.b16 %v5449
    %v5829 = vunpack.c.l.b16 %v5450
    %v5830 = vunpack.c.h.b16 %v5450
    %v5831 = vunpack.c.l.b16 %v5451
    %v5832 = vunpack.c.h.b16 %v5451
    %v5833 = vunpack.c.l.b16 %v5452
    %v5834 = vunpack.c.h.b16 %v5452
    %v5835 = vunpack.c.l.b16 %v5453
    %v5836 = vunpack.c.h.b16 %v5453
    %v5837 = vunpack.c.l.b16 %v5454
    %v5838 = vunpack.c.h.b16 %v5454
    %v5839 = vpack.c.b16 %v5587, %v5583
    %v5840 = vpack.c.b16 %v5588, %v5584
    %v5841 = vpack.c.b16 %v5589, %v5585
    %v5842 = vpack.c.b16 %v5590, %v5586
    %v5843 = vpack.c.b16 %v5595, %v5591
    %v5844 = vpack.c.b16 %v5596, %v5592
    %v5845 = vpack.c.b16 %v5597, %v5593
    %v5846 = vpack.c.b16 %v5598, %v5594
    %v5847 = vpack.c.b16 %v5603, %v5599
    %v5848 = vpack.c.b16 %v5604, %v5600
    %v5849 = vpack.c.b16 %v5605, %v5601
    %v5850 = vpack.c.b16 %v5606, %v5602
    %v5851 = vpack.c.b16 %v5611, %v5607
    %v5852 = vpack.c.b16 %v5612, %v5608
    %v5853 = vpack.c.b16 %v5613, %v5609
    %v5854 = vpack.c.b16 %v5614, %v5610
    %v5855 = vpack.c.b16 %v5619, %v5615
    %v5856 = vpack.c.b16 %v5620, %v5616
    %v5857 = vpack.c.b16 %v5621, %v5617
    %v5858 = vpack.c.b16 %v5622, %v5618
    %v5859 = vpack.c.b16 %v5627, %v5623
    %v5860 = vpack.c.b16 %v5628, %v5624
    %v5861 = vpack.c.b16 %v5629, %v5625
    %v5862 = vpack.c.b16 %v5630, %v5626
    %v5863 = vpack.c.b16 %v5635, %v5631
    %v5864 = vpack.c.b16 %v5636, %v5632
    %v5865 = vpack.c.b16 %v5637, %v5633
    %v5866 = vpack.c.b16 %v5638, %v5634
    %v5867 = vpack.c.b16 %v5643, %v5639
    %v5868 = vpack.c.b16 %v5644, %v5640
    %v5869 = vpack.c.b16 %v5645, %v5641
    %v5870 = vpack.c.b16 %v5646, %v5642
    %v5871 = vpack.c.b16 %v5651, %v5647
    %v5872 = vpack.c.b16 %v5652, %v5648
    %v5873 = vpack.c.b16 %v5653, %v5649
    %v5874 = vpack.c.b16 %v5654, %v5650
    %v5875 = vpack.c.b16 %v5659, %v5655
    %v5876 = vpack.c.b16 %v5660, %v5656
    %v5877 = vpack.c.b16 %v5661, %v5657
    %v5878 = vpack.c.b16 %v5662, %v5658
    %v5879 = vpack.c.b16 %v5667, %v5663
    %v5880 = vpack.c.b16 %v5668, %v5664
    %v5881 = vpack.c.b16 %v5669, %v5665
    %v5882 = vpack.c.b16 %v5670, %v5666
    %v5883 = vpack.c.b16 %v5675, %v5671
    %v5884 = vpack.c.b16 %v5676, %v5672
    %v5885 = vpack.c.b16 %v5677, %v5673
    %v5886 = vpack.c.b16 %v5678, %v5674
    %v5887 = vpack.c.b16 %v5683, %v5679
    %v5888 = vpack.c.b16 %v5684, %v5680
    %v5889 = vpack.c.b16 %v5685, %v5681
    %v5890 = vpack.c.b16 %v5686, %v5682
    %v5891 = vpack.c.b16 %v5691, %v5687
    %v5892 = vpack.c.b16 %v5692, %v5688
    %v5893 = vpack.c.b16 %v5693, %v5689
    %v5894 = vpack.c.b16 %v5694, %v5690
    %v5895 = vpack.c.b16 %v5699, %v5695
    %v5896 = vpack.c.b16 %v5700, %v5696
    %v5897 = vpack.c.b16 %v5701, %v5697
    %v5898 = vpack.c.b16 %v5702, %v5698
    %v5899 = vpack.c.b16 %v5707, %v5703
    %v5900 = vpack.c.b16 %v5708, %v5704
    %v5901 = vpack.c.b16 %v5709, %v5705
    %v5902 = vpack.c.b16 %v5710, %v5706
    %v5903 = vpack.c.b16 %v5715, %v5711
    %v5904 = vpack.c.b16 %v5716, %v5712
    %v5905 = vpack.c.b16 %v5717, %v5713
    %v5906 = vpack.c.b16 %v5718, %v5714
    %v5907 = vpack.c.b16 %v5723, %v5719
    %v5908 = vpack.c.b16 %v5724, %v5720
    %v5909 = vpack.c.b16 %v5725, %v5721
    %v5910 = vpack.c.b16 %v5726, %v5722
    %v5911 = vpack.c.b16 %v5731, %v5727
    %v5912 = vpack.c.b16 %v5732, %v5728
    %v5913 = vpack.c.b16 %v5733, %v5729
    %v5914 = vpack.c.b16 %v5734, %v5730
    %v5915 = vpack.c.b16 %v5739, %v5735
    %v5916 = vpack.c.b16 %v5740, %v5736
    %v5917 = vpack.c.b16 %v5741, %v5737
    %v5918 = vpack.c.b16 %v5742, %v5738
    %v5919 = vpack.c.b16 %v5747, %v5743
    %v5920 = vpack.c.b16 %v5748, %v5744
    %v5921 = vpack.c.b16 %v5749, %v5745
    %v5922 = vpack.c.b16 %v5750, %v5746
    %v5923 = vpack.c.b16 %v5755, %v5751
    %v5924 = vpack.c.b16 %v5756, %v5752
    %v5925 = vpack.c.b16 %v5757, %v5753
    %v5926 = vpack.c.b16 %v5758, %v5754
    %v5927 = vpack.c.b16 %v5763, %v5759
    %v5928 = vpack.c.b16 %v5764, %v5760
    %v5929 = vpack.c.b16 %v5765, %v5761
    %v5930 = vpack.c.b16 %v5766, %v5762
    %v5931 = vpack.c.b16 %v5771, %v5767
    %v5932 = vpack.c.b16 %v5772, %v5768
    %v5933 = vpack.c.b16 %v5773, %v5769
    %v5934 = vpack.c.b16 %v5774, %v5770
    %v5935 = vpack.c.b16 %v5779, %v5775
    %v5936 = vpack.c.b16 %v5780, %v5776
    %v5937 = vpack.c.b16 %v5781, %v5777
    %v5938 = vpack.c.b16 %v5782, %v5778
    %v5939 = vpack.c.b16 %v5787, %v5783
    %v5940 = vpack.c.b16 %v5788, %v5784
    %v5941 = vpack.c.b16 %v5789, %v5785
    %v5942 = vpack.c.b16 %v5790, %v5786
    %v5943 = vpack.c.b16 %v5795, %v5791
    %v5944 = vpack.c.b16 %v5796, %v5792
    %v5945 = vpack.c.b16 %v5797, %v5793
    %v5946 = vpack.c.b16 %v5798, %v5794
    %v5947 = vpack.c.b16 %v5803, %v5799
    %v5948 = vpack.c.b16 %v5804, %v5800
    %v5949 = vpack.c.b16 %v5805, %v5801
    %v5950 = vpack.c.b16 %v5806, %v5802
    %v5951 = vpack.c.b16 %v5811, %v5807
    %v5952 = vpack.c.b16 %v5812, %v5808
    %v5953 = vpack.c.b16 %v5813, %v5809
    %v5954 = vpack.c.b16 %v5814, %v5810
    %v5955 = vpack.c.b16 %v5819, %v5815
    %v5956 = vpack.c.b16 %v5820, %v5816
    %v5957 = vpack.c.b16 %v5821, %v5817
    %v5958 = vpack.c.b16 %v5822, %v5818
    %v5959 = vpack.c.b16 %v5827, %v5823
    %v5960 = vpack.c.b16 %v5828, %v5824
    %v5961 = vpack.c.b16 %v5829, %v5825
    %v5962 = vpack.c.b16 %v5830, %v5826
    %v5963 = vpack.c.b16 %v5835, %v5831
    %v5964 = vpack.c.b16 %v5836, %v5832
    %v5965 = vpack.c.b16 %v5837, %v5833
    %v5966 = vpack.c.b16 %v5838, %v5834
    %6095 = vmatpush.bf16.msra.mxu0 %v5867
    %6096 = vmatpush.bf16.msra.mxu0 %v5863
    %6097 = vmatpush.bf16.msra.mxu0 %v5859
    %6098 = vmatpush.bf16.msra.mxu0 %v5855
    %6099 = vmatpush.bf16.msra.mxu0 %v5851
    %6100 = vmatpush.bf16.msra.mxu0 %v5847
    %6101 = vmatpush.bf16.msra.mxu0 %v5843
    %6102 = vmatpush.bf16.msra.mxu0 %v5839
    %6103 = vmatmul.bf16.gmra.mxu0 %v5323
    %v6104 = vpop.f32.mrf.mxu0
    %v6105 = vadd.f32 0.0, %v6104
    %v6106 = vpop.f32.mrf.mxu0
    %v6107 = vadd.f32 0.0, %v6106
    %6108 = vdwg.mxu0
    %6109 = vmatpush.bf16.msra.mxu0 %v5899
    %6110 = vmatpush.bf16.msra.mxu0 %v5895
    %6111 = vmatpush.bf16.msra.mxu0 %v5891
    %6112 = vmatpush.bf16.msra.mxu0 %v5887
    %6113 = vmatpush.bf16.msra.mxu0 %v5883
    %6114 = vmatpush.bf16.msra.mxu0 %v5879
    %6115 = vmatpush.bf16.msra.mxu0 %v5875
    %6116 = vmatpush.bf16.msra.mxu0 %v5871
    %6117 = vmatmul.bf16.gmra.mxu0 %v5324
    %v6118 = vpop.f32.mrf.mxu0
    %v6119 = vadd.f32 %v6105, %v6118
    %v6120 = vpop.f32.mrf.mxu0
    %v6121 = vadd.f32 %v6107, %v6120
    %6122 = vdwg.mxu0
    %6123 = vmatpush.bf16.msra.mxu0 %v5931
    %6124 = vmatpush.bf16.msra.mxu0 %v5927
    %6125 = vmatpush.bf16.msra.mxu0 %v5923
    %6126 = vmatpush.bf16.msra.mxu0 %v5919
    %6127 = vmatpush.bf16.msra.mxu0 %v5915
    %6128 = vmatpush.bf16.msra.mxu0 %v5911
    %6129 = vmatpush.bf16.msra.mxu0 %v5907
    %6130 = vmatpush.bf16.msra.mxu0 %v5903
    %6131 = vmatmul.bf16.gmra.mxu0 %v5325
    %v6132 = vpop.f32.mrf.mxu0
    %v6133 = vadd.f32 %v6119, %v6132
    %v6134 = vpop.f32.mrf.mxu0
    %v6135 = vadd.f32 %v6121, %v6134
    %6136 = vdwg.mxu0
    %6137 = vmatpush.bf16.msra.mxu0 %v5963
    %6138 = vmatpush.bf16.msra.mxu0 %v5959
    %6139 = vmatpush.bf16.msra.mxu0 %v5955
    %6140 = vmatpush.bf16.msra.mxu0 %v5951
    %6141 = vmatpush.bf16.msra.mxu0 %v5947
    %6142 = vmatpush.bf16.msra.mxu0 %v5943
    %6143 = vmatpush.bf16.msra.mxu0 %v5939
    %6144 = vmatpush.bf16.msra.mxu0 %v5935
    %6145 = vmatmul.bf16.gmra.mxu0 %v5326
    %v6146 = vpop.f32.mrf.mxu0
    %v6147 = vadd.f32 %v6133, %v6146
    %v6148 = vpop.f32.mrf.mxu0
    %v6149 = vadd.f32 %v6135, %v6148
    %6150 = vdwg.mxu0
    %6151 = vmatpush.bf16.msra.mxu0 %v5868
    %6152 = vmatpush.bf16.msra.mxu0 %v5864
    %6153 = vmatpush.bf16.msra.mxu0 %v5860
    %6154 = vmatpush.bf16.msra.mxu0 %v5856
    %6155 = vmatpush.bf16.msra.mxu0 %v5852
    %6156 = vmatpush.bf16.msra.mxu0 %v5848
    %6157 = vmatpush.bf16.msra.mxu0 %v5844
    %6158 = vmatpush.bf16.msra.mxu0 %v5840
    %6159 = vmatmul.bf16.gmra.mxu0 %v5323
    %v6160 = vpop.f32.mrf.mxu0
    %v6161 = vadd.f32 0.0, %v6160
    %v6162 = vpop.f32.mrf.mxu0
    %v6163 = vadd.f32 0.0, %v6162
    %6164 = vdwg.mxu0
    %6165 = vmatpush.bf16.msra.mxu0 %v5900
    %6166 = vmatpush.bf16.msra.mxu0 %v5896
    %6167 = vmatpush.bf16.msra.mxu0 %v5892
    %6168 = vmatpush.bf16.msra.mxu0 %v5888
    %6169 = vmatpush.bf16.msra.mxu0 %v5884
    %6170 = vmatpush.bf16.msra.mxu0 %v5880
    %6171 = vmatpush.bf16.msra.mxu0 %v5876
    %6172 = vmatpush.bf16.msra.mxu0 %v5872
    %6173 = vmatmul.bf16.gmra.mxu0 %v5324
    %v6174 = vpop.f32.mrf.mxu0
    %v6175 = vadd.f32 %v6161, %v6174
    %v6176 = vpop.f32.mrf.mxu0
    %v6177 = vadd.f32 %v6163, %v6176
    %6178 = vdwg.mxu0
    %6179 = vmatpush.bf16.msra.mxu0 %v5932
    %6180 = vmatpush.bf16.msra.mxu0 %v5928
    %6181 = vmatpush.bf16.msra.mxu0 %v5924
    %6182 = vmatpush.bf16.msra.mxu0 %v5920
    %6183 = vmatpush.bf16.msra.mxu0 %v5916
    %6184 = vmatpush.bf16.msra.mxu0 %v5912
    %6185 = vmatpush.bf16.msra.mxu0 %v5908
    %6186 = vmatpush.bf16.msra.mxu0 %v5904
    %6187 = vmatmul.bf16.gmra.mxu0 %v5325
    %v6188 = vpop.f32.mrf.mxu0
    %v6189 = vadd.f32 %v6175, %v6188
    %v6190 = vpop.f32.mrf.mxu0
    %v6191 = vadd.f32 %v6177, %v6190
    %6192 = vdwg.mxu0
    %6193 = vmatpush.bf16.msra.mxu0 %v5964
    %6194 = vmatpush.bf16.msra.mxu0 %v5960
    %6195 = vmatpush.bf16.msra.mxu0 %v5956
    %6196 = vmatpush.bf16.msra.mxu0 %v5952
    %6197 = vmatpush.bf16.msra.mxu0 %v5948
    %6198 = vmatpush.bf16.msra.mxu0 %v5944
    %6199 = vmatpush.bf16.msra.mxu0 %v5940
    %6200 = vmatpush.bf16.msra.mxu0 %v5936
    %6201 = vmatmul.bf16.gmra.mxu0 %v5326
    %v6202 = vpop.f32.mrf.mxu0
    %v6203 = vadd.f32 %v6189, %v6202
    %v6204 = vpop.f32.mrf.mxu0
    %v6205 = vadd.f32 %v6191, %v6204
    %6206 = vdwg.mxu0
    %6207 = vmatpush.bf16.msra.mxu0 %v5869
    %6208 = vmatpush.bf16.msra.mxu0 %v5865
    %6209 = vmatpush.bf16.msra.mxu0 %v5861
    %6210 = vmatpush.bf16.msra.mxu0 %v5857
    %6211 = vmatpush.bf16.msra.mxu0 %v5853
    %6212 = vmatpush.bf16.msra.mxu0 %v5849
    %6213 = vmatpush.bf16.msra.mxu0 %v5845
    %6214 = vmatpush.bf16.msra.mxu0 %v5841
    %6215 = vmatmul.bf16.gmra.mxu0 %v5323
    %v6216 = vpop.f32.mrf.mxu0
    %v6217 = vadd.f32 0.0, %v6216
    %v6218 = vpop.f32.mrf.mxu0
    %v6219 = vadd.f32 0.0, %v6218
    %6220 = vdwg.mxu0
    %6221 = vmatpush.bf16.msra.mxu0 %v5901
    %6222 = vmatpush.bf16.msra.mxu0 %v5897
    %6223 = vmatpush.bf16.msra.mxu0 %v5893
    %6224 = vmatpush.bf16.msra.mxu0 %v5889
    %6225 = vmatpush.bf16.msra.mxu0 %v5885
    %6226 = vmatpush.bf16.msra.mxu0 %v5881
    %6227 = vmatpush.bf16.msra.mxu0 %v5877
    %6228 = vmatpush.bf16.msra.mxu0 %v5873
    %6229 = vmatmul.bf16.gmra.mxu0 %v5324
    %v6230 = vpop.f32.mrf.mxu0
    %v6231 = vadd.f32 %v6217, %v6230
    %v6232 = vpop.f32.mrf.mxu0
    %v6233 = vadd.f32 %v6219, %v6232
    %6234 = vdwg.mxu0
    %6235 = vmatpush.bf16.msra.mxu0 %v5933
    %6236 = vmatpush.bf16.msra.mxu0 %v5929
    %6237 = vmatpush.bf16.msra.mxu0 %v5925
    %6238 = vmatpush.bf16.msra.mxu0 %v5921
    %6239 = vmatpush.bf16.msra.mxu0 %v5917
    %6240 = vmatpush.bf16.msra.mxu0 %v5913
    %6241 = vmatpush.bf16.msra.mxu0 %v5909
    %6242 = vmatpush.bf16.msra.mxu0 %v5905
    %6243 = vmatmul.bf16.gmra.mxu0 %v5325
    %v6244 = vpop.f32.mrf.mxu0
    %v6245 = vadd.f32 %v6231, %v6244
    %v6246 = vpop.f32.mrf.mxu0
    %v6247 = vadd.f32 %v6233, %v6246
    %6248 = vdwg.mxu0
    %6249 = vmatpush.bf16.msra.mxu0 %v5965
    %6250 = vmatpush.bf16.msra.mxu0 %v5961
    %6251 = vmatpush.bf16.msra.mxu0 %v5957
    %6252 = vmatpush.bf16.msra.mxu0 %v5953
    %6253 = vmatpush.bf16.msra.mxu0 %v5949
    %6254 = vmatpush.bf16.msra.mxu0 %v5945
    %6255 = vmatpush.bf16.msra.mxu0 %v5941
    %6256 = vmatpush.bf16.msra.mxu0 %v5937
    %6257 = vmatmul.bf16.gmra.mxu0 %v5326
    %v6258 = vpop.f32.mrf.mxu0
    %v6259 = vadd.f32 %v6245, %v6258
    %v6260 = vpop.f32.mrf.mxu0
    %v6261 = vadd.f32 %v6247, %v6260
    %6262 = vdwg.mxu0
    %6263 = vmatpush.bf16.msra.mxu0 %v5870
    %6264 = vmatpush.bf16.msra.mxu0 %v5866
    %6265 = vmatpush.bf16.msra.mxu0 %v5862
    %6266 = vmatpush.bf16.msra.mxu0 %v5858
    %6267 = vmatpush.bf16.msra.mxu0 %v5854
    %6268 = vmatpush.bf16.msra.mxu0 %v5850
    %6269 = vmatpush.bf16.msra.mxu0 %v5846
    %6270 = vmatpush.bf16.msra.mxu0 %v5842
    %6271 = vmatmul.bf16.gmra.mxu0 %v5323
    %v6272 = vpop.f32.mrf.mxu0
    %v6273 = vadd.f32 0.0, %v6272
    %v6274 = vpop.f32.mrf.mxu0
    %v6275 = vadd.f32 0.0, %v6274
    %6276 = vdwg.mxu0
    %6277 = vmatpush.bf16.msra.mxu0 %v5902
    %6278 = vmatpush.bf16.msra.mxu0 %v5898
    %6279 = vmatpush.bf16.msra.mxu0 %v5894
    %6280 = vmatpush.bf16.msra.mxu0 %v5890
    %6281 = vmatpush.bf16.msra.mxu0 %v5886
    %6282 = vmatpush.bf16.msra.mxu0 %v5882
    %6283 = vmatpush.bf16.msra.mxu0 %v5878
    %6284 = vmatpush.bf16.msra.mxu0 %v5874
    %6285 = vmatmul.bf16.gmra.mxu0 %v5324
    %v6286 = vpop.f32.mrf.mxu0
    %v6287 = vadd.f32 %v6273, %v6286
    %v6288 = vpop.f32.mrf.mxu0
    %v6289 = vadd.f32 %v6275, %v6288
    %6290 = vdwg.mxu0
    %6291 = vmatpush.bf16.msra.mxu0 %v5934
    %6292 = vmatpush.bf16.msra.mxu0 %v5930
    %6293 = vmatpush.bf16.msra.mxu0 %v5926
    %6294 = vmatpush.bf16.msra.mxu0 %v5922
    %6295 = vmatpush.bf16.msra.mxu0 %v5918
    %6296 = vmatpush.bf16.msra.mxu0 %v5914
    %6297 = vmatpush.bf16.msra.mxu0 %v5910
    %6298 = vmatpush.bf16.msra.mxu0 %v5906
    %6299 = vmatmul.bf16.gmra.mxu0 %v5325
    %v6300 = vpop.f32.mrf.mxu0
    %v6301 = vadd.f32 %v6287, %v6300
    %v6302 = vpop.f32.mrf.mxu0
    %v6303 = vadd.f32 %v6289, %v6302
    %6304 = vdwg.mxu0
    %6305 = vmatpush.bf16.msra.mxu0 %v5966
    %6306 = vmatpush.bf16.msra.mxu0 %v5962
    %6307 = vmatpush.bf16.msra.mxu0 %v5958
    %6308 = vmatpush.bf16.msra.mxu0 %v5954
    %6309 = vmatpush.bf16.msra.mxu0 %v5950
    %6310 = vmatpush.bf16.msra.mxu0 %v5946
    %6311 = vmatpush.bf16.msra.mxu0 %v5942
    %6312 = vmatpush.bf16.msra.mxu0 %v5938
    %6313 = vmatmul.bf16.gmra.mxu0 %v5326
    %v6314 = vpop.f32.mrf.mxu0
    %v6315 = vadd.f32 %v6301, %v6314
    %v6316 = vpop.f32.mrf.mxu0
    %v6317 = vadd.f32 %v6303, %v6316
    %6318 = vdwg.mxu0
    %v6319 = vmul.f32 %v6147, 0.5
    %v6320 = vmul.f32 %v6203, 0.5
    %v6321 = vmul.f32 %v6259, 0.5
    %v6322 = vmul.f32 %v6315, 0.5
    %v6323 = vmul.f32 %v6149, 0.5
    %v6324 = vmul.f32 %v6205, 0.5
    %v6325 = vmul.f32 %v6261, 0.5
    %v6326 = vmul.f32 %v6317, 0.5
    %v6327 = vmul.f32 %v6147, 0.70710677
    %v6328 = vmul.f32 %v6203, 0.70710677
    %v6329 = vmul.f32 %v6259, 0.70710677
    %v6330 = vmul.f32 %v6315, 0.70710677
    %v6331 = vmul.f32 %v6149, 0.70710677
    %v6332 = vmul.f32 %v6205, 0.70710677
    %v6333 = vmul.f32 %v6261, 0.70710677
    %v6334 = vmul.f32 %v6317, 0.70710677
    %v6335 = vmul.f32 %v6327, %v6327
    %v6336 = vmin.f32 16.0, %v6335
    %v6337 = vmul.f32 %v6336, 2.1237322e-06
    %v6338 = vadd.f32 %v6337, 0.00028619796
    %v6339 = vmul.f32 %v6336, %v6338
    %v6340 = vadd.f32 %v6339, 0.0036580483
    %v6341 = vmul.f32 %v6336, %v6340
    %v6342 = vadd.f32 %v6341, 0.05243302
    %v6343 = vmul.f32 %v6336, %v6342
    %v6344 = vadd.f32 %v6343, 0.18741608
    %v6345 = vmul.f32 %v6336, %v6344
    %v6346 = vadd.f32 %v6345, 1.1283791
    %v6347 = vmul.f32 %v6327, %v6346
    %v6348 = vmul.f32 %v6336, 3.8918573e-05
    %v6349 = vadd.f32 %v6348, 0.001143296
    %v6350 = vmul.f32 %v6336, %v6349
    %v6351 = vadd.f32 %v6350, 0.014752088
    %v6352 = vmul.f32 %v6336, %v6351
    %v6353 = vadd.f32 %v6352, 0.112945676
    %v6354 = vmul.f32 %v6336, %v6353
    %v6355 = vadd.f32 %v6354, 0.4994258
    %v6356 = vmul.f32 %v6336, %v6355
    %v6357 = vadd.f32 %v6356, 1.0
    %v6358 = vrcp.pop %v6357
    %v6359 = vmul.f32 %v6357, %v6358
    %v6360 = vsub.f32 1.0, %v6359
    %v6361 = vmul.f32 %v6358, %v6360
    %v6362 = vadd.f32 %v6358, %v6361
    %vm6363 = vweird.f32 %v6357
    %vm6364 = vweird.f32 %v6358
    %vm6365 = vmor %vm6363, %vm6364
    %v6366 = vsel %vm6365, %v6358, %v6362
    %v6367 = vand.u32 2147483647, %v6357
    %vm6368 = vcmp.eq.f32.partialorder %v6367, 8.507059e+37
    %v6369 = vand.u32 %v6357, 2147483648
    %v6370 = vor.u32 1.1754944e-38, %v6369
    %v6371 = vsel %vm6368, %v6370, %v6366
    %v6372 = vmul.f32 %v6347, %v6371
    %v6373 = vmin.f32 %v6372, 1.0
    %v6374 = vmax.f32 %v6373, -1.0
    %v6375 = vmul.f32 %v6328, %v6328
    %v6376 = vmin.f32 16.0, %v6375
    %v6377 = vmul.f32 %v6376, 2.1237322e-06
    %v6378 = vadd.f32 %v6377, 0.00028619796
    %v6379 = vmul.f32 %v6376, %v6378
    %v6380 = vadd.f32 %v6379, 0.0036580483
    %v6381 = vmul.f32 %v6376, %v6380
    %v6382 = vadd.f32 %v6381, 0.05243302
    %v6383 = vmul.f32 %v6376, %v6382
    %v6384 = vadd.f32 %v6383, 0.18741608
    %v6385 = vmul.f32 %v6376, %v6384
    %v6386 = vadd.f32 %v6385, 1.1283791
    %v6387 = vmul.f32 %v6328, %v6386
    %v6388 = vmul.f32 %v6376, 3.8918573e-05
    %v6389 = vadd.f32 %v6388, 0.001143296
    %v6390 = vmul.f32 %v6376, %v6389
    %v6391 = vadd.f32 %v6390, 0.014752088
    %v6392 = vmul.f32 %v6376, %v6391
    %v6393 = vadd.f32 %v6392, 0.112945676
    %v6394 = vmul.f32 %v6376, %v6393
    %v6395 = vadd.f32 %v6394, 0.4994258
    %v6396 = vmul.f32 %v6376, %v6395
    %v6397 = vadd.f32 %v6396, 1.0
    %v6398 = vrcp.pop %v6397
    %v6399 = vmul.f32 %v6397, %v6398
    %v6400 = vsub.f32 1.0, %v6399
    %v6401 = vmul.f32 %v6398, %v6400
    %v6402 = vadd.f32 %v6398, %v6401
    %vm6403 = vweird.f32 %v6397
    %vm6404 = vweird.f32 %v6398
    %vm6405 = vmor %vm6403, %vm6404
    %v6406 = vsel %vm6405, %v6398, %v6402
    %v6407 = vand.u32 2147483647, %v6397
    %vm6408 = vcmp.eq.f32.partialorder %v6407, 8.507059e+37
    %v6409 = vand.u32 %v6397, 2147483648
    %v6410 = vor.u32 1.1754944e-38, %v6409
    %v6411 = vsel %vm6408, %v6410, %v6406
    %v6412 = vmul.f32 %v6387, %v6411
    %v6413 = vmin.f32 %v6412, 1.0
    %v6414 = vmax.f32 %v6413, -1.0
    %v6415 = vmul.f32 %v6329, %v6329
    %v6416 = vmin.f32 16.0, %v6415
    %v6417 = vmul.f32 %v6416, 2.1237322e-06
    %v6418 = vadd.f32 %v6417, 0.00028619796
    %v6419 = vmul.f32 %v6416, %v6418
    %v6420 = vadd.f32 %v6419, 0.0036580483
    %v6421 = vmul.f32 %v6416, %v6420
    %v6422 = vadd.f32 %v6421, 0.05243302
    %v6423 = vmul.f32 %v6416, %v6422
    %v6424 = vadd.f32 %v6423, 0.18741608
    %v6425 = vmul.f32 %v6416, %v6424
    %v6426 = vadd.f32 %v6425, 1.1283791
    %v6427 = vmul.f32 %v6329, %v6426
    %v6428 = vmul.f32 %v6416, 3.8918573e-05
    %v6429 = vadd.f32 %v6428, 0.001143296
    %v6430 = vmul.f32 %v6416, %v6429
    %v6431 = vadd.f32 %v6430, 0.014752088
    %v6432 = vmul.f32 %v6416, %v6431
    %v6433 = vadd.f32 %v6432, 0.112945676
    %v6434 = vmul.f32 %v6416, %v6433
    %v6435 = vadd.f32 %v6434, 0.4994258
    %v6436 = vmul.f32 %v6416, %v6435
    %v6437 = vadd.f32 %v6436, 1.0
    %v6438 = vrcp.pop %v6437
    %v6439 = vmul.f32 %v6437, %v6438
    %v6440 = vsub.f32 1.0, %v6439
    %v6441 = vmul.f32 %v6438, %v6440
    %v6442 = vadd.f32 %v6438, %v6441
    %vm6443 = vweird.f32 %v6437
    %vm6444 = vweird.f32 %v6438
    %vm6445 = vmor %vm6443, %vm6444
    %v6446 = vsel %vm6445, %v6438, %v6442
    %v6447 = vand.u32 2147483647, %v6437
    %vm6448 = vcmp.eq.f32.partialorder %v6447, 8.507059e+37
    %v6449 = vand.u32 %v6437, 2147483648
    %v6450 = vor.u32 1.1754944e-38, %v6449
    %v6451 = vsel %vm6448, %v6450, %v6446
    %v6452 = vmul.f32 %v6427, %v6451
    %v6453 = vmin.f32 %v6452, 1.0
    %v6454 = vmax.f32 %v6453, -1.0
    %v6455 = vmul.f32 %v6330, %v6330
    %v6456 = vmin.f32 16.0, %v6455
    %v6457 = vmul.f32 %v6456, 2.1237322e-06
    %v6458 = vadd.f32 %v6457, 0.00028619796
    %v6459 = vmul.f32 %v6456, %v6458
    %v6460 = vadd.f32 %v6459, 0.0036580483
    %v6461 = vmul.f32 %v6456, %v6460
    %v6462 = vadd.f32 %v6461, 0.05243302
    %v6463 = vmul.f32 %v6456, %v6462
    %v6464 = vadd.f32 %v6463, 0.18741608
    %v6465 = vmul.f32 %v6456, %v6464
    %v6466 = vadd.f32 %v6465, 1.1283791
    %v6467 = vmul.f32 %v6330, %v6466
    %v6468 = vmul.f32 %v6456, 3.8918573e-05
    %v6469 = vadd.f32 %v6468, 0.001143296
    %v6470 = vmul.f32 %v6456, %v6469
    %v6471 = vadd.f32 %v6470, 0.014752088
    %v6472 = vmul.f32 %v6456, %v6471
    %v6473 = vadd.f32 %v6472, 0.112945676
    %v6474 = vmul.f32 %v6456, %v6473
    %v6475 = vadd.f32 %v6474, 0.4994258
    %v6476 = vmul.f32 %v6456, %v6475
    %v6477 = vadd.f32 %v6476, 1.0
    %v6478 = vrcp.pop %v6477
    %v6479 = vmul.f32 %v6477, %v6478
    %v6480 = vsub.f32 1.0, %v6479
    %v6481 = vmul.f32 %v6478, %v6480
    %v6482 = vadd.f32 %v6478, %v6481
    %vm6483 = vweird.f32 %v6477
    %vm6484 = vweird.f32 %v6478
    %vm6485 = vmor %vm6483, %vm6484
    %v6486 = vsel %vm6485, %v6478, %v6482
    %v6487 = vand.u32 2147483647, %v6477
    %vm6488 = vcmp.eq.f32.partialorder %v6487, 8.507059e+37
    %v6489 = vand.u32 %v6477, 2147483648
    %v6490 = vor.u32 1.1754944e-38, %v6489
    %v6491 = vsel %vm6488, %v6490, %v6486
    %v6492 = vmul.f32 %v6467, %v6491
    %v6493 = vmin.f32 %v6492, 1.0
    %v6494 = vmax.f32 %v6493, -1.0
    %v6495 = vmul.f32 %v6331, %v6331
    %v6496 = vmin.f32 16.0, %v6495
    %v6497 = vmul.f32 %v6496, 2.1237322e-06
    %v6498 = vadd.f32 %v6497, 0.00028619796
    %v6499 = vmul.f32 %v6496, %v6498
    %v6500 = vadd.f32 %v6499, 0.0036580483
    %v6501 = vmul.f32 %v6496, %v6500
    %v6502 = vadd.f32 %v6501, 0.05243302
    %v6503 = vmul.f32 %v6496, %v6502
    %v6504 = vadd.f32 %v6503, 0.18741608
    %v6505 = vmul.f32 %v6496, %v6504
    %v6506 = vadd.f32 %v6505, 1.1283791
    %v6507 = vmul.f32 %v6331, %v6506
    %v6508 = vmul.f32 %v6496, 3.8918573e-05
    %v6509 = vadd.f32 %v6508, 0.001143296
    %v6510 = vmul.f32 %v6496, %v6509
    %v6511 = vadd.f32 %v6510, 0.014752088
    %v6512 = vmul.f32 %v6496, %v6511
    %v6513 = vadd.f32 %v6512, 0.112945676
    %v6514 = vmul.f32 %v6496, %v6513
    %v6515 = vadd.f32 %v6514, 0.4994258
    %v6516 = vmul.f32 %v6496, %v6515
    %v6517 = vadd.f32 %v6516, 1.0
    %v6518 = vrcp.pop %v6517
    %v6519 = vmul.f32 %v6517, %v6518
    %v6520 = vsub.f32 1.0, %v6519
    %v6521 = vmul.f32 %v6518, %v6520
    %v6522 = vadd.f32 %v6518, %v6521
    %vm6523 = vweird.f32 %v6517
    %vm6524 = vweird.f32 %v6518
    %vm6525 = vmor %vm6523, %vm6524
    %v6526 = vsel %vm6525, %v6518, %v6522
    %v6527 = vand.u32 2147483647, %v6517
    %vm6528 = vcmp.eq.f32.partialorder %v6527, 8.507059e+37
    %v6529 = vand.u32 %v6517, 2147483648
    %v6530 = vor.u32 1.1754944e-38, %v6529
    %v6531 = vsel %vm6528, %v6530, %v6526
    %v6532 = vmul.f32 %v6507, %v6531
    %v6533 = vmin.f32 %v6532, 1.0
    %v6534 = vmax.f32 %v6533, -1.0
    %v6535 = vmul.f32 %v6332, %v6332
    %v6536 = vmin.f32 16.0, %v6535
    %v6537 = vmul.f32 %v6536, 2.1237322e-06
    %v6538 = vadd.f32 %v6537, 0.00028619796
    %v6539 = vmul.f32 %v6536, %v6538
    %v6540 = vadd.f32 %v6539, 0.0036580483
    %v6541 = vmul.f32 %v6536, %v6540
    %v6542 = vadd.f32 %v6541, 0.05243302
    %v6543 = vmul.f32 %v6536, %v6542
    %v6544 = vadd.f32 %v6543, 0.18741608
    %v6545 = vmul.f32 %v6536, %v6544
    %v6546 = vadd.f32 %v6545, 1.1283791
    %v6547 = vmul.f32 %v6332, %v6546
    %v6548 = vmul.f32 %v6536, 3.8918573e-05
    %v6549 = vadd.f32 %v6548, 0.001143296
    %v6550 = vmul.f32 %v6536, %v6549
    %v6551 = vadd.f32 %v6550, 0.014752088
    %v6552 = vmul.f32 %v6536, %v6551
    %v6553 = vadd.f32 %v6552, 0.112945676
    %v6554 = vmul.f32 %v6536, %v6553
    %v6555 = vadd.f32 %v6554, 0.4994258
    %v6556 = vmul.f32 %v6536, %v6555
    %v6557 = vadd.f32 %v6556, 1.0
    %v6558 = vrcp.pop %v6557
    %v6559 = vmul.f32 %v6557, %v6558
    %v6560 = vsub.f32 1.0, %v6559
    %v6561 = vmul.f32 %v6558, %v6560
    %v6562 = vadd.f32 %v6558, %v6561
    %vm6563 = vweird.f32 %v6557
    %vm6564 = vweird.f32 %v6558
    %vm6565 = vmor %vm6563, %vm6564
    %v6566 = vsel %vm6565, %v6558, %v6562
    %v6567 = vand.u32 2147483647, %v6557
    %vm6568 = vcmp.eq.f32.partialorder %v6567, 8.507059e+37
    %v6569 = vand.u32 %v6557, 2147483648
    %v6570 = vor.u32 1.1754944e-38, %v6569
    %v6571 = vsel %vm6568, %v6570, %v6566
    %v6572 = vmul.f32 %v6547, %v6571
    %v6573 = vmin.f32 %v6572, 1.0
    %v6574 = vmax.f32 %v6573, -1.0
    %v6575 = vmul.f32 %v6333, %v6333
    %v6576 = vmin.f32 16.0, %v6575
    %v6577 = vmul.f32 %v6576, 2.1237322e-06
    %v6578 = vadd.f32 %v6577, 0.00028619796
    %v6579 = vmul.f32 %v6576, %v6578
    %v6580 = vadd.f32 %v6579, 0.0036580483
    %v6581 = vmul.f32 %v6576, %v6580
    %v6582 = vadd.f32 %v6581, 0.05243302
    %v6583 = vmul.f32 %v6576, %v6582
    %v6584 = vadd.f32 %v6583, 0.18741608
    %v6585 = vmul.f32 %v6576, %v6584
    %v6586 = vadd.f32 %v6585, 1.1283791
    %v6587 = vmul.f32 %v6333, %v6586
    %v6588 = vmul.f32 %v6576, 3.8918573e-05
    %v6589 = vadd.f32 %v6588, 0.001143296
    %v6590 = vmul.f32 %v6576, %v6589
    %v6591 = vadd.f32 %v6590, 0.014752088
    %v6592 = vmul.f32 %v6576, %v6591
    %v6593 = vadd.f32 %v6592, 0.112945676
    %v6594 = vmul.f32 %v6576, %v6593
    %v6595 = vadd.f32 %v6594, 0.4994258
    %v6596 = vmul.f32 %v6576, %v6595
    %v6597 = vadd.f32 %v6596, 1.0
    %v6598 = vrcp.pop %v6597
    %v6599 = vmul.f32 %v6597, %v6598
    %v6600 = vsub.f32 1.0, %v6599
    %v6601 = vmul.f32 %v6598, %v6600
    %v6602 = vadd.f32 %v6598, %v6601
    %vm6603 = vweird.f32 %v6597
    %vm6604 = vweird.f32 %v6598
    %vm6605 = vmor %vm6603, %vm6604
    %v6606 = vsel %vm6605, %v6598, %v6602
    %v6607 = vand.u32 2147483647, %v6597
    %vm6608 = vcmp.eq.f32.partialorder %v6607, 8.507059e+37
    %v6609 = vand.u32 %v6597, 2147483648
    %v6610 = vor.u32 1.1754944e-38, %v6609
    %v6611 = vsel %vm6608, %v6610, %v6606
    %v6612 = vmul.f32 %v6587, %v6611
    %v6613 = vmin.f32 %v6612, 1.0
    %v6614 = vmax.f32 %v6613, -1.0
    %v6615 = vmul.f32 %v6334, %v6334
    %v6616 = vmin.f32 16.0, %v6615
    %v6617 = vmul.f32 %v6616, 2.1237322e-06
    %v6618 = vadd.f32 %v6617, 0.00028619796
    %v6619 = vmul.f32 %v6616, %v6618
    %v6620 = vadd.f32 %v6619, 0.0036580483
    %v6621 = vmul.f32 %v6616, %v6620
    %v6622 = vadd.f32 %v6621, 0.05243302
    %v6623 = vmul.f32 %v6616, %v6622
    %v6624 = vadd.f32 %v6623, 0.18741608
    %v6625 = vmul.f32 %v6616, %v6624
    %v6626 = vadd.f32 %v6625, 1.1283791
    %v6627 = vmul.f32 %v6334, %v6626
    %v6628 = vmul.f32 %v6616, 3.8918573e-05
    %v6629 = vadd.f32 %v6628, 0.001143296
    %v6630 = vmul.f32 %v6616, %v6629
    %v6631 = vadd.f32 %v6630, 0.014752088
    %v6632 = vmul.f32 %v6616, %v6631
    %v6633 = vadd.f32 %v6632, 0.112945676
    %v6634 = vmul.f32 %v6616, %v6633
    %v6635 = vadd.f32 %v6634, 0.4994258
    %v6636 = vmul.f32 %v6616, %v6635
    %v6637 = vadd.f32 %v6636, 1.0
    %v6638 = vrcp.pop %v6637
    %v6639 = vmul.f32 %v6637, %v6638
    %v6640 = vsub.f32 1.0, %v6639
    %v6641 = vmul.f32 %v6638, %v6640
    %v6642 = vadd.f32 %v6638, %v6641
    %vm6643 = vweird.f32 %v6637
    %vm6644 = vweird.f32 %v6638
    %vm6645 = vmor %vm6643, %vm6644
    %v6646 = vsel %vm6645, %v6638, %v6642
    %v6647 = vand.u32 2147483647, %v6637
    %vm6648 = vcmp.eq.f32.partialorder %v6647, 8.507059e+37
    %v6649 = vand.u32 %v6637, 2147483648
    %v6650 = vor.u32 1.1754944e-38, %v6649
    %v6651 = vsel %vm6648, %v6650, %v6646
    %v6652 = vmul.f32 %v6627, %v6651
    %v6653 = vmin.f32 %v6652, 1.0
    %v6654 = vmax.f32 %v6653, -1.0
    %v6655 = vadd.f32 %v6374, 1.0
    %v6656 = vadd.f32 %v6414, 1.0
    %v6657 = vadd.f32 %v6454, 1.0
    %v6658 = vadd.f32 %v6494, 1.0
    %v6659 = vadd.f32 %v6534, 1.0
    %v6660 = vadd.f32 %v6574, 1.0
    %v6661 = vadd.f32 %v6614, 1.0
    %v6662 = vadd.f32 %v6654, 1.0
    %v6663 = vmul.f32 %v6319, %v6655
    %v6664 = vmul.f32 %v6320, %v6656
    %v6665 = vmul.f32 %v6321, %v6657
    %v6666 = vmul.f32 %v6322, %v6658
    %v6667 = vmul.f32 %v6323, %v6659
    %v6668 = vmul.f32 %v6324, %v6660
    %v6669 = vmul.f32 %v6325, %v6661
    %v6670 = vmul.f32 %v6326, %v6662
    %v6671 = vpack.c.bf16 %v6667, %v6663
    %v6672 = vpack.c.bf16 %v6668, %v6664
    %v6673 = vpack.c.bf16 %v6669, %v6665
    %v6674 = vpack.c.bf16 %v6670, %v6666
    %v6675 = vld [vmem:[#allocation27] sm:$0xff]
    %v6676 = vld [vmem:[#allocation27 + $0x8] sm:$0xff]
    %v6677 = vld [vmem:[#allocation27 + $0x10] sm:$0xff]
    %v6678 = vld [vmem:[#allocation27 + $0x18] sm:$0xff]
    %v6679 = vld [vmem:[#allocation27 + $0x20] sm:$0xff]
    %v6680 = vld [vmem:[#allocation27 + $0x28] sm:$0xff]
    %v6681 = vld [vmem:[#allocation27 + $0x30] sm:$0xff]
    %v6682 = vld [vmem:[#allocation27 + $0x38] sm:$0xff]
    %v6683 = vld [vmem:[#allocation27 + $0x40] sm:$0xff]
    %v6684 = vld [vmem:[#allocation27 + $0x48] sm:$0xff]
    %v6685 = vld [vmem:[#allocation27 + $0x50] sm:$0xff]
    %v6686 = vld [vmem:[#allocation27 + $0x58] sm:$0xff]
    %v6687 = vld [vmem:[#allocation27 + $0x60] sm:$0xff]
    %v6688 = vld [vmem:[#allocation27 + $0x68] sm:$0xff]
    %v6689 = vld [vmem:[#allocation27 + $0x70] sm:$0xff]
    %v6690 = vld [vmem:[#allocation27 + $0x78] sm:$0xff]
    %v6691 = vld [vmem:[#allocation27 + $0x80] sm:$0xff]
    %v6692 = vld [vmem:[#allocation27 + $0x88] sm:$0xff]
    %v6693 = vld [vmem:[#allocation27 + $0x90] sm:$0xff]
    %v6694 = vld [vmem:[#allocation27 + $0x98] sm:$0xff]
    %v6695 = vld [vmem:[#allocation27 + $0xa0] sm:$0xff]
    %v6696 = vld [vmem:[#allocation27 + $0xa8] sm:$0xff]
    %v6697 = vld [vmem:[#allocation27 + $0xb0] sm:$0xff]
    %v6698 = vld [vmem:[#allocation27 + $0xb8] sm:$0xff]
    %v6699 = vld [vmem:[#allocation27 + $0xc0] sm:$0xff]
    %v6700 = vld [vmem:[#allocation27 + $0xc8] sm:$0xff]
    %v6701 = vld [vmem:[#allocation27 + $0xd0] sm:$0xff]
    %v6702 = vld [vmem:[#allocation27 + $0xd8] sm:$0xff]
    %v6703 = vld [vmem:[#allocation27 + $0xe0] sm:$0xff]
    %v6704 = vld [vmem:[#allocation27 + $0xe8] sm:$0xff]
    %v6705 = vld [vmem:[#allocation27 + $0xf0] sm:$0xff]
    %v6706 = vld [vmem:[#allocation27 + $0xf8] sm:$0xff]
    %v6707 = vld [vmem:[#allocation27 + $0x100] sm:$0xff]
    %v6708 = vld [vmem:[#allocation27 + $0x108] sm:$0xff]
    %v6709 = vld [vmem:[#allocation27 + $0x110] sm:$0xff]
    %v6710 = vld [vmem:[#allocation27 + $0x118] sm:$0xff]
    %v6711 = vld [vmem:[#allocation27 + $0x120] sm:$0xff]
    %v6712 = vld [vmem:[#allocation27 + $0x128] sm:$0xff]
    %v6713 = vld [vmem:[#allocation27 + $0x130] sm:$0xff]
    %v6714 = vld [vmem:[#allocation27 + $0x138] sm:$0xff]
    %v6715 = vld [vmem:[#allocation27 + $0x140] sm:$0xff]
    %v6716 = vld [vmem:[#allocation27 + $0x148] sm:$0xff]
    %v6717 = vld [vmem:[#allocation27 + $0x150] sm:$0xff]
    %v6718 = vld [vmem:[#allocation27 + $0x158] sm:$0xff]
    %v6719 = vld [vmem:[#allocation27 + $0x160] sm:$0xff]
    %v6720 = vld [vmem:[#allocation27 + $0x168] sm:$0xff]
    %v6721 = vld [vmem:[#allocation27 + $0x170] sm:$0xff]
    %v6722 = vld [vmem:[#allocation27 + $0x178] sm:$0xff]
    %v6723 = vld [vmem:[#allocation27 + $0x180] sm:$0xff]
    %v6724 = vld [vmem:[#allocation27 + $0x188] sm:$0xff]
    %v6725 = vld [vmem:[#allocation27 + $0x190] sm:$0xff]
    %v6726 = vld [vmem:[#allocation27 + $0x198] sm:$0xff]
    %v6727 = vld [vmem:[#allocation27 + $0x1a0] sm:$0xff]
    %v6728 = vld [vmem:[#allocation27 + $0x1a8] sm:$0xff]
    %v6729 = vld [vmem:[#allocation27 + $0x1b0] sm:$0xff]
    %v6730 = vld [vmem:[#allocation27 + $0x1b8] sm:$0xff]
    %v6731 = vld [vmem:[#allocation27 + $0x1c0] sm:$0xff]
    %v6732 = vld [vmem:[#allocation27 + $0x1c8] sm:$0xff]
    %v6733 = vld [vmem:[#allocation27 + $0x1d0] sm:$0xff]
    %v6734 = vld [vmem:[#allocation27 + $0x1d8] sm:$0xff]
    %v6735 = vld [vmem:[#allocation27 + $0x1e0] sm:$0xff]
    %v6736 = vld [vmem:[#allocation27 + $0x1e8] sm:$0xff]
    %v6737 = vld [vmem:[#allocation27 + $0x1f0] sm:$0xff]
    %v6738 = vld [vmem:[#allocation27 + $0x1f8] sm:$0xff]
    %v6739 = vld [vmem:[#allocation27 + $0x200] sm:$0xff]
    %v6740 = vld [vmem:[#allocation27 + $0x208] sm:$0xff]
    %v6741 = vld [vmem:[#allocation27 + $0x210] sm:$0xff]
    %v6742 = vld [vmem:[#allocation27 + $0x218] sm:$0xff]
    %v6743 = vld [vmem:[#allocation27 + $0x220] sm:$0xff]
    %v6744 = vld [vmem:[#allocation27 + $0x228] sm:$0xff]
    %v6745 = vld [vmem:[#allocation27 + $0x230] sm:$0xff]
    %v6746 = vld [vmem:[#allocation27 + $0x238] sm:$0xff]
    %v6747 = vld [vmem:[#allocation27 + $0x240] sm:$0xff]
    %v6748 = vld [vmem:[#allocation27 + $0x248] sm:$0xff]
    %v6749 = vld [vmem:[#allocation27 + $0x250] sm:$0xff]
    %v6750 = vld [vmem:[#allocation27 + $0x258] sm:$0xff]
    %v6751 = vld [vmem:[#allocation27 + $0x260] sm:$0xff]
    %v6752 = vld [vmem:[#allocation27 + $0x268] sm:$0xff]
    %v6753 = vld [vmem:[#allocation27 + $0x270] sm:$0xff]
    %v6754 = vld [vmem:[#allocation27 + $0x278] sm:$0xff]
    %v6755 = vld [vmem:[#allocation27 + $0x280] sm:$0xff]
    %v6756 = vld [vmem:[#allocation27 + $0x288] sm:$0xff]
    %v6757 = vld [vmem:[#allocation27 + $0x290] sm:$0xff]
    %v6758 = vld [vmem:[#allocation27 + $0x298] sm:$0xff]
    %v6759 = vld [vmem:[#allocation27 + $0x2a0] sm:$0xff]
    %v6760 = vld [vmem:[#allocation27 + $0x2a8] sm:$0xff]
    %v6761 = vld [vmem:[#allocation27 + $0x2b0] sm:$0xff]
    %v6762 = vld [vmem:[#allocation27 + $0x2b8] sm:$0xff]
    %v6763 = vld [vmem:[#allocation27 + $0x2c0] sm:$0xff]
    %v6764 = vld [vmem:[#allocation27 + $0x2c8] sm:$0xff]
    %v6765 = vld [vmem:[#allocation27 + $0x2d0] sm:$0xff]
    %v6766 = vld [vmem:[#allocation27 + $0x2d8] sm:$0xff]
    %v6767 = vld [vmem:[#allocation27 + $0x2e0] sm:$0xff]
    %v6768 = vld [vmem:[#allocation27 + $0x2e8] sm:$0xff]
    %v6769 = vld [vmem:[#allocation27 + $0x2f0] sm:$0xff]
    %v6770 = vld [vmem:[#allocation27 + $0x2f8] sm:$0xff]
    %v6771 = vld [vmem:[#allocation27 + $0x300] sm:$0xff]
    %v6772 = vld [vmem:[#allocation27 + $0x308] sm:$0xff]
    %v6773 = vld [vmem:[#allocation27 + $0x310] sm:$0xff]
    %v6774 = vld [vmem:[#allocation27 + $0x318] sm:$0xff]
    %v6775 = vld [vmem:[#allocation27 + $0x320] sm:$0xff]
    %v6776 = vld [vmem:[#allocation27 + $0x328] sm:$0xff]
    %v6777 = vld [vmem:[#allocation27 + $0x330] sm:$0xff]
    %v6778 = vld [vmem:[#allocation27 + $0x338] sm:$0xff]
    %v6779 = vld [vmem:[#allocation27 + $0x340] sm:$0xff]
    %v6780 = vld [vmem:[#allocation27 + $0x348] sm:$0xff]
    %v6781 = vld [vmem:[#allocation27 + $0x350] sm:$0xff]
    %v6782 = vld [vmem:[#allocation27 + $0x358] sm:$0xff]
    %v6783 = vld [vmem:[#allocation27 + $0x360] sm:$0xff]
    %v6784 = vld [vmem:[#allocation27 + $0x368] sm:$0xff]
    %v6785 = vld [vmem:[#allocation27 + $0x370] sm:$0xff]
    %v6786 = vld [vmem:[#allocation27 + $0x378] sm:$0xff]
    %v6787 = vld [vmem:[#allocation27 + $0x380] sm:$0xff]
    %v6788 = vld [vmem:[#allocation27 + $0x388] sm:$0xff]
    %v6789 = vld [vmem:[#allocation27 + $0x390] sm:$0xff]
    %v6790 = vld [vmem:[#allocation27 + $0x398] sm:$0xff]
    %v6791 = vld [vmem:[#allocation27 + $0x3a0] sm:$0xff]
    %v6792 = vld [vmem:[#allocation27 + $0x3a8] sm:$0xff]
    %v6793 = vld [vmem:[#allocation27 + $0x3b0] sm:$0xff]
    %v6794 = vld [vmem:[#allocation27 + $0x3b8] sm:$0xff]
    %v6795 = vld [vmem:[#allocation27 + $0x3c0] sm:$0xff]
    %v6796 = vld [vmem:[#allocation27 + $0x3c8] sm:$0xff]
    %v6797 = vld [vmem:[#allocation27 + $0x3d0] sm:$0xff]
    %v6798 = vld [vmem:[#allocation27 + $0x3d8] sm:$0xff]
    %v6799 = vld [vmem:[#allocation27 + $0x3e0] sm:$0xff]
    %v6800 = vld [vmem:[#allocation27 + $0x3e8] sm:$0xff]
    %v6801 = vld [vmem:[#allocation27 + $0x3f0] sm:$0xff]
    %v6802 = vld [vmem:[#allocation27 + $0x3f8] sm:$0xff]
    %v6931 = vunpack.c.l.b16 %v6675
    %v6932 = vunpack.c.h.b16 %v6675
    %v6933 = vunpack.c.l.b16 %v6676
    %v6934 = vunpack.c.h.b16 %v6676
    %v6935 = vunpack.c.l.b16 %v6677
    %v6936 = vunpack.c.h.b16 %v6677
    %v6937 = vunpack.c.l.b16 %v6678
    %v6938 = vunpack.c.h.b16 %v6678
    %v6939 = vunpack.c.l.b16 %v6679
    %v6940 = vunpack.c.h.b16 %v6679
    %v6941 = vunpack.c.l.b16 %v6680
    %v6942 = vunpack.c.h.b16 %v6680
    %v6943 = vunpack.c.l.b16 %v6681
    %v6944 = vunpack.c.h.b16 %v6681
    %v6945 = vunpack.c.l.b16 %v6682
    %v6946 = vunpack.c.h.b16 %v6682
    %v6947 = vunpack.c.l.b16 %v6683
    %v6948 = vunpack.c.h.b16 %v6683
    %v6949 = vunpack.c.l.b16 %v6684
    %v6950 = vunpack.c.h.b16 %v6684
    %v6951 = vunpack.c.l.b16 %v6685
    %v6952 = vunpack.c.h.b16 %v6685
    %v6953 = vunpack.c.l.b16 %v6686
    %v6954 = vunpack.c.h.b16 %v6686
    %v6955 = vunpack.c.l.b16 %v6687
    %v6956 = vunpack.c.h.b16 %v6687
    %v6957 = vunpack.c.l.b16 %v6688
    %v6958 = vunpack.c.h.b16 %v6688
    %v6959 = vunpack.c.l.b16 %v6689
    %v6960 = vunpack.c.h.b16 %v6689
    %v6961 = vunpack.c.l.b16 %v6690
    %v6962 = vunpack.c.h.b16 %v6690
    %v6963 = vunpack.c.l.b16 %v6691
    %v6964 = vunpack.c.h.b16 %v6691
    %v6965 = vunpack.c.l.b16 %v6692
    %v6966 = vunpack.c.h.b16 %v6692
    %v6967 = vunpack.c.l.b16 %v6693
    %v6968 = vunpack.c.h.b16 %v6693
    %v6969 = vunpack.c.l.b16 %v6694
    %v6970 = vunpack.c.h.b16 %v6694
    %v6971 = vunpack.c.l.b16 %v6695
    %v6972 = vunpack.c.h.b16 %v6695
    %v6973 = vunpack.c.l.b16 %v6696
    %v6974 = vunpack.c.h.b16 %v6696
    %v6975 = vunpack.c.l.b16 %v6697
    %v6976 = vunpack.c.h.b16 %v6697
    %v6977 = vunpack.c.l.b16 %v6698
    %v6978 = vunpack.c.h.b16 %v6698
    %v6979 = vunpack.c.l.b16 %v6699
    %v6980 = vunpack.c.h.b16 %v6699
    %v6981 = vunpack.c.l.b16 %v6700
    %v6982 = vunpack.c.h.b16 %v6700
    %v6983 = vunpack.c.l.b16 %v6701
    %v6984 = vunpack.c.h.b16 %v6701
    %v6985 = vunpack.c.l.b16 %v6702
    %v6986 = vunpack.c.h.b16 %v6702
    %v6987 = vunpack.c.l.b16 %v6703
    %v6988 = vunpack.c.h.b16 %v6703
    %v6989 = vunpack.c.l.b16 %v6704
    %v6990 = vunpack.c.h.b16 %v6704
    %v6991 = vunpack.c.l.b16 %v6705
    %v6992 = vunpack.c.h.b16 %v6705
    %v6993 = vunpack.c.l.b16 %v6706
    %v6994 = vunpack.c.h.b16 %v6706
    %v6995 = vunpack.c.l.b16 %v6707
    %v6996 = vunpack.c.h.b16 %v6707
    %v6997 = vunpack.c.l.b16 %v6708
    %v6998 = vunpack.c.h.b16 %v6708
    %v6999 = vunpack.c.l.b16 %v6709
    %v7000 = vunpack.c.h.b16 %v6709
    %v7001 = vunpack.c.l.b16 %v6710
    %v7002 = vunpack.c.h.b16 %v6710
    %v7003 = vunpack.c.l.b16 %v6711
    %v7004 = vunpack.c.h.b16 %v6711
    %v7005 = vunpack.c.l.b16 %v6712
    %v7006 = vunpack.c.h.b16 %v6712
    %v7007 = vunpack.c.l.b16 %v6713
    %v7008 = vunpack.c.h.b16 %v6713
    %v7009 = vunpack.c.l.b16 %v6714
    %v7010 = vunpack.c.h.b16 %v6714
    %v7011 = vunpack.c.l.b16 %v6715
    %v7012 = vunpack.c.h.b16 %v6715
    %v7013 = vunpack.c.l.b16 %v6716
    %v7014 = vunpack.c.h.b16 %v6716
    %v7015 = vunpack.c.l.b16 %v6717
    %v7016 = vunpack.c.h.b16 %v6717
    %v7017 = vunpack.c.l.b16 %v6718
    %v7018 = vunpack.c.h.b16 %v6718
    %v7019 = vunpack.c.l.b16 %v6719
    %v7020 = vunpack.c.h.b16 %v6719
    %v7021 = vunpack.c.l.b16 %v6720
    %v7022 = vunpack.c.h.b16 %v6720
    %v7023 = vunpack.c.l.b16 %v6721
    %v7024 = vunpack.c.h.b16 %v6721
    %v7025 = vunpack.c.l.b16 %v6722
    %v7026 = vunpack.c.h.b16 %v6722
    %v7027 = vunpack.c.l.b16 %v6723
    %v7028 = vunpack.c.h.b16 %v6723
    %v7029 = vunpack.c.l.b16 %v6724
    %v7030 = vunpack.c.h.b16 %v6724
    %v7031 = vunpack.c.l.b16 %v6725
    %v7032 = vunpack.c.h.b16 %v6725
    %v7033 = vunpack.c.l.b16 %v6726
    %v7034 = vunpack.c.h.b16 %v6726
    %v7035 = vunpack.c.l.b16 %v6727
    %v7036 = vunpack.c.h.b16 %v6727
    %v7037 = vunpack.c.l.b16 %v6728
    %v7038 = vunpack.c.h.b16 %v6728
    %v7039 = vunpack.c.l.b16 %v6729
    %v7040 = vunpack.c.h.b16 %v6729
    %v7041 = vunpack.c.l.b16 %v6730
    %v7042 = vunpack.c.h.b16 %v6730
    %v7043 = vunpack.c.l.b16 %v6731
    %v7044 = vunpack.c.h.b16 %v6731
    %v7045 = vunpack.c.l.b16 %v6732
    %v7046 = vunpack.c.h.b16 %v6732
    %v7047 = vunpack.c.l.b16 %v6733
    %v7048 = vunpack.c.h.b16 %v6733
    %v7049 = vunpack.c.l.b16 %v6734
    %v7050 = vunpack.c.h.b16 %v6734
    %v7051 = vunpack.c.l.b16 %v6735
    %v7052 = vunpack.c.h.b16 %v6735
    %v7053 = vunpack.c.l.b16 %v6736
    %v7054 = vunpack.c.h.b16 %v6736
    %v7055 = vunpack.c.l.b16 %v6737
    %v7056 = vunpack.c.h.b16 %v6737
    %v7057 = vunpack.c.l.b16 %v6738
    %v7058 = vunpack.c.h.b16 %v6738
    %v7059 = vunpack.c.l.b16 %v6739
    %v7060 = vunpack.c.h.b16 %v6739
    %v7061 = vunpack.c.l.b16 %v6740
    %v7062 = vunpack.c.h.b16 %v6740
    %v7063 = vunpack.c.l.b16 %v6741
    %v7064 = vunpack.c.h.b16 %v6741
    %v7065 = vunpack.c.l.b16 %v6742
    %v7066 = vunpack.c.h.b16 %v6742
    %v7067 = vunpack.c.l.b16 %v6743
    %v7068 = vunpack.c.h.b16 %v6743
    %v7069 = vunpack.c.l.b16 %v6744
    %v7070 = vunpack.c.h.b16 %v6744
    %v7071 = vunpack.c.l.b16 %v6745
    %v7072 = vunpack.c.h.b16 %v6745
    %v7073 = vunpack.c.l.b16 %v6746
    %v7074 = vunpack.c.h.b16 %v6746
    %v7075 = vunpack.c.l.b16 %v6747
    %v7076 = vunpack.c.h.b16 %v6747
    %v7077 = vunpack.c.l.b16 %v6748
    %v7078 = vunpack.c.h.b16 %v6748
    %v7079 = vunpack.c.l.b16 %v6749
    %v7080 = vunpack.c.h.b16 %v6749
    %v7081 = vunpack.c.l.b16 %v6750
    %v7082 = vunpack.c.h.b16 %v6750
    %v7083 = vunpack.c.l.b16 %v6751
    %v7084 = vunpack.c.h.b16 %v6751
    %v7085 = vunpack.c.l.b16 %v6752
    %v7086 = vunpack.c.h.b16 %v6752
    %v7087 = vunpack.c.l.b16 %v6753
    %v7088 = vunpack.c.h.b16 %v6753
    %v7089 = vunpack.c.l.b16 %v6754
    %v7090 = vunpack.c.h.b16 %v6754
    %v7091 = vunpack.c.l.b16 %v6755
    %v7092 = vunpack.c.h.b16 %v6755
    %v7093 = vunpack.c.l.b16 %v6756
    %v7094 = vunpack.c.h.b16 %v6756
    %v7095 = vunpack.c.l.b16 %v6757
    %v7096 = vunpack.c.h.b16 %v6757
    %v7097 = vunpack.c.l.b16 %v6758
    %v7098 = vunpack.c.h.b16 %v6758
    %v7099 = vunpack.c.l.b16 %v6759
    %v7100 = vunpack.c.h.b16 %v6759
    %v7101 = vunpack.c.l.b16 %v6760
    %v7102 = vunpack.c.h.b16 %v6760
    %v7103 = vunpack.c.l.b16 %v6761
    %v7104 = vunpack.c.h.b16 %v6761
    %v7105 = vunpack.c.l.b16 %v6762
    %v7106 = vunpack.c.h.b16 %v6762
    %v7107 = vunpack.c.l.b16 %v6763
    %v7108 = vunpack.c.h.b16 %v6763
    %v7109 = vunpack.c.l.b16 %v6764
    %v7110 = vunpack.c.h.b16 %v6764
    %v7111 = vunpack.c.l.b16 %v6765
    %v7112 = vunpack.c.h.b16 %v6765
    %v7113 = vunpack.c.l.b16 %v6766
    %v7114 = vunpack.c.h.b16 %v6766
    %v7115 = vunpack.c.l.b16 %v6767
    %v7116 = vunpack.c.h.b16 %v6767
    %v7117 = vunpack.c.l.b16 %v6768
    %v7118 = vunpack.c.h.b16 %v6768
    %v7119 = vunpack.c.l.b16 %v6769
    %v7120 = vunpack.c.h.b16 %v6769
    %v7121 = vunpack.c.l.b16 %v6770
    %v7122 = vunpack.c.h.b16 %v6770
    %v7123 = vunpack.c.l.b16 %v6771
    %v7124 = vunpack.c.h.b16 %v6771
    %v7125 = vunpack.c.l.b16 %v6772
    %v7126 = vunpack.c.h.b16 %v6772
    %v7127 = vunpack.c.l.b16 %v6773
    %v7128 = vunpack.c.h.b16 %v6773
    %v7129 = vunpack.c.l.b16 %v6774
    %v7130 = vunpack.c.h.b16 %v6774
    %v7131 = vunpack.c.l.b16 %v6775
    %v7132 = vunpack.c.h.b16 %v6775
    %v7133 = vunpack.c.l.b16 %v6776
    %v7134 = vunpack.c.h.b16 %v6776
    %v7135 = vunpack.c.l.b16 %v6777
    %v7136 = vunpack.c.h.b16 %v6777
    %v7137 = vunpack.c.l.b16 %v6778
    %v7138 = vunpack.c.h.b16 %v6778
    %v7139 = vunpack.c.l.b16 %v6779
    %v7140 = vunpack.c.h.b16 %v6779
    %v7141 = vunpack.c.l.b16 %v6780
    %v7142 = vunpack.c.h.b16 %v6780
    %v7143 = vunpack.c.l.b16 %v6781
    %v7144 = vunpack.c.h.b16 %v6781
    %v7145 = vunpack.c.l.b16 %v6782
    %v7146 = vunpack.c.h.b16 %v6782
    %v7147 = vunpack.c.l.b16 %v6783
    %v7148 = vunpack.c.h.b16 %v6783
    %v7149 = vunpack.c.l.b16 %v6784
    %v7150 = vunpack.c.h.b16 %v6784
    %v7151 = vunpack.c.l.b16 %v6785
    %v7152 = vunpack.c.h.b16 %v6785
    %v7153 = vunpack.c.l.b16 %v6786
    %v7154 = vunpack.c.h.b16 %v6786
    %v7155 = vunpack.c.l.b16 %v6787
    %v7156 = vunpack.c.h.b16 %v6787
    %v7157 = vunpack.c.l.b16 %v6788
    %v7158 = vunpack.c.h.b16 %v6788
    %v7159 = vunpack.c.l.b16 %v6789
    %v7160 = vunpack.c.h.b16 %v6789
    %v7161 = vunpack.c.l.b16 %v6790
    %v7162 = vunpack.c.h.b16 %v6790
    %v7163 = vunpack.c.l.b16 %v6791
    %v7164 = vunpack.c.h.b16 %v6791
    %v7165 = vunpack.c.l.b16 %v6792
    %v7166 = vunpack.c.h.b16 %v6792
    %v7167 = vunpack.c.l.b16 %v6793
    %v7168 = vunpack.c.h.b16 %v6793
    %v7169 = vunpack.c.l.b16 %v6794
    %v7170 = vunpack.c.h.b16 %v6794
    %v7171 = vunpack.c.l.b16 %v6795
    %v7172 = vunpack.c.h.b16 %v6795
    %v7173 = vunpack.c.l.b16 %v6796
    %v7174 = vunpack.c.h.b16 %v6796
    %v7175 = vunpack.c.l.b16 %v6797
    %v7176 = vunpack.c.h.b16 %v6797
    %v7177 = vunpack.c.l.b16 %v6798
    %v7178 = vunpack.c.h.b16 %v6798
    %v7179 = vunpack.c.l.b16 %v6799
    %v7180 = vunpack.c.h.b16 %v6799
    %v7181 = vunpack.c.l.b16 %v6800
    %v7182 = vunpack.c.h.b16 %v6800
    %v7183 = vunpack.c.l.b16 %v6801
    %v7184 = vunpack.c.h.b16 %v6801
    %v7185 = vunpack.c.l.b16 %v6802
    %v7186 = vunpack.c.h.b16 %v6802
    %v7187 = vpack.c.b16 %v6935, %v6931
    %v7188 = vpack.c.b16 %v6936, %v6932
    %v7189 = vpack.c.b16 %v6937, %v6933
    %v7190 = vpack.c.b16 %v6938, %v6934
    %v7191 = vpack.c.b16 %v6943, %v6939
    %v7192 = vpack.c.b16 %v6944, %v6940
    %v7193 = vpack.c.b16 %v6945, %v6941
    %v7194 = vpack.c.b16 %v6946, %v6942
    %v7195 = vpack.c.b16 %v6951, %v6947
    %v7196 = vpack.c.b16 %v6952, %v6948
    %v7197 = vpack.c.b16 %v6953, %v6949
    %v7198 = vpack.c.b16 %v6954, %v6950
    %v7199 = vpack.c.b16 %v6959, %v6955
    %v7200 = vpack.c.b16 %v6960, %v6956
    %v7201 = vpack.c.b16 %v6961, %v6957
    %v7202 = vpack.c.b16 %v6962, %v6958
    %v7203 = vpack.c.b16 %v6967, %v6963
    %v7204 = vpack.c.b16 %v6968, %v6964
    %v7205 = vpack.c.b16 %v6969, %v6965
    %v7206 = vpack.c.b16 %v6970, %v6966
    %v7207 = vpack.c.b16 %v6975, %v6971
    %v7208 = vpack.c.b16 %v6976, %v6972
    %v7209 = vpack.c.b16 %v6977, %v6973
    %v7210 = vpack.c.b16 %v6978, %v6974
    %v7211 = vpack.c.b16 %v6983, %v6979
    %v7212 = vpack.c.b16 %v6984, %v6980
    %v7213 = vpack.c.b16 %v6985, %v6981
    %v7214 = vpack.c.b16 %v6986, %v6982
    %v7215 = vpack.c.b16 %v6991, %v6987
    %v7216 = vpack.c.b16 %v6992, %v6988
    %v7217 = vpack.c.b16 %v6993, %v6989
    %v7218 = vpack.c.b16 %v6994, %v6990
    %v7219 = vpack.c.b16 %v6999, %v6995
    %v7220 = vpack.c.b16 %v7000, %v6996
    %v7221 = vpack.c.b16 %v7001, %v6997
    %v7222 = vpack.c.b16 %v7002, %v6998
    %v7223 = vpack.c.b16 %v7007, %v7003
    %v7224 = vpack.c.b16 %v7008, %v7004
    %v7225 = vpack.c.b16 %v7009, %v7005
    %v7226 = vpack.c.b16 %v7010, %v7006
    %v7227 = vpack.c.b16 %v7015, %v7011
    %v7228 = vpack.c.b16 %v7016, %v7012
    %v7229 = vpack.c.b16 %v7017, %v7013
    %v7230 = vpack.c.b16 %v7018, %v7014
    %v7231 = vpack.c.b16 %v7023, %v7019
    %v7232 = vpack.c.b16 %v7024, %v7020
    %v7233 = vpack.c.b16 %v7025, %v7021
    %v7234 = vpack.c.b16 %v7026, %v7022
    %v7235 = vpack.c.b16 %v7031, %v7027
    %v7236 = vpack.c.b16 %v7032, %v7028
    %v7237 = vpack.c.b16 %v7033, %v7029
    %v7238 = vpack.c.b16 %v7034, %v7030
    %v7239 = vpack.c.b16 %v7039, %v7035
    %v7240 = vpack.c.b16 %v7040, %v7036
    %v7241 = vpack.c.b16 %v7041, %v7037
    %v7242 = vpack.c.b16 %v7042, %v7038
    %v7243 = vpack.c.b16 %v7047, %v7043
    %v7244 = vpack.c.b16 %v7048, %v7044
    %v7245 = vpack.c.b16 %v7049, %v7045
    %v7246 = vpack.c.b16 %v7050, %v7046
    %v7247 = vpack.c.b16 %v7055, %v7051
    %v7248 = vpack.c.b16 %v7056, %v7052
    %v7249 = vpack.c.b16 %v7057, %v7053
    %v7250 = vpack.c.b16 %v7058, %v7054
    %v7251 = vpack.c.b16 %v7063, %v7059
    %v7252 = vpack.c.b16 %v7064, %v7060
    %v7253 = vpack.c.b16 %v7065, %v7061
    %v7254 = vpack.c.b16 %v7066, %v7062
    %v7255 = vpack.c.b16 %v7071, %v7067
    %v7256 = vpack.c.b16 %v7072, %v7068
    %v7257 = vpack.c.b16 %v7073, %v7069
    %v7258 = vpack.c.b16 %v7074, %v7070
    %v7259 = vpack.c.b16 %v7079, %v7075
    %v7260 = vpack.c.b16 %v7080, %v7076
    %v7261 = vpack.c.b16 %v7081, %v7077
    %v7262 = vpack.c.b16 %v7082, %v7078
    %v7263 = vpack.c.b16 %v7087, %v7083
    %v7264 = vpack.c.b16 %v7088, %v7084
    %v7265 = vpack.c.b16 %v7089, %v7085
    %v7266 = vpack.c.b16 %v7090, %v7086
    %v7267 = vpack.c.b16 %v7095, %v7091
    %v7268 = vpack.c.b16 %v7096, %v7092
    %v7269 = vpack.c.b16 %v7097, %v7093
    %v7270 = vpack.c.b16 %v7098, %v7094
    %v7271 = vpack.c.b16 %v7103, %v7099
    %v7272 = vpack.c.b16 %v7104, %v7100
    %v7273 = vpack.c.b16 %v7105, %v7101
    %v7274 = vpack.c.b16 %v7106, %v7102
    %v7275 = vpack.c.b16 %v7111, %v7107
    %v7276 = vpack.c.b16 %v7112, %v7108
    %v7277 = vpack.c.b16 %v7113, %v7109
    %v7278 = vpack.c.b16 %v7114, %v7110
    %v7279 = vpack.c.b16 %v7119, %v7115
    %v7280 = vpack.c.b16 %v7120, %v7116
    %v7281 = vpack.c.b16 %v7121, %v7117
    %v7282 = vpack.c.b16 %v7122, %v7118
    %v7283 = vpack.c.b16 %v7127, %v7123
    %v7284 = vpack.c.b16 %v7128, %v7124
    %v7285 = vpack.c.b16 %v7129, %v7125
    %v7286 = vpack.c.b16 %v7130, %v7126
    %v7287 = vpack.c.b16 %v7135, %v7131
    %v7288 = vpack.c.b16 %v7136, %v7132
    %v7289 = vpack.c.b16 %v7137, %v7133
    %v7290 = vpack.c.b16 %v7138, %v7134
    %v7291 = vpack.c.b16 %v7143, %v7139
    %v7292 = vpack.c.b16 %v7144, %v7140
    %v7293 = vpack.c.b16 %v7145, %v7141
    %v7294 = vpack.c.b16 %v7146, %v7142
    %v7295 = vpack.c.b16 %v7151, %v7147
    %v7296 = vpack.c.b16 %v7152, %v7148
    %v7297 = vpack.c.b16 %v7153, %v7149
    %v7298 = vpack.c.b16 %v7154, %v7150
    %v7299 = vpack.c.b16 %v7159, %v7155
    %v7300 = vpack.c.b16 %v7160, %v7156
    %v7301 = vpack.c.b16 %v7161, %v7157
    %v7302 = vpack.c.b16 %v7162, %v7158
    %v7303 = vpack.c.b16 %v7167, %v7163
    %v7304 = vpack.c.b16 %v7168, %v7164
    %v7305 = vpack.c.b16 %v7169, %v7165
    %v7306 = vpack.c.b16 %v7170, %v7166
    %v7307 = vpack.c.b16 %v7175, %v7171
    %v7308 = vpack.c.b16 %v7176, %v7172
    %v7309 = vpack.c.b16 %v7177, %v7173
    %v7310 = vpack.c.b16 %v7178, %v7174
    %v7311 = vpack.c.b16 %v7183, %v7179
    %v7312 = vpack.c.b16 %v7184, %v7180
    %v7313 = vpack.c.b16 %v7185, %v7181
    %v7314 = vpack.c.b16 %v7186, %v7182
    %7443 = vmatpush.bf16.msra.mxu0 %v7215
    %7444 = vmatpush.bf16.msra.mxu0 %v7211
    %7445 = vmatpush.bf16.msra.mxu0 %v7207
    %7446 = vmatpush.bf16.msra.mxu0 %v7203
    %7447 = vmatpush.bf16.msra.mxu0 %v7199
    %7448 = vmatpush.bf16.msra.mxu0 %v7195
    %7449 = vmatpush.bf16.msra.mxu0 %v7191
    %7450 = vmatpush.bf16.msra.mxu0 %v7187
    %7451 = vmatmul.bf16.gmra.mxu0 %v6671
    %v7452 = vpop.f32.mrf.mxu0
    %v7453 = vadd.f32 0.0, %v7452
    %v7454 = vpop.f32.mrf.mxu0
    %v7455 = vadd.f32 0.0, %v7454
    %7456 = vdwg.mxu0
    %7457 = vmatpush.bf16.msra.mxu0 %v7247
    %7458 = vmatpush.bf16.msra.mxu0 %v7243
    %7459 = vmatpush.bf16.msra.mxu0 %v7239
    %7460 = vmatpush.bf16.msra.mxu0 %v7235
    %7461 = vmatpush.bf16.msra.mxu0 %v7231
    %7462 = vmatpush.bf16.msra.mxu0 %v7227
    %7463 = vmatpush.bf16.msra.mxu0 %v7223
    %7464 = vmatpush.bf16.msra.mxu0 %v7219
    %7465 = vmatmul.bf16.gmra.mxu0 %v6672
    %v7466 = vpop.f32.mrf.mxu0
    %v7467 = vadd.f32 %v7453, %v7466
    %v7468 = vpop.f32.mrf.mxu0
    %v7469 = vadd.f32 %v7455, %v7468
    %7470 = vdwg.mxu0
    %7471 = vmatpush.bf16.msra.mxu0 %v7279
    %7472 = vmatpush.bf16.msra.mxu0 %v7275
    %7473 = vmatpush.bf16.msra.mxu0 %v7271
    %7474 = vmatpush.bf16.msra.mxu0 %v7267
    %7475 = vmatpush.bf16.msra.mxu0 %v7263
    %7476 = vmatpush.bf16.msra.mxu0 %v7259
    %7477 = vmatpush.bf16.msra.mxu0 %v7255
    %7478 = vmatpush.bf16.msra.mxu0 %v7251
    %7479 = vmatmul.bf16.gmra.mxu0 %v6673
    %v7480 = vpop.f32.mrf.mxu0
    %v7481 = vadd.f32 %v7467, %v7480
    %v7482 = vpop.f32.mrf.mxu0
    %v7483 = vadd.f32 %v7469, %v7482
    %7484 = vdwg.mxu0
    %7485 = vmatpush.bf16.msra.mxu0 %v7311
    %7486 = vmatpush.bf16.msra.mxu0 %v7307
    %7487 = vmatpush.bf16.msra.mxu0 %v7303
    %7488 = vmatpush.bf16.msra.mxu0 %v7299
    %7489 = vmatpush.bf16.msra.mxu0 %v7295
    %7490 = vmatpush.bf16.msra.mxu0 %v7291
    %7491 = vmatpush.bf16.msra.mxu0 %v7287
    %7492 = vmatpush.bf16.msra.mxu0 %v7283
    %7493 = vmatmul.bf16.gmra.mxu0 %v6674
    %v7494 = vpop.f32.mrf.mxu0
    %v7495 = vadd.f32 %v7481, %v7494
    %v7496 = vpop.f32.mrf.mxu0
    %v7497 = vadd.f32 %v7483, %v7496
    %7498 = vdwg.mxu0
    %7499 = vmatpush.bf16.msra.mxu0 %v7216
    %7500 = vmatpush.bf16.msra.mxu0 %v7212
    %7501 = vmatpush.bf16.msra.mxu0 %v7208
    %7502 = vmatpush.bf16.msra.mxu0 %v7204
    %7503 = vmatpush.bf16.msra.mxu0 %v7200
    %7504 = vmatpush.bf16.msra.mxu0 %v7196
    %7505 = vmatpush.bf16.msra.mxu0 %v7192
    %7506 = vmatpush.bf16.msra.mxu0 %v7188
    %7507 = vmatmul.bf16.gmra.mxu0 %v6671
    %v7508 = vpop.f32.mrf.mxu0
    %v7509 = vadd.f32 0.0, %v7508
    %v7510 = vpop.f32.mrf.mxu0
    %v7511 = vadd.f32 0.0, %v7510
    %7512 = vdwg.mxu0
    %7513 = vmatpush.bf16.msra.mxu0 %v7248
    %7514 = vmatpush.bf16.msra.mxu0 %v7244
    %7515 = vmatpush.bf16.msra.mxu0 %v7240
    %7516 = vmatpush.bf16.msra.mxu0 %v7236
    %7517 = vmatpush.bf16.msra.mxu0 %v7232
    %7518 = vmatpush.bf16.msra.mxu0 %v7228
    %7519 = vmatpush.bf16.msra.mxu0 %v7224
    %7520 = vmatpush.bf16.msra.mxu0 %v7220
    %7521 = vmatmul.bf16.gmra.mxu0 %v6672
    %v7522 = vpop.f32.mrf.mxu0
    %v7523 = vadd.f32 %v7509, %v7522
    %v7524 = vpop.f32.mrf.mxu0
    %v7525 = vadd.f32 %v7511, %v7524
    %7526 = vdwg.mxu0
    %7527 = vmatpush.bf16.msra.mxu0 %v7280
    %7528 = vmatpush.bf16.msra.mxu0 %v7276
    %7529 = vmatpush.bf16.msra.mxu0 %v7272
    %7530 = vmatpush.bf16.msra.mxu0 %v7268
    %7531 = vmatpush.bf16.msra.mxu0 %v7264
    %7532 = vmatpush.bf16.msra.mxu0 %v7260
    %7533 = vmatpush.bf16.msra.mxu0 %v7256
    %7534 = vmatpush.bf16.msra.mxu0 %v7252
    %7535 = vmatmul.bf16.gmra.mxu0 %v6673
    %v7536 = vpop.f32.mrf.mxu0
    %v7537 = vadd.f32 %v7523, %v7536
    %v7538 = vpop.f32.mrf.mxu0
    %v7539 = vadd.f32 %v7525, %v7538
    %7540 = vdwg.mxu0
    %7541 = vmatpush.bf16.msra.mxu0 %v7312
    %7542 = vmatpush.bf16.msra.mxu0 %v7308
    %7543 = vmatpush.bf16.msra.mxu0 %v7304
    %7544 = vmatpush.bf16.msra.mxu0 %v7300
    %7545 = vmatpush.bf16.msra.mxu0 %v7296
    %7546 = vmatpush.bf16.msra.mxu0 %v7292
    %7547 = vmatpush.bf16.msra.mxu0 %v7288
    %7548 = vmatpush.bf16.msra.mxu0 %v7284
    %7549 = vmatmul.bf16.gmra.mxu0 %v6674
    %v7550 = vpop.f32.mrf.mxu0
    %v7551 = vadd.f32 %v7537, %v7550
    %v7552 = vpop.f32.mrf.mxu0
    %v7553 = vadd.f32 %v7539, %v7552
    %7554 = vdwg.mxu0
    %7555 = vmatpush.bf16.msra.mxu0 %v7217
    %7556 = vmatpush.bf16.msra.mxu0 %v7213
    %7557 = vmatpush.bf16.msra.mxu0 %v7209
    %7558 = vmatpush.bf16.msra.mxu0 %v7205
    %7559 = vmatpush.bf16.msra.mxu0 %v7201
    %7560 = vmatpush.bf16.msra.mxu0 %v7197
    %7561 = vmatpush.bf16.msra.mxu0 %v7193
    %7562 = vmatpush.bf16.msra.mxu0 %v7189
    %7563 = vmatmul.bf16.gmra.mxu0 %v6671
    %v7564 = vpop.f32.mrf.mxu0
    %v7565 = vadd.f32 0.0, %v7564
    %v7566 = vpop.f32.mrf.mxu0
    %v7567 = vadd.f32 0.0, %v7566
    %7568 = vdwg.mxu0
    %7569 = vmatpush.bf16.msra.mxu0 %v7249
    %7570 = vmatpush.bf16.msra.mxu0 %v7245
    %7571 = vmatpush.bf16.msra.mxu0 %v7241
    %7572 = vmatpush.bf16.msra.mxu0 %v7237
    %7573 = vmatpush.bf16.msra.mxu0 %v7233
    %7574 = vmatpush.bf16.msra.mxu0 %v7229
    %7575 = vmatpush.bf16.msra.mxu0 %v7225
    %7576 = vmatpush.bf16.msra.mxu0 %v7221
    %7577 = vmatmul.bf16.gmra.mxu0 %v6672
    %v7578 = vpop.f32.mrf.mxu0
    %v7579 = vadd.f32 %v7565, %v7578
    %v7580 = vpop.f32.mrf.mxu0
    %v7581 = vadd.f32 %v7567, %v7580
    %7582 = vdwg.mxu0
    %7583 = vmatpush.bf16.msra.mxu0 %v7281
    %7584 = vmatpush.bf16.msra.mxu0 %v7277
    %7585 = vmatpush.bf16.msra.mxu0 %v7273
    %7586 = vmatpush.bf16.msra.mxu0 %v7269
    %7587 = vmatpush.bf16.msra.mxu0 %v7265
    %7588 = vmatpush.bf16.msra.mxu0 %v7261
    %7589 = vmatpush.bf16.msra.mxu0 %v7257
    %7590 = vmatpush.bf16.msra.mxu0 %v7253
    %7591 = vmatmul.bf16.gmra.mxu0 %v6673
    %v7592 = vpop.f32.mrf.mxu0
    %v7593 = vadd.f32 %v7579, %v7592
    %v7594 = vpop.f32.mrf.mxu0
    %v7595 = vadd.f32 %v7581, %v7594
    %7596 = vdwg.mxu0
    %7597 = vmatpush.bf16.msra.mxu0 %v7313
    %7598 = vmatpush.bf16.msra.mxu0 %v7309
    %7599 = vmatpush.bf16.msra.mxu0 %v7305
    %7600 = vmatpush.bf16.msra.mxu0 %v7301
    %7601 = vmatpush.bf16.msra.mxu0 %v7297
    %7602 = vmatpush.bf16.msra.mxu0 %v7293
    %7603 = vmatpush.bf16.msra.mxu0 %v7289
    %7604 = vmatpush.bf16.msra.mxu0 %v7285
    %7605 = vmatmul.bf16.gmra.mxu0 %v6674
    %v7606 = vpop.f32.mrf.mxu0
    %v7607 = vadd.f32 %v7593, %v7606
    %v7608 = vpop.f32.mrf.mxu0
    %v7609 = vadd.f32 %v7595, %v7608
    %7610 = vdwg.mxu0
    %7611 = vmatpush.bf16.msra.mxu0 %v7218
    %7612 = vmatpush.bf16.msra.mxu0 %v7214
    %7613 = vmatpush.bf16.msra.mxu0 %v7210
    %7614 = vmatpush.bf16.msra.mxu0 %v7206
    %7615 = vmatpush.bf16.msra.mxu0 %v7202
    %7616 = vmatpush.bf16.msra.mxu0 %v7198
    %7617 = vmatpush.bf16.msra.mxu0 %v7194
    %7618 = vmatpush.bf16.msra.mxu0 %v7190
    %7619 = vmatmul.bf16.gmra.mxu0 %v6671
    %v7620 = vpop.f32.mrf.mxu0
    %v7621 = vadd.f32 0.0, %v7620
    %v7622 = vpop.f32.mrf.mxu0
    %v7623 = vadd.f32 0.0, %v7622
    %7624 = vdwg.mxu0
    %7625 = vmatpush.bf16.msra.mxu0 %v7250
    %7626 = vmatpush.bf16.msra.mxu0 %v7246
    %7627 = vmatpush.bf16.msra.mxu0 %v7242
    %7628 = vmatpush.bf16.msra.mxu0 %v7238
    %7629 = vmatpush.bf16.msra.mxu0 %v7234
    %7630 = vmatpush.bf16.msra.mxu0 %v7230
    %7631 = vmatpush.bf16.msra.mxu0 %v7226
    %7632 = vmatpush.bf16.msra.mxu0 %v7222
    %7633 = vmatmul.bf16.gmra.mxu0 %v6672
    %v7634 = vpop.f32.mrf.mxu0
    %v7635 = vadd.f32 %v7621, %v7634
    %v7636 = vpop.f32.mrf.mxu0
    %v7637 = vadd.f32 %v7623, %v7636
    %7638 = vdwg.mxu0
    %7639 = vmatpush.bf16.msra.mxu0 %v7282
    %7640 = vmatpush.bf16.msra.mxu0 %v7278
    %7641 = vmatpush.bf16.msra.mxu0 %v7274
    %7642 = vmatpush.bf16.msra.mxu0 %v7270
    %7643 = vmatpush.bf16.msra.mxu0 %v7266
    %7644 = vmatpush.bf16.msra.mxu0 %v7262
    %7645 = vmatpush.bf16.msra.mxu0 %v7258
    %7646 = vmatpush.bf16.msra.mxu0 %v7254
    %7647 = vmatmul.bf16.gmra.mxu0 %v6673
    %v7648 = vpop.f32.mrf.mxu0
    %v7649 = vadd.f32 %v7635, %v7648
    %v7650 = vpop.f32.mrf.mxu0
    %v7651 = vadd.f32 %v7637, %v7650
    %7652 = vdwg.mxu0
    %7653 = vmatpush.bf16.msra.mxu0 %v7314
    %7654 = vmatpush.bf16.msra.mxu0 %v7310
    %7655 = vmatpush.bf16.msra.mxu0 %v7306
    %7656 = vmatpush.bf16.msra.mxu0 %v7302
    %7657 = vmatpush.bf16.msra.mxu0 %v7298
    %7658 = vmatpush.bf16.msra.mxu0 %v7294
    %7659 = vmatpush.bf16.msra.mxu0 %v7290
    %7660 = vmatpush.bf16.msra.mxu0 %v7286
    %7661 = vmatmul.bf16.gmra.mxu0 %v6674
    %v7662 = vpop.f32.mrf.mxu0
    %v7663 = vadd.f32 %v7649, %v7662
    %v7664 = vpop.f32.mrf.mxu0
    %v7665 = vadd.f32 %v7651, %v7664
    %7666 = vdwg.mxu0
    %v7667 = vadd.f32 %v6147, %v7495
    %v7668 = vadd.f32 %v6203, %v7551
    %v7669 = vadd.f32 %v6259, %v7607
    %v7670 = vadd.f32 %v6315, %v7663
    %v7671 = vadd.f32 %v6149, %v7497
    %v7672 = vadd.f32 %v6205, %v7553
    %v7673 = vadd.f32 %v6261, %v7609
    %v7674 = vadd.f32 %v6317, %v7665
    %v7675 = vld [vmem:[%s23] sm:$0xf]
    %v7676 = vld [vmem:[%s24] sm:$0xf]
    %v7677 = vadd.f32 %v7667, %v7668
    %v7678 = vadd.f32 %v7677, %v7669
    %v7679 = vadd.f32 %v7678, %v7670
    %7680 = vadd.xlane.f32.xlu0 %v7679
    %v7681 = vpop.xlane.xlu0 %7680
    %v7682 = vadd.f32 %v7671, %v7672
    %v7683 = vadd.f32 %v7682, %v7673
    %v7684 = vadd.f32 %v7683, %v7674
    %7685 = vadd.xlane.f32.xlu0 %v7684
    %v7686 = vpop.xlane.xlu0 %7685
    %v7687 = vmul.f32 %v7681, %v3031
    %v7688 = vmul.f32 %v7686, %v3031
    %v7689 = vsub.f32 %v7667, %v7687
    %v7690 = vsub.f32 %v7668, %v7687
    %v7691 = vsub.f32 %v7669, %v7687
    %v7692 = vsub.f32 %v7670, %v7687
    %v7693 = vsub.f32 %v7671, %v7688
    %v7694 = vsub.f32 %v7672, %v7688
    %v7695 = vsub.f32 %v7673, %v7688
    %v7696 = vsub.f32 %v7674, %v7688
    %v7697 = vmul.f32 %v7689, %v7689
    %v7698 = vmul.f32 %v7690, %v7690
    %v7699 = vmul.f32 %v7691, %v7691
    %v7700 = vmul.f32 %v7692, %v7692
    %v7701 = vmul.f32 %v7693, %v7693
    %v7702 = vmul.f32 %v7694, %v7694
    %v7703 = vmul.f32 %v7695, %v7695
    %v7704 = vmul.f32 %v7696, %v7696
    %v7705 = vadd.f32 %v7697, %v7698
    %v7706 = vadd.f32 %v7705, %v7699
    %v7707 = vadd.f32 %v7706, %v7700
    %7708 = vadd.xlane.f32.xlu0 %v7707
    %v7709 = vpop.xlane.xlu0 %7708
    %v7710 = vadd.f32 %v7701, %v7702
    %v7711 = vadd.f32 %v7710, %v7703
    %v7712 = vadd.f32 %v7711, %v7704
    %7713 = vadd.xlane.f32.xlu0 %v7712
    %v7714 = vpop.xlane.xlu0 %7713
    %v7715 = vmul.f32 %v7709, %v3031
    %v7716 = vmul.f32 %v7714, %v3031
    %v7717 = vadd.f32 %v7715, 1e-05
    %v7718 = vadd.f32 %v7716, 1e-05
    %v7719 = vrsqrt.pop %v7717
    %v7720 = vmul.f32 %v7719, %v7717
    %v7721 = vmul.f32 %v7720, %v7719
    %v7722 = vmul.f32 0.5, %v7721
    %v7723 = vsub.f32 1.5, %v7722
    %v7724 = vmul.f32 %v7719, %v7723
    %vm7725 = vweird.f32 %v7717
    %vm7726 = vweird.f32 %v7719
    %vm7727 = vmor %vm7725, %vm7726
    %v7728 = vsel %vm7727, %v7719, %v7724
    %v7729 = vrsqrt.pop %v7718
    %v7730 = vmul.f32 %v7729, %v7718
    %v7731 = vmul.f32 %v7730, %v7729
    %v7732 = vmul.f32 0.5, %v7731
    %v7733 = vsub.f32 1.5, %v7732
    %v7734 = vmul.f32 %v7729, %v7733
    %vm7735 = vweird.f32 %v7718
    %vm7736 = vweird.f32 %v7729
    %vm7737 = vmor %vm7735, %vm7736
    %v7738 = vsel %vm7737, %v7729, %v7734
    %v7739 = vmul.f32 %v7689, %v7728
    %v7740 = vmul.f32 %v7690, %v7728
    %v7741 = vmul.f32 %v7691, %v7728
    %v7742 = vmul.f32 %v7692, %v7728
    %v7743 = vmul.f32 %v7693, %v7738
    %v7744 = vmul.f32 %v7694, %v7738
    %v7745 = vmul.f32 %v7695, %v7738
    %v7746 = vmul.f32 %v7696, %v7738
    %v7748 = vperm.slane %v7675, 0
    %v7749 = vperm.slane %v7675, 1
    %v7750 = vperm.slane %v7675, 2
    %v7751 = vperm.slane %v7675, 3
    %v7756 = vmul.f32 %v7739, %v7748
    %v7757 = vmul.f32 %v7740, %v7749
    %v7758 = vmul.f32 %v7741, %v7750
    %v7759 = vmul.f32 %v7742, %v7751
    %v7760 = vmul.f32 %v7743, %v7748
    %v7761 = vmul.f32 %v7744, %v7749
    %v7762 = vmul.f32 %v7745, %v7750
    %v7763 = vmul.f32 %v7746, %v7751
    %v7765 = vperm.slane %v7676, 0
    %v7766 = vperm.slane %v7676, 1
    %v7767 = vperm.slane %v7676, 2
    %v7768 = vperm.slane %v7676, 3
    %v7773 = vadd.f32 %v7756, %v7765
    %v7774 = vadd.f32 %v7757, %v7766
    %v7775 = vadd.f32 %v7758, %v7767
    %v7776 = vadd.f32 %v7759, %v7768
    %v7777 = vadd.f32 %v7760, %v7765
    %v7778 = vadd.f32 %v7761, %v7766
    %v7779 = vadd.f32 %v7762, %v7767
    %v7780 = vadd.f32 %v7763, %v7768
    %v7781 = vpack.c.bf16 %v3108, %v5311
    %v7782 = vpack.c.bf16 %v3109, %v5312
    %v7783 = vpack.c.bf16 %v3110, %v5313
    %v7784 = vpack.c.bf16 %v3111, %v5314
    %v7785 = vpack.c.bf16 %v7777, %v7773
    %v7786 = vpack.c.bf16 %v7778, %v7774
    %v7787 = vpack.c.bf16 %v7779, %v7775
    %v7788 = vpack.c.bf16 %v7780, %v7776
    %7789 = vmatpush.bf16.xpose.msra.mxu0 0
    %7790 = vmatpush.bf16.xpose.msra.mxu0 0
    %7791 = vmatpush.bf16.xpose.msra.mxu0 0
    %7792 = vmatpush.bf16.xpose.msra.mxu0 0
    %7793 = vmatpush.bf16.xpose.msra.mxu0 0
    %7794 = vmatpush.bf16.xpose.msra.mxu0 0
    %7795 = vmatpush.bf16.xpose.msra.mxu0 0
    %7796 = vmatpush.bf16.xpose.msra.mxu0 %v7785
    %7797 = vmatmul.bf16.gmra.mxu0 %v7781
    %v7798 = vpop.f32.mrf.mxu0
    %v7799 = vadd.f32 0.0, %v7798
    %v7800 = vpop.f32.mrf.mxu0
    %v7801 = vadd.f32 0.0, %v7800
    %7802 = vdwg.mxu0
    %7803 = vmatpush.bf16.xpose.msra.mxu0 0
    %7804 = vmatpush.bf16.xpose.msra.mxu0 0
    %7805 = vmatpush.bf16.xpose.msra.mxu0 0
    %7806 = vmatpush.bf16.xpose.msra.mxu0 0
    %7807 = vmatpush.bf16.xpose.msra.mxu0 0
    %7808 = vmatpush.bf16.xpose.msra.mxu0 0
    %7809 = vmatpush.bf16.xpose.msra.mxu0 0
    %7810 = vmatpush.bf16.xpose.msra.mxu0 %v7786
    %7811 = vmatmul.bf16.gmra.mxu0 %v7782
    %v7812 = vpop.f32.mrf.mxu0
    %v7813 = vadd.f32 %v7799, %v7812
    %v7814 = vpop.f32.mrf.mxu0
    %v7815 = vadd.f32 %v7801, %v7814
    %7816 = vdwg.mxu0
    %7817 = vmatpush.bf16.xpose.msra.mxu0 0
    %7818 = vmatpush.bf16.xpose.msra.mxu0 0
    %7819 = vmatpush.bf16.xpose.msra.mxu0 0
    %7820 = vmatpush.bf16.xpose.msra.mxu0 0
    %7821 = vmatpush.bf16.xpose.msra.mxu0 0
    %7822 = vmatpush.bf16.xpose.msra.mxu0 0
    %7823 = vmatpush.bf16.xpose.msra.mxu0 0
    %7824 = vmatpush.bf16.xpose.msra.mxu0 %v7787
    %7825 = vmatmul.bf16.gmra.mxu0 %v7783
    %v7826 = vpop.f32.mrf.mxu0
    %v7827 = vadd.f32 %v7813, %v7826
    %v7828 = vpop.f32.mrf.mxu0
    %v7829 = vadd.f32 %v7815, %v7828
    %7830 = vdwg.mxu0
    %7831 = vmatpush.bf16.xpose.msra.mxu0 0
    %7832 = vmatpush.bf16.xpose.msra.mxu0 0
    %7833 = vmatpush.bf16.xpose.msra.mxu0 0
    %7834 = vmatpush.bf16.xpose.msra.mxu0 0
    %7835 = vmatpush.bf16.xpose.msra.mxu0 0
    %7836 = vmatpush.bf16.xpose.msra.mxu0 0
    %7837 = vmatpush.bf16.xpose.msra.mxu0 0
    %7838 = vmatpush.bf16.xpose.msra.mxu0 %v7788
    %7839 = vmatmul.bf16.gmra.mxu0 %v7784
    %v7840 = vpop.f32.mrf.mxu0
    %v7841 = vadd.f32 %v7827, %v7840
    %v7842 = vpop.f32.mrf.mxu0
    %v7843 = vadd.f32 %v7829, %v7842
    %7844 = vdwg.mxu0
    %v7845 = vstv %s316
    %v7846 = vmul.f32 %v7841, %v7845
    %v7847 = vmul.f32 %v7846, %v7846
    %vm7848 = vcmask 130048
    %v7849 = vsel %vm7848, %v7847, 0.0
    %7850 = vadd.xlane.f32.xlu0 %v7849
    %v7851 = vpop.xlane.xlu0 %7850
    %v7852 = vadd.f32 %v7851, 1e-12
    %v7853 = vrsqrt.pop %v7852
    %v7854 = vmul.f32 %v7853, %v7852
    %v7855 = vmul.f32 %v7854, %v7853
    %v7856 = vmul.f32 0.5, %v7855
    %v7857 = vsub.f32 1.5, %v7856
    %v7858 = vmul.f32 %v7853, %v7857
    %vm7859 = vweird.f32 %v7852
    %vm7860 = vweird.f32 %v7853
    %vm7861 = vmor %vm7859, %vm7860
    %v7862 = vsel %vm7861, %v7853, %v7858
    %v7863 = vmul.f32 %v7846, %v7862
    %v7864 = vstv %s317
    %v7865 = vmul.f32 %v7843, %v7864
    %v7866 = vmul.f32 %v7865, %v7865
    %v7867 = vsel %vm7848, %v7866, 0.0
    %7868 = vadd.xlane.f32.xlu0 %v7867
    %v7869 = vpop.xlane.xlu0 %7868
    %v7870 = vadd.f32 %v7869, 1e-12
    %v7871 = vrsqrt.pop %v7870
    %v7872 = vmul.f32 %v7871, %v7870
    %v7873 = vmul.f32 %v7872, %v7871
    %v7874 = vmul.f32 0.5, %v7873
    %v7875 = vsub.f32 1.5, %v7874
    %v7876 = vmul.f32 %v7871, %v7875
    %vm7877 = vweird.f32 %v7870
    %vm7878 = vweird.f32 %v7871
    %vm7879 = vmor %vm7877, %vm7878
    %v7880 = vsel %vm7879, %v7871, %v7876
    %v7881 = vmul.f32 %v7865, %v7880
    %v7882 = vmul.f32 %v7863, 0.5
    %v7883 = vmul.f32 %v7881, 0.5
    %v7884 = vadd.f32 %v7882, %v7883
    %v7885 = vmul.f32 %v7884, %v7884
    %v7886 = vsel %vm7848, %v7885, 0.0
    %7887 = vadd.xlane.f32.xlu0 %v7886
    %v7888 = vpop.xlane.xlu0 %7887
    %v7889 = vadd.f32 %v7888, 1e-12
    %v7890 = vrsqrt.pop %v7889
    %v7891 = vmul.f32 %v7890, %v7889
    %v7892 = vmul.f32 %v7891, %v7890
    %v7893 = vmul.f32 0.5, %v7892
    %v7894 = vsub.f32 1.5, %v7893
    %v7895 = vmul.f32 %v7890, %v7894
    %vm7896 = vweird.f32 %v7889
    %vm7897 = vweird.f32 %v7890
    %vm7898 = vmor %vm7896, %vm7897
    %v7899 = vsel %vm7898, %v7890, %v7895
    %v7900 = vmul.f32 %v7884, %v7899
    %v7901 = vlaneseq
    %v7902 = vand.u32 %v7901, 127
    %v7903 = vld [vmem:[%s1] sm:$0xff]
    %v7904 = vmul.f32 %v7900, 14.285714
    %v7905 = vsel %vm7848, %v7904, -inf
    %7906 = vmax.xlane.f32.xlu0 %v7905
    %v7907 = vpop.xlane.xlu0 %7906
    %v7908 = vsub.f32 %v7904, %v7907
    %v7909 = vmul.f32 %v7908, 1.442695
    %v7910 = vpow.pop %v7909
    %v7911 = vsel %vm7848, %v7910, 0.0
    %7912 = vadd.xlane.f32.xlu0 %v7911
    %v7913 = vpop.xlane.xlu0 %7912
    %v7914 = vlog2.pop %v7913
    %v7915 = vmul.f32 %v7914, 0.6931472
    %v7916 = vadd.f32 %v7915, %v7907
    %7917 = vset.pattern.permute.xlu0 0
    %7918 = vperm.xlu0 %7917, %v7903
    %v7919 = vpop.permute.xlu0 %7918
    %vm7920 = vcmp.eq.s32.totalorder %v7902, %v7919
    %v7921 = vsel %vm7920, 1, 0
    %v7922 = vcvt.s32.f32 %v7921
    %v7923 = vmul.f32 %v7904, %v7922
    %v7924 = vsel %vm7848, %v7923, 0.0
    %7925 = vadd.xlane.f32.xlu0 %v7924
    %v7926 = vpop.xlane.xlu0 %7925
    %v7927 = vsub.f32 %v7916, %v7926
    %v7928 = vrot.slane %v7927, 4
    %v7929 = vadd.f32 %v7927, %v7928
    %v7930 = vrot.slane %v7929, 2
    %v7931 = vadd.f32 %v7929, %v7930
    %v7932 = vrot.slane %v7931, 1
    %v7933 = vadd.f32 %v7931, %v7932
    %v7934 = vmul.f32 %v7933, 0.125
    %v7935 = vsel %vm7848, %v7900, -inf
    %7936 = vmax.xlane.f32.xlu0 %v7935
    %v7937 = vpop.xlane.xlu0 %7936
    %vm7938 = vcmp.eq.f32.partialorder %v7900, %v7937
    %v7939 = vsel %vm7938, %v7902, 16
    %v7940 = vsel %vm7848, %v7939, 2147483647
    %v7941 = vand.u32 %v7940, 65535
    %v7942 = vshra.s32 %v7940, 16
    %v7943 = vcvt.s32.f32 %v7941
    %v7944 = vcvt.s32.f32 %v7942
    %7945 = vmin.xlane.f32.xlu0 %v7944
    %v7946 = vpop.xlane.xlu0 %7945
    %vm7947 = vcmp.eq.f32.partialorder %v7944, %v7946
    %v7948 = vsel %vm7947, %v7943, inf
    %7949 = vmin.xlane.f32.xlu0 %v7948
    %v7950 = vpop.xlane.xlu0 %7949
    %v7951 = vcvt.f32.s32 %v7950
    %v7952 = vcvt.f32.s32 %v7946
    %v7953 = vshll.u32 %v7952, 16
    %v7954 = vadd.s32 %v7953, %v7951
    %vm7955 = vcmp.eq.s32.totalorder %v7954, %v7903
    %v7956 = vsel %vm7955, 1, 0
    %v7957 = vcvt.s32.f32 %v7956
    %vm7958 = vcmask 7168
    %v7959 = vsel %vm7958, %v7957, 0.0
    %v7960 = vrot.slane %v7959, 4
    %v7961 = vadd.f32 %v7959, %v7960
    %v7962 = vrot.slane %v7961, 2
    %v7963 = vadd.f32 %v7961, %v7962
    %v7964 = vrot.slane %v7963, 1
    %v7965 = vadd.f32 %v7963, %v7964
    %vm7966 = vcmp.eq.s32.totalorder %v7902, 0
    %v7967 = vcvt.s32.f32 %v7954
    %vm7968 = vcmp.eq.s32.totalorder %v7902, 1
    %vm7969 = vcmp.eq.s32.totalorder %v7902, 2
    %7971 = vset.pattern.permute.xlu0 0
    %7972 = vperm.xlu0 %7971, %v7965
    %v7973 = vpop.permute.xlu0 %7972
    %v7975 = vsel %vm7969, %v7973, 0.0
    %v7976 = vsel %vm7968, %v7934, %v7975
    %v7977 = vsel %vm7966, %v7967, %v7976
    %7978 = vst [vmem:[#allocation28] sm:$0xff] %v7977
    // Predicated region
    $region166: #{tpu_custom_call.1} parent=1 // pred_check
      _
    $region167: #{tpu_custom_call.1} parent=1 // pred_check_branch
      %7980 = sbr.rel (0) target = $region169
    $region168: #{tpu_custom_call.1} parent=1 // pred_region
      %7982 = vsyncadd [#allocation4], 0
      %s7984 = sshll.u32 [#allocation28], 4
      %s7985 = int_to_ptr.vmem [resolvable:$true] %s7984
      %s7986 = sshll.u32 %s25, 4
      %s7987 = int_to_ptr.hbm [resolvable:$true] %s7986
      %7989 = dma.vmem_to_hbm [thread:$0]  %s7985, 128, %s7987, [#allocation4]
    $region169: #{tpu_custom_call.1} parent=1 // pred_fallthru
      _
    // Predicated region
    $region170: #{tpu_custom_call.1} parent=1 // pred_check
      _
    $region171: #{tpu_custom_call.1} parent=1 // pred_check_branch
      %7991 = sbr.rel (0) target = $region173
    $region172: #{tpu_custom_call.1} parent=1 // pred_region
      %7993 = dma.done [#allocation4], 128
    $region173: #{tpu_custom_call.1} parent=1 // pred_fallthru
      _
    %7994 = vsyncpa [#allocation3], 1
    %7995 = vsyncpa [#allocation8], 1
    %7996 = vsyncpa [#allocation11], 1
    %7997 = vsyncpa [#allocation14], 1
    %7998 = vsyncpa [#allocation17], 1
    %7999 = vsyncpa [#allocation20], 1
    %8000 = vsyncpa [#allocation23], 1
    %8001 = vsyncpa [#allocation26], 1
    %8002 = vsyncpa [#allocation4], 1
    %8003 = vsyncpa [#allocation5], 1

</llo_original>
